<compile_context>
chip_gen: v5e
topology: v5e:2x2
jax: 0.10.0
libtpu: 0.0.40
codegen_flags: <defaults>
</compile_context>

<pallas_src>
import functools

import jax
import jax.numpy as jnp
from jax import lax
from jax.experimental import pallas as pl
from jax.experimental.pallas import tpu as pltpu


def _fignn_kernel(feat_ref, wattn_ref, wout_ref, win_ref, bp_ref,
                  wih_ref, whh_ref, bih_ref, bhh_ref, out_ref,
                  *, num_fields, embed_dim, gnn_layers, block_b, mxu_dtype):
    F = num_fields
    D = embed_dim
    L = gnn_layers
    TB = block_b
    f32 = jnp.float32

    # Lane-dense activation block (TB, F*D); per-field views are lane slices.
    feat2 = feat_ref[...]                                        # (TB, F*D) f32
    feat_f = [feat2[:, f * D:(f + 1) * D] for f in range(F)]     # F x (TB, D)

    # ---------------- build_graph_with_attention (VPU only) ----------------
    # alpha[b, i, j] = leaky_relu(w_src . h_i + w_dst . h_j), diag masked -inf,
    # softmax over j.  (num_fields == 1 would give an all -inf row -> NaN,
    # exactly like the PyTorch module.)
    w_src = wattn_ref[0:1, :]                                    # (1, D)
    w_dst = wattn_ref[1:2, :]                                    # (1, D)
    s = [jnp.sum(feat_f[f] * w_src, axis=-1, keepdims=True) for f in range(F)]
    d = [jnp.sum(feat_f[f] * w_dst, axis=-1, keepdims=True) for f in range(F)]
    d_row = jnp.concatenate(d, axis=1)                           # (TB, F)

    lane = lax.broadcasted_iota(jnp.int32, (TB, F), 1)
    g_rows = []                                                  # g_rows[i]: (TB, F)
    for i in range(F):
        alpha = s[i] + d_row                                     # (TB, F)
        alpha = jnp.where(alpha > 0, alpha, 0.01 * alpha)        # LeakyReLU(0.01)
        alpha = jnp.where(lane == i, -jnp.inf, alpha)            # mask diagonal
        alpha = alpha - jnp.max(alpha, axis=-1, keepdims=True)
        e = jnp.exp(alpha)
        g_rows.append(e / jnp.sum(e, axis=-1, keepdims=True))

    # ---------------- GNN layers + GRU + residual ----------------
    w_ih = wih_ref[...]                                          # (D, 3D) fused r|z|n
    w_hh = whh_ref[...]                                          # (D, 3D)
    # Hoist bias broadcasts out of the unrolled loops (no CSE of broadcast_in_dim).
    b_ih = jnp.broadcast_to(bih_ref[...], (TB, 3 * D))
    b_hh = jnp.broadcast_to(bhh_ref[...], (TB, 3 * D))

    h_f = list(feat_f)                                           # F x (TB, D) f32
    for l in range(L):
        bias_p = jnp.broadcast_to(bp_ref[l], (TB, D))

        # h_out[f] = h[f] @ W_out[l,f]^T   (MXU: batch in M, bf16 operands, f32 acc)
        h_out = [
            jnp.dot(h_f[f].astype(mxu_dtype), wout_ref[l, f],
                    preferred_element_type=f32)
            for f in range(F)
        ]

        new_h = []
        for i in range(F):
            # aggr_i = sum_k g[:, i, k] * h_out[k]   (VPU FMA; below MXU size)
            aggr = g_rows[i][:, 0:1] * h_out[0]
            for k in range(1, F):
                aggr = aggr + g_rows[i][:, k:k + 1] * h_out[k]

            # a_i = aggr_i @ W_in[l,i]^T + bias_p    (MXU)
            a_i = jnp.dot(aggr.astype(mxu_dtype), win_ref[l, i],
                          preferred_element_type=f32) + bias_p

            # GRUCell with fused gate weights, gate order (r, z, n).
            gi = jnp.dot(a_i.astype(mxu_dtype), w_ih,
                         preferred_element_type=f32) + b_ih
            gh = jnp.dot(h_f[i].astype(mxu_dtype), w_hh,
                         preferred_element_type=f32) + b_hh
            r = jax.nn.sigmoid(gi[:, 0:D] + gh[:, 0:D])
            z = jax.nn.sigmoid(gi[:, D:2 * D] + gh[:, D:2 * D])
            n = jnp.tanh(gi[:, 2 * D:3 * D] + r * gh[:, 2 * D:3 * D])
            h_new = (1.0 - z) * n + z * h_f[i]

            new_h.append(h_new + feat_f[i])                      # use_residual=True
        h_f = new_h

    # Lane-dense (TB, F*D) store: unmasked full-width vector stores + dense DMA.
    out_ref[...] = jnp.concatenate(h_f, axis=1).astype(out_ref.dtype)


def _round_up(x, m):
    return ((x + m - 1) // m) * m


def fignn_forward(feature_emb, params, *, block_b=None, mxu_dtype=jnp.bfloat16):
    """FiGNN_Layer forward.  feature_emb: (B, F, D) float32."""
    B, F, D = feature_emb.shape
    L = params["w_out"].shape[0]

    # Batch tile: 128 is conservative w.r.t. v7x's 64 MiB VMEM; on v5e/v6e it
    # can be raised (256-512) for large B.
    if block_b is None:
        block_b = min(128, _round_up(B, 8))
    TB = _round_up(block_b, 8)                     # sublane-aligned batch tile
    Bp = _round_up(B, TB)

    feat = feature_emb
    if Bp != B:
        feat = jnp.pad(feat, ((0, Bp - B), (0, 0), (0, 0)))
    feat2 = feat.reshape(Bp, F * D)                # lane-dense; free metadata reshape

    # Per-field weights pre-transposed so the kernel computes x @ W (batch = M).
    w_out_t = jnp.swapaxes(params["w_out"], -1, -2).astype(mxu_dtype)
    w_in_t = jnp.swapaxes(params["w_in"], -1, -2).astype(mxu_dtype)
    # Fused GRU gate weights (D, 3D), gate order (r, z, n).
    w_ih = jnp.concatenate([params["w_ih"][0], params["w_ih"][1],
                            params["w_ih"][2]], axis=1).astype(mxu_dtype)
    w_hh = jnp.concatenate([params["w_hh"][0], params["w_hh"][1],
                            params["w_hh"][2]], axis=1).astype(mxu_dtype)
    b_ih = params["b_ih"].reshape(1, 3 * D)
    b_hh = params["b_hh"].reshape(1, 3 * D)

    kernel = functools.partial(
        _fignn_kernel, num_fields=F, embed_dim=D, gnn_layers=L,
        block_b=TB, mxu_dtype=mxu_dtype)

    out2 = pl.pallas_call(
        kernel,
        out_shape=jax.ShapeDtypeStruct((Bp, F * D), jnp.float32),
        grid=(Bp // TB,),
        in_specs=[
            pl.BlockSpec((TB, F * D), lambda b: (b, 0)),           # activations
            pl.BlockSpec((2, D), lambda b: (0, 0)),                # W_attn (src/dst rows)
            pl.BlockSpec((L, F, D, D), lambda b: (0, 0, 0, 0)),    # W_out^T
            pl.BlockSpec((L, F, D, D), lambda b: (0, 0, 0, 0)),    # W_in^T
            pl.BlockSpec((L, 1, D), lambda b: (0, 0, 0)),          # bias_p
            pl.BlockSpec((D, 3 * D), lambda b: (0, 0)),            # GRU W_ih fused
            pl.BlockSpec((D, 3 * D), lambda b: (0, 0)),            # GRU W_hh fused
            pl.BlockSpec((1, 3 * D), lambda b: (0, 0)),            # GRU b_ih
            pl.BlockSpec((1, 3 * D), lambda b: (0, 0)),            # GRU b_hh
        ],
        out_specs=pl.BlockSpec((TB, F * D), lambda b: (b, 0)),
        compiler_params=pltpu.CompilerParams(
            dimension_semantics=("parallel",),
            vmem_limit_bytes=32 * 1024 * 1024),
    )(feat2, params["w_attn"], w_out_t, w_in_t, params["bias_p"],
      w_ih, w_hh, b_ih, b_hh)

    return out2[:B].reshape(B, F, D)


def _reference_forward(feature_emb, params, mxu_dtype=jnp.float32):
    """Pure-JAX mirror of the PyTorch forward.  With mxu_dtype=bfloat16 it uses
    the same bf16-operand / f32-accumulation casts as the kernel."""
    B, F, D = feature_emb.shape
    L = params["w_out"].shape[0]
    f32 = jnp.float32
    cast = lambda x: x.astype(mxu_dtype)

    w_attn = params["w_attn"]                                    # (2, D)
    s = jnp.einsum('bfd,d->bf', feature_emb, w_attn[0])
    d = jnp.einsum('bfd,d->bf', feature_emb, w_attn[1])
    alpha = s[:, :, None] + d[:, None, :]                        # (B, F, F)
    alpha = jnp.where(alpha > 0, alpha, 0.01 * alpha)
    alpha = jnp.where(jnp.eye(F, dtype=bool)[None], -jnp.inf, alpha)
    g = jax.nn.softmax(alpha, axis=-1)

    def mm(x, w):
        return jnp.dot(cast(x), cast(w), preferred_element_type=f32)

    h = feature_emb
    for l in range(L):
        h_out = jnp.einsum('fij,bfj->bfi', cast(params["w_out"][l]), cast(h),
                           preferred_element_type=f32)
        aggr = jnp.einsum('bik,bkd->bid', g, h_out)
        a = jnp.einsum('fij,bfj->bfi', cast(params["w_in"][l]), cast(aggr),
                       preferred_element_type=f32) + params["bias_p"][l][None]
        a2 = a.reshape(-1, D)
        h2 = h.reshape(-1, D)
        r = jax.nn.sigmoid(mm(a2, params["w_ih"][0]) + params["b_ih"][0]
                           + mm(h2, params["w_hh"][0]) + params["b_hh"][0])
        z = jax.nn.sigmoid(mm(a2, params["w_ih"][1]) + params["b_ih"][1]
                           + mm(h2, params["w_hh"][1]) + params["b_hh"][1])
        n = jnp.tanh(mm(a2, params["w_ih"][2]) + params["b_ih"][2]
                     + r * (mm(h2, params["w_hh"][2]) + params["b_hh"][2]))
        h2 = (1.0 - z) * n + z * h2
        h = h2.reshape(B, F, D) + feature_emb
    return h


def make_params(key, num_fields, embedding_dim, gnn_layers):
    """Parameters mirroring the PyTorch module.

    Layouts:
      w_attn: (2, D)   -- row 0 = weights on the src embedding, row 1 = dst
                          (the (1, 2D) nn.Linear weight split in half).
      w_out, w_in: (L, F, D, D) in PyTorch orientation (a = W @ h_vec).
      w_ih, w_hh: (3, D, D) pre-transposed so gate = x @ w[g]; gate order (r, z, n).
      b_ih, b_hh: (3, 1, D);  bias_p: (L, 1, D).
    """
    F, D, L = num_fields, embedding_dim, gnn_layers
    ks = jax.random.split(key, 7)
    xavier_std = (2.0 / (D + D)) ** 0.5
    gru_bound = 1.0 / (D ** 0.5)
    return {
        "w_attn": jax.random.normal(ks[0], (2, D), jnp.float32) * 0.1,
        "w_out": jax.random.normal(ks[1], (L, F, D, D), jnp.float32) * xavier_std,
        "w_in": jax.random.normal(ks[2], (L, F, D, D), jnp.float32) * xavier_std,
        "bias_p": jnp.zeros((L, 1, D), jnp.float32),
        "w_ih": jax.random.uniform(ks[3], (3, D, D), jnp.float32, -gru_bound, gru_bound),
        "w_hh": jax.random.uniform(ks[4], (3, D, D), jnp.float32, -gru_bound, gru_bound),
        "b_ih": jax.random.uniform(ks[5], (3, 1, D), jnp.float32, -gru_bound, gru_bound),
        "b_hh": jax.random.uniform(ks[6], (3, 1, D), jnp.float32, -gru_bound, gru_bound),
    }


if __name__ == "__main__":
    B, F, D, L = 16, 8, 32, 3       # batch, num_fields, embedding_dim, gnn_layers
    key = jax.random.PRNGKey(0)
    k_feat, k_params = jax.random.split(key)
    feature_emb = jax.random.normal(k_feat, (B, F, D), jnp.float32)
    params = make_params(k_params, F, D, L)

    # block_b=8 -> two batch tiles: exercises the tiled pipeline and gives the
    # 'parallel' batch grid an even length for the v7x megacore.
    out = fignn_forward(feature_emb, params, block_b=8)
    out = jax.block_until_ready(out)

    ref = _reference_forward(feature_emb, params, mxu_dtype=jnp.bfloat16)
    assert out.shape == (B, F, D)
    max_err = float(jnp.max(jnp.abs(out - ref)))
    assert jnp.allclose(out, ref, atol=1e-2, rtol=1e-2), f"mismatch vs ref: {max_err}"

    print("KERNEL_OK")
</pallas_src>

<mosaic_0001>
module attributes {stable_mosaic.version = 11 : i64} {
  func.func @_fignn_kernel(%arg0: i32, %arg1: memref<8x256xf32, #tpu.memory_space<vmem>>, %arg2: memref<2x32xf32, #tpu.memory_space<vmem>>, %arg3: memref<3x8x32x32xbf16, #tpu.memory_space<vmem>>, %arg4: memref<3x8x32x32xbf16, #tpu.memory_space<vmem>>, %arg5: memref<3x1x32xf32, #tpu.memory_space<vmem>>, %arg6: memref<32x96xbf16, #tpu.memory_space<vmem>>, %arg7: memref<32x96xbf16, #tpu.memory_space<vmem>>, %arg8: memref<1x96xf32, #tpu.memory_space<vmem>>, %arg9: memref<1x96xf32, #tpu.memory_space<vmem>>, %arg10: memref<8x256xf32, #tpu.memory_space<vmem>>) attributes {dimension_semantics = [#tpu.dimension_semantics<parallel>], iteration_bounds = array<i64: 2>, scalar_prefetch = 0 : i64, scratch_operands = 0 : i64, tpu.core_type = #tpu.core_type<tc>, window_params = [{transform_indices = @transform_0, window_bounds = array<i64: 8, 256>}, {pipeline_mode = #tpu.pipeline_mode<synchronous>, transform_indices = @transform_1, window_bounds = array<i64: 2, 32>}, {pipeline_mode = #tpu.pipeline_mode<synchronous>, transform_indices = @transform_2, window_bounds = array<i64: 3, 8, 32, 32>}, {pipeline_mode = #tpu.pipeline_mode<synchronous>, transform_indices = @transform_3, window_bounds = array<i64: 3, 8, 32, 32>}, {pipeline_mode = #tpu.pipeline_mode<synchronous>, transform_indices = @transform_4, window_bounds = array<i64: 3, 1, 32>}, {pipeline_mode = #tpu.pipeline_mode<synchronous>, transform_indices = @transform_5, window_bounds = array<i64: 32, 96>}, {pipeline_mode = #tpu.pipeline_mode<synchronous>, transform_indices = @transform_6, window_bounds = array<i64: 32, 96>}, {pipeline_mode = #tpu.pipeline_mode<synchronous>, transform_indices = @transform_7, window_bounds = array<i64: 1, 96>}, {pipeline_mode = #tpu.pipeline_mode<synchronous>, transform_indices = @transform_8, window_bounds = array<i64: 1, 96>}, {transform_indices = @transform_9, window_bounds = array<i64: 8, 256>}]} {
    %c0 = arith.constant 0 : index
    %c0_0 = arith.constant 0 : index
    %0 = vector.load %arg1[%c0, %c0_0] : memref<8x256xf32, #tpu.memory_space<vmem>>, vector<8x256xf32>
    %1 = vector.extract_strided_slice %0 {offsets = [0, 0], sizes = [8, 32], strides = [1, 1]} : vector<8x256xf32> to vector<8x32xf32>
    %2 = vector.extract_strided_slice %0 {offsets = [0, 32], sizes = [8, 32], strides = [1, 1]} : vector<8x256xf32> to vector<8x32xf32>
    %3 = vector.extract_strided_slice %0 {offsets = [0, 64], sizes = [8, 32], strides = [1, 1]} : vector<8x256xf32> to vector<8x32xf32>
    %4 = vector.extract_strided_slice %0 {offsets = [0, 96], sizes = [8, 32], strides = [1, 1]} : vector<8x256xf32> to vector<8x32xf32>
    %5 = vector.extract_strided_slice %0 {offsets = [0, 128], sizes = [8, 32], strides = [1, 1]} : vector<8x256xf32> to vector<8x32xf32>
    %6 = vector.extract_strided_slice %0 {offsets = [0, 160], sizes = [8, 32], strides = [1, 1]} : vector<8x256xf32> to vector<8x32xf32>
    %7 = vector.extract_strided_slice %0 {offsets = [0, 192], sizes = [8, 32], strides = [1, 1]} : vector<8x256xf32> to vector<8x32xf32>
    %8 = vector.extract_strided_slice %0 {offsets = [0, 224], sizes = [8, 32], strides = [1, 1]} : vector<8x256xf32> to vector<8x32xf32>
    %c0_1 = arith.constant 0 : index
    %c0_2 = arith.constant 0 : index
    %9 = vector.load %arg2[%c0_1, %c0_2] : memref<2x32xf32, #tpu.memory_space<vmem>>, vector<1x32xf32>
    %c1 = arith.constant 1 : index
    %c0_3 = arith.constant 0 : index
    %10 = vector.load %arg2[%c1, %c0_3] : memref<2x32xf32, #tpu.memory_space<vmem>>, vector<1x32xf32>
    %11 = vector.broadcast %9 : vector<1x32xf32> to vector<8x32xf32>
    %12 = arith.mulf %1, %11 : vector<8x32xf32>
    %cst = arith.constant dense<0.000000e+00> : vector<8xf32>
    %13 = vector.multi_reduction <add>, %12, %cst [1] : vector<8x32xf32> to vector<8xf32>
    %14 = vector.shape_cast %13 : vector<8xf32> to vector<8x1xf32>
    %15 = vector.broadcast %9 : vector<1x32xf32> to vector<8x32xf32>
    %16 = arith.mulf %2, %15 : vector<8x32xf32>
    %cst_4 = arith.constant dense<0.000000e+00> : vector<8xf32>
    %17 = vector.multi_reduction <add>, %16, %cst_4 [1] : vector<8x32xf32> to vector<8xf32>
    %18 = vector.shape_cast %17 : vector<8xf32> to vector<8x1xf32>
    %19 = vector.broadcast %9 : vector<1x32xf32> to vector<8x32xf32>
    %20 = arith.mulf %3, %19 : vector<8x32xf32>
    %cst_5 = arith.constant dense<0.000000e+00> : vector<8xf32>
    %21 = vector.multi_reduction <add>, %20, %cst_5 [1] : vector<8x32xf32> to vector<8xf32>
    %22 = vector.shape_cast %21 : vector<8xf32> to vector<8x1xf32>
    %23 = vector.broadcast %9 : vector<1x32xf32> to vector<8x32xf32>
    %24 = arith.mulf %4, %23 : vector<8x32xf32>
    %cst_6 = arith.constant dense<0.000000e+00> : vector<8xf32>
    %25 = vector.multi_reduction <add>, %24, %cst_6 [1] : vector<8x32xf32> to vector<8xf32>
    %26 = vector.shape_cast %25 : vector<8xf32> to vector<8x1xf32>
    %27 = vector.broadcast %9 : vector<1x32xf32> to vector<8x32xf32>
    %28 = arith.mulf %5, %27 : vector<8x32xf32>
    %cst_7 = arith.constant dense<0.000000e+00> : vector<8xf32>
    %29 = vector.multi_reduction <add>, %28, %cst_7 [1] : vector<8x32xf32> to vector<8xf32>
    %30 = vector.shape_cast %29 : vector<8xf32> to vector<8x1xf32>
    %31 = vector.broadcast %9 : vector<1x32xf32> to vector<8x32xf32>
    %32 = arith.mulf %6, %31 : vector<8x32xf32>
    %cst_8 = arith.constant dense<0.000000e+00> : vector<8xf32>
    %33 = vector.multi_reduction <add>, %32, %cst_8 [1] : vector<8x32xf32> to vector<8xf32>
    %34 = vector.shape_cast %33 : vector<8xf32> to vector<8x1xf32>
    %35 = vector.broadcast %9 : vector<1x32xf32> to vector<8x32xf32>
    %36 = arith.mulf %7, %35 : vector<8x32xf32>
    %cst_9 = arith.constant dense<0.000000e+00> : vector<8xf32>
    %37 = vector.multi_reduction <add>, %36, %cst_9 [1] : vector<8x32xf32> to vector<8xf32>
    %38 = vector.shape_cast %37 : vector<8xf32> to vector<8x1xf32>
    %39 = vector.broadcast %9 : vector<1x32xf32> to vector<8x32xf32>
    %40 = arith.mulf %8, %39 : vector<8x32xf32>
    %cst_10 = arith.constant dense<0.000000e+00> : vector<8xf32>
    %41 = vector.multi_reduction <add>, %40, %cst_10 [1] : vector<8x32xf32> to vector<8xf32>
    %42 = vector.shape_cast %41 : vector<8xf32> to vector<8x1xf32>
    %43 = vector.broadcast %10 : vector<1x32xf32> to vector<8x32xf32>
    %44 = arith.mulf %1, %43 : vector<8x32xf32>
    %cst_11 = arith.constant dense<0.000000e+00> : vector<8xf32>
    %45 = vector.multi_reduction <add>, %44, %cst_11 [1] : vector<8x32xf32> to vector<8xf32>
    %46 = vector.shape_cast %45 : vector<8xf32> to vector<8x1xf32>
    %47 = vector.broadcast %10 : vector<1x32xf32> to vector<8x32xf32>
    %48 = arith.mulf %2, %47 : vector<8x32xf32>
    %cst_12 = arith.constant dense<0.000000e+00> : vector<8xf32>
    %49 = vector.multi_reduction <add>, %48, %cst_12 [1] : vector<8x32xf32> to vector<8xf32>
    %50 = vector.shape_cast %49 : vector<8xf32> to vector<8x1xf32>
    %51 = vector.broadcast %10 : vector<1x32xf32> to vector<8x32xf32>
    %52 = arith.mulf %3, %51 : vector<8x32xf32>
    %cst_13 = arith.constant dense<0.000000e+00> : vector<8xf32>
    %53 = vector.multi_reduction <add>, %52, %cst_13 [1] : vector<8x32xf32> to vector<8xf32>
    %54 = vector.shape_cast %53 : vector<8xf32> to vector<8x1xf32>
    %55 = vector.broadcast %10 : vector<1x32xf32> to vector<8x32xf32>
    %56 = arith.mulf %4, %55 : vector<8x32xf32>
    %cst_14 = arith.constant dense<0.000000e+00> : vector<8xf32>
    %57 = vector.multi_reduction <add>, %56, %cst_14 [1] : vector<8x32xf32> to vector<8xf32>
    %58 = vector.shape_cast %57 : vector<8xf32> to vector<8x1xf32>
    %59 = vector.broadcast %10 : vector<1x32xf32> to vector<8x32xf32>
    %60 = arith.mulf %5, %59 : vector<8x32xf32>
    %cst_15 = arith.constant dense<0.000000e+00> : vector<8xf32>
    %61 = vector.multi_reduction <add>, %60, %cst_15 [1] : vector<8x32xf32> to vector<8xf32>
    %62 = vector.shape_cast %61 : vector<8xf32> to vector<8x1xf32>
    %63 = vector.broadcast %10 : vector<1x32xf32> to vector<8x32xf32>
    %64 = arith.mulf %6, %63 : vector<8x32xf32>
    %cst_16 = arith.constant dense<0.000000e+00> : vector<8xf32>
    %65 = vector.multi_reduction <add>, %64, %cst_16 [1] : vector<8x32xf32> to vector<8xf32>
    %66 = vector.shape_cast %65 : vector<8xf32> to vector<8x1xf32>
    %67 = vector.broadcast %10 : vector<1x32xf32> to vector<8x32xf32>
    %68 = arith.mulf %7, %67 : vector<8x32xf32>
    %cst_17 = arith.constant dense<0.000000e+00> : vector<8xf32>
    %69 = vector.multi_reduction <add>, %68, %cst_17 [1] : vector<8x32xf32> to vector<8xf32>
    %70 = vector.shape_cast %69 : vector<8xf32> to vector<8x1xf32>
    %71 = vector.broadcast %10 : vector<1x32xf32> to vector<8x32xf32>
    %72 = arith.mulf %8, %71 : vector<8x32xf32>
    %cst_18 = arith.constant dense<0.000000e+00> : vector<8xf32>
    %73 = vector.multi_reduction <add>, %72, %cst_18 [1] : vector<8x32xf32> to vector<8xf32>
    %74 = vector.shape_cast %73 : vector<8xf32> to vector<8x1xf32>
    %75 = tpu.concatenate %46, %50, %54, %58, %62, %66, %70, %74 in 1 : vector<8x1xf32>, vector<8x1xf32>, vector<8x1xf32>, vector<8x1xf32>, vector<8x1xf32>, vector<8x1xf32>, vector<8x1xf32>, vector<8x1xf32> -> vector<8x8xf32>
    %76 = tpu.iota {dimensions = array<i32: 1>} : vector<8x8xi32>
    %77 = vector.broadcast %14 : vector<8x1xf32> to vector<8x8xf32>
    %78 = arith.addf %77, %75 : vector<8x8xf32>
    %cst_19 = arith.constant 0.000000e+00 : f32
    %79 = vector.broadcast %cst_19 : f32 to vector<8x8xf32>
    %80 = arith.cmpf ogt, %78, %79 : vector<8x8xf32>
    %cst_20 = arith.constant 0.00999999977 : f32
    %81 = vector.broadcast %cst_20 : f32 to vector<8x8xf32>
    %82 = arith.mulf %81, %78 : vector<8x8xf32>
    %83 = arith.select %80, %78, %82 : vector<8x8xi1>, vector<8x8xf32>
    %c0_i32 = arith.constant 0 : i32
    %84 = vector.broadcast %c0_i32 : i32 to vector<8x8xi32>
    %85 = arith.cmpi eq, %76, %84 : vector<8x8xi32>
    %cst_21 = arith.constant 0xFF800000 : f32
    %86 = vector.broadcast %cst_21 : f32 to vector<8x8xf32>
    %87 = arith.select %85, %86, %83 : vector<8x8xi1>, vector<8x8xf32>
    %cst_22 = arith.constant dense<0xFF800000> : vector<8xf32>
    %88 = vector.multi_reduction <maximumf>, %87, %cst_22 [1] : vector<8x8xf32> to vector<8xf32>
    %89 = vector.shape_cast %88 : vector<8xf32> to vector<8x1xf32>
    %90 = vector.broadcast %89 : vector<8x1xf32> to vector<8x8xf32>
    %91 = arith.subf %87, %90 : vector<8x8xf32>
    %92 = math.exp %91 : vector<8x8xf32>
    %cst_23 = arith.constant dense<0.000000e+00> : vector<8xf32>
    %93 = vector.multi_reduction <add>, %92, %cst_23 [1] : vector<8x8xf32> to vector<8xf32>
    %94 = vector.shape_cast %93 : vector<8xf32> to vector<8x1xf32>
    %95 = vector.broadcast %94 : vector<8x1xf32> to vector<8x8xf32>
    %96 = arith.divf %92, %95 : vector<8x8xf32>
    %97 = vector.broadcast %18 : vector<8x1xf32> to vector<8x8xf32>
    %98 = arith.addf %97, %75 : vector<8x8xf32>
    %cst_24 = arith.constant 0.000000e+00 : f32
    %99 = vector.broadcast %cst_24 : f32 to vector<8x8xf32>
    %100 = arith.cmpf ogt, %98, %99 : vector<8x8xf32>
    %cst_25 = arith.constant 0.00999999977 : f32
    %101 = vector.broadcast %cst_25 : f32 to vector<8x8xf32>
    %102 = arith.mulf %101, %98 : vector<8x8xf32>
    %103 = arith.select %100, %98, %102 : vector<8x8xi1>, vector<8x8xf32>
    %c1_i32 = arith.constant 1 : i32
    %104 = vector.broadcast %c1_i32 : i32 to vector<8x8xi32>
    %105 = arith.cmpi eq, %76, %104 : vector<8x8xi32>
    %cst_26 = arith.constant 0xFF800000 : f32
    %106 = vector.broadcast %cst_26 : f32 to vector<8x8xf32>
    %107 = arith.select %105, %106, %103 : vector<8x8xi1>, vector<8x8xf32>
    %cst_27 = arith.constant dense<0xFF800000> : vector<8xf32>
    %108 = vector.multi_reduction <maximumf>, %107, %cst_27 [1] : vector<8x8xf32> to vector<8xf32>
    %109 = vector.shape_cast %108 : vector<8xf32> to vector<8x1xf32>
    %110 = vector.broadcast %109 : vector<8x1xf32> to vector<8x8xf32>
    %111 = arith.subf %107, %110 : vector<8x8xf32>
    %112 = math.exp %111 : vector<8x8xf32>
    %cst_28 = arith.constant dense<0.000000e+00> : vector<8xf32>
    %113 = vector.multi_reduction <add>, %112, %cst_28 [1] : vector<8x8xf32> to vector<8xf32>
    %114 = vector.shape_cast %113 : vector<8xf32> to vector<8x1xf32>
    %115 = vector.broadcast %114 : vector<8x1xf32> to vector<8x8xf32>
    %116 = arith.divf %112, %115 : vector<8x8xf32>
    %117 = vector.broadcast %22 : vector<8x1xf32> to vector<8x8xf32>
    %118 = arith.addf %117, %75 : vector<8x8xf32>
    %cst_29 = arith.constant 0.000000e+00 : f32
    %119 = vector.broadcast %cst_29 : f32 to vector<8x8xf32>
    %120 = arith.cmpf ogt, %118, %119 : vector<8x8xf32>
    %cst_30 = arith.constant 0.00999999977 : f32
    %121 = vector.broadcast %cst_30 : f32 to vector<8x8xf32>
    %122 = arith.mulf %121, %118 : vector<8x8xf32>
    %123 = arith.select %120, %118, %122 : vector<8x8xi1>, vector<8x8xf32>
    %c2_i32 = arith.constant 2 : i32
    %124 = vector.broadcast %c2_i32 : i32 to vector<8x8xi32>
    %125 = arith.cmpi eq, %76, %124 : vector<8x8xi32>
    %cst_31 = arith.constant 0xFF800000 : f32
    %126 = vector.broadcast %cst_31 : f32 to vector<8x8xf32>
    %127 = arith.select %125, %126, %123 : vector<8x8xi1>, vector<8x8xf32>
    %cst_32 = arith.constant dense<0xFF800000> : vector<8xf32>
    %128 = vector.multi_reduction <maximumf>, %127, %cst_32 [1] : vector<8x8xf32> to vector<8xf32>
    %129 = vector.shape_cast %128 : vector<8xf32> to vector<8x1xf32>
    %130 = vector.broadcast %129 : vector<8x1xf32> to vector<8x8xf32>
    %131 = arith.subf %127, %130 : vector<8x8xf32>
    %132 = math.exp %131 : vector<8x8xf32>
    %cst_33 = arith.constant dense<0.000000e+00> : vector<8xf32>
    %133 = vector.multi_reduction <add>, %132, %cst_33 [1] : vector<8x8xf32> to vector<8xf32>
    %134 = vector.shape_cast %133 : vector<8xf32> to vector<8x1xf32>
    %135 = vector.broadcast %134 : vector<8x1xf32> to vector<8x8xf32>
    %136 = arith.divf %132, %135 : vector<8x8xf32>
    %137 = vector.broadcast %26 : vector<8x1xf32> to vector<8x8xf32>
    %138 = arith.addf %137, %75 : vector<8x8xf32>
    %cst_34 = arith.constant 0.000000e+00 : f32
    %139 = vector.broadcast %cst_34 : f32 to vector<8x8xf32>
    %140 = arith.cmpf ogt, %138, %139 : vector<8x8xf32>
    %cst_35 = arith.constant 0.00999999977 : f32
    %141 = vector.broadcast %cst_35 : f32 to vector<8x8xf32>
    %142 = arith.mulf %141, %138 : vector<8x8xf32>
    %143 = arith.select %140, %138, %142 : vector<8x8xi1>, vector<8x8xf32>
    %c3_i32 = arith.constant 3 : i32
    %144 = vector.broadcast %c3_i32 : i32 to vector<8x8xi32>
    %145 = arith.cmpi eq, %76, %144 : vector<8x8xi32>
    %cst_36 = arith.constant 0xFF800000 : f32
    %146 = vector.broadcast %cst_36 : f32 to vector<8x8xf32>
    %147 = arith.select %145, %146, %143 : vector<8x8xi1>, vector<8x8xf32>
    %cst_37 = arith.constant dense<0xFF800000> : vector<8xf32>
    %148 = vector.multi_reduction <maximumf>, %147, %cst_37 [1] : vector<8x8xf32> to vector<8xf32>
    %149 = vector.shape_cast %148 : vector<8xf32> to vector<8x1xf32>
    %150 = vector.broadcast %149 : vector<8x1xf32> to vector<8x8xf32>
    %151 = arith.subf %147, %150 : vector<8x8xf32>
    %152 = math.exp %151 : vector<8x8xf32>
    %cst_38 = arith.constant dense<0.000000e+00> : vector<8xf32>
    %153 = vector.multi_reduction <add>, %152, %cst_38 [1] : vector<8x8xf32> to vector<8xf32>
    %154 = vector.shape_cast %153 : vector<8xf32> to vector<8x1xf32>
    %155 = vector.broadcast %154 : vector<8x1xf32> to vector<8x8xf32>
    %156 = arith.divf %152, %155 : vector<8x8xf32>
    %157 = vector.broadcast %30 : vector<8x1xf32> to vector<8x8xf32>
    %158 = arith.addf %157, %75 : vector<8x8xf32>
    %cst_39 = arith.constant 0.000000e+00 : f32
    %159 = vector.broadcast %cst_39 : f32 to vector<8x8xf32>
    %160 = arith.cmpf ogt, %158, %159 : vector<8x8xf32>
    %cst_40 = arith.constant 0.00999999977 : f32
    %161 = vector.broadcast %cst_40 : f32 to vector<8x8xf32>
    %162 = arith.mulf %161, %158 : vector<8x8xf32>
    %163 = arith.select %160, %158, %162 : vector<8x8xi1>, vector<8x8xf32>
    %c4_i32 = arith.constant 4 : i32
    %164 = vector.broadcast %c4_i32 : i32 to vector<8x8xi32>
    %165 = arith.cmpi eq, %76, %164 : vector<8x8xi32>
    %cst_41 = arith.constant 0xFF800000 : f32
    %166 = vector.broadcast %cst_41 : f32 to vector<8x8xf32>
    %167 = arith.select %165, %166, %163 : vector<8x8xi1>, vector<8x8xf32>
    %cst_42 = arith.constant dense<0xFF800000> : vector<8xf32>
    %168 = vector.multi_reduction <maximumf>, %167, %cst_42 [1] : vector<8x8xf32> to vector<8xf32>
    %169 = vector.shape_cast %168 : vector<8xf32> to vector<8x1xf32>
    %170 = vector.broadcast %169 : vector<8x1xf32> to vector<8x8xf32>
    %171 = arith.subf %167, %170 : vector<8x8xf32>
    %172 = math.exp %171 : vector<8x8xf32>
    %cst_43 = arith.constant dense<0.000000e+00> : vector<8xf32>
    %173 = vector.multi_reduction <add>, %172, %cst_43 [1] : vector<8x8xf32> to vector<8xf32>
    %174 = vector.shape_cast %173 : vector<8xf32> to vector<8x1xf32>
    %175 = vector.broadcast %174 : vector<8x1xf32> to vector<8x8xf32>
    %176 = arith.divf %172, %175 : vector<8x8xf32>
    %177 = vector.broadcast %34 : vector<8x1xf32> to vector<8x8xf32>
    %178 = arith.addf %177, %75 : vector<8x8xf32>
    %cst_44 = arith.constant 0.000000e+00 : f32
    %179 = vector.broadcast %cst_44 : f32 to vector<8x8xf32>
    %180 = arith.cmpf ogt, %178, %179 : vector<8x8xf32>
    %cst_45 = arith.constant 0.00999999977 : f32
    %181 = vector.broadcast %cst_45 : f32 to vector<8x8xf32>
    %182 = arith.mulf %181, %178 : vector<8x8xf32>
    %183 = arith.select %180, %178, %182 : vector<8x8xi1>, vector<8x8xf32>
    %c5_i32 = arith.constant 5 : i32
    %184 = vector.broadcast %c5_i32 : i32 to vector<8x8xi32>
    %185 = arith.cmpi eq, %76, %184 : vector<8x8xi32>
    %cst_46 = arith.constant 0xFF800000 : f32
    %186 = vector.broadcast %cst_46 : f32 to vector<8x8xf32>
    %187 = arith.select %185, %186, %183 : vector<8x8xi1>, vector<8x8xf32>
    %cst_47 = arith.constant dense<0xFF800000> : vector<8xf32>
    %188 = vector.multi_reduction <maximumf>, %187, %cst_47 [1] : vector<8x8xf32> to vector<8xf32>
    %189 = vector.shape_cast %188 : vector<8xf32> to vector<8x1xf32>
    %190 = vector.broadcast %189 : vector<8x1xf32> to vector<8x8xf32>
    %191 = arith.subf %187, %190 : vector<8x8xf32>
    %192 = math.exp %191 : vector<8x8xf32>
    %cst_48 = arith.constant dense<0.000000e+00> : vector<8xf32>
    %193 = vector.multi_reduction <add>, %192, %cst_48 [1] : vector<8x8xf32> to vector<8xf32>
    %194 = vector.shape_cast %193 : vector<8xf32> to vector<8x1xf32>
    %195 = vector.broadcast %194 : vector<8x1xf32> to vector<8x8xf32>
    %196 = arith.divf %192, %195 : vector<8x8xf32>
    %197 = vector.broadcast %38 : vector<8x1xf32> to vector<8x8xf32>
    %198 = arith.addf %197, %75 : vector<8x8xf32>
    %cst_49 = arith.constant 0.000000e+00 : f32
    %199 = vector.broadcast %cst_49 : f32 to vector<8x8xf32>
    %200 = arith.cmpf ogt, %198, %199 : vector<8x8xf32>
    %cst_50 = arith.constant 0.00999999977 : f32
    %201 = vector.broadcast %cst_50 : f32 to vector<8x8xf32>
    %202 = arith.mulf %201, %198 : vector<8x8xf32>
    %203 = arith.select %200, %198, %202 : vector<8x8xi1>, vector<8x8xf32>
    %c6_i32 = arith.constant 6 : i32
    %204 = vector.broadcast %c6_i32 : i32 to vector<8x8xi32>
    %205 = arith.cmpi eq, %76, %204 : vector<8x8xi32>
    %cst_51 = arith.constant 0xFF800000 : f32
    %206 = vector.broadcast %cst_51 : f32 to vector<8x8xf32>
    %207 = arith.select %205, %206, %203 : vector<8x8xi1>, vector<8x8xf32>
    %cst_52 = arith.constant dense<0xFF800000> : vector<8xf32>
    %208 = vector.multi_reduction <maximumf>, %207, %cst_52 [1] : vector<8x8xf32> to vector<8xf32>
    %209 = vector.shape_cast %208 : vector<8xf32> to vector<8x1xf32>
    %210 = vector.broadcast %209 : vector<8x1xf32> to vector<8x8xf32>
    %211 = arith.subf %207, %210 : vector<8x8xf32>
    %212 = math.exp %211 : vector<8x8xf32>
    %cst_53 = arith.constant dense<0.000000e+00> : vector<8xf32>
    %213 = vector.multi_reduction <add>, %212, %cst_53 [1] : vector<8x8xf32> to vector<8xf32>
    %214 = vector.shape_cast %213 : vector<8xf32> to vector<8x1xf32>
    %215 = vector.broadcast %214 : vector<8x1xf32> to vector<8x8xf32>
    %216 = arith.divf %212, %215 : vector<8x8xf32>
    %217 = vector.broadcast %42 : vector<8x1xf32> to vector<8x8xf32>
    %218 = arith.addf %217, %75 : vector<8x8xf32>
    %cst_54 = arith.constant 0.000000e+00 : f32
    %219 = vector.broadcast %cst_54 : f32 to vector<8x8xf32>
    %220 = arith.cmpf ogt, %218, %219 : vector<8x8xf32>
    %cst_55 = arith.constant 0.00999999977 : f32
    %221 = vector.broadcast %cst_55 : f32 to vector<8x8xf32>
    %222 = arith.mulf %221, %218 : vector<8x8xf32>
    %223 = arith.select %220, %218, %222 : vector<8x8xi1>, vector<8x8xf32>
    %c7_i32 = arith.constant 7 : i32
    %224 = vector.broadcast %c7_i32 : i32 to vector<8x8xi32>
    %225 = arith.cmpi eq, %76, %224 : vector<8x8xi32>
    %cst_56 = arith.constant 0xFF800000 : f32
    %226 = vector.broadcast %cst_56 : f32 to vector<8x8xf32>
    %227 = arith.select %225, %226, %223 : vector<8x8xi1>, vector<8x8xf32>
    %cst_57 = arith.constant dense<0xFF800000> : vector<8xf32>
    %228 = vector.multi_reduction <maximumf>, %227, %cst_57 [1] : vector<8x8xf32> to vector<8xf32>
    %229 = vector.shape_cast %228 : vector<8xf32> to vector<8x1xf32>
    %230 = vector.broadcast %229 : vector<8x1xf32> to vector<8x8xf32>
    %231 = arith.subf %227, %230 : vector<8x8xf32>
    %232 = math.exp %231 : vector<8x8xf32>
    %cst_58 = arith.constant dense<0.000000e+00> : vector<8xf32>
    %233 = vector.multi_reduction <add>, %232, %cst_58 [1] : vector<8x8xf32> to vector<8xf32>
    %234 = vector.shape_cast %233 : vector<8xf32> to vector<8x1xf32>
    %235 = vector.broadcast %234 : vector<8x1xf32> to vector<8x8xf32>
    %236 = arith.divf %232, %235 : vector<8x8xf32>
    %c0_59 = arith.constant 0 : index
    %c0_60 = arith.constant 0 : index
    %237 = vector.load %arg6[%c0_59, %c0_60] : memref<32x96xbf16, #tpu.memory_space<vmem>>, vector<32x96xbf16>
    %c0_61 = arith.constant 0 : index
    %c0_62 = arith.constant 0 : index
    %238 = vector.load %arg7[%c0_61, %c0_62] : memref<32x96xbf16, #tpu.memory_space<vmem>>, vector<32x96xbf16>
    %c0_63 = arith.constant 0 : index
    %c0_64 = arith.constant 0 : index
    %239 = vector.load %arg8[%c0_63, %c0_64] : memref<1x96xf32, #tpu.memory_space<vmem>>, vector<1x96xf32>
    %240 = vector.shape_cast %239 : vector<1x96xf32> to vector<1x96xf32>
    %241 = vector.broadcast %240 : vector<1x96xf32> to vector<8x96xf32>
    %c0_65 = arith.constant 0 : index
    %c0_66 = arith.constant 0 : index
    %242 = vector.load %arg9[%c0_65, %c0_66] : memref<1x96xf32, #tpu.memory_space<vmem>>, vector<1x96xf32>
    %243 = vector.shape_cast %242 : vector<1x96xf32> to vector<1x96xf32>
    %244 = vector.broadcast %243 : vector<1x96xf32> to vector<8x96xf32>
    %c0_67 = arith.constant 0 : index
    %c0_68 = arith.constant 0 : index
    %c0_69 = arith.constant 0 : index
    %245 = vector.load %arg5[%c0_67, %c0_68, %c0_69] : memref<3x1x32xf32, #tpu.memory_space<vmem>>, vector<1x1x32xf32>
    %246 = vector.shape_cast %245 : vector<1x1x32xf32> to vector<1x32xf32>
    %247 = vector.shape_cast %246 : vector<1x32xf32> to vector<1x32xf32>
    %248 = vector.broadcast %247 : vector<1x32xf32> to vector<8x32xf32>
    %249 = arith.truncf %1 : vector<8x32xf32> to vector<8x32xbf16>
    %c0_70 = arith.constant 0 : index
    %c0_71 = arith.constant 0 : index
    %c0_72 = arith.constant 0 : index
    %c0_73 = arith.constant 0 : index
    %250 = vector.load %arg3[%c0_70, %c0_71, %c0_72, %c0_73] : memref<3x8x32x32xbf16, #tpu.memory_space<vmem>>, vector<1x1x32x32xbf16>
    %251 = vector.shape_cast %250 : vector<1x1x32x32xbf16> to vector<32x32xbf16>
    %cst_74 = arith.constant dense<0.000000e+00> : vector<8x32xf32>
    %252 = tpu.matmul %249, %251, %cst_74 {dimension_numbers = #tpu.dot_dimension_numbers<[1], [0], [0], [1], [0, 0, 1, 1], [], []>} : vector<8x32xbf16>, vector<32x32xbf16>, vector<8x32xf32> -> vector<8x32xf32>
    %253 = arith.truncf %2 : vector<8x32xf32> to vector<8x32xbf16>
    %c0_75 = arith.constant 0 : index
    %c1_76 = arith.constant 1 : index
    %c0_77 = arith.constant 0 : index
    %c0_78 = arith.constant 0 : index
    %254 = vector.load %arg3[%c0_75, %c1_76, %c0_77, %c0_78] : memref<3x8x32x32xbf16, #tpu.memory_space<vmem>>, vector<1x1x32x32xbf16>
    %255 = vector.shape_cast %254 : vector<1x1x32x32xbf16> to vector<32x32xbf16>
    %cst_79 = arith.constant dense<0.000000e+00> : vector<8x32xf32>
    %256 = tpu.matmul %253, %255, %cst_79 {dimension_numbers = #tpu.dot_dimension_numbers<[1], [0], [0], [1], [0, 0, 1, 1], [], []>} : vector<8x32xbf16>, vector<32x32xbf16>, vector<8x32xf32> -> vector<8x32xf32>
    %257 = arith.truncf %3 : vector<8x32xf32> to vector<8x32xbf16>
    %c0_80 = arith.constant 0 : index
    %c2 = arith.constant 2 : index
    %c0_81 = arith.constant 0 : index
    %c0_82 = arith.constant 0 : index
    %258 = vector.load %arg3[%c0_80, %c2, %c0_81, %c0_82] : memref<3x8x32x32xbf16, #tpu.memory_space<vmem>>, vector<1x1x32x32xbf16>
    %259 = vector.shape_cast %258 : vector<1x1x32x32xbf16> to vector<32x32xbf16>
    %cst_83 = arith.constant dense<0.000000e+00> : vector<8x32xf32>
    %260 = tpu.matmul %257, %259, %cst_83 {dimension_numbers = #tpu.dot_dimension_numbers<[1], [0], [0], [1], [0, 0, 1, 1], [], []>} : vector<8x32xbf16>, vector<32x32xbf16>, vector<8x32xf32> -> vector<8x32xf32>
    %261 = arith.truncf %4 : vector<8x32xf32> to vector<8x32xbf16>
    %c0_84 = arith.constant 0 : index
    %c3 = arith.constant 3 : index
    %c0_85 = arith.constant 0 : index
    %c0_86 = arith.constant 0 : index
    %262 = vector.load %arg3[%c0_84, %c3, %c0_85, %c0_86] : memref<3x8x32x32xbf16, #tpu.memory_space<vmem>>, vector<1x1x32x32xbf16>
    %263 = vector.shape_cast %262 : vector<1x1x32x32xbf16> to vector<32x32xbf16>
    %cst_87 = arith.constant dense<0.000000e+00> : vector<8x32xf32>
    %264 = tpu.matmul %261, %263, %cst_87 {dimension_numbers = #tpu.dot_dimension_numbers<[1], [0], [0], [1], [0, 0, 1, 1], [], []>} : vector<8x32xbf16>, vector<32x32xbf16>, vector<8x32xf32> -> vector<8x32xf32>
    %265 = arith.truncf %5 : vector<8x32xf32> to vector<8x32xbf16>
    %c0_88 = arith.constant 0 : index
    %c4 = arith.constant 4 : index
    %c0_89 = arith.constant 0 : index
    %c0_90 = arith.constant 0 : index
    %266 = vector.load %arg3[%c0_88, %c4, %c0_89, %c0_90] : memref<3x8x32x32xbf16, #tpu.memory_space<vmem>>, vector<1x1x32x32xbf16>
    %267 = vector.shape_cast %266 : vector<1x1x32x32xbf16> to vector<32x32xbf16>
    %cst_91 = arith.constant dense<0.000000e+00> : vector<8x32xf32>
    %268 = tpu.matmul %265, %267, %cst_91 {dimension_numbers = #tpu.dot_dimension_numbers<[1], [0], [0], [1], [0, 0, 1, 1], [], []>} : vector<8x32xbf16>, vector<32x32xbf16>, vector<8x32xf32> -> vector<8x32xf32>
    %269 = arith.truncf %6 : vector<8x32xf32> to vector<8x32xbf16>
    %c0_92 = arith.constant 0 : index
    %c5 = arith.constant 5 : index
    %c0_93 = arith.constant 0 : index
    %c0_94 = arith.constant 0 : index
    %270 = vector.load %arg3[%c0_92, %c5, %c0_93, %c0_94] : memref<3x8x32x32xbf16, #tpu.memory_space<vmem>>, vector<1x1x32x32xbf16>
    %271 = vector.shape_cast %270 : vector<1x1x32x32xbf16> to vector<32x32xbf16>
    %cst_95 = arith.constant dense<0.000000e+00> : vector<8x32xf32>
    %272 = tpu.matmul %269, %271, %cst_95 {dimension_numbers = #tpu.dot_dimension_numbers<[1], [0], [0], [1], [0, 0, 1, 1], [], []>} : vector<8x32xbf16>, vector<32x32xbf16>, vector<8x32xf32> -> vector<8x32xf32>
    %273 = arith.truncf %7 : vector<8x32xf32> to vector<8x32xbf16>
    %c0_96 = arith.constant 0 : index
    %c6 = arith.constant 6 : index
    %c0_97 = arith.constant 0 : index
    %c0_98 = arith.constant 0 : index
    %274 = vector.load %arg3[%c0_96, %c6, %c0_97, %c0_98] : memref<3x8x32x32xbf16, #tpu.memory_space<vmem>>, vector<1x1x32x32xbf16>
    %275 = vector.shape_cast %274 : vector<1x1x32x32xbf16> to vector<32x32xbf16>
    %cst_99 = arith.constant dense<0.000000e+00> : vector<8x32xf32>
    %276 = tpu.matmul %273, %275, %cst_99 {dimension_numbers = #tpu.dot_dimension_numbers<[1], [0], [0], [1], [0, 0, 1, 1], [], []>} : vector<8x32xbf16>, vector<32x32xbf16>, vector<8x32xf32> -> vector<8x32xf32>
    %277 = arith.truncf %8 : vector<8x32xf32> to vector<8x32xbf16>
    %c0_100 = arith.constant 0 : index
    %c7 = arith.constant 7 : index
    %c0_101 = arith.constant 0 : index
    %c0_102 = arith.constant 0 : index
    %278 = vector.load %arg3[%c0_100, %c7, %c0_101, %c0_102] : memref<3x8x32x32xbf16, #tpu.memory_space<vmem>>, vector<1x1x32x32xbf16>
    %279 = vector.shape_cast %278 : vector<1x1x32x32xbf16> to vector<32x32xbf16>
    %cst_103 = arith.constant dense<0.000000e+00> : vector<8x32xf32>
    %280 = tpu.matmul %277, %279, %cst_103 {dimension_numbers = #tpu.dot_dimension_numbers<[1], [0], [0], [1], [0, 0, 1, 1], [], []>} : vector<8x32xbf16>, vector<32x32xbf16>, vector<8x32xf32> -> vector<8x32xf32>
    %281 = vector.extract_strided_slice %96 {offsets = [0, 0], sizes = [8, 1], strides = [1, 1]} : vector<8x8xf32> to vector<8x1xf32>
    %282 = vector.broadcast %281 : vector<8x1xf32> to vector<8x32xf32>
    %283 = arith.mulf %282, %252 : vector<8x32xf32>
    %284 = vector.extract_strided_slice %96 {offsets = [0, 1], sizes = [8, 1], strides = [1, 1]} : vector<8x8xf32> to vector<8x1xf32>
    %285 = vector.broadcast %284 : vector<8x1xf32> to vector<8x32xf32>
    %286 = arith.mulf %285, %256 : vector<8x32xf32>
    %287 = arith.addf %283, %286 : vector<8x32xf32>
    %288 = vector.extract_strided_slice %96 {offsets = [0, 2], sizes = [8, 1], strides = [1, 1]} : vector<8x8xf32> to vector<8x1xf32>
    %289 = vector.broadcast %288 : vector<8x1xf32> to vector<8x32xf32>
    %290 = arith.mulf %289, %260 : vector<8x32xf32>
    %291 = arith.addf %287, %290 : vector<8x32xf32>
    %292 = vector.extract_strided_slice %96 {offsets = [0, 3], sizes = [8, 1], strides = [1, 1]} : vector<8x8xf32> to vector<8x1xf32>
    %293 = vector.broadcast %292 : vector<8x1xf32> to vector<8x32xf32>
    %294 = arith.mulf %293, %264 : vector<8x32xf32>
    %295 = arith.addf %291, %294 : vector<8x32xf32>
    %296 = vector.extract_strided_slice %96 {offsets = [0, 4], sizes = [8, 1], strides = [1, 1]} : vector<8x8xf32> to vector<8x1xf32>
    %297 = vector.broadcast %296 : vector<8x1xf32> to vector<8x32xf32>
    %298 = arith.mulf %297, %268 : vector<8x32xf32>
    %299 = arith.addf %295, %298 : vector<8x32xf32>
    %300 = vector.extract_strided_slice %96 {offsets = [0, 5], sizes = [8, 1], strides = [1, 1]} : vector<8x8xf32> to vector<8x1xf32>
    %301 = vector.broadcast %300 : vector<8x1xf32> to vector<8x32xf32>
    %302 = arith.mulf %301, %272 : vector<8x32xf32>
    %303 = arith.addf %299, %302 : vector<8x32xf32>
    %304 = vector.extract_strided_slice %96 {offsets = [0, 6], sizes = [8, 1], strides = [1, 1]} : vector<8x8xf32> to vector<8x1xf32>
    %305 = vector.broadcast %304 : vector<8x1xf32> to vector<8x32xf32>
    %306 = arith.mulf %305, %276 : vector<8x32xf32>
    %307 = arith.addf %303, %306 : vector<8x32xf32>
    %308 = vector.extract_strided_slice %96 {offsets = [0, 7], sizes = [8, 1], strides = [1, 1]} : vector<8x8xf32> to vector<8x1xf32>
    %309 = vector.broadcast %308 : vector<8x1xf32> to vector<8x32xf32>
    %310 = arith.mulf %309, %280 : vector<8x32xf32>
    %311 = arith.addf %307, %310 : vector<8x32xf32>
    %312 = arith.truncf %311 : vector<8x32xf32> to vector<8x32xbf16>
    %c0_104 = arith.constant 0 : index
    %c0_105 = arith.constant 0 : index
    %c0_106 = arith.constant 0 : index
    %c0_107 = arith.constant 0 : index
    %313 = vector.load %arg4[%c0_104, %c0_105, %c0_106, %c0_107] : memref<3x8x32x32xbf16, #tpu.memory_space<vmem>>, vector<1x1x32x32xbf16>
    %314 = vector.shape_cast %313 : vector<1x1x32x32xbf16> to vector<32x32xbf16>
    %cst_108 = arith.constant dense<0.000000e+00> : vector<8x32xf32>
    %315 = tpu.matmul %312, %314, %cst_108 {dimension_numbers = #tpu.dot_dimension_numbers<[1], [0], [0], [1], [0, 0, 1, 1], [], []>} : vector<8x32xbf16>, vector<32x32xbf16>, vector<8x32xf32> -> vector<8x32xf32>
    %316 = arith.addf %315, %248 : vector<8x32xf32>
    %317 = arith.truncf %316 : vector<8x32xf32> to vector<8x32xbf16>
    %cst_109 = arith.constant dense<0.000000e+00> : vector<8x96xf32>
    %318 = tpu.matmul %317, %237, %cst_109 {dimension_numbers = #tpu.dot_dimension_numbers<[1], [0], [0], [1], [0, 0, 1, 1], [], []>} : vector<8x32xbf16>, vector<32x96xbf16>, vector<8x96xf32> -> vector<8x96xf32>
    %319 = arith.addf %318, %241 : vector<8x96xf32>
    %320 = arith.truncf %1 : vector<8x32xf32> to vector<8x32xbf16>
    %cst_110 = arith.constant dense<0.000000e+00> : vector<8x96xf32>
    %321 = tpu.matmul %320, %238, %cst_110 {dimension_numbers = #tpu.dot_dimension_numbers<[1], [0], [0], [1], [0, 0, 1, 1], [], []>} : vector<8x32xbf16>, vector<32x96xbf16>, vector<8x96xf32> -> vector<8x96xf32>
    %322 = arith.addf %321, %244 : vector<8x96xf32>
    %323 = vector.extract_strided_slice %319 {offsets = [0, 0], sizes = [8, 32], strides = [1, 1]} : vector<8x96xf32> to vector<8x32xf32>
    %324 = vector.extract_strided_slice %322 {offsets = [0, 0], sizes = [8, 32], strides = [1, 1]} : vector<8x96xf32> to vector<8x32xf32>
    %325 = arith.addf %323, %324 : vector<8x32xf32>
    %326 = arith.negf %325 : vector<8x32xf32>
    %327 = math.exp %326 : vector<8x32xf32>
    %cst_111 = arith.constant 1.000000e+00 : f32
    %328 = vector.broadcast %cst_111 : f32 to vector<8x32xf32>
    %329 = arith.addf %328, %327 : vector<8x32xf32>
    %330 = arith.divf %328, %329 : vector<8x32xf32>
    %331 = vector.extract_strided_slice %319 {offsets = [0, 32], sizes = [8, 32], strides = [1, 1]} : vector<8x96xf32> to vector<8x32xf32>
    %332 = vector.extract_strided_slice %322 {offsets = [0, 32], sizes = [8, 32], strides = [1, 1]} : vector<8x96xf32> to vector<8x32xf32>
    %333 = arith.addf %331, %332 : vector<8x32xf32>
    %334 = arith.negf %333 : vector<8x32xf32>
    %335 = math.exp %334 : vector<8x32xf32>
    %cst_112 = arith.constant 1.000000e+00 : f32
    %336 = vector.broadcast %cst_112 : f32 to vector<8x32xf32>
    %337 = arith.addf %336, %335 : vector<8x32xf32>
    %338 = arith.divf %336, %337 : vector<8x32xf32>
    %339 = vector.extract_strided_slice %319 {offsets = [0, 64], sizes = [8, 32], strides = [1, 1]} : vector<8x96xf32> to vector<8x32xf32>
    %340 = vector.extract_strided_slice %322 {offsets = [0, 64], sizes = [8, 32], strides = [1, 1]} : vector<8x96xf32> to vector<8x32xf32>
    %341 = arith.mulf %330, %340 : vector<8x32xf32>
    %342 = arith.addf %339, %341 : vector<8x32xf32>
    %343 = math.tanh %342 : vector<8x32xf32>
    %cst_113 = arith.constant 1.000000e+00 : f32
    %344 = vector.broadcast %cst_113 : f32 to vector<8x32xf32>
    %345 = arith.subf %344, %338 : vector<8x32xf32>
    %346 = arith.mulf %345, %343 : vector<8x32xf32>
    %347 = arith.mulf %338, %1 : vector<8x32xf32>
    %348 = arith.addf %346, %347 : vector<8x32xf32>
    %349 = arith.addf %348, %1 : vector<8x32xf32>
    %350 = vector.extract_strided_slice %116 {offsets = [0, 0], sizes = [8, 1], strides = [1, 1]} : vector<8x8xf32> to vector<8x1xf32>
    %351 = vector.broadcast %350 : vector<8x1xf32> to vector<8x32xf32>
    %352 = arith.mulf %351, %252 : vector<8x32xf32>
    %353 = vector.extract_strided_slice %116 {offsets = [0, 1], sizes = [8, 1], strides = [1, 1]} : vector<8x8xf32> to vector<8x1xf32>
    %354 = vector.broadcast %353 : vector<8x1xf32> to vector<8x32xf32>
    %355 = arith.mulf %354, %256 : vector<8x32xf32>
    %356 = arith.addf %352, %355 : vector<8x32xf32>
    %357 = vector.extract_strided_slice %116 {offsets = [0, 2], sizes = [8, 1], strides = [1, 1]} : vector<8x8xf32> to vector<8x1xf32>
    %358 = vector.broadcast %357 : vector<8x1xf32> to vector<8x32xf32>
    %359 = arith.mulf %358, %260 : vector<8x32xf32>
    %360 = arith.addf %356, %359 : vector<8x32xf32>
    %361 = vector.extract_strided_slice %116 {offsets = [0, 3], sizes = [8, 1], strides = [1, 1]} : vector<8x8xf32> to vector<8x1xf32>
    %362 = vector.broadcast %361 : vector<8x1xf32> to vector<8x32xf32>
    %363 = arith.mulf %362, %264 : vector<8x32xf32>
    %364 = arith.addf %360, %363 : vector<8x32xf32>
    %365 = vector.extract_strided_slice %116 {offsets = [0, 4], sizes = [8, 1], strides = [1, 1]} : vector<8x8xf32> to vector<8x1xf32>
    %366 = vector.broadcast %365 : vector<8x1xf32> to vector<8x32xf32>
    %367 = arith.mulf %366, %268 : vector<8x32xf32>
    %368 = arith.addf %364, %367 : vector<8x32xf32>
    %369 = vector.extract_strided_slice %116 {offsets = [0, 5], sizes = [8, 1], strides = [1, 1]} : vector<8x8xf32> to vector<8x1xf32>
    %370 = vector.broadcast %369 : vector<8x1xf32> to vector<8x32xf32>
    %371 = arith.mulf %370, %272 : vector<8x32xf32>
    %372 = arith.addf %368, %371 : vector<8x32xf32>
    %373 = vector.extract_strided_slice %116 {offsets = [0, 6], sizes = [8, 1], strides = [1, 1]} : vector<8x8xf32> to vector<8x1xf32>
    %374 = vector.broadcast %373 : vector<8x1xf32> to vector<8x32xf32>
    %375 = arith.mulf %374, %276 : vector<8x32xf32>
    %376 = arith.addf %372, %375 : vector<8x32xf32>
    %377 = vector.extract_strided_slice %116 {offsets = [0, 7], sizes = [8, 1], strides = [1, 1]} : vector<8x8xf32> to vector<8x1xf32>
    %378 = vector.broadcast %377 : vector<8x1xf32> to vector<8x32xf32>
    %379 = arith.mulf %378, %280 : vector<8x32xf32>
    %380 = arith.addf %376, %379 : vector<8x32xf32>
    %381 = arith.truncf %380 : vector<8x32xf32> to vector<8x32xbf16>
    %c0_114 = arith.constant 0 : index
    %c1_115 = arith.constant 1 : index
    %c0_116 = arith.constant 0 : index
    %c0_117 = arith.constant 0 : index
    %382 = vector.load %arg4[%c0_114, %c1_115, %c0_116, %c0_117] : memref<3x8x32x32xbf16, #tpu.memory_space<vmem>>, vector<1x1x32x32xbf16>
    %383 = vector.shape_cast %382 : vector<1x1x32x32xbf16> to vector<32x32xbf16>
    %cst_118 = arith.constant dense<0.000000e+00> : vector<8x32xf32>
    %384 = tpu.matmul %381, %383, %cst_118 {dimension_numbers = #tpu.dot_dimension_numbers<[1], [0], [0], [1], [0, 0, 1, 1], [], []>} : vector<8x32xbf16>, vector<32x32xbf16>, vector<8x32xf32> -> vector<8x32xf32>
    %385 = arith.addf %384, %248 : vector<8x32xf32>
    %386 = arith.truncf %385 : vector<8x32xf32> to vector<8x32xbf16>
    %cst_119 = arith.constant dense<0.000000e+00> : vector<8x96xf32>
    %387 = tpu.matmul %386, %237, %cst_119 {dimension_numbers = #tpu.dot_dimension_numbers<[1], [0], [0], [1], [0, 0, 1, 1], [], []>} : vector<8x32xbf16>, vector<32x96xbf16>, vector<8x96xf32> -> vector<8x96xf32>
    %388 = arith.addf %387, %241 : vector<8x96xf32>
    %389 = arith.truncf %2 : vector<8x32xf32> to vector<8x32xbf16>
    %cst_120 = arith.constant dense<0.000000e+00> : vector<8x96xf32>
    %390 = tpu.matmul %389, %238, %cst_120 {dimension_numbers = #tpu.dot_dimension_numbers<[1], [0], [0], [1], [0, 0, 1, 1], [], []>} : vector<8x32xbf16>, vector<32x96xbf16>, vector<8x96xf32> -> vector<8x96xf32>
    %391 = arith.addf %390, %244 : vector<8x96xf32>
    %392 = vector.extract_strided_slice %388 {offsets = [0, 0], sizes = [8, 32], strides = [1, 1]} : vector<8x96xf32> to vector<8x32xf32>
    %393 = vector.extract_strided_slice %391 {offsets = [0, 0], sizes = [8, 32], strides = [1, 1]} : vector<8x96xf32> to vector<8x32xf32>
    %394 = arith.addf %392, %393 : vector<8x32xf32>
    %395 = arith.negf %394 : vector<8x32xf32>
    %396 = math.exp %395 : vector<8x32xf32>
    %cst_121 = arith.constant 1.000000e+00 : f32
    %397 = vector.broadcast %cst_121 : f32 to vector<8x32xf32>
    %398 = arith.addf %397, %396 : vector<8x32xf32>
    %399 = arith.divf %397, %398 : vector<8x32xf32>
    %400 = vector.extract_strided_slice %388 {offsets = [0, 32], sizes = [8, 32], strides = [1, 1]} : vector<8x96xf32> to vector<8x32xf32>
    %401 = vector.extract_strided_slice %391 {offsets = [0, 32], sizes = [8, 32], strides = [1, 1]} : vector<8x96xf32> to vector<8x32xf32>
    %402 = arith.addf %400, %401 : vector<8x32xf32>
    %403 = arith.negf %402 : vector<8x32xf32>
    %404 = math.exp %403 : vector<8x32xf32>
    %cst_122 = arith.constant 1.000000e+00 : f32
    %405 = vector.broadcast %cst_122 : f32 to vector<8x32xf32>
    %406 = arith.addf %405, %404 : vector<8x32xf32>
    %407 = arith.divf %405, %406 : vector<8x32xf32>
    %408 = vector.extract_strided_slice %388 {offsets = [0, 64], sizes = [8, 32], strides = [1, 1]} : vector<8x96xf32> to vector<8x32xf32>
    %409 = vector.extract_strided_slice %391 {offsets = [0, 64], sizes = [8, 32], strides = [1, 1]} : vector<8x96xf32> to vector<8x32xf32>
    %410 = arith.mulf %399, %409 : vector<8x32xf32>
    %411 = arith.addf %408, %410 : vector<8x32xf32>
    %412 = math.tanh %411 : vector<8x32xf32>
    %cst_123 = arith.constant 1.000000e+00 : f32
    %413 = vector.broadcast %cst_123 : f32 to vector<8x32xf32>
    %414 = arith.subf %413, %407 : vector<8x32xf32>
    %415 = arith.mulf %414, %412 : vector<8x32xf32>
    %416 = arith.mulf %407, %2 : vector<8x32xf32>
    %417 = arith.addf %415, %416 : vector<8x32xf32>
    %418 = arith.addf %417, %2 : vector<8x32xf32>
    %419 = vector.extract_strided_slice %136 {offsets = [0, 0], sizes = [8, 1], strides = [1, 1]} : vector<8x8xf32> to vector<8x1xf32>
    %420 = vector.broadcast %419 : vector<8x1xf32> to vector<8x32xf32>
    %421 = arith.mulf %420, %252 : vector<8x32xf32>
    %422 = vector.extract_strided_slice %136 {offsets = [0, 1], sizes = [8, 1], strides = [1, 1]} : vector<8x8xf32> to vector<8x1xf32>
    %423 = vector.broadcast %422 : vector<8x1xf32> to vector<8x32xf32>
    %424 = arith.mulf %423, %256 : vector<8x32xf32>
    %425 = arith.addf %421, %424 : vector<8x32xf32>
    %426 = vector.extract_strided_slice %136 {offsets = [0, 2], sizes = [8, 1], strides = [1, 1]} : vector<8x8xf32> to vector<8x1xf32>
    %427 = vector.broadcast %426 : vector<8x1xf32> to vector<8x32xf32>
    %428 = arith.mulf %427, %260 : vector<8x32xf32>
    %429 = arith.addf %425, %428 : vector<8x32xf32>
    %430 = vector.extract_strided_slice %136 {offsets = [0, 3], sizes = [8, 1], strides = [1, 1]} : vector<8x8xf32> to vector<8x1xf32>
    %431 = vector.broadcast %430 : vector<8x1xf32> to vector<8x32xf32>
    %432 = arith.mulf %431, %264 : vector<8x32xf32>
    %433 = arith.addf %429, %432 : vector<8x32xf32>
    %434 = vector.extract_strided_slice %136 {offsets = [0, 4], sizes = [8, 1], strides = [1, 1]} : vector<8x8xf32> to vector<8x1xf32>
    %435 = vector.broadcast %434 : vector<8x1xf32> to vector<8x32xf32>
    %436 = arith.mulf %435, %268 : vector<8x32xf32>
    %437 = arith.addf %433, %436 : vector<8x32xf32>
    %438 = vector.extract_strided_slice %136 {offsets = [0, 5], sizes = [8, 1], strides = [1, 1]} : vector<8x8xf32> to vector<8x1xf32>
    %439 = vector.broadcast %438 : vector<8x1xf32> to vector<8x32xf32>
    %440 = arith.mulf %439, %272 : vector<8x32xf32>
    %441 = arith.addf %437, %440 : vector<8x32xf32>
    %442 = vector.extract_strided_slice %136 {offsets = [0, 6], sizes = [8, 1], strides = [1, 1]} : vector<8x8xf32> to vector<8x1xf32>
    %443 = vector.broadcast %442 : vector<8x1xf32> to vector<8x32xf32>
    %444 = arith.mulf %443, %276 : vector<8x32xf32>
    %445 = arith.addf %441, %444 : vector<8x32xf32>
    %446 = vector.extract_strided_slice %136 {offsets = [0, 7], sizes = [8, 1], strides = [1, 1]} : vector<8x8xf32> to vector<8x1xf32>
    %447 = vector.broadcast %446 : vector<8x1xf32> to vector<8x32xf32>
    %448 = arith.mulf %447, %280 : vector<8x32xf32>
    %449 = arith.addf %445, %448 : vector<8x32xf32>
    %450 = arith.truncf %449 : vector<8x32xf32> to vector<8x32xbf16>
    %c0_124 = arith.constant 0 : index
    %c2_125 = arith.constant 2 : index
    %c0_126 = arith.constant 0 : index
    %c0_127 = arith.constant 0 : index
    %451 = vector.load %arg4[%c0_124, %c2_125, %c0_126, %c0_127] : memref<3x8x32x32xbf16, #tpu.memory_space<vmem>>, vector<1x1x32x32xbf16>
    %452 = vector.shape_cast %451 : vector<1x1x32x32xbf16> to vector<32x32xbf16>
    %cst_128 = arith.constant dense<0.000000e+00> : vector<8x32xf32>
    %453 = tpu.matmul %450, %452, %cst_128 {dimension_numbers = #tpu.dot_dimension_numbers<[1], [0], [0], [1], [0, 0, 1, 1], [], []>} : vector<8x32xbf16>, vector<32x32xbf16>, vector<8x32xf32> -> vector<8x32xf32>
    %454 = arith.addf %453, %248 : vector<8x32xf32>
    %455 = arith.truncf %454 : vector<8x32xf32> to vector<8x32xbf16>
    %cst_129 = arith.constant dense<0.000000e+00> : vector<8x96xf32>
    %456 = tpu.matmul %455, %237, %cst_129 {dimension_numbers = #tpu.dot_dimension_numbers<[1], [0], [0], [1], [0, 0, 1, 1], [], []>} : vector<8x32xbf16>, vector<32x96xbf16>, vector<8x96xf32> -> vector<8x96xf32>
    %457 = arith.addf %456, %241 : vector<8x96xf32>
    %458 = arith.truncf %3 : vector<8x32xf32> to vector<8x32xbf16>
    %cst_130 = arith.constant dense<0.000000e+00> : vector<8x96xf32>
    %459 = tpu.matmul %458, %238, %cst_130 {dimension_numbers = #tpu.dot_dimension_numbers<[1], [0], [0], [1], [0, 0, 1, 1], [], []>} : vector<8x32xbf16>, vector<32x96xbf16>, vector<8x96xf32> -> vector<8x96xf32>
    %460 = arith.addf %459, %244 : vector<8x96xf32>
    %461 = vector.extract_strided_slice %457 {offsets = [0, 0], sizes = [8, 32], strides = [1, 1]} : vector<8x96xf32> to vector<8x32xf32>
    %462 = vector.extract_strided_slice %460 {offsets = [0, 0], sizes = [8, 32], strides = [1, 1]} : vector<8x96xf32> to vector<8x32xf32>
    %463 = arith.addf %461, %462 : vector<8x32xf32>
    %464 = arith.negf %463 : vector<8x32xf32>
    %465 = math.exp %464 : vector<8x32xf32>
    %cst_131 = arith.constant 1.000000e+00 : f32
    %466 = vector.broadcast %cst_131 : f32 to vector<8x32xf32>
    %467 = arith.addf %466, %465 : vector<8x32xf32>
    %468 = arith.divf %466, %467 : vector<8x32xf32>
    %469 = vector.extract_strided_slice %457 {offsets = [0, 32], sizes = [8, 32], strides = [1, 1]} : vector<8x96xf32> to vector<8x32xf32>
    %470 = vector.extract_strided_slice %460 {offsets = [0, 32], sizes = [8, 32], strides = [1, 1]} : vector<8x96xf32> to vector<8x32xf32>
    %471 = arith.addf %469, %470 : vector<8x32xf32>
    %472 = arith.negf %471 : vector<8x32xf32>
    %473 = math.exp %472 : vector<8x32xf32>
    %cst_132 = arith.constant 1.000000e+00 : f32
    %474 = vector.broadcast %cst_132 : f32 to vector<8x32xf32>
    %475 = arith.addf %474, %473 : vector<8x32xf32>
    %476 = arith.divf %474, %475 : vector<8x32xf32>
    %477 = vector.extract_strided_slice %457 {offsets = [0, 64], sizes = [8, 32], strides = [1, 1]} : vector<8x96xf32> to vector<8x32xf32>
    %478 = vector.extract_strided_slice %460 {offsets = [0, 64], sizes = [8, 32], strides = [1, 1]} : vector<8x96xf32> to vector<8x32xf32>
    %479 = arith.mulf %468, %478 : vector<8x32xf32>
    %480 = arith.addf %477, %479 : vector<8x32xf32>
    %481 = math.tanh %480 : vector<8x32xf32>
    %cst_133 = arith.constant 1.000000e+00 : f32
    %482 = vector.broadcast %cst_133 : f32 to vector<8x32xf32>
    %483 = arith.subf %482, %476 : vector<8x32xf32>
    %484 = arith.mulf %483, %481 : vector<8x32xf32>
    %485 = arith.mulf %476, %3 : vector<8x32xf32>
    %486 = arith.addf %484, %485 : vector<8x32xf32>
    %487 = arith.addf %486, %3 : vector<8x32xf32>
    %488 = vector.extract_strided_slice %156 {offsets = [0, 0], sizes = [8, 1], strides = [1, 1]} : vector<8x8xf32> to vector<8x1xf32>
    %489 = vector.broadcast %488 : vector<8x1xf32> to vector<8x32xf32>
    %490 = arith.mulf %489, %252 : vector<8x32xf32>
    %491 = vector.extract_strided_slice %156 {offsets = [0, 1], sizes = [8, 1], strides = [1, 1]} : vector<8x8xf32> to vector<8x1xf32>
    %492 = vector.broadcast %491 : vector<8x1xf32> to vector<8x32xf32>
    %493 = arith.mulf %492, %256 : vector<8x32xf32>
    %494 = arith.addf %490, %493 : vector<8x32xf32>
    %495 = vector.extract_strided_slice %156 {offsets = [0, 2], sizes = [8, 1], strides = [1, 1]} : vector<8x8xf32> to vector<8x1xf32>
    %496 = vector.broadcast %495 : vector<8x1xf32> to vector<8x32xf32>
    %497 = arith.mulf %496, %260 : vector<8x32xf32>
    %498 = arith.addf %494, %497 : vector<8x32xf32>
    %499 = vector.extract_strided_slice %156 {offsets = [0, 3], sizes = [8, 1], strides = [1, 1]} : vector<8x8xf32> to vector<8x1xf32>
    %500 = vector.broadcast %499 : vector<8x1xf32> to vector<8x32xf32>
    %501 = arith.mulf %500, %264 : vector<8x32xf32>
    %502 = arith.addf %498, %501 : vector<8x32xf32>
    %503 = vector.extract_strided_slice %156 {offsets = [0, 4], sizes = [8, 1], strides = [1, 1]} : vector<8x8xf32> to vector<8x1xf32>
    %504 = vector.broadcast %503 : vector<8x1xf32> to vector<8x32xf32>
    %505 = arith.mulf %504, %268 : vector<8x32xf32>
    %506 = arith.addf %502, %505 : vector<8x32xf32>
    %507 = vector.extract_strided_slice %156 {offsets = [0, 5], sizes = [8, 1], strides = [1, 1]} : vector<8x8xf32> to vector<8x1xf32>
    %508 = vector.broadcast %507 : vector<8x1xf32> to vector<8x32xf32>
    %509 = arith.mulf %508, %272 : vector<8x32xf32>
    %510 = arith.addf %506, %509 : vector<8x32xf32>
    %511 = vector.extract_strided_slice %156 {offsets = [0, 6], sizes = [8, 1], strides = [1, 1]} : vector<8x8xf32> to vector<8x1xf32>
    %512 = vector.broadcast %511 : vector<8x1xf32> to vector<8x32xf32>
    %513 = arith.mulf %512, %276 : vector<8x32xf32>
    %514 = arith.addf %510, %513 : vector<8x32xf32>
    %515 = vector.extract_strided_slice %156 {offsets = [0, 7], sizes = [8, 1], strides = [1, 1]} : vector<8x8xf32> to vector<8x1xf32>
    %516 = vector.broadcast %515 : vector<8x1xf32> to vector<8x32xf32>
    %517 = arith.mulf %516, %280 : vector<8x32xf32>
    %518 = arith.addf %514, %517 : vector<8x32xf32>
    %519 = arith.truncf %518 : vector<8x32xf32> to vector<8x32xbf16>
    %c0_134 = arith.constant 0 : index
    %c3_135 = arith.constant 3 : index
    %c0_136 = arith.constant 0 : index
    %c0_137 = arith.constant 0 : index
    %520 = vector.load %arg4[%c0_134, %c3_135, %c0_136, %c0_137] : memref<3x8x32x32xbf16, #tpu.memory_space<vmem>>, vector<1x1x32x32xbf16>
    %521 = vector.shape_cast %520 : vector<1x1x32x32xbf16> to vector<32x32xbf16>
    %cst_138 = arith.constant dense<0.000000e+00> : vector<8x32xf32>
    %522 = tpu.matmul %519, %521, %cst_138 {dimension_numbers = #tpu.dot_dimension_numbers<[1], [0], [0], [1], [0, 0, 1, 1], [], []>} : vector<8x32xbf16>, vector<32x32xbf16>, vector<8x32xf32> -> vector<8x32xf32>
    %523 = arith.addf %522, %248 : vector<8x32xf32>
    %524 = arith.truncf %523 : vector<8x32xf32> to vector<8x32xbf16>
    %cst_139 = arith.constant dense<0.000000e+00> : vector<8x96xf32>
    %525 = tpu.matmul %524, %237, %cst_139 {dimension_numbers = #tpu.dot_dimension_numbers<[1], [0], [0], [1], [0, 0, 1, 1], [], []>} : vector<8x32xbf16>, vector<32x96xbf16>, vector<8x96xf32> -> vector<8x96xf32>
    %526 = arith.addf %525, %241 : vector<8x96xf32>
    %527 = arith.truncf %4 : vector<8x32xf32> to vector<8x32xbf16>
    %cst_140 = arith.constant dense<0.000000e+00> : vector<8x96xf32>
    %528 = tpu.matmul %527, %238, %cst_140 {dimension_numbers = #tpu.dot_dimension_numbers<[1], [0], [0], [1], [0, 0, 1, 1], [], []>} : vector<8x32xbf16>, vector<32x96xbf16>, vector<8x96xf32> -> vector<8x96xf32>
    %529 = arith.addf %528, %244 : vector<8x96xf32>
    %530 = vector.extract_strided_slice %526 {offsets = [0, 0], sizes = [8, 32], strides = [1, 1]} : vector<8x96xf32> to vector<8x32xf32>
    %531 = vector.extract_strided_slice %529 {offsets = [0, 0], sizes = [8, 32], strides = [1, 1]} : vector<8x96xf32> to vector<8x32xf32>
    %532 = arith.addf %530, %531 : vector<8x32xf32>
    %533 = arith.negf %532 : vector<8x32xf32>
    %534 = math.exp %533 : vector<8x32xf32>
    %cst_141 = arith.constant 1.000000e+00 : f32
    %535 = vector.broadcast %cst_141 : f32 to vector<8x32xf32>
    %536 = arith.addf %535, %534 : vector<8x32xf32>
    %537 = arith.divf %535, %536 : vector<8x32xf32>
    %538 = vector.extract_strided_slice %526 {offsets = [0, 32], sizes = [8, 32], strides = [1, 1]} : vector<8x96xf32> to vector<8x32xf32>
    %539 = vector.extract_strided_slice %529 {offsets = [0, 32], sizes = [8, 32], strides = [1, 1]} : vector<8x96xf32> to vector<8x32xf32>
    %540 = arith.addf %538, %539 : vector<8x32xf32>
    %541 = arith.negf %540 : vector<8x32xf32>
    %542 = math.exp %541 : vector<8x32xf32>
    %cst_142 = arith.constant 1.000000e+00 : f32
    %543 = vector.broadcast %cst_142 : f32 to vector<8x32xf32>
    %544 = arith.addf %543, %542 : vector<8x32xf32>
    %545 = arith.divf %543, %544 : vector<8x32xf32>
    %546 = vector.extract_strided_slice %526 {offsets = [0, 64], sizes = [8, 32], strides = [1, 1]} : vector<8x96xf32> to vector<8x32xf32>
    %547 = vector.extract_strided_slice %529 {offsets = [0, 64], sizes = [8, 32], strides = [1, 1]} : vector<8x96xf32> to vector<8x32xf32>
    %548 = arith.mulf %537, %547 : vector<8x32xf32>
    %549 = arith.addf %546, %548 : vector<8x32xf32>
    %550 = math.tanh %549 : vector<8x32xf32>
    %cst_143 = arith.constant 1.000000e+00 : f32
    %551 = vector.broadcast %cst_143 : f32 to vector<8x32xf32>
    %552 = arith.subf %551, %545 : vector<8x32xf32>
    %553 = arith.mulf %552, %550 : vector<8x32xf32>
    %554 = arith.mulf %545, %4 : vector<8x32xf32>
    %555 = arith.addf %553, %554 : vector<8x32xf32>
    %556 = arith.addf %555, %4 : vector<8x32xf32>
    %557 = vector.extract_strided_slice %176 {offsets = [0, 0], sizes = [8, 1], strides = [1, 1]} : vector<8x8xf32> to vector<8x1xf32>
    %558 = vector.broadcast %557 : vector<8x1xf32> to vector<8x32xf32>
    %559 = arith.mulf %558, %252 : vector<8x32xf32>
    %560 = vector.extract_strided_slice %176 {offsets = [0, 1], sizes = [8, 1], strides = [1, 1]} : vector<8x8xf32> to vector<8x1xf32>
    %561 = vector.broadcast %560 : vector<8x1xf32> to vector<8x32xf32>
    %562 = arith.mulf %561, %256 : vector<8x32xf32>
    %563 = arith.addf %559, %562 : vector<8x32xf32>
    %564 = vector.extract_strided_slice %176 {offsets = [0, 2], sizes = [8, 1], strides = [1, 1]} : vector<8x8xf32> to vector<8x1xf32>
    %565 = vector.broadcast %564 : vector<8x1xf32> to vector<8x32xf32>
    %566 = arith.mulf %565, %260 : vector<8x32xf32>
    %567 = arith.addf %563, %566 : vector<8x32xf32>
    %568 = vector.extract_strided_slice %176 {offsets = [0, 3], sizes = [8, 1], strides = [1, 1]} : vector<8x8xf32> to vector<8x1xf32>
    %569 = vector.broadcast %568 : vector<8x1xf32> to vector<8x32xf32>
    %570 = arith.mulf %569, %264 : vector<8x32xf32>
    %571 = arith.addf %567, %570 : vector<8x32xf32>
    %572 = vector.extract_strided_slice %176 {offsets = [0, 4], sizes = [8, 1], strides = [1, 1]} : vector<8x8xf32> to vector<8x1xf32>
    %573 = vector.broadcast %572 : vector<8x1xf32> to vector<8x32xf32>
    %574 = arith.mulf %573, %268 : vector<8x32xf32>
    %575 = arith.addf %571, %574 : vector<8x32xf32>
    %576 = vector.extract_strided_slice %176 {offsets = [0, 5], sizes = [8, 1], strides = [1, 1]} : vector<8x8xf32> to vector<8x1xf32>
    %577 = vector.broadcast %576 : vector<8x1xf32> to vector<8x32xf32>
    %578 = arith.mulf %577, %272 : vector<8x32xf32>
    %579 = arith.addf %575, %578 : vector<8x32xf32>
    %580 = vector.extract_strided_slice %176 {offsets = [0, 6], sizes = [8, 1], strides = [1, 1]} : vector<8x8xf32> to vector<8x1xf32>
    %581 = vector.broadcast %580 : vector<8x1xf32> to vector<8x32xf32>
    %582 = arith.mulf %581, %276 : vector<8x32xf32>
    %583 = arith.addf %579, %582 : vector<8x32xf32>
    %584 = vector.extract_strided_slice %176 {offsets = [0, 7], sizes = [8, 1], strides = [1, 1]} : vector<8x8xf32> to vector<8x1xf32>
    %585 = vector.broadcast %584 : vector<8x1xf32> to vector<8x32xf32>
    %586 = arith.mulf %585, %280 : vector<8x32xf32>
    %587 = arith.addf %583, %586 : vector<8x32xf32>
    %588 = arith.truncf %587 : vector<8x32xf32> to vector<8x32xbf16>
    %c0_144 = arith.constant 0 : index
    %c4_145 = arith.constant 4 : index
    %c0_146 = arith.constant 0 : index
    %c0_147 = arith.constant 0 : index
    %589 = vector.load %arg4[%c0_144, %c4_145, %c0_146, %c0_147] : memref<3x8x32x32xbf16, #tpu.memory_space<vmem>>, vector<1x1x32x32xbf16>
    %590 = vector.shape_cast %589 : vector<1x1x32x32xbf16> to vector<32x32xbf16>
    %cst_148 = arith.constant dense<0.000000e+00> : vector<8x32xf32>
    %591 = tpu.matmul %588, %590, %cst_148 {dimension_numbers = #tpu.dot_dimension_numbers<[1], [0], [0], [1], [0, 0, 1, 1], [], []>} : vector<8x32xbf16>, vector<32x32xbf16>, vector<8x32xf32> -> vector<8x32xf32>
    %592 = arith.addf %591, %248 : vector<8x32xf32>
    %593 = arith.truncf %592 : vector<8x32xf32> to vector<8x32xbf16>
    %cst_149 = arith.constant dense<0.000000e+00> : vector<8x96xf32>
    %594 = tpu.matmul %593, %237, %cst_149 {dimension_numbers = #tpu.dot_dimension_numbers<[1], [0], [0], [1], [0, 0, 1, 1], [], []>} : vector<8x32xbf16>, vector<32x96xbf16>, vector<8x96xf32> -> vector<8x96xf32>
    %595 = arith.addf %594, %241 : vector<8x96xf32>
    %596 = arith.truncf %5 : vector<8x32xf32> to vector<8x32xbf16>
    %cst_150 = arith.constant dense<0.000000e+00> : vector<8x96xf32>
    %597 = tpu.matmul %596, %238, %cst_150 {dimension_numbers = #tpu.dot_dimension_numbers<[1], [0], [0], [1], [0, 0, 1, 1], [], []>} : vector<8x32xbf16>, vector<32x96xbf16>, vector<8x96xf32> -> vector<8x96xf32>
    %598 = arith.addf %597, %244 : vector<8x96xf32>
    %599 = vector.extract_strided_slice %595 {offsets = [0, 0], sizes = [8, 32], strides = [1, 1]} : vector<8x96xf32> to vector<8x32xf32>
    %600 = vector.extract_strided_slice %598 {offsets = [0, 0], sizes = [8, 32], strides = [1, 1]} : vector<8x96xf32> to vector<8x32xf32>
    %601 = arith.addf %599, %600 : vector<8x32xf32>
    %602 = arith.negf %601 : vector<8x32xf32>
    %603 = math.exp %602 : vector<8x32xf32>
    %cst_151 = arith.constant 1.000000e+00 : f32
    %604 = vector.broadcast %cst_151 : f32 to vector<8x32xf32>
    %605 = arith.addf %604, %603 : vector<8x32xf32>
    %606 = arith.divf %604, %605 : vector<8x32xf32>
    %607 = vector.extract_strided_slice %595 {offsets = [0, 32], sizes = [8, 32], strides = [1, 1]} : vector<8x96xf32> to vector<8x32xf32>
    %608 = vector.extract_strided_slice %598 {offsets = [0, 32], sizes = [8, 32], strides = [1, 1]} : vector<8x96xf32> to vector<8x32xf32>
    %609 = arith.addf %607, %608 : vector<8x32xf32>
    %610 = arith.negf %609 : vector<8x32xf32>
    %611 = math.exp %610 : vector<8x32xf32>
    %cst_152 = arith.constant 1.000000e+00 : f32
    %612 = vector.broadcast %cst_152 : f32 to vector<8x32xf32>
    %613 = arith.addf %612, %611 : vector<8x32xf32>
    %614 = arith.divf %612, %613 : vector<8x32xf32>
    %615 = vector.extract_strided_slice %595 {offsets = [0, 64], sizes = [8, 32], strides = [1, 1]} : vector<8x96xf32> to vector<8x32xf32>
    %616 = vector.extract_strided_slice %598 {offsets = [0, 64], sizes = [8, 32], strides = [1, 1]} : vector<8x96xf32> to vector<8x32xf32>
    %617 = arith.mulf %606, %616 : vector<8x32xf32>
    %618 = arith.addf %615, %617 : vector<8x32xf32>
    %619 = math.tanh %618 : vector<8x32xf32>
    %cst_153 = arith.constant 1.000000e+00 : f32
    %620 = vector.broadcast %cst_153 : f32 to vector<8x32xf32>
    %621 = arith.subf %620, %614 : vector<8x32xf32>
    %622 = arith.mulf %621, %619 : vector<8x32xf32>
    %623 = arith.mulf %614, %5 : vector<8x32xf32>
    %624 = arith.addf %622, %623 : vector<8x32xf32>
    %625 = arith.addf %624, %5 : vector<8x32xf32>
    %626 = vector.extract_strided_slice %196 {offsets = [0, 0], sizes = [8, 1], strides = [1, 1]} : vector<8x8xf32> to vector<8x1xf32>
    %627 = vector.broadcast %626 : vector<8x1xf32> to vector<8x32xf32>
    %628 = arith.mulf %627, %252 : vector<8x32xf32>
    %629 = vector.extract_strided_slice %196 {offsets = [0, 1], sizes = [8, 1], strides = [1, 1]} : vector<8x8xf32> to vector<8x1xf32>
    %630 = vector.broadcast %629 : vector<8x1xf32> to vector<8x32xf32>
    %631 = arith.mulf %630, %256 : vector<8x32xf32>
    %632 = arith.addf %628, %631 : vector<8x32xf32>
    %633 = vector.extract_strided_slice %196 {offsets = [0, 2], sizes = [8, 1], strides = [1, 1]} : vector<8x8xf32> to vector<8x1xf32>
    %634 = vector.broadcast %633 : vector<8x1xf32> to vector<8x32xf32>
    %635 = arith.mulf %634, %260 : vector<8x32xf32>
    %636 = arith.addf %632, %635 : vector<8x32xf32>
    %637 = vector.extract_strided_slice %196 {offsets = [0, 3], sizes = [8, 1], strides = [1, 1]} : vector<8x8xf32> to vector<8x1xf32>
    %638 = vector.broadcast %637 : vector<8x1xf32> to vector<8x32xf32>
    %639 = arith.mulf %638, %264 : vector<8x32xf32>
    %640 = arith.addf %636, %639 : vector<8x32xf32>
    %641 = vector.extract_strided_slice %196 {offsets = [0, 4], sizes = [8, 1], strides = [1, 1]} : vector<8x8xf32> to vector<8x1xf32>
    %642 = vector.broadcast %641 : vector<8x1xf32> to vector<8x32xf32>
    %643 = arith.mulf %642, %268 : vector<8x32xf32>
    %644 = arith.addf %640, %643 : vector<8x32xf32>
    %645 = vector.extract_strided_slice %196 {offsets = [0, 5], sizes = [8, 1], strides = [1, 1]} : vector<8x8xf32> to vector<8x1xf32>
    %646 = vector.broadcast %645 : vector<8x1xf32> to vector<8x32xf32>
    %647 = arith.mulf %646, %272 : vector<8x32xf32>
    %648 = arith.addf %644, %647 : vector<8x32xf32>
    %649 = vector.extract_strided_slice %196 {offsets = [0, 6], sizes = [8, 1], strides = [1, 1]} : vector<8x8xf32> to vector<8x1xf32>
    %650 = vector.broadcast %649 : vector<8x1xf32> to vector<8x32xf32>
    %651 = arith.mulf %650, %276 : vector<8x32xf32>
    %652 = arith.addf %648, %651 : vector<8x32xf32>
    %653 = vector.extract_strided_slice %196 {offsets = [0, 7], sizes = [8, 1], strides = [1, 1]} : vector<8x8xf32> to vector<8x1xf32>
    %654 = vector.broadcast %653 : vector<8x1xf32> to vector<8x32xf32>
    %655 = arith.mulf %654, %280 : vector<8x32xf32>
    %656 = arith.addf %652, %655 : vector<8x32xf32>
    %657 = arith.truncf %656 : vector<8x32xf32> to vector<8x32xbf16>
    %c0_154 = arith.constant 0 : index
    %c5_155 = arith.constant 5 : index
    %c0_156 = arith.constant 0 : index
    %c0_157 = arith.constant 0 : index
    %658 = vector.load %arg4[%c0_154, %c5_155, %c0_156, %c0_157] : memref<3x8x32x32xbf16, #tpu.memory_space<vmem>>, vector<1x1x32x32xbf16>
    %659 = vector.shape_cast %658 : vector<1x1x32x32xbf16> to vector<32x32xbf16>
    %cst_158 = arith.constant dense<0.000000e+00> : vector<8x32xf32>
    %660 = tpu.matmul %657, %659, %cst_158 {dimension_numbers = #tpu.dot_dimension_numbers<[1], [0], [0], [1], [0, 0, 1, 1], [], []>} : vector<8x32xbf16>, vector<32x32xbf16>, vector<8x32xf32> -> vector<8x32xf32>
    %661 = arith.addf %660, %248 : vector<8x32xf32>
    %662 = arith.truncf %661 : vector<8x32xf32> to vector<8x32xbf16>
    %cst_159 = arith.constant dense<0.000000e+00> : vector<8x96xf32>
    %663 = tpu.matmul %662, %237, %cst_159 {dimension_numbers = #tpu.dot_dimension_numbers<[1], [0], [0], [1], [0, 0, 1, 1], [], []>} : vector<8x32xbf16>, vector<32x96xbf16>, vector<8x96xf32> -> vector<8x96xf32>
    %664 = arith.addf %663, %241 : vector<8x96xf32>
    %665 = arith.truncf %6 : vector<8x32xf32> to vector<8x32xbf16>
    %cst_160 = arith.constant dense<0.000000e+00> : vector<8x96xf32>
    %666 = tpu.matmul %665, %238, %cst_160 {dimension_numbers = #tpu.dot_dimension_numbers<[1], [0], [0], [1], [0, 0, 1, 1], [], []>} : vector<8x32xbf16>, vector<32x96xbf16>, vector<8x96xf32> -> vector<8x96xf32>
    %667 = arith.addf %666, %244 : vector<8x96xf32>
    %668 = vector.extract_strided_slice %664 {offsets = [0, 0], sizes = [8, 32], strides = [1, 1]} : vector<8x96xf32> to vector<8x32xf32>
    %669 = vector.extract_strided_slice %667 {offsets = [0, 0], sizes = [8, 32], strides = [1, 1]} : vector<8x96xf32> to vector<8x32xf32>
    %670 = arith.addf %668, %669 : vector<8x32xf32>
    %671 = arith.negf %670 : vector<8x32xf32>
    %672 = math.exp %671 : vector<8x32xf32>
    %cst_161 = arith.constant 1.000000e+00 : f32
    %673 = vector.broadcast %cst_161 : f32 to vector<8x32xf32>
    %674 = arith.addf %673, %672 : vector<8x32xf32>
    %675 = arith.divf %673, %674 : vector<8x32xf32>
    %676 = vector.extract_strided_slice %664 {offsets = [0, 32], sizes = [8, 32], strides = [1, 1]} : vector<8x96xf32> to vector<8x32xf32>
    %677 = vector.extract_strided_slice %667 {offsets = [0, 32], sizes = [8, 32], strides = [1, 1]} : vector<8x96xf32> to vector<8x32xf32>
    %678 = arith.addf %676, %677 : vector<8x32xf32>
    %679 = arith.negf %678 : vector<8x32xf32>
    %680 = math.exp %679 : vector<8x32xf32>
    %cst_162 = arith.constant 1.000000e+00 : f32
    %681 = vector.broadcast %cst_162 : f32 to vector<8x32xf32>
    %682 = arith.addf %681, %680 : vector<8x32xf32>
    %683 = arith.divf %681, %682 : vector<8x32xf32>
    %684 = vector.extract_strided_slice %664 {offsets = [0, 64], sizes = [8, 32], strides = [1, 1]} : vector<8x96xf32> to vector<8x32xf32>
    %685 = vector.extract_strided_slice %667 {offsets = [0, 64], sizes = [8, 32], strides = [1, 1]} : vector<8x96xf32> to vector<8x32xf32>
    %686 = arith.mulf %675, %685 : vector<8x32xf32>
    %687 = arith.addf %684, %686 : vector<8x32xf32>
    %688 = math.tanh %687 : vector<8x32xf32>
    %cst_163 = arith.constant 1.000000e+00 : f32
    %689 = vector.broadcast %cst_163 : f32 to vector<8x32xf32>
    %690 = arith.subf %689, %683 : vector<8x32xf32>
    %691 = arith.mulf %690, %688 : vector<8x32xf32>
    %692 = arith.mulf %683, %6 : vector<8x32xf32>
    %693 = arith.addf %691, %692 : vector<8x32xf32>
    %694 = arith.addf %693, %6 : vector<8x32xf32>
    %695 = vector.extract_strided_slice %216 {offsets = [0, 0], sizes = [8, 1], strides = [1, 1]} : vector<8x8xf32> to vector<8x1xf32>
    %696 = vector.broadcast %695 : vector<8x1xf32> to vector<8x32xf32>
    %697 = arith.mulf %696, %252 : vector<8x32xf32>
    %698 = vector.extract_strided_slice %216 {offsets = [0, 1], sizes = [8, 1], strides = [1, 1]} : vector<8x8xf32> to vector<8x1xf32>
    %699 = vector.broadcast %698 : vector<8x1xf32> to vector<8x32xf32>
    %700 = arith.mulf %699, %256 : vector<8x32xf32>
    %701 = arith.addf %697, %700 : vector<8x32xf32>
    %702 = vector.extract_strided_slice %216 {offsets = [0, 2], sizes = [8, 1], strides = [1, 1]} : vector<8x8xf32> to vector<8x1xf32>
    %703 = vector.broadcast %702 : vector<8x1xf32> to vector<8x32xf32>
    %704 = arith.mulf %703, %260 : vector<8x32xf32>
    %705 = arith.addf %701, %704 : vector<8x32xf32>
    %706 = vector.extract_strided_slice %216 {offsets = [0, 3], sizes = [8, 1], strides = [1, 1]} : vector<8x8xf32> to vector<8x1xf32>
    %707 = vector.broadcast %706 : vector<8x1xf32> to vector<8x32xf32>
    %708 = arith.mulf %707, %264 : vector<8x32xf32>
    %709 = arith.addf %705, %708 : vector<8x32xf32>
    %710 = vector.extract_strided_slice %216 {offsets = [0, 4], sizes = [8, 1], strides = [1, 1]} : vector<8x8xf32> to vector<8x1xf32>
    %711 = vector.broadcast %710 : vector<8x1xf32> to vector<8x32xf32>
    %712 = arith.mulf %711, %268 : vector<8x32xf32>
    %713 = arith.addf %709, %712 : vector<8x32xf32>
    %714 = vector.extract_strided_slice %216 {offsets = [0, 5], sizes = [8, 1], strides = [1, 1]} : vector<8x8xf32> to vector<8x1xf32>
    %715 = vector.broadcast %714 : vector<8x1xf32> to vector<8x32xf32>
    %716 = arith.mulf %715, %272 : vector<8x32xf32>
    %717 = arith.addf %713, %716 : vector<8x32xf32>
    %718 = vector.extract_strided_slice %216 {offsets = [0, 6], sizes = [8, 1], strides = [1, 1]} : vector<8x8xf32> to vector<8x1xf32>
    %719 = vector.broadcast %718 : vector<8x1xf32> to vector<8x32xf32>
    %720 = arith.mulf %719, %276 : vector<8x32xf32>
    %721 = arith.addf %717, %720 : vector<8x32xf32>
    %722 = vector.extract_strided_slice %216 {offsets = [0, 7], sizes = [8, 1], strides = [1, 1]} : vector<8x8xf32> to vector<8x1xf32>
    %723 = vector.broadcast %722 : vector<8x1xf32> to vector<8x32xf32>
    %724 = arith.mulf %723, %280 : vector<8x32xf32>
    %725 = arith.addf %721, %724 : vector<8x32xf32>
    %726 = arith.truncf %725 : vector<8x32xf32> to vector<8x32xbf16>
    %c0_164 = arith.constant 0 : index
    %c6_165 = arith.constant 6 : index
    %c0_166 = arith.constant 0 : index
    %c0_167 = arith.constant 0 : index
    %727 = vector.load %arg4[%c0_164, %c6_165, %c0_166, %c0_167] : memref<3x8x32x32xbf16, #tpu.memory_space<vmem>>, vector<1x1x32x32xbf16>
    %728 = vector.shape_cast %727 : vector<1x1x32x32xbf16> to vector<32x32xbf16>
    %cst_168 = arith.constant dense<0.000000e+00> : vector<8x32xf32>
    %729 = tpu.matmul %726, %728, %cst_168 {dimension_numbers = #tpu.dot_dimension_numbers<[1], [0], [0], [1], [0, 0, 1, 1], [], []>} : vector<8x32xbf16>, vector<32x32xbf16>, vector<8x32xf32> -> vector<8x32xf32>
    %730 = arith.addf %729, %248 : vector<8x32xf32>
    %731 = arith.truncf %730 : vector<8x32xf32> to vector<8x32xbf16>
    %cst_169 = arith.constant dense<0.000000e+00> : vector<8x96xf32>
    %732 = tpu.matmul %731, %237, %cst_169 {dimension_numbers = #tpu.dot_dimension_numbers<[1], [0], [0], [1], [0, 0, 1, 1], [], []>} : vector<8x32xbf16>, vector<32x96xbf16>, vector<8x96xf32> -> vector<8x96xf32>
    %733 = arith.addf %732, %241 : vector<8x96xf32>
    %734 = arith.truncf %7 : vector<8x32xf32> to vector<8x32xbf16>
    %cst_170 = arith.constant dense<0.000000e+00> : vector<8x96xf32>
    %735 = tpu.matmul %734, %238, %cst_170 {dimension_numbers = #tpu.dot_dimension_numbers<[1], [0], [0], [1], [0, 0, 1, 1], [], []>} : vector<8x32xbf16>, vector<32x96xbf16>, vector<8x96xf32> -> vector<8x96xf32>
    %736 = arith.addf %735, %244 : vector<8x96xf32>
    %737 = vector.extract_strided_slice %733 {offsets = [0, 0], sizes = [8, 32], strides = [1, 1]} : vector<8x96xf32> to vector<8x32xf32>
    %738 = vector.extract_strided_slice %736 {offsets = [0, 0], sizes = [8, 32], strides = [1, 1]} : vector<8x96xf32> to vector<8x32xf32>
    %739 = arith.addf %737, %738 : vector<8x32xf32>
    %740 = arith.negf %739 : vector<8x32xf32>
    %741 = math.exp %740 : vector<8x32xf32>
    %cst_171 = arith.constant 1.000000e+00 : f32
    %742 = vector.broadcast %cst_171 : f32 to vector<8x32xf32>
    %743 = arith.addf %742, %741 : vector<8x32xf32>
    %744 = arith.divf %742, %743 : vector<8x32xf32>
    %745 = vector.extract_strided_slice %733 {offsets = [0, 32], sizes = [8, 32], strides = [1, 1]} : vector<8x96xf32> to vector<8x32xf32>
    %746 = vector.extract_strided_slice %736 {offsets = [0, 32], sizes = [8, 32], strides = [1, 1]} : vector<8x96xf32> to vector<8x32xf32>
    %747 = arith.addf %745, %746 : vector<8x32xf32>
    %748 = arith.negf %747 : vector<8x32xf32>
    %749 = math.exp %748 : vector<8x32xf32>
    %cst_172 = arith.constant 1.000000e+00 : f32
    %750 = vector.broadcast %cst_172 : f32 to vector<8x32xf32>
    %751 = arith.addf %750, %749 : vector<8x32xf32>
    %752 = arith.divf %750, %751 : vector<8x32xf32>
    %753 = vector.extract_strided_slice %733 {offsets = [0, 64], sizes = [8, 32], strides = [1, 1]} : vector<8x96xf32> to vector<8x32xf32>
    %754 = vector.extract_strided_slice %736 {offsets = [0, 64], sizes = [8, 32], strides = [1, 1]} : vector<8x96xf32> to vector<8x32xf32>
    %755 = arith.mulf %744, %754 : vector<8x32xf32>
    %756 = arith.addf %753, %755 : vector<8x32xf32>
    %757 = math.tanh %756 : vector<8x32xf32>
    %cst_173 = arith.constant 1.000000e+00 : f32
    %758 = vector.broadcast %cst_173 : f32 to vector<8x32xf32>
    %759 = arith.subf %758, %752 : vector<8x32xf32>
    %760 = arith.mulf %759, %757 : vector<8x32xf32>
    %761 = arith.mulf %752, %7 : vector<8x32xf32>
    %762 = arith.addf %760, %761 : vector<8x32xf32>
    %763 = arith.addf %762, %7 : vector<8x32xf32>
    %764 = vector.extract_strided_slice %236 {offsets = [0, 0], sizes = [8, 1], strides = [1, 1]} : vector<8x8xf32> to vector<8x1xf32>
    %765 = vector.broadcast %764 : vector<8x1xf32> to vector<8x32xf32>
    %766 = arith.mulf %765, %252 : vector<8x32xf32>
    %767 = vector.extract_strided_slice %236 {offsets = [0, 1], sizes = [8, 1], strides = [1, 1]} : vector<8x8xf32> to vector<8x1xf32>
    %768 = vector.broadcast %767 : vector<8x1xf32> to vector<8x32xf32>
    %769 = arith.mulf %768, %256 : vector<8x32xf32>
    %770 = arith.addf %766, %769 : vector<8x32xf32>
    %771 = vector.extract_strided_slice %236 {offsets = [0, 2], sizes = [8, 1], strides = [1, 1]} : vector<8x8xf32> to vector<8x1xf32>
    %772 = vector.broadcast %771 : vector<8x1xf32> to vector<8x32xf32>
    %773 = arith.mulf %772, %260 : vector<8x32xf32>
    %774 = arith.addf %770, %773 : vector<8x32xf32>
    %775 = vector.extract_strided_slice %236 {offsets = [0, 3], sizes = [8, 1], strides = [1, 1]} : vector<8x8xf32> to vector<8x1xf32>
    %776 = vector.broadcast %775 : vector<8x1xf32> to vector<8x32xf32>
    %777 = arith.mulf %776, %264 : vector<8x32xf32>
    %778 = arith.addf %774, %777 : vector<8x32xf32>
    %779 = vector.extract_strided_slice %236 {offsets = [0, 4], sizes = [8, 1], strides = [1, 1]} : vector<8x8xf32> to vector<8x1xf32>
    %780 = vector.broadcast %779 : vector<8x1xf32> to vector<8x32xf32>
    %781 = arith.mulf %780, %268 : vector<8x32xf32>
    %782 = arith.addf %778, %781 : vector<8x32xf32>
    %783 = vector.extract_strided_slice %236 {offsets = [0, 5], sizes = [8, 1], strides = [1, 1]} : vector<8x8xf32> to vector<8x1xf32>
    %784 = vector.broadcast %783 : vector<8x1xf32> to vector<8x32xf32>
    %785 = arith.mulf %784, %272 : vector<8x32xf32>
    %786 = arith.addf %782, %785 : vector<8x32xf32>
    %787 = vector.extract_strided_slice %236 {offsets = [0, 6], sizes = [8, 1], strides = [1, 1]} : vector<8x8xf32> to vector<8x1xf32>
    %788 = vector.broadcast %787 : vector<8x1xf32> to vector<8x32xf32>
    %789 = arith.mulf %788, %276 : vector<8x32xf32>
    %790 = arith.addf %786, %789 : vector<8x32xf32>
    %791 = vector.extract_strided_slice %236 {offsets = [0, 7], sizes = [8, 1], strides = [1, 1]} : vector<8x8xf32> to vector<8x1xf32>
    %792 = vector.broadcast %791 : vector<8x1xf32> to vector<8x32xf32>
    %793 = arith.mulf %792, %280 : vector<8x32xf32>
    %794 = arith.addf %790, %793 : vector<8x32xf32>
    %795 = arith.truncf %794 : vector<8x32xf32> to vector<8x32xbf16>
    %c0_174 = arith.constant 0 : index
    %c7_175 = arith.constant 7 : index
    %c0_176 = arith.constant 0 : index
    %c0_177 = arith.constant 0 : index
    %796 = vector.load %arg4[%c0_174, %c7_175, %c0_176, %c0_177] : memref<3x8x32x32xbf16, #tpu.memory_space<vmem>>, vector<1x1x32x32xbf16>
    %797 = vector.shape_cast %796 : vector<1x1x32x32xbf16> to vector<32x32xbf16>
    %cst_178 = arith.constant dense<0.000000e+00> : vector<8x32xf32>
    %798 = tpu.matmul %795, %797, %cst_178 {dimension_numbers = #tpu.dot_dimension_numbers<[1], [0], [0], [1], [0, 0, 1, 1], [], []>} : vector<8x32xbf16>, vector<32x32xbf16>, vector<8x32xf32> -> vector<8x32xf32>
    %799 = arith.addf %798, %248 : vector<8x32xf32>
    %800 = arith.truncf %799 : vector<8x32xf32> to vector<8x32xbf16>
    %cst_179 = arith.constant dense<0.000000e+00> : vector<8x96xf32>
    %801 = tpu.matmul %800, %237, %cst_179 {dimension_numbers = #tpu.dot_dimension_numbers<[1], [0], [0], [1], [0, 0, 1, 1], [], []>} : vector<8x32xbf16>, vector<32x96xbf16>, vector<8x96xf32> -> vector<8x96xf32>
    %802 = arith.addf %801, %241 : vector<8x96xf32>
    %803 = arith.truncf %8 : vector<8x32xf32> to vector<8x32xbf16>
    %cst_180 = arith.constant dense<0.000000e+00> : vector<8x96xf32>
    %804 = tpu.matmul %803, %238, %cst_180 {dimension_numbers = #tpu.dot_dimension_numbers<[1], [0], [0], [1], [0, 0, 1, 1], [], []>} : vector<8x32xbf16>, vector<32x96xbf16>, vector<8x96xf32> -> vector<8x96xf32>
    %805 = arith.addf %804, %244 : vector<8x96xf32>
    %806 = vector.extract_strided_slice %802 {offsets = [0, 0], sizes = [8, 32], strides = [1, 1]} : vector<8x96xf32> to vector<8x32xf32>
    %807 = vector.extract_strided_slice %805 {offsets = [0, 0], sizes = [8, 32], strides = [1, 1]} : vector<8x96xf32> to vector<8x32xf32>
    %808 = arith.addf %806, %807 : vector<8x32xf32>
    %809 = arith.negf %808 : vector<8x32xf32>
    %810 = math.exp %809 : vector<8x32xf32>
    %cst_181 = arith.constant 1.000000e+00 : f32
    %811 = vector.broadcast %cst_181 : f32 to vector<8x32xf32>
    %812 = arith.addf %811, %810 : vector<8x32xf32>
    %813 = arith.divf %811, %812 : vector<8x32xf32>
    %814 = vector.extract_strided_slice %802 {offsets = [0, 32], sizes = [8, 32], strides = [1, 1]} : vector<8x96xf32> to vector<8x32xf32>
    %815 = vector.extract_strided_slice %805 {offsets = [0, 32], sizes = [8, 32], strides = [1, 1]} : vector<8x96xf32> to vector<8x32xf32>
    %816 = arith.addf %814, %815 : vector<8x32xf32>
    %817 = arith.negf %816 : vector<8x32xf32>
    %818 = math.exp %817 : vector<8x32xf32>
    %cst_182 = arith.constant 1.000000e+00 : f32
    %819 = vector.broadcast %cst_182 : f32 to vector<8x32xf32>
    %820 = arith.addf %819, %818 : vector<8x32xf32>
    %821 = arith.divf %819, %820 : vector<8x32xf32>
    %822 = vector.extract_strided_slice %802 {offsets = [0, 64], sizes = [8, 32], strides = [1, 1]} : vector<8x96xf32> to vector<8x32xf32>
    %823 = vector.extract_strided_slice %805 {offsets = [0, 64], sizes = [8, 32], strides = [1, 1]} : vector<8x96xf32> to vector<8x32xf32>
    %824 = arith.mulf %813, %823 : vector<8x32xf32>
    %825 = arith.addf %822, %824 : vector<8x32xf32>
    %826 = math.tanh %825 : vector<8x32xf32>
    %cst_183 = arith.constant 1.000000e+00 : f32
    %827 = vector.broadcast %cst_183 : f32 to vector<8x32xf32>
    %828 = arith.subf %827, %821 : vector<8x32xf32>
    %829 = arith.mulf %828, %826 : vector<8x32xf32>
    %830 = arith.mulf %821, %8 : vector<8x32xf32>
    %831 = arith.addf %829, %830 : vector<8x32xf32>
    %832 = arith.addf %831, %8 : vector<8x32xf32>
    %c1_184 = arith.constant 1 : index
    %c0_185 = arith.constant 0 : index
    %c0_186 = arith.constant 0 : index
    %833 = vector.load %arg5[%c1_184, %c0_185, %c0_186] : memref<3x1x32xf32, #tpu.memory_space<vmem>>, vector<1x1x32xf32>
    %834 = vector.shape_cast %833 : vector<1x1x32xf32> to vector<1x32xf32>
    %835 = vector.shape_cast %834 : vector<1x32xf32> to vector<1x32xf32>
    %836 = vector.broadcast %835 : vector<1x32xf32> to vector<8x32xf32>
    %837 = arith.truncf %349 : vector<8x32xf32> to vector<8x32xbf16>
    %c1_187 = arith.constant 1 : index
    %c0_188 = arith.constant 0 : index
    %c0_189 = arith.constant 0 : index
    %c0_190 = arith.constant 0 : index
    %838 = vector.load %arg3[%c1_187, %c0_188, %c0_189, %c0_190] : memref<3x8x32x32xbf16, #tpu.memory_space<vmem>>, vector<1x1x32x32xbf16>
    %839 = vector.shape_cast %838 : vector<1x1x32x32xbf16> to vector<32x32xbf16>
    %cst_191 = arith.constant dense<0.000000e+00> : vector<8x32xf32>
    %840 = tpu.matmul %837, %839, %cst_191 {dimension_numbers = #tpu.dot_dimension_numbers<[1], [0], [0], [1], [0, 0, 1, 1], [], []>} : vector<8x32xbf16>, vector<32x32xbf16>, vector<8x32xf32> -> vector<8x32xf32>
    %841 = arith.truncf %418 : vector<8x32xf32> to vector<8x32xbf16>
    %c1_192 = arith.constant 1 : index
    %c1_193 = arith.constant 1 : index
    %c0_194 = arith.constant 0 : index
    %c0_195 = arith.constant 0 : index
    %842 = vector.load %arg3[%c1_192, %c1_193, %c0_194, %c0_195] : memref<3x8x32x32xbf16, #tpu.memory_space<vmem>>, vector<1x1x32x32xbf16>
    %843 = vector.shape_cast %842 : vector<1x1x32x32xbf16> to vector<32x32xbf16>
    %cst_196 = arith.constant dense<0.000000e+00> : vector<8x32xf32>
    %844 = tpu.matmul %841, %843, %cst_196 {dimension_numbers = #tpu.dot_dimension_numbers<[1], [0], [0], [1], [0, 0, 1, 1], [], []>} : vector<8x32xbf16>, vector<32x32xbf16>, vector<8x32xf32> -> vector<8x32xf32>
    %845 = arith.truncf %487 : vector<8x32xf32> to vector<8x32xbf16>
    %c1_197 = arith.constant 1 : index
    %c2_198 = arith.constant 2 : index
    %c0_199 = arith.constant 0 : index
    %c0_200 = arith.constant 0 : index
    %846 = vector.load %arg3[%c1_197, %c2_198, %c0_199, %c0_200] : memref<3x8x32x32xbf16, #tpu.memory_space<vmem>>, vector<1x1x32x32xbf16>
    %847 = vector.shape_cast %846 : vector<1x1x32x32xbf16> to vector<32x32xbf16>
    %cst_201 = arith.constant dense<0.000000e+00> : vector<8x32xf32>
    %848 = tpu.matmul %845, %847, %cst_201 {dimension_numbers = #tpu.dot_dimension_numbers<[1], [0], [0], [1], [0, 0, 1, 1], [], []>} : vector<8x32xbf16>, vector<32x32xbf16>, vector<8x32xf32> -> vector<8x32xf32>
    %849 = arith.truncf %556 : vector<8x32xf32> to vector<8x32xbf16>
    %c1_202 = arith.constant 1 : index
    %c3_203 = arith.constant 3 : index
    %c0_204 = arith.constant 0 : index
    %c0_205 = arith.constant 0 : index
    %850 = vector.load %arg3[%c1_202, %c3_203, %c0_204, %c0_205] : memref<3x8x32x32xbf16, #tpu.memory_space<vmem>>, vector<1x1x32x32xbf16>
    %851 = vector.shape_cast %850 : vector<1x1x32x32xbf16> to vector<32x32xbf16>
    %cst_206 = arith.constant dense<0.000000e+00> : vector<8x32xf32>
    %852 = tpu.matmul %849, %851, %cst_206 {dimension_numbers = #tpu.dot_dimension_numbers<[1], [0], [0], [1], [0, 0, 1, 1], [], []>} : vector<8x32xbf16>, vector<32x32xbf16>, vector<8x32xf32> -> vector<8x32xf32>
    %853 = arith.truncf %625 : vector<8x32xf32> to vector<8x32xbf16>
    %c1_207 = arith.constant 1 : index
    %c4_208 = arith.constant 4 : index
    %c0_209 = arith.constant 0 : index
    %c0_210 = arith.constant 0 : index
    %854 = vector.load %arg3[%c1_207, %c4_208, %c0_209, %c0_210] : memref<3x8x32x32xbf16, #tpu.memory_space<vmem>>, vector<1x1x32x32xbf16>
    %855 = vector.shape_cast %854 : vector<1x1x32x32xbf16> to vector<32x32xbf16>
    %cst_211 = arith.constant dense<0.000000e+00> : vector<8x32xf32>
    %856 = tpu.matmul %853, %855, %cst_211 {dimension_numbers = #tpu.dot_dimension_numbers<[1], [0], [0], [1], [0, 0, 1, 1], [], []>} : vector<8x32xbf16>, vector<32x32xbf16>, vector<8x32xf32> -> vector<8x32xf32>
    %857 = arith.truncf %694 : vector<8x32xf32> to vector<8x32xbf16>
    %c1_212 = arith.constant 1 : index
    %c5_213 = arith.constant 5 : index
    %c0_214 = arith.constant 0 : index
    %c0_215 = arith.constant 0 : index
    %858 = vector.load %arg3[%c1_212, %c5_213, %c0_214, %c0_215] : memref<3x8x32x32xbf16, #tpu.memory_space<vmem>>, vector<1x1x32x32xbf16>
    %859 = vector.shape_cast %858 : vector<1x1x32x32xbf16> to vector<32x32xbf16>
    %cst_216 = arith.constant dense<0.000000e+00> : vector<8x32xf32>
    %860 = tpu.matmul %857, %859, %cst_216 {dimension_numbers = #tpu.dot_dimension_numbers<[1], [0], [0], [1], [0, 0, 1, 1], [], []>} : vector<8x32xbf16>, vector<32x32xbf16>, vector<8x32xf32> -> vector<8x32xf32>
    %861 = arith.truncf %763 : vector<8x32xf32> to vector<8x32xbf16>
    %c1_217 = arith.constant 1 : index
    %c6_218 = arith.constant 6 : index
    %c0_219 = arith.constant 0 : index
    %c0_220 = arith.constant 0 : index
    %862 = vector.load %arg3[%c1_217, %c6_218, %c0_219, %c0_220] : memref<3x8x32x32xbf16, #tpu.memory_space<vmem>>, vector<1x1x32x32xbf16>
    %863 = vector.shape_cast %862 : vector<1x1x32x32xbf16> to vector<32x32xbf16>
    %cst_221 = arith.constant dense<0.000000e+00> : vector<8x32xf32>
    %864 = tpu.matmul %861, %863, %cst_221 {dimension_numbers = #tpu.dot_dimension_numbers<[1], [0], [0], [1], [0, 0, 1, 1], [], []>} : vector<8x32xbf16>, vector<32x32xbf16>, vector<8x32xf32> -> vector<8x32xf32>
    %865 = arith.truncf %832 : vector<8x32xf32> to vector<8x32xbf16>
    %c1_222 = arith.constant 1 : index
    %c7_223 = arith.constant 7 : index
    %c0_224 = arith.constant 0 : index
    %c0_225 = arith.constant 0 : index
    %866 = vector.load %arg3[%c1_222, %c7_223, %c0_224, %c0_225] : memref<3x8x32x32xbf16, #tpu.memory_space<vmem>>, vector<1x1x32x32xbf16>
    %867 = vector.shape_cast %866 : vector<1x1x32x32xbf16> to vector<32x32xbf16>
    %cst_226 = arith.constant dense<0.000000e+00> : vector<8x32xf32>
    %868 = tpu.matmul %865, %867, %cst_226 {dimension_numbers = #tpu.dot_dimension_numbers<[1], [0], [0], [1], [0, 0, 1, 1], [], []>} : vector<8x32xbf16>, vector<32x32xbf16>, vector<8x32xf32> -> vector<8x32xf32>
    %869 = vector.extract_strided_slice %96 {offsets = [0, 0], sizes = [8, 1], strides = [1, 1]} : vector<8x8xf32> to vector<8x1xf32>
    %870 = vector.broadcast %869 : vector<8x1xf32> to vector<8x32xf32>
    %871 = arith.mulf %870, %840 : vector<8x32xf32>
    %872 = vector.extract_strided_slice %96 {offsets = [0, 1], sizes = [8, 1], strides = [1, 1]} : vector<8x8xf32> to vector<8x1xf32>
    %873 = vector.broadcast %872 : vector<8x1xf32> to vector<8x32xf32>
    %874 = arith.mulf %873, %844 : vector<8x32xf32>
    %875 = arith.addf %871, %874 : vector<8x32xf32>
    %876 = vector.extract_strided_slice %96 {offsets = [0, 2], sizes = [8, 1], strides = [1, 1]} : vector<8x8xf32> to vector<8x1xf32>
    %877 = vector.broadcast %876 : vector<8x1xf32> to vector<8x32xf32>
    %878 = arith.mulf %877, %848 : vector<8x32xf32>
    %879 = arith.addf %875, %878 : vector<8x32xf32>
    %880 = vector.extract_strided_slice %96 {offsets = [0, 3], sizes = [8, 1], strides = [1, 1]} : vector<8x8xf32> to vector<8x1xf32>
    %881 = vector.broadcast %880 : vector<8x1xf32> to vector<8x32xf32>
    %882 = arith.mulf %881, %852 : vector<8x32xf32>
    %883 = arith.addf %879, %882 : vector<8x32xf32>
    %884 = vector.extract_strided_slice %96 {offsets = [0, 4], sizes = [8, 1], strides = [1, 1]} : vector<8x8xf32> to vector<8x1xf32>
    %885 = vector.broadcast %884 : vector<8x1xf32> to vector<8x32xf32>
    %886 = arith.mulf %885, %856 : vector<8x32xf32>
    %887 = arith.addf %883, %886 : vector<8x32xf32>
    %888 = vector.extract_strided_slice %96 {offsets = [0, 5], sizes = [8, 1], strides = [1, 1]} : vector<8x8xf32> to vector<8x1xf32>
    %889 = vector.broadcast %888 : vector<8x1xf32> to vector<8x32xf32>
    %890 = arith.mulf %889, %860 : vector<8x32xf32>
    %891 = arith.addf %887, %890 : vector<8x32xf32>
    %892 = vector.extract_strided_slice %96 {offsets = [0, 6], sizes = [8, 1], strides = [1, 1]} : vector<8x8xf32> to vector<8x1xf32>
    %893 = vector.broadcast %892 : vector<8x1xf32> to vector<8x32xf32>
    %894 = arith.mulf %893, %864 : vector<8x32xf32>
    %895 = arith.addf %891, %894 : vector<8x32xf32>
    %896 = vector.extract_strided_slice %96 {offsets = [0, 7], sizes = [8, 1], strides = [1, 1]} : vector<8x8xf32> to vector<8x1xf32>
    %897 = vector.broadcast %896 : vector<8x1xf32> to vector<8x32xf32>
    %898 = arith.mulf %897, %868 : vector<8x32xf32>
    %899 = arith.addf %895, %898 : vector<8x32xf32>
    %900 = arith.truncf %899 : vector<8x32xf32> to vector<8x32xbf16>
    %c1_227 = arith.constant 1 : index
    %c0_228 = arith.constant 0 : index
    %c0_229 = arith.constant 0 : index
    %c0_230 = arith.constant 0 : index
    %901 = vector.load %arg4[%c1_227, %c0_228, %c0_229, %c0_230] : memref<3x8x32x32xbf16, #tpu.memory_space<vmem>>, vector<1x1x32x32xbf16>
    %902 = vector.shape_cast %901 : vector<1x1x32x32xbf16> to vector<32x32xbf16>
    %cst_231 = arith.constant dense<0.000000e+00> : vector<8x32xf32>
    %903 = tpu.matmul %900, %902, %cst_231 {dimension_numbers = #tpu.dot_dimension_numbers<[1], [0], [0], [1], [0, 0, 1, 1], [], []>} : vector<8x32xbf16>, vector<32x32xbf16>, vector<8x32xf32> -> vector<8x32xf32>
    %904 = arith.addf %903, %836 : vector<8x32xf32>
    %905 = arith.truncf %904 : vector<8x32xf32> to vector<8x32xbf16>
    %cst_232 = arith.constant dense<0.000000e+00> : vector<8x96xf32>
    %906 = tpu.matmul %905, %237, %cst_232 {dimension_numbers = #tpu.dot_dimension_numbers<[1], [0], [0], [1], [0, 0, 1, 1], [], []>} : vector<8x32xbf16>, vector<32x96xbf16>, vector<8x96xf32> -> vector<8x96xf32>
    %907 = arith.addf %906, %241 : vector<8x96xf32>
    %908 = arith.truncf %349 : vector<8x32xf32> to vector<8x32xbf16>
    %cst_233 = arith.constant dense<0.000000e+00> : vector<8x96xf32>
    %909 = tpu.matmul %908, %238, %cst_233 {dimension_numbers = #tpu.dot_dimension_numbers<[1], [0], [0], [1], [0, 0, 1, 1], [], []>} : vector<8x32xbf16>, vector<32x96xbf16>, vector<8x96xf32> -> vector<8x96xf32>
    %910 = arith.addf %909, %244 : vector<8x96xf32>
    %911 = vector.extract_strided_slice %907 {offsets = [0, 0], sizes = [8, 32], strides = [1, 1]} : vector<8x96xf32> to vector<8x32xf32>
    %912 = vector.extract_strided_slice %910 {offsets = [0, 0], sizes = [8, 32], strides = [1, 1]} : vector<8x96xf32> to vector<8x32xf32>
    %913 = arith.addf %911, %912 : vector<8x32xf32>
    %914 = arith.negf %913 : vector<8x32xf32>
    %915 = math.exp %914 : vector<8x32xf32>
    %cst_234 = arith.constant 1.000000e+00 : f32
    %916 = vector.broadcast %cst_234 : f32 to vector<8x32xf32>
    %917 = arith.addf %916, %915 : vector<8x32xf32>
    %918 = arith.divf %916, %917 : vector<8x32xf32>
    %919 = vector.extract_strided_slice %907 {offsets = [0, 32], sizes = [8, 32], strides = [1, 1]} : vector<8x96xf32> to vector<8x32xf32>
    %920 = vector.extract_strided_slice %910 {offsets = [0, 32], sizes = [8, 32], strides = [1, 1]} : vector<8x96xf32> to vector<8x32xf32>
    %921 = arith.addf %919, %920 : vector<8x32xf32>
    %922 = arith.negf %921 : vector<8x32xf32>
    %923 = math.exp %922 : vector<8x32xf32>
    %cst_235 = arith.constant 1.000000e+00 : f32
    %924 = vector.broadcast %cst_235 : f32 to vector<8x32xf32>
    %925 = arith.addf %924, %923 : vector<8x32xf32>
    %926 = arith.divf %924, %925 : vector<8x32xf32>
    %927 = vector.extract_strided_slice %907 {offsets = [0, 64], sizes = [8, 32], strides = [1, 1]} : vector<8x96xf32> to vector<8x32xf32>
    %928 = vector.extract_strided_slice %910 {offsets = [0, 64], sizes = [8, 32], strides = [1, 1]} : vector<8x96xf32> to vector<8x32xf32>
    %929 = arith.mulf %918, %928 : vector<8x32xf32>
    %930 = arith.addf %927, %929 : vector<8x32xf32>
    %931 = math.tanh %930 : vector<8x32xf32>
    %cst_236 = arith.constant 1.000000e+00 : f32
    %932 = vector.broadcast %cst_236 : f32 to vector<8x32xf32>
    %933 = arith.subf %932, %926 : vector<8x32xf32>
    %934 = arith.mulf %933, %931 : vector<8x32xf32>
    %935 = arith.mulf %926, %349 : vector<8x32xf32>
    %936 = arith.addf %934, %935 : vector<8x32xf32>
    %937 = arith.addf %936, %1 : vector<8x32xf32>
    %938 = vector.extract_strided_slice %116 {offsets = [0, 0], sizes = [8, 1], strides = [1, 1]} : vector<8x8xf32> to vector<8x1xf32>
    %939 = vector.broadcast %938 : vector<8x1xf32> to vector<8x32xf32>
    %940 = arith.mulf %939, %840 : vector<8x32xf32>
    %941 = vector.extract_strided_slice %116 {offsets = [0, 1], sizes = [8, 1], strides = [1, 1]} : vector<8x8xf32> to vector<8x1xf32>
    %942 = vector.broadcast %941 : vector<8x1xf32> to vector<8x32xf32>
    %943 = arith.mulf %942, %844 : vector<8x32xf32>
    %944 = arith.addf %940, %943 : vector<8x32xf32>
    %945 = vector.extract_strided_slice %116 {offsets = [0, 2], sizes = [8, 1], strides = [1, 1]} : vector<8x8xf32> to vector<8x1xf32>
    %946 = vector.broadcast %945 : vector<8x1xf32> to vector<8x32xf32>
    %947 = arith.mulf %946, %848 : vector<8x32xf32>
    %948 = arith.addf %944, %947 : vector<8x32xf32>
    %949 = vector.extract_strided_slice %116 {offsets = [0, 3], sizes = [8, 1], strides = [1, 1]} : vector<8x8xf32> to vector<8x1xf32>
    %950 = vector.broadcast %949 : vector<8x1xf32> to vector<8x32xf32>
    %951 = arith.mulf %950, %852 : vector<8x32xf32>
    %952 = arith.addf %948, %951 : vector<8x32xf32>
    %953 = vector.extract_strided_slice %116 {offsets = [0, 4], sizes = [8, 1], strides = [1, 1]} : vector<8x8xf32> to vector<8x1xf32>
    %954 = vector.broadcast %953 : vector<8x1xf32> to vector<8x32xf32>
    %955 = arith.mulf %954, %856 : vector<8x32xf32>
    %956 = arith.addf %952, %955 : vector<8x32xf32>
    %957 = vector.extract_strided_slice %116 {offsets = [0, 5], sizes = [8, 1], strides = [1, 1]} : vector<8x8xf32> to vector<8x1xf32>
    %958 = vector.broadcast %957 : vector<8x1xf32> to vector<8x32xf32>
    %959 = arith.mulf %958, %860 : vector<8x32xf32>
    %960 = arith.addf %956, %959 : vector<8x32xf32>
    %961 = vector.extract_strided_slice %116 {offsets = [0, 6], sizes = [8, 1], strides = [1, 1]} : vector<8x8xf32> to vector<8x1xf32>
    %962 = vector.broadcast %961 : vector<8x1xf32> to vector<8x32xf32>
    %963 = arith.mulf %962, %864 : vector<8x32xf32>
    %964 = arith.addf %960, %963 : vector<8x32xf32>
    %965 = vector.extract_strided_slice %116 {offsets = [0, 7], sizes = [8, 1], strides = [1, 1]} : vector<8x8xf32> to vector<8x1xf32>
    %966 = vector.broadcast %965 : vector<8x1xf32> to vector<8x32xf32>
    %967 = arith.mulf %966, %868 : vector<8x32xf32>
    %968 = arith.addf %964, %967 : vector<8x32xf32>
    %969 = arith.truncf %968 : vector<8x32xf32> to vector<8x32xbf16>
    %c1_237 = arith.constant 1 : index
    %c1_238 = arith.constant 1 : index
    %c0_239 = arith.constant 0 : index
    %c0_240 = arith.constant 0 : index
    %970 = vector.load %arg4[%c1_237, %c1_238, %c0_239, %c0_240] : memref<3x8x32x32xbf16, #tpu.memory_space<vmem>>, vector<1x1x32x32xbf16>
    %971 = vector.shape_cast %970 : vector<1x1x32x32xbf16> to vector<32x32xbf16>
    %cst_241 = arith.constant dense<0.000000e+00> : vector<8x32xf32>
    %972 = tpu.matmul %969, %971, %cst_241 {dimension_numbers = #tpu.dot_dimension_numbers<[1], [0], [0], [1], [0, 0, 1, 1], [], []>} : vector<8x32xbf16>, vector<32x32xbf16>, vector<8x32xf32> -> vector<8x32xf32>
    %973 = arith.addf %972, %836 : vector<8x32xf32>
    %974 = arith.truncf %973 : vector<8x32xf32> to vector<8x32xbf16>
    %cst_242 = arith.constant dense<0.000000e+00> : vector<8x96xf32>
    %975 = tpu.matmul %974, %237, %cst_242 {dimension_numbers = #tpu.dot_dimension_numbers<[1], [0], [0], [1], [0, 0, 1, 1], [], []>} : vector<8x32xbf16>, vector<32x96xbf16>, vector<8x96xf32> -> vector<8x96xf32>
    %976 = arith.addf %975, %241 : vector<8x96xf32>
    %977 = arith.truncf %418 : vector<8x32xf32> to vector<8x32xbf16>
    %cst_243 = arith.constant dense<0.000000e+00> : vector<8x96xf32>
    %978 = tpu.matmul %977, %238, %cst_243 {dimension_numbers = #tpu.dot_dimension_numbers<[1], [0], [0], [1], [0, 0, 1, 1], [], []>} : vector<8x32xbf16>, vector<32x96xbf16>, vector<8x96xf32> -> vector<8x96xf32>
    %979 = arith.addf %978, %244 : vector<8x96xf32>
    %980 = vector.extract_strided_slice %976 {offsets = [0, 0], sizes = [8, 32], strides = [1, 1]} : vector<8x96xf32> to vector<8x32xf32>
    %981 = vector.extract_strided_slice %979 {offsets = [0, 0], sizes = [8, 32], strides = [1, 1]} : vector<8x96xf32> to vector<8x32xf32>
    %982 = arith.addf %980, %981 : vector<8x32xf32>
    %983 = arith.negf %982 : vector<8x32xf32>
    %984 = math.exp %983 : vector<8x32xf32>
    %cst_244 = arith.constant 1.000000e+00 : f32
    %985 = vector.broadcast %cst_244 : f32 to vector<8x32xf32>
    %986 = arith.addf %985, %984 : vector<8x32xf32>
    %987 = arith.divf %985, %986 : vector<8x32xf32>
    %988 = vector.extract_strided_slice %976 {offsets = [0, 32], sizes = [8, 32], strides = [1, 1]} : vector<8x96xf32> to vector<8x32xf32>
    %989 = vector.extract_strided_slice %979 {offsets = [0, 32], sizes = [8, 32], strides = [1, 1]} : vector<8x96xf32> to vector<8x32xf32>
    %990 = arith.addf %988, %989 : vector<8x32xf32>
    %991 = arith.negf %990 : vector<8x32xf32>
    %992 = math.exp %991 : vector<8x32xf32>
    %cst_245 = arith.constant 1.000000e+00 : f32
    %993 = vector.broadcast %cst_245 : f32 to vector<8x32xf32>
    %994 = arith.addf %993, %992 : vector<8x32xf32>
    %995 = arith.divf %993, %994 : vector<8x32xf32>
    %996 = vector.extract_strided_slice %976 {offsets = [0, 64], sizes = [8, 32], strides = [1, 1]} : vector<8x96xf32> to vector<8x32xf32>
    %997 = vector.extract_strided_slice %979 {offsets = [0, 64], sizes = [8, 32], strides = [1, 1]} : vector<8x96xf32> to vector<8x32xf32>
    %998 = arith.mulf %987, %997 : vector<8x32xf32>
    %999 = arith.addf %996, %998 : vector<8x32xf32>
    %1000 = math.tanh %999 : vector<8x32xf32>
    %cst_246 = arith.constant 1.000000e+00 : f32
    %1001 = vector.broadcast %cst_246 : f32 to vector<8x32xf32>
    %1002 = arith.subf %1001, %995 : vector<8x32xf32>
    %1003 = arith.mulf %1002, %1000 : vector<8x32xf32>
    %1004 = arith.mulf %995, %418 : vector<8x32xf32>
    %1005 = arith.addf %1003, %1004 : vector<8x32xf32>
    %1006 = arith.addf %1005, %2 : vector<8x32xf32>
    %1007 = vector.extract_strided_slice %136 {offsets = [0, 0], sizes = [8, 1], strides = [1, 1]} : vector<8x8xf32> to vector<8x1xf32>
    %1008 = vector.broadcast %1007 : vector<8x1xf32> to vector<8x32xf32>
    %1009 = arith.mulf %1008, %840 : vector<8x32xf32>
    %1010 = vector.extract_strided_slice %136 {offsets = [0, 1], sizes = [8, 1], strides = [1, 1]} : vector<8x8xf32> to vector<8x1xf32>
    %1011 = vector.broadcast %1010 : vector<8x1xf32> to vector<8x32xf32>
    %1012 = arith.mulf %1011, %844 : vector<8x32xf32>
    %1013 = arith.addf %1009, %1012 : vector<8x32xf32>
    %1014 = vector.extract_strided_slice %136 {offsets = [0, 2], sizes = [8, 1], strides = [1, 1]} : vector<8x8xf32> to vector<8x1xf32>
    %1015 = vector.broadcast %1014 : vector<8x1xf32> to vector<8x32xf32>
    %1016 = arith.mulf %1015, %848 : vector<8x32xf32>
    %1017 = arith.addf %1013, %1016 : vector<8x32xf32>
    %1018 = vector.extract_strided_slice %136 {offsets = [0, 3], sizes = [8, 1], strides = [1, 1]} : vector<8x8xf32> to vector<8x1xf32>
    %1019 = vector.broadcast %1018 : vector<8x1xf32> to vector<8x32xf32>
    %1020 = arith.mulf %1019, %852 : vector<8x32xf32>
    %1021 = arith.addf %1017, %1020 : vector<8x32xf32>
    %1022 = vector.extract_strided_slice %136 {offsets = [0, 4], sizes = [8, 1], strides = [1, 1]} : vector<8x8xf32> to vector<8x1xf32>
    %1023 = vector.broadcast %1022 : vector<8x1xf32> to vector<8x32xf32>
    %1024 = arith.mulf %1023, %856 : vector<8x32xf32>
    %1025 = arith.addf %1021, %1024 : vector<8x32xf32>
    %1026 = vector.extract_strided_slice %136 {offsets = [0, 5], sizes = [8, 1], strides = [1, 1]} : vector<8x8xf32> to vector<8x1xf32>
    %1027 = vector.broadcast %1026 : vector<8x1xf32> to vector<8x32xf32>
    %1028 = arith.mulf %1027, %860 : vector<8x32xf32>
    %1029 = arith.addf %1025, %1028 : vector<8x32xf32>
    %1030 = vector.extract_strided_slice %136 {offsets = [0, 6], sizes = [8, 1], strides = [1, 1]} : vector<8x8xf32> to vector<8x1xf32>
    %1031 = vector.broadcast %1030 : vector<8x1xf32> to vector<8x32xf32>
    %1032 = arith.mulf %1031, %864 : vector<8x32xf32>
    %1033 = arith.addf %1029, %1032 : vector<8x32xf32>
    %1034 = vector.extract_strided_slice %136 {offsets = [0, 7], sizes = [8, 1], strides = [1, 1]} : vector<8x8xf32> to vector<8x1xf32>
    %1035 = vector.broadcast %1034 : vector<8x1xf32> to vector<8x32xf32>
    %1036 = arith.mulf %1035, %868 : vector<8x32xf32>
    %1037 = arith.addf %1033, %1036 : vector<8x32xf32>
    %1038 = arith.truncf %1037 : vector<8x32xf32> to vector<8x32xbf16>
    %c1_247 = arith.constant 1 : index
    %c2_248 = arith.constant 2 : index
    %c0_249 = arith.constant 0 : index
    %c0_250 = arith.constant 0 : index
    %1039 = vector.load %arg4[%c1_247, %c2_248, %c0_249, %c0_250] : memref<3x8x32x32xbf16, #tpu.memory_space<vmem>>, vector<1x1x32x32xbf16>
    %1040 = vector.shape_cast %1039 : vector<1x1x32x32xbf16> to vector<32x32xbf16>
    %cst_251 = arith.constant dense<0.000000e+00> : vector<8x32xf32>
    %1041 = tpu.matmul %1038, %1040, %cst_251 {dimension_numbers = #tpu.dot_dimension_numbers<[1], [0], [0], [1], [0, 0, 1, 1], [], []>} : vector<8x32xbf16>, vector<32x32xbf16>, vector<8x32xf32> -> vector<8x32xf32>
    %1042 = arith.addf %1041, %836 : vector<8x32xf32>
    %1043 = arith.truncf %1042 : vector<8x32xf32> to vector<8x32xbf16>
    %cst_252 = arith.constant dense<0.000000e+00> : vector<8x96xf32>
    %1044 = tpu.matmul %1043, %237, %cst_252 {dimension_numbers = #tpu.dot_dimension_numbers<[1], [0], [0], [1], [0, 0, 1, 1], [], []>} : vector<8x32xbf16>, vector<32x96xbf16>, vector<8x96xf32> -> vector<8x96xf32>
    %1045 = arith.addf %1044, %241 : vector<8x96xf32>
    %1046 = arith.truncf %487 : vector<8x32xf32> to vector<8x32xbf16>
    %cst_253 = arith.constant dense<0.000000e+00> : vector<8x96xf32>
    %1047 = tpu.matmul %1046, %238, %cst_253 {dimension_numbers = #tpu.dot_dimension_numbers<[1], [0], [0], [1], [0, 0, 1, 1], [], []>} : vector<8x32xbf16>, vector<32x96xbf16>, vector<8x96xf32> -> vector<8x96xf32>
    %1048 = arith.addf %1047, %244 : vector<8x96xf32>
    %1049 = vector.extract_strided_slice %1045 {offsets = [0, 0], sizes = [8, 32], strides = [1, 1]} : vector<8x96xf32> to vector<8x32xf32>
    %1050 = vector.extract_strided_slice %1048 {offsets = [0, 0], sizes = [8, 32], strides = [1, 1]} : vector<8x96xf32> to vector<8x32xf32>
    %1051 = arith.addf %1049, %1050 : vector<8x32xf32>
    %1052 = arith.negf %1051 : vector<8x32xf32>
    %1053 = math.exp %1052 : vector<8x32xf32>
    %cst_254 = arith.constant 1.000000e+00 : f32
    %1054 = vector.broadcast %cst_254 : f32 to vector<8x32xf32>
    %1055 = arith.addf %1054, %1053 : vector<8x32xf32>
    %1056 = arith.divf %1054, %1055 : vector<8x32xf32>
    %1057 = vector.extract_strided_slice %1045 {offsets = [0, 32], sizes = [8, 32], strides = [1, 1]} : vector<8x96xf32> to vector<8x32xf32>
    %1058 = vector.extract_strided_slice %1048 {offsets = [0, 32], sizes = [8, 32], strides = [1, 1]} : vector<8x96xf32> to vector<8x32xf32>
    %1059 = arith.addf %1057, %1058 : vector<8x32xf32>
    %1060 = arith.negf %1059 : vector<8x32xf32>
    %1061 = math.exp %1060 : vector<8x32xf32>
    %cst_255 = arith.constant 1.000000e+00 : f32
    %1062 = vector.broadcast %cst_255 : f32 to vector<8x32xf32>
    %1063 = arith.addf %1062, %1061 : vector<8x32xf32>
    %1064 = arith.divf %1062, %1063 : vector<8x32xf32>
    %1065 = vector.extract_strided_slice %1045 {offsets = [0, 64], sizes = [8, 32], strides = [1, 1]} : vector<8x96xf32> to vector<8x32xf32>
    %1066 = vector.extract_strided_slice %1048 {offsets = [0, 64], sizes = [8, 32], strides = [1, 1]} : vector<8x96xf32> to vector<8x32xf32>
    %1067 = arith.mulf %1056, %1066 : vector<8x32xf32>
    %1068 = arith.addf %1065, %1067 : vector<8x32xf32>
    %1069 = math.tanh %1068 : vector<8x32xf32>
    %cst_256 = arith.constant 1.000000e+00 : f32
    %1070 = vector.broadcast %cst_256 : f32 to vector<8x32xf32>
    %1071 = arith.subf %1070, %1064 : vector<8x32xf32>
    %1072 = arith.mulf %1071, %1069 : vector<8x32xf32>
    %1073 = arith.mulf %1064, %487 : vector<8x32xf32>
    %1074 = arith.addf %1072, %1073 : vector<8x32xf32>
    %1075 = arith.addf %1074, %3 : vector<8x32xf32>
    %1076 = vector.extract_strided_slice %156 {offsets = [0, 0], sizes = [8, 1], strides = [1, 1]} : vector<8x8xf32> to vector<8x1xf32>
    %1077 = vector.broadcast %1076 : vector<8x1xf32> to vector<8x32xf32>
    %1078 = arith.mulf %1077, %840 : vector<8x32xf32>
    %1079 = vector.extract_strided_slice %156 {offsets = [0, 1], sizes = [8, 1], strides = [1, 1]} : vector<8x8xf32> to vector<8x1xf32>
    %1080 = vector.broadcast %1079 : vector<8x1xf32> to vector<8x32xf32>
    %1081 = arith.mulf %1080, %844 : vector<8x32xf32>
    %1082 = arith.addf %1078, %1081 : vector<8x32xf32>
    %1083 = vector.extract_strided_slice %156 {offsets = [0, 2], sizes = [8, 1], strides = [1, 1]} : vector<8x8xf32> to vector<8x1xf32>
    %1084 = vector.broadcast %1083 : vector<8x1xf32> to vector<8x32xf32>
    %1085 = arith.mulf %1084, %848 : vector<8x32xf32>
    %1086 = arith.addf %1082, %1085 : vector<8x32xf32>
    %1087 = vector.extract_strided_slice %156 {offsets = [0, 3], sizes = [8, 1], strides = [1, 1]} : vector<8x8xf32> to vector<8x1xf32>
    %1088 = vector.broadcast %1087 : vector<8x1xf32> to vector<8x32xf32>
    %1089 = arith.mulf %1088, %852 : vector<8x32xf32>
    %1090 = arith.addf %1086, %1089 : vector<8x32xf32>
    %1091 = vector.extract_strided_slice %156 {offsets = [0, 4], sizes = [8, 1], strides = [1, 1]} : vector<8x8xf32> to vector<8x1xf32>
    %1092 = vector.broadcast %1091 : vector<8x1xf32> to vector<8x32xf32>
    %1093 = arith.mulf %1092, %856 : vector<8x32xf32>
    %1094 = arith.addf %1090, %1093 : vector<8x32xf32>
    %1095 = vector.extract_strided_slice %156 {offsets = [0, 5], sizes = [8, 1], strides = [1, 1]} : vector<8x8xf32> to vector<8x1xf32>
    %1096 = vector.broadcast %1095 : vector<8x1xf32> to vector<8x32xf32>
    %1097 = arith.mulf %1096, %860 : vector<8x32xf32>
    %1098 = arith.addf %1094, %1097 : vector<8x32xf32>
    %1099 = vector.extract_strided_slice %156 {offsets = [0, 6], sizes = [8, 1], strides = [1, 1]} : vector<8x8xf32> to vector<8x1xf32>
    %1100 = vector.broadcast %1099 : vector<8x1xf32> to vector<8x32xf32>
    %1101 = arith.mulf %1100, %864 : vector<8x32xf32>
    %1102 = arith.addf %1098, %1101 : vector<8x32xf32>
    %1103 = vector.extract_strided_slice %156 {offsets = [0, 7], sizes = [8, 1], strides = [1, 1]} : vector<8x8xf32> to vector<8x1xf32>
    %1104 = vector.broadcast %1103 : vector<8x1xf32> to vector<8x32xf32>
    %1105 = arith.mulf %1104, %868 : vector<8x32xf32>
    %1106 = arith.addf %1102, %1105 : vector<8x32xf32>
    %1107 = arith.truncf %1106 : vector<8x32xf32> to vector<8x32xbf16>
    %c1_257 = arith.constant 1 : index
    %c3_258 = arith.constant 3 : index
    %c0_259 = arith.constant 0 : index
    %c0_260 = arith.constant 0 : index
    %1108 = vector.load %arg4[%c1_257, %c3_258, %c0_259, %c0_260] : memref<3x8x32x32xbf16, #tpu.memory_space<vmem>>, vector<1x1x32x32xbf16>
    %1109 = vector.shape_cast %1108 : vector<1x1x32x32xbf16> to vector<32x32xbf16>
    %cst_261 = arith.constant dense<0.000000e+00> : vector<8x32xf32>
    %1110 = tpu.matmul %1107, %1109, %cst_261 {dimension_numbers = #tpu.dot_dimension_numbers<[1], [0], [0], [1], [0, 0, 1, 1], [], []>} : vector<8x32xbf16>, vector<32x32xbf16>, vector<8x32xf32> -> vector<8x32xf32>
    %1111 = arith.addf %1110, %836 : vector<8x32xf32>
    %1112 = arith.truncf %1111 : vector<8x32xf32> to vector<8x32xbf16>
    %cst_262 = arith.constant dense<0.000000e+00> : vector<8x96xf32>
    %1113 = tpu.matmul %1112, %237, %cst_262 {dimension_numbers = #tpu.dot_dimension_numbers<[1], [0], [0], [1], [0, 0, 1, 1], [], []>} : vector<8x32xbf16>, vector<32x96xbf16>, vector<8x96xf32> -> vector<8x96xf32>
    %1114 = arith.addf %1113, %241 : vector<8x96xf32>
    %1115 = arith.truncf %556 : vector<8x32xf32> to vector<8x32xbf16>
    %cst_263 = arith.constant dense<0.000000e+00> : vector<8x96xf32>
    %1116 = tpu.matmul %1115, %238, %cst_263 {dimension_numbers = #tpu.dot_dimension_numbers<[1], [0], [0], [1], [0, 0, 1, 1], [], []>} : vector<8x32xbf16>, vector<32x96xbf16>, vector<8x96xf32> -> vector<8x96xf32>
    %1117 = arith.addf %1116, %244 : vector<8x96xf32>
    %1118 = vector.extract_strided_slice %1114 {offsets = [0, 0], sizes = [8, 32], strides = [1, 1]} : vector<8x96xf32> to vector<8x32xf32>
    %1119 = vector.extract_strided_slice %1117 {offsets = [0, 0], sizes = [8, 32], strides = [1, 1]} : vector<8x96xf32> to vector<8x32xf32>
    %1120 = arith.addf %1118, %1119 : vector<8x32xf32>
    %1121 = arith.negf %1120 : vector<8x32xf32>
    %1122 = math.exp %1121 : vector<8x32xf32>
    %cst_264 = arith.constant 1.000000e+00 : f32
    %1123 = vector.broadcast %cst_264 : f32 to vector<8x32xf32>
    %1124 = arith.addf %1123, %1122 : vector<8x32xf32>
    %1125 = arith.divf %1123, %1124 : vector<8x32xf32>
    %1126 = vector.extract_strided_slice %1114 {offsets = [0, 32], sizes = [8, 32], strides = [1, 1]} : vector<8x96xf32> to vector<8x32xf32>
    %1127 = vector.extract_strided_slice %1117 {offsets = [0, 32], sizes = [8, 32], strides = [1, 1]} : vector<8x96xf32> to vector<8x32xf32>
    %1128 = arith.addf %1126, %1127 : vector<8x32xf32>
    %1129 = arith.negf %1128 : vector<8x32xf32>
    %1130 = math.exp %1129 : vector<8x32xf32>
    %cst_265 = arith.constant 1.000000e+00 : f32
    %1131 = vector.broadcast %cst_265 : f32 to vector<8x32xf32>
    %1132 = arith.addf %1131, %1130 : vector<8x32xf32>
    %1133 = arith.divf %1131, %1132 : vector<8x32xf32>
    %1134 = vector.extract_strided_slice %1114 {offsets = [0, 64], sizes = [8, 32], strides = [1, 1]} : vector<8x96xf32> to vector<8x32xf32>
    %1135 = vector.extract_strided_slice %1117 {offsets = [0, 64], sizes = [8, 32], strides = [1, 1]} : vector<8x96xf32> to vector<8x32xf32>
    %1136 = arith.mulf %1125, %1135 : vector<8x32xf32>
    %1137 = arith.addf %1134, %1136 : vector<8x32xf32>
    %1138 = math.tanh %1137 : vector<8x32xf32>
    %cst_266 = arith.constant 1.000000e+00 : f32
    %1139 = vector.broadcast %cst_266 : f32 to vector<8x32xf32>
    %1140 = arith.subf %1139, %1133 : vector<8x32xf32>
    %1141 = arith.mulf %1140, %1138 : vector<8x32xf32>
    %1142 = arith.mulf %1133, %556 : vector<8x32xf32>
    %1143 = arith.addf %1141, %1142 : vector<8x32xf32>
    %1144 = arith.addf %1143, %4 : vector<8x32xf32>
    %1145 = vector.extract_strided_slice %176 {offsets = [0, 0], sizes = [8, 1], strides = [1, 1]} : vector<8x8xf32> to vector<8x1xf32>
    %1146 = vector.broadcast %1145 : vector<8x1xf32> to vector<8x32xf32>
    %1147 = arith.mulf %1146, %840 : vector<8x32xf32>
    %1148 = vector.extract_strided_slice %176 {offsets = [0, 1], sizes = [8, 1], strides = [1, 1]} : vector<8x8xf32> to vector<8x1xf32>
    %1149 = vector.broadcast %1148 : vector<8x1xf32> to vector<8x32xf32>
    %1150 = arith.mulf %1149, %844 : vector<8x32xf32>
    %1151 = arith.addf %1147, %1150 : vector<8x32xf32>
    %1152 = vector.extract_strided_slice %176 {offsets = [0, 2], sizes = [8, 1], strides = [1, 1]} : vector<8x8xf32> to vector<8x1xf32>
    %1153 = vector.broadcast %1152 : vector<8x1xf32> to vector<8x32xf32>
    %1154 = arith.mulf %1153, %848 : vector<8x32xf32>
    %1155 = arith.addf %1151, %1154 : vector<8x32xf32>
    %1156 = vector.extract_strided_slice %176 {offsets = [0, 3], sizes = [8, 1], strides = [1, 1]} : vector<8x8xf32> to vector<8x1xf32>
    %1157 = vector.broadcast %1156 : vector<8x1xf32> to vector<8x32xf32>
    %1158 = arith.mulf %1157, %852 : vector<8x32xf32>
    %1159 = arith.addf %1155, %1158 : vector<8x32xf32>
    %1160 = vector.extract_strided_slice %176 {offsets = [0, 4], sizes = [8, 1], strides = [1, 1]} : vector<8x8xf32> to vector<8x1xf32>
    %1161 = vector.broadcast %1160 : vector<8x1xf32> to vector<8x32xf32>
    %1162 = arith.mulf %1161, %856 : vector<8x32xf32>
    %1163 = arith.addf %1159, %1162 : vector<8x32xf32>
    %1164 = vector.extract_strided_slice %176 {offsets = [0, 5], sizes = [8, 1], strides = [1, 1]} : vector<8x8xf32> to vector<8x1xf32>
    %1165 = vector.broadcast %1164 : vector<8x1xf32> to vector<8x32xf32>
    %1166 = arith.mulf %1165, %860 : vector<8x32xf32>
    %1167 = arith.addf %1163, %1166 : vector<8x32xf32>
    %1168 = vector.extract_strided_slice %176 {offsets = [0, 6], sizes = [8, 1], strides = [1, 1]} : vector<8x8xf32> to vector<8x1xf32>
    %1169 = vector.broadcast %1168 : vector<8x1xf32> to vector<8x32xf32>
    %1170 = arith.mulf %1169, %864 : vector<8x32xf32>
    %1171 = arith.addf %1167, %1170 : vector<8x32xf32>
    %1172 = vector.extract_strided_slice %176 {offsets = [0, 7], sizes = [8, 1], strides = [1, 1]} : vector<8x8xf32> to vector<8x1xf32>
    %1173 = vector.broadcast %1172 : vector<8x1xf32> to vector<8x32xf32>
    %1174 = arith.mulf %1173, %868 : vector<8x32xf32>
    %1175 = arith.addf %1171, %1174 : vector<8x32xf32>
    %1176 = arith.truncf %1175 : vector<8x32xf32> to vector<8x32xbf16>
    %c1_267 = arith.constant 1 : index
    %c4_268 = arith.constant 4 : index
    %c0_269 = arith.constant 0 : index
    %c0_270 = arith.constant 0 : index
    %1177 = vector.load %arg4[%c1_267, %c4_268, %c0_269, %c0_270] : memref<3x8x32x32xbf16, #tpu.memory_space<vmem>>, vector<1x1x32x32xbf16>
    %1178 = vector.shape_cast %1177 : vector<1x1x32x32xbf16> to vector<32x32xbf16>
    %cst_271 = arith.constant dense<0.000000e+00> : vector<8x32xf32>
    %1179 = tpu.matmul %1176, %1178, %cst_271 {dimension_numbers = #tpu.dot_dimension_numbers<[1], [0], [0], [1], [0, 0, 1, 1], [], []>} : vector<8x32xbf16>, vector<32x32xbf16>, vector<8x32xf32> -> vector<8x32xf32>
    %1180 = arith.addf %1179, %836 : vector<8x32xf32>
    %1181 = arith.truncf %1180 : vector<8x32xf32> to vector<8x32xbf16>
    %cst_272 = arith.constant dense<0.000000e+00> : vector<8x96xf32>
    %1182 = tpu.matmul %1181, %237, %cst_272 {dimension_numbers = #tpu.dot_dimension_numbers<[1], [0], [0], [1], [0, 0, 1, 1], [], []>} : vector<8x32xbf16>, vector<32x96xbf16>, vector<8x96xf32> -> vector<8x96xf32>
    %1183 = arith.addf %1182, %241 : vector<8x96xf32>
    %1184 = arith.truncf %625 : vector<8x32xf32> to vector<8x32xbf16>
    %cst_273 = arith.constant dense<0.000000e+00> : vector<8x96xf32>
    %1185 = tpu.matmul %1184, %238, %cst_273 {dimension_numbers = #tpu.dot_dimension_numbers<[1], [0], [0], [1], [0, 0, 1, 1], [], []>} : vector<8x32xbf16>, vector<32x96xbf16>, vector<8x96xf32> -> vector<8x96xf32>
    %1186 = arith.addf %1185, %244 : vector<8x96xf32>
    %1187 = vector.extract_strided_slice %1183 {offsets = [0, 0], sizes = [8, 32], strides = [1, 1]} : vector<8x96xf32> to vector<8x32xf32>
    %1188 = vector.extract_strided_slice %1186 {offsets = [0, 0], sizes = [8, 32], strides = [1, 1]} : vector<8x96xf32> to vector<8x32xf32>
    %1189 = arith.addf %1187, %1188 : vector<8x32xf32>
    %1190 = arith.negf %1189 : vector<8x32xf32>
    %1191 = math.exp %1190 : vector<8x32xf32>
    %cst_274 = arith.constant 1.000000e+00 : f32
    %1192 = vector.broadcast %cst_274 : f32 to vector<8x32xf32>
    %1193 = arith.addf %1192, %1191 : vector<8x32xf32>
    %1194 = arith.divf %1192, %1193 : vector<8x32xf32>
    %1195 = vector.extract_strided_slice %1183 {offsets = [0, 32], sizes = [8, 32], strides = [1, 1]} : vector<8x96xf32> to vector<8x32xf32>
    %1196 = vector.extract_strided_slice %1186 {offsets = [0, 32], sizes = [8, 32], strides = [1, 1]} : vector<8x96xf32> to vector<8x32xf32>
    %1197 = arith.addf %1195, %1196 : vector<8x32xf32>
    %1198 = arith.negf %1197 : vector<8x32xf32>
    %1199 = math.exp %1198 : vector<8x32xf32>
    %cst_275 = arith.constant 1.000000e+00 : f32
    %1200 = vector.broadcast %cst_275 : f32 to vector<8x32xf32>
    %1201 = arith.addf %1200, %1199 : vector<8x32xf32>
    %1202 = arith.divf %1200, %1201 : vector<8x32xf32>
    %1203 = vector.extract_strided_slice %1183 {offsets = [0, 64], sizes = [8, 32], strides = [1, 1]} : vector<8x96xf32> to vector<8x32xf32>
    %1204 = vector.extract_strided_slice %1186 {offsets = [0, 64], sizes = [8, 32], strides = [1, 1]} : vector<8x96xf32> to vector<8x32xf32>
    %1205 = arith.mulf %1194, %1204 : vector<8x32xf32>
    %1206 = arith.addf %1203, %1205 : vector<8x32xf32>
    %1207 = math.tanh %1206 : vector<8x32xf32>
    %cst_276 = arith.constant 1.000000e+00 : f32
    %1208 = vector.broadcast %cst_276 : f32 to vector<8x32xf32>
    %1209 = arith.subf %1208, %1202 : vector<8x32xf32>
    %1210 = arith.mulf %1209, %1207 : vector<8x32xf32>
    %1211 = arith.mulf %1202, %625 : vector<8x32xf32>
    %1212 = arith.addf %1210, %1211 : vector<8x32xf32>
    %1213 = arith.addf %1212, %5 : vector<8x32xf32>
    %1214 = vector.extract_strided_slice %196 {offsets = [0, 0], sizes = [8, 1], strides = [1, 1]} : vector<8x8xf32> to vector<8x1xf32>
    %1215 = vector.broadcast %1214 : vector<8x1xf32> to vector<8x32xf32>
    %1216 = arith.mulf %1215, %840 : vector<8x32xf32>
    %1217 = vector.extract_strided_slice %196 {offsets = [0, 1], sizes = [8, 1], strides = [1, 1]} : vector<8x8xf32> to vector<8x1xf32>
    %1218 = vector.broadcast %1217 : vector<8x1xf32> to vector<8x32xf32>
    %1219 = arith.mulf %1218, %844 : vector<8x32xf32>
    %1220 = arith.addf %1216, %1219 : vector<8x32xf32>
    %1221 = vector.extract_strided_slice %196 {offsets = [0, 2], sizes = [8, 1], strides = [1, 1]} : vector<8x8xf32> to vector<8x1xf32>
    %1222 = vector.broadcast %1221 : vector<8x1xf32> to vector<8x32xf32>
    %1223 = arith.mulf %1222, %848 : vector<8x32xf32>
    %1224 = arith.addf %1220, %1223 : vector<8x32xf32>
    %1225 = vector.extract_strided_slice %196 {offsets = [0, 3], sizes = [8, 1], strides = [1, 1]} : vector<8x8xf32> to vector<8x1xf32>
    %1226 = vector.broadcast %1225 : vector<8x1xf32> to vector<8x32xf32>
    %1227 = arith.mulf %1226, %852 : vector<8x32xf32>
    %1228 = arith.addf %1224, %1227 : vector<8x32xf32>
    %1229 = vector.extract_strided_slice %196 {offsets = [0, 4], sizes = [8, 1], strides = [1, 1]} : vector<8x8xf32> to vector<8x1xf32>
    %1230 = vector.broadcast %1229 : vector<8x1xf32> to vector<8x32xf32>
    %1231 = arith.mulf %1230, %856 : vector<8x32xf32>
    %1232 = arith.addf %1228, %1231 : vector<8x32xf32>
    %1233 = vector.extract_strided_slice %196 {offsets = [0, 5], sizes = [8, 1], strides = [1, 1]} : vector<8x8xf32> to vector<8x1xf32>
    %1234 = vector.broadcast %1233 : vector<8x1xf32> to vector<8x32xf32>
    %1235 = arith.mulf %1234, %860 : vector<8x32xf32>
    %1236 = arith.addf %1232, %1235 : vector<8x32xf32>
    %1237 = vector.extract_strided_slice %196 {offsets = [0, 6], sizes = [8, 1], strides = [1, 1]} : vector<8x8xf32> to vector<8x1xf32>
    %1238 = vector.broadcast %1237 : vector<8x1xf32> to vector<8x32xf32>
    %1239 = arith.mulf %1238, %864 : vector<8x32xf32>
    %1240 = arith.addf %1236, %1239 : vector<8x32xf32>
    %1241 = vector.extract_strided_slice %196 {offsets = [0, 7], sizes = [8, 1], strides = [1, 1]} : vector<8x8xf32> to vector<8x1xf32>
    %1242 = vector.broadcast %1241 : vector<8x1xf32> to vector<8x32xf32>
    %1243 = arith.mulf %1242, %868 : vector<8x32xf32>
    %1244 = arith.addf %1240, %1243 : vector<8x32xf32>
    %1245 = arith.truncf %1244 : vector<8x32xf32> to vector<8x32xbf16>
    %c1_277 = arith.constant 1 : index
    %c5_278 = arith.constant 5 : index
    %c0_279 = arith.constant 0 : index
    %c0_280 = arith.constant 0 : index
    %1246 = vector.load %arg4[%c1_277, %c5_278, %c0_279, %c0_280] : memref<3x8x32x32xbf16, #tpu.memory_space<vmem>>, vector<1x1x32x32xbf16>
    %1247 = vector.shape_cast %1246 : vector<1x1x32x32xbf16> to vector<32x32xbf16>
    %cst_281 = arith.constant dense<0.000000e+00> : vector<8x32xf32>
    %1248 = tpu.matmul %1245, %1247, %cst_281 {dimension_numbers = #tpu.dot_dimension_numbers<[1], [0], [0], [1], [0, 0, 1, 1], [], []>} : vector<8x32xbf16>, vector<32x32xbf16>, vector<8x32xf32> -> vector<8x32xf32>
    %1249 = arith.addf %1248, %836 : vector<8x32xf32>
    %1250 = arith.truncf %1249 : vector<8x32xf32> to vector<8x32xbf16>
    %cst_282 = arith.constant dense<0.000000e+00> : vector<8x96xf32>
    %1251 = tpu.matmul %1250, %237, %cst_282 {dimension_numbers = #tpu.dot_dimension_numbers<[1], [0], [0], [1], [0, 0, 1, 1], [], []>} : vector<8x32xbf16>, vector<32x96xbf16>, vector<8x96xf32> -> vector<8x96xf32>
    %1252 = arith.addf %1251, %241 : vector<8x96xf32>
    %1253 = arith.truncf %694 : vector<8x32xf32> to vector<8x32xbf16>
    %cst_283 = arith.constant dense<0.000000e+00> : vector<8x96xf32>
    %1254 = tpu.matmul %1253, %238, %cst_283 {dimension_numbers = #tpu.dot_dimension_numbers<[1], [0], [0], [1], [0, 0, 1, 1], [], []>} : vector<8x32xbf16>, vector<32x96xbf16>, vector<8x96xf32> -> vector<8x96xf32>
    %1255 = arith.addf %1254, %244 : vector<8x96xf32>
    %1256 = vector.extract_strided_slice %1252 {offsets = [0, 0], sizes = [8, 32], strides = [1, 1]} : vector<8x96xf32> to vector<8x32xf32>
    %1257 = vector.extract_strided_slice %1255 {offsets = [0, 0], sizes = [8, 32], strides = [1, 1]} : vector<8x96xf32> to vector<8x32xf32>
    %1258 = arith.addf %1256, %1257 : vector<8x32xf32>
    %1259 = arith.negf %1258 : vector<8x32xf32>
    %1260 = math.exp %1259 : vector<8x32xf32>
    %cst_284 = arith.constant 1.000000e+00 : f32
    %1261 = vector.broadcast %cst_284 : f32 to vector<8x32xf32>
    %1262 = arith.addf %1261, %1260 : vector<8x32xf32>
    %1263 = arith.divf %1261, %1262 : vector<8x32xf32>
    %1264 = vector.extract_strided_slice %1252 {offsets = [0, 32], sizes = [8, 32], strides = [1, 1]} : vector<8x96xf32> to vector<8x32xf32>
    %1265 = vector.extract_strided_slice %1255 {offsets = [0, 32], sizes = [8, 32], strides = [1, 1]} : vector<8x96xf32> to vector<8x32xf32>
    %1266 = arith.addf %1264, %1265 : vector<8x32xf32>
    %1267 = arith.negf %1266 : vector<8x32xf32>
    %1268 = math.exp %1267 : vector<8x32xf32>
    %cst_285 = arith.constant 1.000000e+00 : f32
    %1269 = vector.broadcast %cst_285 : f32 to vector<8x32xf32>
    %1270 = arith.addf %1269, %1268 : vector<8x32xf32>
    %1271 = arith.divf %1269, %1270 : vector<8x32xf32>
    %1272 = vector.extract_strided_slice %1252 {offsets = [0, 64], sizes = [8, 32], strides = [1, 1]} : vector<8x96xf32> to vector<8x32xf32>
    %1273 = vector.extract_strided_slice %1255 {offsets = [0, 64], sizes = [8, 32], strides = [1, 1]} : vector<8x96xf32> to vector<8x32xf32>
    %1274 = arith.mulf %1263, %1273 : vector<8x32xf32>
    %1275 = arith.addf %1272, %1274 : vector<8x32xf32>
    %1276 = math.tanh %1275 : vector<8x32xf32>
    %cst_286 = arith.constant 1.000000e+00 : f32
    %1277 = vector.broadcast %cst_286 : f32 to vector<8x32xf32>
    %1278 = arith.subf %1277, %1271 : vector<8x32xf32>
    %1279 = arith.mulf %1278, %1276 : vector<8x32xf32>
    %1280 = arith.mulf %1271, %694 : vector<8x32xf32>
    %1281 = arith.addf %1279, %1280 : vector<8x32xf32>
    %1282 = arith.addf %1281, %6 : vector<8x32xf32>
    %1283 = vector.extract_strided_slice %216 {offsets = [0, 0], sizes = [8, 1], strides = [1, 1]} : vector<8x8xf32> to vector<8x1xf32>
    %1284 = vector.broadcast %1283 : vector<8x1xf32> to vector<8x32xf32>
    %1285 = arith.mulf %1284, %840 : vector<8x32xf32>
    %1286 = vector.extract_strided_slice %216 {offsets = [0, 1], sizes = [8, 1], strides = [1, 1]} : vector<8x8xf32> to vector<8x1xf32>
    %1287 = vector.broadcast %1286 : vector<8x1xf32> to vector<8x32xf32>
    %1288 = arith.mulf %1287, %844 : vector<8x32xf32>
    %1289 = arith.addf %1285, %1288 : vector<8x32xf32>
    %1290 = vector.extract_strided_slice %216 {offsets = [0, 2], sizes = [8, 1], strides = [1, 1]} : vector<8x8xf32> to vector<8x1xf32>
    %1291 = vector.broadcast %1290 : vector<8x1xf32> to vector<8x32xf32>
    %1292 = arith.mulf %1291, %848 : vector<8x32xf32>
    %1293 = arith.addf %1289, %1292 : vector<8x32xf32>
    %1294 = vector.extract_strided_slice %216 {offsets = [0, 3], sizes = [8, 1], strides = [1, 1]} : vector<8x8xf32> to vector<8x1xf32>
    %1295 = vector.broadcast %1294 : vector<8x1xf32> to vector<8x32xf32>
    %1296 = arith.mulf %1295, %852 : vector<8x32xf32>
    %1297 = arith.addf %1293, %1296 : vector<8x32xf32>
    %1298 = vector.extract_strided_slice %216 {offsets = [0, 4], sizes = [8, 1], strides = [1, 1]} : vector<8x8xf32> to vector<8x1xf32>
    %1299 = vector.broadcast %1298 : vector<8x1xf32> to vector<8x32xf32>
    %1300 = arith.mulf %1299, %856 : vector<8x32xf32>
    %1301 = arith.addf %1297, %1300 : vector<8x32xf32>
    %1302 = vector.extract_strided_slice %216 {offsets = [0, 5], sizes = [8, 1], strides = [1, 1]} : vector<8x8xf32> to vector<8x1xf32>
    %1303 = vector.broadcast %1302 : vector<8x1xf32> to vector<8x32xf32>
    %1304 = arith.mulf %1303, %860 : vector<8x32xf32>
    %1305 = arith.addf %1301, %1304 : vector<8x32xf32>
    %1306 = vector.extract_strided_slice %216 {offsets = [0, 6], sizes = [8, 1], strides = [1, 1]} : vector<8x8xf32> to vector<8x1xf32>
    %1307 = vector.broadcast %1306 : vector<8x1xf32> to vector<8x32xf32>
    %1308 = arith.mulf %1307, %864 : vector<8x32xf32>
    %1309 = arith.addf %1305, %1308 : vector<8x32xf32>
    %1310 = vector.extract_strided_slice %216 {offsets = [0, 7], sizes = [8, 1], strides = [1, 1]} : vector<8x8xf32> to vector<8x1xf32>
    %1311 = vector.broadcast %1310 : vector<8x1xf32> to vector<8x32xf32>
    %1312 = arith.mulf %1311, %868 : vector<8x32xf32>
    %1313 = arith.addf %1309, %1312 : vector<8x32xf32>
    %1314 = arith.truncf %1313 : vector<8x32xf32> to vector<8x32xbf16>
    %c1_287 = arith.constant 1 : index
    %c6_288 = arith.constant 6 : index
    %c0_289 = arith.constant 0 : index
    %c0_290 = arith.constant 0 : index
    %1315 = vector.load %arg4[%c1_287, %c6_288, %c0_289, %c0_290] : memref<3x8x32x32xbf16, #tpu.memory_space<vmem>>, vector<1x1x32x32xbf16>
    %1316 = vector.shape_cast %1315 : vector<1x1x32x32xbf16> to vector<32x32xbf16>
    %cst_291 = arith.constant dense<0.000000e+00> : vector<8x32xf32>
    %1317 = tpu.matmul %1314, %1316, %cst_291 {dimension_numbers = #tpu.dot_dimension_numbers<[1], [0], [0], [1], [0, 0, 1, 1], [], []>} : vector<8x32xbf16>, vector<32x32xbf16>, vector<8x32xf32> -> vector<8x32xf32>
    %1318 = arith.addf %1317, %836 : vector<8x32xf32>
    %1319 = arith.truncf %1318 : vector<8x32xf32> to vector<8x32xbf16>
    %cst_292 = arith.constant dense<0.000000e+00> : vector<8x96xf32>
    %1320 = tpu.matmul %1319, %237, %cst_292 {dimension_numbers = #tpu.dot_dimension_numbers<[1], [0], [0], [1], [0, 0, 1, 1], [], []>} : vector<8x32xbf16>, vector<32x96xbf16>, vector<8x96xf32> -> vector<8x96xf32>
    %1321 = arith.addf %1320, %241 : vector<8x96xf32>
    %1322 = arith.truncf %763 : vector<8x32xf32> to vector<8x32xbf16>
    %cst_293 = arith.constant dense<0.000000e+00> : vector<8x96xf32>
    %1323 = tpu.matmul %1322, %238, %cst_293 {dimension_numbers = #tpu.dot_dimension_numbers<[1], [0], [0], [1], [0, 0, 1, 1], [], []>} : vector<8x32xbf16>, vector<32x96xbf16>, vector<8x96xf32> -> vector<8x96xf32>
    %1324 = arith.addf %1323, %244 : vector<8x96xf32>
    %1325 = vector.extract_strided_slice %1321 {offsets = [0, 0], sizes = [8, 32], strides = [1, 1]} : vector<8x96xf32> to vector<8x32xf32>
    %1326 = vector.extract_strided_slice %1324 {offsets = [0, 0], sizes = [8, 32], strides = [1, 1]} : vector<8x96xf32> to vector<8x32xf32>
    %1327 = arith.addf %1325, %1326 : vector<8x32xf32>
    %1328 = arith.negf %1327 : vector<8x32xf32>
    %1329 = math.exp %1328 : vector<8x32xf32>
    %cst_294 = arith.constant 1.000000e+00 : f32
    %1330 = vector.broadcast %cst_294 : f32 to vector<8x32xf32>
    %1331 = arith.addf %1330, %1329 : vector<8x32xf32>
    %1332 = arith.divf %1330, %1331 : vector<8x32xf32>
    %1333 = vector.extract_strided_slice %1321 {offsets = [0, 32], sizes = [8, 32], strides = [1, 1]} : vector<8x96xf32> to vector<8x32xf32>
    %1334 = vector.extract_strided_slice %1324 {offsets = [0, 32], sizes = [8, 32], strides = [1, 1]} : vector<8x96xf32> to vector<8x32xf32>
    %1335 = arith.addf %1333, %1334 : vector<8x32xf32>
    %1336 = arith.negf %1335 : vector<8x32xf32>
    %1337 = math.exp %1336 : vector<8x32xf32>
    %cst_295 = arith.constant 1.000000e+00 : f32
    %1338 = vector.broadcast %cst_295 : f32 to vector<8x32xf32>
    %1339 = arith.addf %1338, %1337 : vector<8x32xf32>
    %1340 = arith.divf %1338, %1339 : vector<8x32xf32>
    %1341 = vector.extract_strided_slice %1321 {offsets = [0, 64], sizes = [8, 32], strides = [1, 1]} : vector<8x96xf32> to vector<8x32xf32>
    %1342 = vector.extract_strided_slice %1324 {offsets = [0, 64], sizes = [8, 32], strides = [1, 1]} : vector<8x96xf32> to vector<8x32xf32>
    %1343 = arith.mulf %1332, %1342 : vector<8x32xf32>
    %1344 = arith.addf %1341, %1343 : vector<8x32xf32>
    %1345 = math.tanh %1344 : vector<8x32xf32>
    %cst_296 = arith.constant 1.000000e+00 : f32
    %1346 = vector.broadcast %cst_296 : f32 to vector<8x32xf32>
    %1347 = arith.subf %1346, %1340 : vector<8x32xf32>
    %1348 = arith.mulf %1347, %1345 : vector<8x32xf32>
    %1349 = arith.mulf %1340, %763 : vector<8x32xf32>
    %1350 = arith.addf %1348, %1349 : vector<8x32xf32>
    %1351 = arith.addf %1350, %7 : vector<8x32xf32>
    %1352 = vector.extract_strided_slice %236 {offsets = [0, 0], sizes = [8, 1], strides = [1, 1]} : vector<8x8xf32> to vector<8x1xf32>
    %1353 = vector.broadcast %1352 : vector<8x1xf32> to vector<8x32xf32>
    %1354 = arith.mulf %1353, %840 : vector<8x32xf32>
    %1355 = vector.extract_strided_slice %236 {offsets = [0, 1], sizes = [8, 1], strides = [1, 1]} : vector<8x8xf32> to vector<8x1xf32>
    %1356 = vector.broadcast %1355 : vector<8x1xf32> to vector<8x32xf32>
    %1357 = arith.mulf %1356, %844 : vector<8x32xf32>
    %1358 = arith.addf %1354, %1357 : vector<8x32xf32>
    %1359 = vector.extract_strided_slice %236 {offsets = [0, 2], sizes = [8, 1], strides = [1, 1]} : vector<8x8xf32> to vector<8x1xf32>
    %1360 = vector.broadcast %1359 : vector<8x1xf32> to vector<8x32xf32>
    %1361 = arith.mulf %1360, %848 : vector<8x32xf32>
    %1362 = arith.addf %1358, %1361 : vector<8x32xf32>
    %1363 = vector.extract_strided_slice %236 {offsets = [0, 3], sizes = [8, 1], strides = [1, 1]} : vector<8x8xf32> to vector<8x1xf32>
    %1364 = vector.broadcast %1363 : vector<8x1xf32> to vector<8x32xf32>
    %1365 = arith.mulf %1364, %852 : vector<8x32xf32>
    %1366 = arith.addf %1362, %1365 : vector<8x32xf32>
    %1367 = vector.extract_strided_slice %236 {offsets = [0, 4], sizes = [8, 1], strides = [1, 1]} : vector<8x8xf32> to vector<8x1xf32>
    %1368 = vector.broadcast %1367 : vector<8x1xf32> to vector<8x32xf32>
    %1369 = arith.mulf %1368, %856 : vector<8x32xf32>
    %1370 = arith.addf %1366, %1369 : vector<8x32xf32>
    %1371 = vector.extract_strided_slice %236 {offsets = [0, 5], sizes = [8, 1], strides = [1, 1]} : vector<8x8xf32> to vector<8x1xf32>
    %1372 = vector.broadcast %1371 : vector<8x1xf32> to vector<8x32xf32>
    %1373 = arith.mulf %1372, %860 : vector<8x32xf32>
    %1374 = arith.addf %1370, %1373 : vector<8x32xf32>
    %1375 = vector.extract_strided_slice %236 {offsets = [0, 6], sizes = [8, 1], strides = [1, 1]} : vector<8x8xf32> to vector<8x1xf32>
    %1376 = vector.broadcast %1375 : vector<8x1xf32> to vector<8x32xf32>
    %1377 = arith.mulf %1376, %864 : vector<8x32xf32>
    %1378 = arith.addf %1374, %1377 : vector<8x32xf32>
    %1379 = vector.extract_strided_slice %236 {offsets = [0, 7], sizes = [8, 1], strides = [1, 1]} : vector<8x8xf32> to vector<8x1xf32>
    %1380 = vector.broadcast %1379 : vector<8x1xf32> to vector<8x32xf32>
    %1381 = arith.mulf %1380, %868 : vector<8x32xf32>
    %1382 = arith.addf %1378, %1381 : vector<8x32xf32>
    %1383 = arith.truncf %1382 : vector<8x32xf32> to vector<8x32xbf16>
    %c1_297 = arith.constant 1 : index
    %c7_298 = arith.constant 7 : index
    %c0_299 = arith.constant 0 : index
    %c0_300 = arith.constant 0 : index
    %1384 = vector.load %arg4[%c1_297, %c7_298, %c0_299, %c0_300] : memref<3x8x32x32xbf16, #tpu.memory_space<vmem>>, vector<1x1x32x32xbf16>
    %1385 = vector.shape_cast %1384 : vector<1x1x32x32xbf16> to vector<32x32xbf16>
    %cst_301 = arith.constant dense<0.000000e+00> : vector<8x32xf32>
    %1386 = tpu.matmul %1383, %1385, %cst_301 {dimension_numbers = #tpu.dot_dimension_numbers<[1], [0], [0], [1], [0, 0, 1, 1], [], []>} : vector<8x32xbf16>, vector<32x32xbf16>, vector<8x32xf32> -> vector<8x32xf32>
    %1387 = arith.addf %1386, %836 : vector<8x32xf32>
    %1388 = arith.truncf %1387 : vector<8x32xf32> to vector<8x32xbf16>
    %cst_302 = arith.constant dense<0.000000e+00> : vector<8x96xf32>
    %1389 = tpu.matmul %1388, %237, %cst_302 {dimension_numbers = #tpu.dot_dimension_numbers<[1], [0], [0], [1], [0, 0, 1, 1], [], []>} : vector<8x32xbf16>, vector<32x96xbf16>, vector<8x96xf32> -> vector<8x96xf32>
    %1390 = arith.addf %1389, %241 : vector<8x96xf32>
    %1391 = arith.truncf %832 : vector<8x32xf32> to vector<8x32xbf16>
    %cst_303 = arith.constant dense<0.000000e+00> : vector<8x96xf32>
    %1392 = tpu.matmul %1391, %238, %cst_303 {dimension_numbers = #tpu.dot_dimension_numbers<[1], [0], [0], [1], [0, 0, 1, 1], [], []>} : vector<8x32xbf16>, vector<32x96xbf16>, vector<8x96xf32> -> vector<8x96xf32>
    %1393 = arith.addf %1392, %244 : vector<8x96xf32>
    %1394 = vector.extract_strided_slice %1390 {offsets = [0, 0], sizes = [8, 32], strides = [1, 1]} : vector<8x96xf32> to vector<8x32xf32>
    %1395 = vector.extract_strided_slice %1393 {offsets = [0, 0], sizes = [8, 32], strides = [1, 1]} : vector<8x96xf32> to vector<8x32xf32>
    %1396 = arith.addf %1394, %1395 : vector<8x32xf32>
    %1397 = arith.negf %1396 : vector<8x32xf32>
    %1398 = math.exp %1397 : vector<8x32xf32>
    %cst_304 = arith.constant 1.000000e+00 : f32
    %1399 = vector.broadcast %cst_304 : f32 to vector<8x32xf32>
    %1400 = arith.addf %1399, %1398 : vector<8x32xf32>
    %1401 = arith.divf %1399, %1400 : vector<8x32xf32>
    %1402 = vector.extract_strided_slice %1390 {offsets = [0, 32], sizes = [8, 32], strides = [1, 1]} : vector<8x96xf32> to vector<8x32xf32>
    %1403 = vector.extract_strided_slice %1393 {offsets = [0, 32], sizes = [8, 32], strides = [1, 1]} : vector<8x96xf32> to vector<8x32xf32>
    %1404 = arith.addf %1402, %1403 : vector<8x32xf32>
    %1405 = arith.negf %1404 : vector<8x32xf32>
    %1406 = math.exp %1405 : vector<8x32xf32>
    %cst_305 = arith.constant 1.000000e+00 : f32
    %1407 = vector.broadcast %cst_305 : f32 to vector<8x32xf32>
    %1408 = arith.addf %1407, %1406 : vector<8x32xf32>
    %1409 = arith.divf %1407, %1408 : vector<8x32xf32>
    %1410 = vector.extract_strided_slice %1390 {offsets = [0, 64], sizes = [8, 32], strides = [1, 1]} : vector<8x96xf32> to vector<8x32xf32>
    %1411 = vector.extract_strided_slice %1393 {offsets = [0, 64], sizes = [8, 32], strides = [1, 1]} : vector<8x96xf32> to vector<8x32xf32>
    %1412 = arith.mulf %1401, %1411 : vector<8x32xf32>
    %1413 = arith.addf %1410, %1412 : vector<8x32xf32>
    %1414 = math.tanh %1413 : vector<8x32xf32>
    %cst_306 = arith.constant 1.000000e+00 : f32
    %1415 = vector.broadcast %cst_306 : f32 to vector<8x32xf32>
    %1416 = arith.subf %1415, %1409 : vector<8x32xf32>
    %1417 = arith.mulf %1416, %1414 : vector<8x32xf32>
    %1418 = arith.mulf %1409, %832 : vector<8x32xf32>
    %1419 = arith.addf %1417, %1418 : vector<8x32xf32>
    %1420 = arith.addf %1419, %8 : vector<8x32xf32>
    %c2_307 = arith.constant 2 : index
    %c0_308 = arith.constant 0 : index
    %c0_309 = arith.constant 0 : index
    %1421 = vector.load %arg5[%c2_307, %c0_308, %c0_309] : memref<3x1x32xf32, #tpu.memory_space<vmem>>, vector<1x1x32xf32>
    %1422 = vector.shape_cast %1421 : vector<1x1x32xf32> to vector<1x32xf32>
    %1423 = vector.shape_cast %1422 : vector<1x32xf32> to vector<1x32xf32>
    %1424 = vector.broadcast %1423 : vector<1x32xf32> to vector<8x32xf32>
    %1425 = arith.truncf %937 : vector<8x32xf32> to vector<8x32xbf16>
    %c2_310 = arith.constant 2 : index
    %c0_311 = arith.constant 0 : index
    %c0_312 = arith.constant 0 : index
    %c0_313 = arith.constant 0 : index
    %1426 = vector.load %arg3[%c2_310, %c0_311, %c0_312, %c0_313] : memref<3x8x32x32xbf16, #tpu.memory_space<vmem>>, vector<1x1x32x32xbf16>
    %1427 = vector.shape_cast %1426 : vector<1x1x32x32xbf16> to vector<32x32xbf16>
    %cst_314 = arith.constant dense<0.000000e+00> : vector<8x32xf32>
    %1428 = tpu.matmul %1425, %1427, %cst_314 {dimension_numbers = #tpu.dot_dimension_numbers<[1], [0], [0], [1], [0, 0, 1, 1], [], []>} : vector<8x32xbf16>, vector<32x32xbf16>, vector<8x32xf32> -> vector<8x32xf32>
    %1429 = arith.truncf %1006 : vector<8x32xf32> to vector<8x32xbf16>
    %c2_315 = arith.constant 2 : index
    %c1_316 = arith.constant 1 : index
    %c0_317 = arith.constant 0 : index
    %c0_318 = arith.constant 0 : index
    %1430 = vector.load %arg3[%c2_315, %c1_316, %c0_317, %c0_318] : memref<3x8x32x32xbf16, #tpu.memory_space<vmem>>, vector<1x1x32x32xbf16>
    %1431 = vector.shape_cast %1430 : vector<1x1x32x32xbf16> to vector<32x32xbf16>
    %cst_319 = arith.constant dense<0.000000e+00> : vector<8x32xf32>
    %1432 = tpu.matmul %1429, %1431, %cst_319 {dimension_numbers = #tpu.dot_dimension_numbers<[1], [0], [0], [1], [0, 0, 1, 1], [], []>} : vector<8x32xbf16>, vector<32x32xbf16>, vector<8x32xf32> -> vector<8x32xf32>
    %1433 = arith.truncf %1075 : vector<8x32xf32> to vector<8x32xbf16>
    %c2_320 = arith.constant 2 : index
    %c2_321 = arith.constant 2 : index
    %c0_322 = arith.constant 0 : index
    %c0_323 = arith.constant 0 : index
    %1434 = vector.load %arg3[%c2_320, %c2_321, %c0_322, %c0_323] : memref<3x8x32x32xbf16, #tpu.memory_space<vmem>>, vector<1x1x32x32xbf16>
    %1435 = vector.shape_cast %1434 : vector<1x1x32x32xbf16> to vector<32x32xbf16>
    %cst_324 = arith.constant dense<0.000000e+00> : vector<8x32xf32>
    %1436 = tpu.matmul %1433, %1435, %cst_324 {dimension_numbers = #tpu.dot_dimension_numbers<[1], [0], [0], [1], [0, 0, 1, 1], [], []>} : vector<8x32xbf16>, vector<32x32xbf16>, vector<8x32xf32> -> vector<8x32xf32>
    %1437 = arith.truncf %1144 : vector<8x32xf32> to vector<8x32xbf16>
    %c2_325 = arith.constant 2 : index
    %c3_326 = arith.constant 3 : index
    %c0_327 = arith.constant 0 : index
    %c0_328 = arith.constant 0 : index
    %1438 = vector.load %arg3[%c2_325, %c3_326, %c0_327, %c0_328] : memref<3x8x32x32xbf16, #tpu.memory_space<vmem>>, vector<1x1x32x32xbf16>
    %1439 = vector.shape_cast %1438 : vector<1x1x32x32xbf16> to vector<32x32xbf16>
    %cst_329 = arith.constant dense<0.000000e+00> : vector<8x32xf32>
    %1440 = tpu.matmul %1437, %1439, %cst_329 {dimension_numbers = #tpu.dot_dimension_numbers<[1], [0], [0], [1], [0, 0, 1, 1], [], []>} : vector<8x32xbf16>, vector<32x32xbf16>, vector<8x32xf32> -> vector<8x32xf32>
    %1441 = arith.truncf %1213 : vector<8x32xf32> to vector<8x32xbf16>
    %c2_330 = arith.constant 2 : index
    %c4_331 = arith.constant 4 : index
    %c0_332 = arith.constant 0 : index
    %c0_333 = arith.constant 0 : index
    %1442 = vector.load %arg3[%c2_330, %c4_331, %c0_332, %c0_333] : memref<3x8x32x32xbf16, #tpu.memory_space<vmem>>, vector<1x1x32x32xbf16>
    %1443 = vector.shape_cast %1442 : vector<1x1x32x32xbf16> to vector<32x32xbf16>
    %cst_334 = arith.constant dense<0.000000e+00> : vector<8x32xf32>
    %1444 = tpu.matmul %1441, %1443, %cst_334 {dimension_numbers = #tpu.dot_dimension_numbers<[1], [0], [0], [1], [0, 0, 1, 1], [], []>} : vector<8x32xbf16>, vector<32x32xbf16>, vector<8x32xf32> -> vector<8x32xf32>
    %1445 = arith.truncf %1282 : vector<8x32xf32> to vector<8x32xbf16>
    %c2_335 = arith.constant 2 : index
    %c5_336 = arith.constant 5 : index
    %c0_337 = arith.constant 0 : index
    %c0_338 = arith.constant 0 : index
    %1446 = vector.load %arg3[%c2_335, %c5_336, %c0_337, %c0_338] : memref<3x8x32x32xbf16, #tpu.memory_space<vmem>>, vector<1x1x32x32xbf16>
    %1447 = vector.shape_cast %1446 : vector<1x1x32x32xbf16> to vector<32x32xbf16>
    %cst_339 = arith.constant dense<0.000000e+00> : vector<8x32xf32>
    %1448 = tpu.matmul %1445, %1447, %cst_339 {dimension_numbers = #tpu.dot_dimension_numbers<[1], [0], [0], [1], [0, 0, 1, 1], [], []>} : vector<8x32xbf16>, vector<32x32xbf16>, vector<8x32xf32> -> vector<8x32xf32>
    %1449 = arith.truncf %1351 : vector<8x32xf32> to vector<8x32xbf16>
    %c2_340 = arith.constant 2 : index
    %c6_341 = arith.constant 6 : index
    %c0_342 = arith.constant 0 : index
    %c0_343 = arith.constant 0 : index
    %1450 = vector.load %arg3[%c2_340, %c6_341, %c0_342, %c0_343] : memref<3x8x32x32xbf16, #tpu.memory_space<vmem>>, vector<1x1x32x32xbf16>
    %1451 = vector.shape_cast %1450 : vector<1x1x32x32xbf16> to vector<32x32xbf16>
    %cst_344 = arith.constant dense<0.000000e+00> : vector<8x32xf32>
    %1452 = tpu.matmul %1449, %1451, %cst_344 {dimension_numbers = #tpu.dot_dimension_numbers<[1], [0], [0], [1], [0, 0, 1, 1], [], []>} : vector<8x32xbf16>, vector<32x32xbf16>, vector<8x32xf32> -> vector<8x32xf32>
    %1453 = arith.truncf %1420 : vector<8x32xf32> to vector<8x32xbf16>
    %c2_345 = arith.constant 2 : index
    %c7_346 = arith.constant 7 : index
    %c0_347 = arith.constant 0 : index
    %c0_348 = arith.constant 0 : index
    %1454 = vector.load %arg3[%c2_345, %c7_346, %c0_347, %c0_348] : memref<3x8x32x32xbf16, #tpu.memory_space<vmem>>, vector<1x1x32x32xbf16>
    %1455 = vector.shape_cast %1454 : vector<1x1x32x32xbf16> to vector<32x32xbf16>
    %cst_349 = arith.constant dense<0.000000e+00> : vector<8x32xf32>
    %1456 = tpu.matmul %1453, %1455, %cst_349 {dimension_numbers = #tpu.dot_dimension_numbers<[1], [0], [0], [1], [0, 0, 1, 1], [], []>} : vector<8x32xbf16>, vector<32x32xbf16>, vector<8x32xf32> -> vector<8x32xf32>
    %1457 = vector.extract_strided_slice %96 {offsets = [0, 0], sizes = [8, 1], strides = [1, 1]} : vector<8x8xf32> to vector<8x1xf32>
    %1458 = vector.broadcast %1457 : vector<8x1xf32> to vector<8x32xf32>
    %1459 = arith.mulf %1458, %1428 : vector<8x32xf32>
    %1460 = vector.extract_strided_slice %96 {offsets = [0, 1], sizes = [8, 1], strides = [1, 1]} : vector<8x8xf32> to vector<8x1xf32>
    %1461 = vector.broadcast %1460 : vector<8x1xf32> to vector<8x32xf32>
    %1462 = arith.mulf %1461, %1432 : vector<8x32xf32>
    %1463 = arith.addf %1459, %1462 : vector<8x32xf32>
    %1464 = vector.extract_strided_slice %96 {offsets = [0, 2], sizes = [8, 1], strides = [1, 1]} : vector<8x8xf32> to vector<8x1xf32>
    %1465 = vector.broadcast %1464 : vector<8x1xf32> to vector<8x32xf32>
    %1466 = arith.mulf %1465, %1436 : vector<8x32xf32>
    %1467 = arith.addf %1463, %1466 : vector<8x32xf32>
    %1468 = vector.extract_strided_slice %96 {offsets = [0, 3], sizes = [8, 1], strides = [1, 1]} : vector<8x8xf32> to vector<8x1xf32>
    %1469 = vector.broadcast %1468 : vector<8x1xf32> to vector<8x32xf32>
    %1470 = arith.mulf %1469, %1440 : vector<8x32xf32>
    %1471 = arith.addf %1467, %1470 : vector<8x32xf32>
    %1472 = vector.extract_strided_slice %96 {offsets = [0, 4], sizes = [8, 1], strides = [1, 1]} : vector<8x8xf32> to vector<8x1xf32>
    %1473 = vector.broadcast %1472 : vector<8x1xf32> to vector<8x32xf32>
    %1474 = arith.mulf %1473, %1444 : vector<8x32xf32>
    %1475 = arith.addf %1471, %1474 : vector<8x32xf32>
    %1476 = vector.extract_strided_slice %96 {offsets = [0, 5], sizes = [8, 1], strides = [1, 1]} : vector<8x8xf32> to vector<8x1xf32>
    %1477 = vector.broadcast %1476 : vector<8x1xf32> to vector<8x32xf32>
    %1478 = arith.mulf %1477, %1448 : vector<8x32xf32>
    %1479 = arith.addf %1475, %1478 : vector<8x32xf32>
    %1480 = vector.extract_strided_slice %96 {offsets = [0, 6], sizes = [8, 1], strides = [1, 1]} : vector<8x8xf32> to vector<8x1xf32>
    %1481 = vector.broadcast %1480 : vector<8x1xf32> to vector<8x32xf32>
    %1482 = arith.mulf %1481, %1452 : vector<8x32xf32>
    %1483 = arith.addf %1479, %1482 : vector<8x32xf32>
    %1484 = vector.extract_strided_slice %96 {offsets = [0, 7], sizes = [8, 1], strides = [1, 1]} : vector<8x8xf32> to vector<8x1xf32>
    %1485 = vector.broadcast %1484 : vector<8x1xf32> to vector<8x32xf32>
    %1486 = arith.mulf %1485, %1456 : vector<8x32xf32>
    %1487 = arith.addf %1483, %1486 : vector<8x32xf32>
    %1488 = arith.truncf %1487 : vector<8x32xf32> to vector<8x32xbf16>
    %c2_350 = arith.constant 2 : index
    %c0_351 = arith.constant 0 : index
    %c0_352 = arith.constant 0 : index
    %c0_353 = arith.constant 0 : index
    %1489 = vector.load %arg4[%c2_350, %c0_351, %c0_352, %c0_353] : memref<3x8x32x32xbf16, #tpu.memory_space<vmem>>, vector<1x1x32x32xbf16>
    %1490 = vector.shape_cast %1489 : vector<1x1x32x32xbf16> to vector<32x32xbf16>
    %cst_354 = arith.constant dense<0.000000e+00> : vector<8x32xf32>
    %1491 = tpu.matmul %1488, %1490, %cst_354 {dimension_numbers = #tpu.dot_dimension_numbers<[1], [0], [0], [1], [0, 0, 1, 1], [], []>} : vector<8x32xbf16>, vector<32x32xbf16>, vector<8x32xf32> -> vector<8x32xf32>
    %1492 = arith.addf %1491, %1424 : vector<8x32xf32>
    %1493 = arith.truncf %1492 : vector<8x32xf32> to vector<8x32xbf16>
    %cst_355 = arith.constant dense<0.000000e+00> : vector<8x96xf32>
    %1494 = tpu.matmul %1493, %237, %cst_355 {dimension_numbers = #tpu.dot_dimension_numbers<[1], [0], [0], [1], [0, 0, 1, 1], [], []>} : vector<8x32xbf16>, vector<32x96xbf16>, vector<8x96xf32> -> vector<8x96xf32>
    %1495 = arith.addf %1494, %241 : vector<8x96xf32>
    %1496 = arith.truncf %937 : vector<8x32xf32> to vector<8x32xbf16>
    %cst_356 = arith.constant dense<0.000000e+00> : vector<8x96xf32>
    %1497 = tpu.matmul %1496, %238, %cst_356 {dimension_numbers = #tpu.dot_dimension_numbers<[1], [0], [0], [1], [0, 0, 1, 1], [], []>} : vector<8x32xbf16>, vector<32x96xbf16>, vector<8x96xf32> -> vector<8x96xf32>
    %1498 = arith.addf %1497, %244 : vector<8x96xf32>
    %1499 = vector.extract_strided_slice %1495 {offsets = [0, 0], sizes = [8, 32], strides = [1, 1]} : vector<8x96xf32> to vector<8x32xf32>
    %1500 = vector.extract_strided_slice %1498 {offsets = [0, 0], sizes = [8, 32], strides = [1, 1]} : vector<8x96xf32> to vector<8x32xf32>
    %1501 = arith.addf %1499, %1500 : vector<8x32xf32>
    %1502 = arith.negf %1501 : vector<8x32xf32>
    %1503 = math.exp %1502 : vector<8x32xf32>
    %cst_357 = arith.constant 1.000000e+00 : f32
    %1504 = vector.broadcast %cst_357 : f32 to vector<8x32xf32>
    %1505 = arith.addf %1504, %1503 : vector<8x32xf32>
    %1506 = arith.divf %1504, %1505 : vector<8x32xf32>
    %1507 = vector.extract_strided_slice %1495 {offsets = [0, 32], sizes = [8, 32], strides = [1, 1]} : vector<8x96xf32> to vector<8x32xf32>
    %1508 = vector.extract_strided_slice %1498 {offsets = [0, 32], sizes = [8, 32], strides = [1, 1]} : vector<8x96xf32> to vector<8x32xf32>
    %1509 = arith.addf %1507, %1508 : vector<8x32xf32>
    %1510 = arith.negf %1509 : vector<8x32xf32>
    %1511 = math.exp %1510 : vector<8x32xf32>
    %cst_358 = arith.constant 1.000000e+00 : f32
    %1512 = vector.broadcast %cst_358 : f32 to vector<8x32xf32>
    %1513 = arith.addf %1512, %1511 : vector<8x32xf32>
    %1514 = arith.divf %1512, %1513 : vector<8x32xf32>
    %1515 = vector.extract_strided_slice %1495 {offsets = [0, 64], sizes = [8, 32], strides = [1, 1]} : vector<8x96xf32> to vector<8x32xf32>
    %1516 = vector.extract_strided_slice %1498 {offsets = [0, 64], sizes = [8, 32], strides = [1, 1]} : vector<8x96xf32> to vector<8x32xf32>
    %1517 = arith.mulf %1506, %1516 : vector<8x32xf32>
    %1518 = arith.addf %1515, %1517 : vector<8x32xf32>
    %1519 = math.tanh %1518 : vector<8x32xf32>
    %cst_359 = arith.constant 1.000000e+00 : f32
    %1520 = vector.broadcast %cst_359 : f32 to vector<8x32xf32>
    %1521 = arith.subf %1520, %1514 : vector<8x32xf32>
    %1522 = arith.mulf %1521, %1519 : vector<8x32xf32>
    %1523 = arith.mulf %1514, %937 : vector<8x32xf32>
    %1524 = arith.addf %1522, %1523 : vector<8x32xf32>
    %1525 = arith.addf %1524, %1 : vector<8x32xf32>
    %1526 = vector.extract_strided_slice %116 {offsets = [0, 0], sizes = [8, 1], strides = [1, 1]} : vector<8x8xf32> to vector<8x1xf32>
    %1527 = vector.broadcast %1526 : vector<8x1xf32> to vector<8x32xf32>
    %1528 = arith.mulf %1527, %1428 : vector<8x32xf32>
    %1529 = vector.extract_strided_slice %116 {offsets = [0, 1], sizes = [8, 1], strides = [1, 1]} : vector<8x8xf32> to vector<8x1xf32>
    %1530 = vector.broadcast %1529 : vector<8x1xf32> to vector<8x32xf32>
    %1531 = arith.mulf %1530, %1432 : vector<8x32xf32>
    %1532 = arith.addf %1528, %1531 : vector<8x32xf32>
    %1533 = vector.extract_strided_slice %116 {offsets = [0, 2], sizes = [8, 1], strides = [1, 1]} : vector<8x8xf32> to vector<8x1xf32>
    %1534 = vector.broadcast %1533 : vector<8x1xf32> to vector<8x32xf32>
    %1535 = arith.mulf %1534, %1436 : vector<8x32xf32>
    %1536 = arith.addf %1532, %1535 : vector<8x32xf32>
    %1537 = vector.extract_strided_slice %116 {offsets = [0, 3], sizes = [8, 1], strides = [1, 1]} : vector<8x8xf32> to vector<8x1xf32>
    %1538 = vector.broadcast %1537 : vector<8x1xf32> to vector<8x32xf32>
    %1539 = arith.mulf %1538, %1440 : vector<8x32xf32>
    %1540 = arith.addf %1536, %1539 : vector<8x32xf32>
    %1541 = vector.extract_strided_slice %116 {offsets = [0, 4], sizes = [8, 1], strides = [1, 1]} : vector<8x8xf32> to vector<8x1xf32>
    %1542 = vector.broadcast %1541 : vector<8x1xf32> to vector<8x32xf32>
    %1543 = arith.mulf %1542, %1444 : vector<8x32xf32>
    %1544 = arith.addf %1540, %1543 : vector<8x32xf32>
    %1545 = vector.extract_strided_slice %116 {offsets = [0, 5], sizes = [8, 1], strides = [1, 1]} : vector<8x8xf32> to vector<8x1xf32>
    %1546 = vector.broadcast %1545 : vector<8x1xf32> to vector<8x32xf32>
    %1547 = arith.mulf %1546, %1448 : vector<8x32xf32>
    %1548 = arith.addf %1544, %1547 : vector<8x32xf32>
    %1549 = vector.extract_strided_slice %116 {offsets = [0, 6], sizes = [8, 1], strides = [1, 1]} : vector<8x8xf32> to vector<8x1xf32>
    %1550 = vector.broadcast %1549 : vector<8x1xf32> to vector<8x32xf32>
    %1551 = arith.mulf %1550, %1452 : vector<8x32xf32>
    %1552 = arith.addf %1548, %1551 : vector<8x32xf32>
    %1553 = vector.extract_strided_slice %116 {offsets = [0, 7], sizes = [8, 1], strides = [1, 1]} : vector<8x8xf32> to vector<8x1xf32>
    %1554 = vector.broadcast %1553 : vector<8x1xf32> to vector<8x32xf32>
    %1555 = arith.mulf %1554, %1456 : vector<8x32xf32>
    %1556 = arith.addf %1552, %1555 : vector<8x32xf32>
    %1557 = arith.truncf %1556 : vector<8x32xf32> to vector<8x32xbf16>
    %c2_360 = arith.constant 2 : index
    %c1_361 = arith.constant 1 : index
    %c0_362 = arith.constant 0 : index
    %c0_363 = arith.constant 0 : index
    %1558 = vector.load %arg4[%c2_360, %c1_361, %c0_362, %c0_363] : memref<3x8x32x32xbf16, #tpu.memory_space<vmem>>, vector<1x1x32x32xbf16>
    %1559 = vector.shape_cast %1558 : vector<1x1x32x32xbf16> to vector<32x32xbf16>
    %cst_364 = arith.constant dense<0.000000e+00> : vector<8x32xf32>
    %1560 = tpu.matmul %1557, %1559, %cst_364 {dimension_numbers = #tpu.dot_dimension_numbers<[1], [0], [0], [1], [0, 0, 1, 1], [], []>} : vector<8x32xbf16>, vector<32x32xbf16>, vector<8x32xf32> -> vector<8x32xf32>
    %1561 = arith.addf %1560, %1424 : vector<8x32xf32>
    %1562 = arith.truncf %1561 : vector<8x32xf32> to vector<8x32xbf16>
    %cst_365 = arith.constant dense<0.000000e+00> : vector<8x96xf32>
    %1563 = tpu.matmul %1562, %237, %cst_365 {dimension_numbers = #tpu.dot_dimension_numbers<[1], [0], [0], [1], [0, 0, 1, 1], [], []>} : vector<8x32xbf16>, vector<32x96xbf16>, vector<8x96xf32> -> vector<8x96xf32>
    %1564 = arith.addf %1563, %241 : vector<8x96xf32>
    %1565 = arith.truncf %1006 : vector<8x32xf32> to vector<8x32xbf16>
    %cst_366 = arith.constant dense<0.000000e+00> : vector<8x96xf32>
    %1566 = tpu.matmul %1565, %238, %cst_366 {dimension_numbers = #tpu.dot_dimension_numbers<[1], [0], [0], [1], [0, 0, 1, 1], [], []>} : vector<8x32xbf16>, vector<32x96xbf16>, vector<8x96xf32> -> vector<8x96xf32>
    %1567 = arith.addf %1566, %244 : vector<8x96xf32>
    %1568 = vector.extract_strided_slice %1564 {offsets = [0, 0], sizes = [8, 32], strides = [1, 1]} : vector<8x96xf32> to vector<8x32xf32>
    %1569 = vector.extract_strided_slice %1567 {offsets = [0, 0], sizes = [8, 32], strides = [1, 1]} : vector<8x96xf32> to vector<8x32xf32>
    %1570 = arith.addf %1568, %1569 : vector<8x32xf32>
    %1571 = arith.negf %1570 : vector<8x32xf32>
    %1572 = math.exp %1571 : vector<8x32xf32>
    %cst_367 = arith.constant 1.000000e+00 : f32
    %1573 = vector.broadcast %cst_367 : f32 to vector<8x32xf32>
    %1574 = arith.addf %1573, %1572 : vector<8x32xf32>
    %1575 = arith.divf %1573, %1574 : vector<8x32xf32>
    %1576 = vector.extract_strided_slice %1564 {offsets = [0, 32], sizes = [8, 32], strides = [1, 1]} : vector<8x96xf32> to vector<8x32xf32>
    %1577 = vector.extract_strided_slice %1567 {offsets = [0, 32], sizes = [8, 32], strides = [1, 1]} : vector<8x96xf32> to vector<8x32xf32>
    %1578 = arith.addf %1576, %1577 : vector<8x32xf32>
    %1579 = arith.negf %1578 : vector<8x32xf32>
    %1580 = math.exp %1579 : vector<8x32xf32>
    %cst_368 = arith.constant 1.000000e+00 : f32
    %1581 = vector.broadcast %cst_368 : f32 to vector<8x32xf32>
    %1582 = arith.addf %1581, %1580 : vector<8x32xf32>
    %1583 = arith.divf %1581, %1582 : vector<8x32xf32>
    %1584 = vector.extract_strided_slice %1564 {offsets = [0, 64], sizes = [8, 32], strides = [1, 1]} : vector<8x96xf32> to vector<8x32xf32>
    %1585 = vector.extract_strided_slice %1567 {offsets = [0, 64], sizes = [8, 32], strides = [1, 1]} : vector<8x96xf32> to vector<8x32xf32>
    %1586 = arith.mulf %1575, %1585 : vector<8x32xf32>
    %1587 = arith.addf %1584, %1586 : vector<8x32xf32>
    %1588 = math.tanh %1587 : vector<8x32xf32>
    %cst_369 = arith.constant 1.000000e+00 : f32
    %1589 = vector.broadcast %cst_369 : f32 to vector<8x32xf32>
    %1590 = arith.subf %1589, %1583 : vector<8x32xf32>
    %1591 = arith.mulf %1590, %1588 : vector<8x32xf32>
    %1592 = arith.mulf %1583, %1006 : vector<8x32xf32>
    %1593 = arith.addf %1591, %1592 : vector<8x32xf32>
    %1594 = arith.addf %1593, %2 : vector<8x32xf32>
    %1595 = vector.extract_strided_slice %136 {offsets = [0, 0], sizes = [8, 1], strides = [1, 1]} : vector<8x8xf32> to vector<8x1xf32>
    %1596 = vector.broadcast %1595 : vector<8x1xf32> to vector<8x32xf32>
    %1597 = arith.mulf %1596, %1428 : vector<8x32xf32>
    %1598 = vector.extract_strided_slice %136 {offsets = [0, 1], sizes = [8, 1], strides = [1, 1]} : vector<8x8xf32> to vector<8x1xf32>
    %1599 = vector.broadcast %1598 : vector<8x1xf32> to vector<8x32xf32>
    %1600 = arith.mulf %1599, %1432 : vector<8x32xf32>
    %1601 = arith.addf %1597, %1600 : vector<8x32xf32>
    %1602 = vector.extract_strided_slice %136 {offsets = [0, 2], sizes = [8, 1], strides = [1, 1]} : vector<8x8xf32> to vector<8x1xf32>
    %1603 = vector.broadcast %1602 : vector<8x1xf32> to vector<8x32xf32>
    %1604 = arith.mulf %1603, %1436 : vector<8x32xf32>
    %1605 = arith.addf %1601, %1604 : vector<8x32xf32>
    %1606 = vector.extract_strided_slice %136 {offsets = [0, 3], sizes = [8, 1], strides = [1, 1]} : vector<8x8xf32> to vector<8x1xf32>
    %1607 = vector.broadcast %1606 : vector<8x1xf32> to vector<8x32xf32>
    %1608 = arith.mulf %1607, %1440 : vector<8x32xf32>
    %1609 = arith.addf %1605, %1608 : vector<8x32xf32>
    %1610 = vector.extract_strided_slice %136 {offsets = [0, 4], sizes = [8, 1], strides = [1, 1]} : vector<8x8xf32> to vector<8x1xf32>
    %1611 = vector.broadcast %1610 : vector<8x1xf32> to vector<8x32xf32>
    %1612 = arith.mulf %1611, %1444 : vector<8x32xf32>
    %1613 = arith.addf %1609, %1612 : vector<8x32xf32>
    %1614 = vector.extract_strided_slice %136 {offsets = [0, 5], sizes = [8, 1], strides = [1, 1]} : vector<8x8xf32> to vector<8x1xf32>
    %1615 = vector.broadcast %1614 : vector<8x1xf32> to vector<8x32xf32>
    %1616 = arith.mulf %1615, %1448 : vector<8x32xf32>
    %1617 = arith.addf %1613, %1616 : vector<8x32xf32>
    %1618 = vector.extract_strided_slice %136 {offsets = [0, 6], sizes = [8, 1], strides = [1, 1]} : vector<8x8xf32> to vector<8x1xf32>
    %1619 = vector.broadcast %1618 : vector<8x1xf32> to vector<8x32xf32>
    %1620 = arith.mulf %1619, %1452 : vector<8x32xf32>
    %1621 = arith.addf %1617, %1620 : vector<8x32xf32>
    %1622 = vector.extract_strided_slice %136 {offsets = [0, 7], sizes = [8, 1], strides = [1, 1]} : vector<8x8xf32> to vector<8x1xf32>
    %1623 = vector.broadcast %1622 : vector<8x1xf32> to vector<8x32xf32>
    %1624 = arith.mulf %1623, %1456 : vector<8x32xf32>
    %1625 = arith.addf %1621, %1624 : vector<8x32xf32>
    %1626 = arith.truncf %1625 : vector<8x32xf32> to vector<8x32xbf16>
    %c2_370 = arith.constant 2 : index
    %c2_371 = arith.constant 2 : index
    %c0_372 = arith.constant 0 : index
    %c0_373 = arith.constant 0 : index
    %1627 = vector.load %arg4[%c2_370, %c2_371, %c0_372, %c0_373] : memref<3x8x32x32xbf16, #tpu.memory_space<vmem>>, vector<1x1x32x32xbf16>
    %1628 = vector.shape_cast %1627 : vector<1x1x32x32xbf16> to vector<32x32xbf16>
    %cst_374 = arith.constant dense<0.000000e+00> : vector<8x32xf32>
    %1629 = tpu.matmul %1626, %1628, %cst_374 {dimension_numbers = #tpu.dot_dimension_numbers<[1], [0], [0], [1], [0, 0, 1, 1], [], []>} : vector<8x32xbf16>, vector<32x32xbf16>, vector<8x32xf32> -> vector<8x32xf32>
    %1630 = arith.addf %1629, %1424 : vector<8x32xf32>
    %1631 = arith.truncf %1630 : vector<8x32xf32> to vector<8x32xbf16>
    %cst_375 = arith.constant dense<0.000000e+00> : vector<8x96xf32>
    %1632 = tpu.matmul %1631, %237, %cst_375 {dimension_numbers = #tpu.dot_dimension_numbers<[1], [0], [0], [1], [0, 0, 1, 1], [], []>} : vector<8x32xbf16>, vector<32x96xbf16>, vector<8x96xf32> -> vector<8x96xf32>
    %1633 = arith.addf %1632, %241 : vector<8x96xf32>
    %1634 = arith.truncf %1075 : vector<8x32xf32> to vector<8x32xbf16>
    %cst_376 = arith.constant dense<0.000000e+00> : vector<8x96xf32>
    %1635 = tpu.matmul %1634, %238, %cst_376 {dimension_numbers = #tpu.dot_dimension_numbers<[1], [0], [0], [1], [0, 0, 1, 1], [], []>} : vector<8x32xbf16>, vector<32x96xbf16>, vector<8x96xf32> -> vector<8x96xf32>
    %1636 = arith.addf %1635, %244 : vector<8x96xf32>
    %1637 = vector.extract_strided_slice %1633 {offsets = [0, 0], sizes = [8, 32], strides = [1, 1]} : vector<8x96xf32> to vector<8x32xf32>
    %1638 = vector.extract_strided_slice %1636 {offsets = [0, 0], sizes = [8, 32], strides = [1, 1]} : vector<8x96xf32> to vector<8x32xf32>
    %1639 = arith.addf %1637, %1638 : vector<8x32xf32>
    %1640 = arith.negf %1639 : vector<8x32xf32>
    %1641 = math.exp %1640 : vector<8x32xf32>
    %cst_377 = arith.constant 1.000000e+00 : f32
    %1642 = vector.broadcast %cst_377 : f32 to vector<8x32xf32>
    %1643 = arith.addf %1642, %1641 : vector<8x32xf32>
    %1644 = arith.divf %1642, %1643 : vector<8x32xf32>
    %1645 = vector.extract_strided_slice %1633 {offsets = [0, 32], sizes = [8, 32], strides = [1, 1]} : vector<8x96xf32> to vector<8x32xf32>
    %1646 = vector.extract_strided_slice %1636 {offsets = [0, 32], sizes = [8, 32], strides = [1, 1]} : vector<8x96xf32> to vector<8x32xf32>
    %1647 = arith.addf %1645, %1646 : vector<8x32xf32>
    %1648 = arith.negf %1647 : vector<8x32xf32>
    %1649 = math.exp %1648 : vector<8x32xf32>
    %cst_378 = arith.constant 1.000000e+00 : f32
    %1650 = vector.broadcast %cst_378 : f32 to vector<8x32xf32>
    %1651 = arith.addf %1650, %1649 : vector<8x32xf32>
    %1652 = arith.divf %1650, %1651 : vector<8x32xf32>
    %1653 = vector.extract_strided_slice %1633 {offsets = [0, 64], sizes = [8, 32], strides = [1, 1]} : vector<8x96xf32> to vector<8x32xf32>
    %1654 = vector.extract_strided_slice %1636 {offsets = [0, 64], sizes = [8, 32], strides = [1, 1]} : vector<8x96xf32> to vector<8x32xf32>
    %1655 = arith.mulf %1644, %1654 : vector<8x32xf32>
    %1656 = arith.addf %1653, %1655 : vector<8x32xf32>
    %1657 = math.tanh %1656 : vector<8x32xf32>
    %cst_379 = arith.constant 1.000000e+00 : f32
    %1658 = vector.broadcast %cst_379 : f32 to vector<8x32xf32>
    %1659 = arith.subf %1658, %1652 : vector<8x32xf32>
    %1660 = arith.mulf %1659, %1657 : vector<8x32xf32>
    %1661 = arith.mulf %1652, %1075 : vector<8x32xf32>
    %1662 = arith.addf %1660, %1661 : vector<8x32xf32>
    %1663 = arith.addf %1662, %3 : vector<8x32xf32>
    %1664 = vector.extract_strided_slice %156 {offsets = [0, 0], sizes = [8, 1], strides = [1, 1]} : vector<8x8xf32> to vector<8x1xf32>
    %1665 = vector.broadcast %1664 : vector<8x1xf32> to vector<8x32xf32>
    %1666 = arith.mulf %1665, %1428 : vector<8x32xf32>
    %1667 = vector.extract_strided_slice %156 {offsets = [0, 1], sizes = [8, 1], strides = [1, 1]} : vector<8x8xf32> to vector<8x1xf32>
    %1668 = vector.broadcast %1667 : vector<8x1xf32> to vector<8x32xf32>
    %1669 = arith.mulf %1668, %1432 : vector<8x32xf32>
    %1670 = arith.addf %1666, %1669 : vector<8x32xf32>
    %1671 = vector.extract_strided_slice %156 {offsets = [0, 2], sizes = [8, 1], strides = [1, 1]} : vector<8x8xf32> to vector<8x1xf32>
    %1672 = vector.broadcast %1671 : vector<8x1xf32> to vector<8x32xf32>
    %1673 = arith.mulf %1672, %1436 : vector<8x32xf32>
    %1674 = arith.addf %1670, %1673 : vector<8x32xf32>
    %1675 = vector.extract_strided_slice %156 {offsets = [0, 3], sizes = [8, 1], strides = [1, 1]} : vector<8x8xf32> to vector<8x1xf32>
    %1676 = vector.broadcast %1675 : vector<8x1xf32> to vector<8x32xf32>
    %1677 = arith.mulf %1676, %1440 : vector<8x32xf32>
    %1678 = arith.addf %1674, %1677 : vector<8x32xf32>
    %1679 = vector.extract_strided_slice %156 {offsets = [0, 4], sizes = [8, 1], strides = [1, 1]} : vector<8x8xf32> to vector<8x1xf32>
    %1680 = vector.broadcast %1679 : vector<8x1xf32> to vector<8x32xf32>
    %1681 = arith.mulf %1680, %1444 : vector<8x32xf32>
    %1682 = arith.addf %1678, %1681 : vector<8x32xf32>
    %1683 = vector.extract_strided_slice %156 {offsets = [0, 5], sizes = [8, 1], strides = [1, 1]} : vector<8x8xf32> to vector<8x1xf32>
    %1684 = vector.broadcast %1683 : vector<8x1xf32> to vector<8x32xf32>
    %1685 = arith.mulf %1684, %1448 : vector<8x32xf32>
    %1686 = arith.addf %1682, %1685 : vector<8x32xf32>
    %1687 = vector.extract_strided_slice %156 {offsets = [0, 6], sizes = [8, 1], strides = [1, 1]} : vector<8x8xf32> to vector<8x1xf32>
    %1688 = vector.broadcast %1687 : vector<8x1xf32> to vector<8x32xf32>
    %1689 = arith.mulf %1688, %1452 : vector<8x32xf32>
    %1690 = arith.addf %1686, %1689 : vector<8x32xf32>
    %1691 = vector.extract_strided_slice %156 {offsets = [0, 7], sizes = [8, 1], strides = [1, 1]} : vector<8x8xf32> to vector<8x1xf32>
    %1692 = vector.broadcast %1691 : vector<8x1xf32> to vector<8x32xf32>
    %1693 = arith.mulf %1692, %1456 : vector<8x32xf32>
    %1694 = arith.addf %1690, %1693 : vector<8x32xf32>
    %1695 = arith.truncf %1694 : vector<8x32xf32> to vector<8x32xbf16>
    %c2_380 = arith.constant 2 : index
    %c3_381 = arith.constant 3 : index
    %c0_382 = arith.constant 0 : index
    %c0_383 = arith.constant 0 : index
    %1696 = vector.load %arg4[%c2_380, %c3_381, %c0_382, %c0_383] : memref<3x8x32x32xbf16, #tpu.memory_space<vmem>>, vector<1x1x32x32xbf16>
    %1697 = vector.shape_cast %1696 : vector<1x1x32x32xbf16> to vector<32x32xbf16>
    %cst_384 = arith.constant dense<0.000000e+00> : vector<8x32xf32>
    %1698 = tpu.matmul %1695, %1697, %cst_384 {dimension_numbers = #tpu.dot_dimension_numbers<[1], [0], [0], [1], [0, 0, 1, 1], [], []>} : vector<8x32xbf16>, vector<32x32xbf16>, vector<8x32xf32> -> vector<8x32xf32>
    %1699 = arith.addf %1698, %1424 : vector<8x32xf32>
    %1700 = arith.truncf %1699 : vector<8x32xf32> to vector<8x32xbf16>
    %cst_385 = arith.constant dense<0.000000e+00> : vector<8x96xf32>
    %1701 = tpu.matmul %1700, %237, %cst_385 {dimension_numbers = #tpu.dot_dimension_numbers<[1], [0], [0], [1], [0, 0, 1, 1], [], []>} : vector<8x32xbf16>, vector<32x96xbf16>, vector<8x96xf32> -> vector<8x96xf32>
    %1702 = arith.addf %1701, %241 : vector<8x96xf32>
    %1703 = arith.truncf %1144 : vector<8x32xf32> to vector<8x32xbf16>
    %cst_386 = arith.constant dense<0.000000e+00> : vector<8x96xf32>
    %1704 = tpu.matmul %1703, %238, %cst_386 {dimension_numbers = #tpu.dot_dimension_numbers<[1], [0], [0], [1], [0, 0, 1, 1], [], []>} : vector<8x32xbf16>, vector<32x96xbf16>, vector<8x96xf32> -> vector<8x96xf32>
    %1705 = arith.addf %1704, %244 : vector<8x96xf32>
    %1706 = vector.extract_strided_slice %1702 {offsets = [0, 0], sizes = [8, 32], strides = [1, 1]} : vector<8x96xf32> to vector<8x32xf32>
    %1707 = vector.extract_strided_slice %1705 {offsets = [0, 0], sizes = [8, 32], strides = [1, 1]} : vector<8x96xf32> to vector<8x32xf32>
    %1708 = arith.addf %1706, %1707 : vector<8x32xf32>
    %1709 = arith.negf %1708 : vector<8x32xf32>
    %1710 = math.exp %1709 : vector<8x32xf32>
    %cst_387 = arith.constant 1.000000e+00 : f32
    %1711 = vector.broadcast %cst_387 : f32 to vector<8x32xf32>
    %1712 = arith.addf %1711, %1710 : vector<8x32xf32>
    %1713 = arith.divf %1711, %1712 : vector<8x32xf32>
    %1714 = vector.extract_strided_slice %1702 {offsets = [0, 32], sizes = [8, 32], strides = [1, 1]} : vector<8x96xf32> to vector<8x32xf32>
    %1715 = vector.extract_strided_slice %1705 {offsets = [0, 32], sizes = [8, 32], strides = [1, 1]} : vector<8x96xf32> to vector<8x32xf32>
    %1716 = arith.addf %1714, %1715 : vector<8x32xf32>
    %1717 = arith.negf %1716 : vector<8x32xf32>
    %1718 = math.exp %1717 : vector<8x32xf32>
    %cst_388 = arith.constant 1.000000e+00 : f32
    %1719 = vector.broadcast %cst_388 : f32 to vector<8x32xf32>
    %1720 = arith.addf %1719, %1718 : vector<8x32xf32>
    %1721 = arith.divf %1719, %1720 : vector<8x32xf32>
    %1722 = vector.extract_strided_slice %1702 {offsets = [0, 64], sizes = [8, 32], strides = [1, 1]} : vector<8x96xf32> to vector<8x32xf32>
    %1723 = vector.extract_strided_slice %1705 {offsets = [0, 64], sizes = [8, 32], strides = [1, 1]} : vector<8x96xf32> to vector<8x32xf32>
    %1724 = arith.mulf %1713, %1723 : vector<8x32xf32>
    %1725 = arith.addf %1722, %1724 : vector<8x32xf32>
    %1726 = math.tanh %1725 : vector<8x32xf32>
    %cst_389 = arith.constant 1.000000e+00 : f32
    %1727 = vector.broadcast %cst_389 : f32 to vector<8x32xf32>
    %1728 = arith.subf %1727, %1721 : vector<8x32xf32>
    %1729 = arith.mulf %1728, %1726 : vector<8x32xf32>
    %1730 = arith.mulf %1721, %1144 : vector<8x32xf32>
    %1731 = arith.addf %1729, %1730 : vector<8x32xf32>
    %1732 = arith.addf %1731, %4 : vector<8x32xf32>
    %1733 = vector.extract_strided_slice %176 {offsets = [0, 0], sizes = [8, 1], strides = [1, 1]} : vector<8x8xf32> to vector<8x1xf32>
    %1734 = vector.broadcast %1733 : vector<8x1xf32> to vector<8x32xf32>
    %1735 = arith.mulf %1734, %1428 : vector<8x32xf32>
    %1736 = vector.extract_strided_slice %176 {offsets = [0, 1], sizes = [8, 1], strides = [1, 1]} : vector<8x8xf32> to vector<8x1xf32>
    %1737 = vector.broadcast %1736 : vector<8x1xf32> to vector<8x32xf32>
    %1738 = arith.mulf %1737, %1432 : vector<8x32xf32>
    %1739 = arith.addf %1735, %1738 : vector<8x32xf32>
    %1740 = vector.extract_strided_slice %176 {offsets = [0, 2], sizes = [8, 1], strides = [1, 1]} : vector<8x8xf32> to vector<8x1xf32>
    %1741 = vector.broadcast %1740 : vector<8x1xf32> to vector<8x32xf32>
    %1742 = arith.mulf %1741, %1436 : vector<8x32xf32>
    %1743 = arith.addf %1739, %1742 : vector<8x32xf32>
    %1744 = vector.extract_strided_slice %176 {offsets = [0, 3], sizes = [8, 1], strides = [1, 1]} : vector<8x8xf32> to vector<8x1xf32>
    %1745 = vector.broadcast %1744 : vector<8x1xf32> to vector<8x32xf32>
    %1746 = arith.mulf %1745, %1440 : vector<8x32xf32>
    %1747 = arith.addf %1743, %1746 : vector<8x32xf32>
    %1748 = vector.extract_strided_slice %176 {offsets = [0, 4], sizes = [8, 1], strides = [1, 1]} : vector<8x8xf32> to vector<8x1xf32>
    %1749 = vector.broadcast %1748 : vector<8x1xf32> to vector<8x32xf32>
    %1750 = arith.mulf %1749, %1444 : vector<8x32xf32>
    %1751 = arith.addf %1747, %1750 : vector<8x32xf32>
    %1752 = vector.extract_strided_slice %176 {offsets = [0, 5], sizes = [8, 1], strides = [1, 1]} : vector<8x8xf32> to vector<8x1xf32>
    %1753 = vector.broadcast %1752 : vector<8x1xf32> to vector<8x32xf32>
    %1754 = arith.mulf %1753, %1448 : vector<8x32xf32>
    %1755 = arith.addf %1751, %1754 : vector<8x32xf32>
    %1756 = vector.extract_strided_slice %176 {offsets = [0, 6], sizes = [8, 1], strides = [1, 1]} : vector<8x8xf32> to vector<8x1xf32>
    %1757 = vector.broadcast %1756 : vector<8x1xf32> to vector<8x32xf32>
    %1758 = arith.mulf %1757, %1452 : vector<8x32xf32>
    %1759 = arith.addf %1755, %1758 : vector<8x32xf32>
    %1760 = vector.extract_strided_slice %176 {offsets = [0, 7], sizes = [8, 1], strides = [1, 1]} : vector<8x8xf32> to vector<8x1xf32>
    %1761 = vector.broadcast %1760 : vector<8x1xf32> to vector<8x32xf32>
    %1762 = arith.mulf %1761, %1456 : vector<8x32xf32>
    %1763 = arith.addf %1759, %1762 : vector<8x32xf32>
    %1764 = arith.truncf %1763 : vector<8x32xf32> to vector<8x32xbf16>
    %c2_390 = arith.constant 2 : index
    %c4_391 = arith.constant 4 : index
    %c0_392 = arith.constant 0 : index
    %c0_393 = arith.constant 0 : index
    %1765 = vector.load %arg4[%c2_390, %c4_391, %c0_392, %c0_393] : memref<3x8x32x32xbf16, #tpu.memory_space<vmem>>, vector<1x1x32x32xbf16>
    %1766 = vector.shape_cast %1765 : vector<1x1x32x32xbf16> to vector<32x32xbf16>
    %cst_394 = arith.constant dense<0.000000e+00> : vector<8x32xf32>
    %1767 = tpu.matmul %1764, %1766, %cst_394 {dimension_numbers = #tpu.dot_dimension_numbers<[1], [0], [0], [1], [0, 0, 1, 1], [], []>} : vector<8x32xbf16>, vector<32x32xbf16>, vector<8x32xf32> -> vector<8x32xf32>
    %1768 = arith.addf %1767, %1424 : vector<8x32xf32>
    %1769 = arith.truncf %1768 : vector<8x32xf32> to vector<8x32xbf16>
    %cst_395 = arith.constant dense<0.000000e+00> : vector<8x96xf32>
    %1770 = tpu.matmul %1769, %237, %cst_395 {dimension_numbers = #tpu.dot_dimension_numbers<[1], [0], [0], [1], [0, 0, 1, 1], [], []>} : vector<8x32xbf16>, vector<32x96xbf16>, vector<8x96xf32> -> vector<8x96xf32>
    %1771 = arith.addf %1770, %241 : vector<8x96xf32>
    %1772 = arith.truncf %1213 : vector<8x32xf32> to vector<8x32xbf16>
    %cst_396 = arith.constant dense<0.000000e+00> : vector<8x96xf32>
    %1773 = tpu.matmul %1772, %238, %cst_396 {dimension_numbers = #tpu.dot_dimension_numbers<[1], [0], [0], [1], [0, 0, 1, 1], [], []>} : vector<8x32xbf16>, vector<32x96xbf16>, vector<8x96xf32> -> vector<8x96xf32>
    %1774 = arith.addf %1773, %244 : vector<8x96xf32>
    %1775 = vector.extract_strided_slice %1771 {offsets = [0, 0], sizes = [8, 32], strides = [1, 1]} : vector<8x96xf32> to vector<8x32xf32>
    %1776 = vector.extract_strided_slice %1774 {offsets = [0, 0], sizes = [8, 32], strides = [1, 1]} : vector<8x96xf32> to vector<8x32xf32>
    %1777 = arith.addf %1775, %1776 : vector<8x32xf32>
    %1778 = arith.negf %1777 : vector<8x32xf32>
    %1779 = math.exp %1778 : vector<8x32xf32>
    %cst_397 = arith.constant 1.000000e+00 : f32
    %1780 = vector.broadcast %cst_397 : f32 to vector<8x32xf32>
    %1781 = arith.addf %1780, %1779 : vector<8x32xf32>
    %1782 = arith.divf %1780, %1781 : vector<8x32xf32>
    %1783 = vector.extract_strided_slice %1771 {offsets = [0, 32], sizes = [8, 32], strides = [1, 1]} : vector<8x96xf32> to vector<8x32xf32>
    %1784 = vector.extract_strided_slice %1774 {offsets = [0, 32], sizes = [8, 32], strides = [1, 1]} : vector<8x96xf32> to vector<8x32xf32>
    %1785 = arith.addf %1783, %1784 : vector<8x32xf32>
    %1786 = arith.negf %1785 : vector<8x32xf32>
    %1787 = math.exp %1786 : vector<8x32xf32>
    %cst_398 = arith.constant 1.000000e+00 : f32
    %1788 = vector.broadcast %cst_398 : f32 to vector<8x32xf32>
    %1789 = arith.addf %1788, %1787 : vector<8x32xf32>
    %1790 = arith.divf %1788, %1789 : vector<8x32xf32>
    %1791 = vector.extract_strided_slice %1771 {offsets = [0, 64], sizes = [8, 32], strides = [1, 1]} : vector<8x96xf32> to vector<8x32xf32>
    %1792 = vector.extract_strided_slice %1774 {offsets = [0, 64], sizes = [8, 32], strides = [1, 1]} : vector<8x96xf32> to vector<8x32xf32>
    %1793 = arith.mulf %1782, %1792 : vector<8x32xf32>
    %1794 = arith.addf %1791, %1793 : vector<8x32xf32>
    %1795 = math.tanh %1794 : vector<8x32xf32>
    %cst_399 = arith.constant 1.000000e+00 : f32
    %1796 = vector.broadcast %cst_399 : f32 to vector<8x32xf32>
    %1797 = arith.subf %1796, %1790 : vector<8x32xf32>
    %1798 = arith.mulf %1797, %1795 : vector<8x32xf32>
    %1799 = arith.mulf %1790, %1213 : vector<8x32xf32>
    %1800 = arith.addf %1798, %1799 : vector<8x32xf32>
    %1801 = arith.addf %1800, %5 : vector<8x32xf32>
    %1802 = vector.extract_strided_slice %196 {offsets = [0, 0], sizes = [8, 1], strides = [1, 1]} : vector<8x8xf32> to vector<8x1xf32>
    %1803 = vector.broadcast %1802 : vector<8x1xf32> to vector<8x32xf32>
    %1804 = arith.mulf %1803, %1428 : vector<8x32xf32>
    %1805 = vector.extract_strided_slice %196 {offsets = [0, 1], sizes = [8, 1], strides = [1, 1]} : vector<8x8xf32> to vector<8x1xf32>
    %1806 = vector.broadcast %1805 : vector<8x1xf32> to vector<8x32xf32>
    %1807 = arith.mulf %1806, %1432 : vector<8x32xf32>
    %1808 = arith.addf %1804, %1807 : vector<8x32xf32>
    %1809 = vector.extract_strided_slice %196 {offsets = [0, 2], sizes = [8, 1], strides = [1, 1]} : vector<8x8xf32> to vector<8x1xf32>
    %1810 = vector.broadcast %1809 : vector<8x1xf32> to vector<8x32xf32>
    %1811 = arith.mulf %1810, %1436 : vector<8x32xf32>
    %1812 = arith.addf %1808, %1811 : vector<8x32xf32>
    %1813 = vector.extract_strided_slice %196 {offsets = [0, 3], sizes = [8, 1], strides = [1, 1]} : vector<8x8xf32> to vector<8x1xf32>
    %1814 = vector.broadcast %1813 : vector<8x1xf32> to vector<8x32xf32>
    %1815 = arith.mulf %1814, %1440 : vector<8x32xf32>
    %1816 = arith.addf %1812, %1815 : vector<8x32xf32>
    %1817 = vector.extract_strided_slice %196 {offsets = [0, 4], sizes = [8, 1], strides = [1, 1]} : vector<8x8xf32> to vector<8x1xf32>
    %1818 = vector.broadcast %1817 : vector<8x1xf32> to vector<8x32xf32>
    %1819 = arith.mulf %1818, %1444 : vector<8x32xf32>
    %1820 = arith.addf %1816, %1819 : vector<8x32xf32>
    %1821 = vector.extract_strided_slice %196 {offsets = [0, 5], sizes = [8, 1], strides = [1, 1]} : vector<8x8xf32> to vector<8x1xf32>
    %1822 = vector.broadcast %1821 : vector<8x1xf32> to vector<8x32xf32>
    %1823 = arith.mulf %1822, %1448 : vector<8x32xf32>
    %1824 = arith.addf %1820, %1823 : vector<8x32xf32>
    %1825 = vector.extract_strided_slice %196 {offsets = [0, 6], sizes = [8, 1], strides = [1, 1]} : vector<8x8xf32> to vector<8x1xf32>
    %1826 = vector.broadcast %1825 : vector<8x1xf32> to vector<8x32xf32>
    %1827 = arith.mulf %1826, %1452 : vector<8x32xf32>
    %1828 = arith.addf %1824, %1827 : vector<8x32xf32>
    %1829 = vector.extract_strided_slice %196 {offsets = [0, 7], sizes = [8, 1], strides = [1, 1]} : vector<8x8xf32> to vector<8x1xf32>
    %1830 = vector.broadcast %1829 : vector<8x1xf32> to vector<8x32xf32>
    %1831 = arith.mulf %1830, %1456 : vector<8x32xf32>
    %1832 = arith.addf %1828, %1831 : vector<8x32xf32>
    %1833 = arith.truncf %1832 : vector<8x32xf32> to vector<8x32xbf16>
    %c2_400 = arith.constant 2 : index
    %c5_401 = arith.constant 5 : index
    %c0_402 = arith.constant 0 : index
    %c0_403 = arith.constant 0 : index
    %1834 = vector.load %arg4[%c2_400, %c5_401, %c0_402, %c0_403] : memref<3x8x32x32xbf16, #tpu.memory_space<vmem>>, vector<1x1x32x32xbf16>
    %1835 = vector.shape_cast %1834 : vector<1x1x32x32xbf16> to vector<32x32xbf16>
    %cst_404 = arith.constant dense<0.000000e+00> : vector<8x32xf32>
    %1836 = tpu.matmul %1833, %1835, %cst_404 {dimension_numbers = #tpu.dot_dimension_numbers<[1], [0], [0], [1], [0, 0, 1, 1], [], []>} : vector<8x32xbf16>, vector<32x32xbf16>, vector<8x32xf32> -> vector<8x32xf32>
    %1837 = arith.addf %1836, %1424 : vector<8x32xf32>
    %1838 = arith.truncf %1837 : vector<8x32xf32> to vector<8x32xbf16>
    %cst_405 = arith.constant dense<0.000000e+00> : vector<8x96xf32>
    %1839 = tpu.matmul %1838, %237, %cst_405 {dimension_numbers = #tpu.dot_dimension_numbers<[1], [0], [0], [1], [0, 0, 1, 1], [], []>} : vector<8x32xbf16>, vector<32x96xbf16>, vector<8x96xf32> -> vector<8x96xf32>
    %1840 = arith.addf %1839, %241 : vector<8x96xf32>
    %1841 = arith.truncf %1282 : vector<8x32xf32> to vector<8x32xbf16>
    %cst_406 = arith.constant dense<0.000000e+00> : vector<8x96xf32>
    %1842 = tpu.matmul %1841, %238, %cst_406 {dimension_numbers = #tpu.dot_dimension_numbers<[1], [0], [0], [1], [0, 0, 1, 1], [], []>} : vector<8x32xbf16>, vector<32x96xbf16>, vector<8x96xf32> -> vector<8x96xf32>
    %1843 = arith.addf %1842, %244 : vector<8x96xf32>
    %1844 = vector.extract_strided_slice %1840 {offsets = [0, 0], sizes = [8, 32], strides = [1, 1]} : vector<8x96xf32> to vector<8x32xf32>
    %1845 = vector.extract_strided_slice %1843 {offsets = [0, 0], sizes = [8, 32], strides = [1, 1]} : vector<8x96xf32> to vector<8x32xf32>
    %1846 = arith.addf %1844, %1845 : vector<8x32xf32>
    %1847 = arith.negf %1846 : vector<8x32xf32>
    %1848 = math.exp %1847 : vector<8x32xf32>
    %cst_407 = arith.constant 1.000000e+00 : f32
    %1849 = vector.broadcast %cst_407 : f32 to vector<8x32xf32>
    %1850 = arith.addf %1849, %1848 : vector<8x32xf32>
    %1851 = arith.divf %1849, %1850 : vector<8x32xf32>
    %1852 = vector.extract_strided_slice %1840 {offsets = [0, 32], sizes = [8, 32], strides = [1, 1]} : vector<8x96xf32> to vector<8x32xf32>
    %1853 = vector.extract_strided_slice %1843 {offsets = [0, 32], sizes = [8, 32], strides = [1, 1]} : vector<8x96xf32> to vector<8x32xf32>
    %1854 = arith.addf %1852, %1853 : vector<8x32xf32>
    %1855 = arith.negf %1854 : vector<8x32xf32>
    %1856 = math.exp %1855 : vector<8x32xf32>
    %cst_408 = arith.constant 1.000000e+00 : f32
    %1857 = vector.broadcast %cst_408 : f32 to vector<8x32xf32>
    %1858 = arith.addf %1857, %1856 : vector<8x32xf32>
    %1859 = arith.divf %1857, %1858 : vector<8x32xf32>
    %1860 = vector.extract_strided_slice %1840 {offsets = [0, 64], sizes = [8, 32], strides = [1, 1]} : vector<8x96xf32> to vector<8x32xf32>
    %1861 = vector.extract_strided_slice %1843 {offsets = [0, 64], sizes = [8, 32], strides = [1, 1]} : vector<8x96xf32> to vector<8x32xf32>
    %1862 = arith.mulf %1851, %1861 : vector<8x32xf32>
    %1863 = arith.addf %1860, %1862 : vector<8x32xf32>
    %1864 = math.tanh %1863 : vector<8x32xf32>
    %cst_409 = arith.constant 1.000000e+00 : f32
    %1865 = vector.broadcast %cst_409 : f32 to vector<8x32xf32>
    %1866 = arith.subf %1865, %1859 : vector<8x32xf32>
    %1867 = arith.mulf %1866, %1864 : vector<8x32xf32>
    %1868 = arith.mulf %1859, %1282 : vector<8x32xf32>
    %1869 = arith.addf %1867, %1868 : vector<8x32xf32>
    %1870 = arith.addf %1869, %6 : vector<8x32xf32>
    %1871 = vector.extract_strided_slice %216 {offsets = [0, 0], sizes = [8, 1], strides = [1, 1]} : vector<8x8xf32> to vector<8x1xf32>
    %1872 = vector.broadcast %1871 : vector<8x1xf32> to vector<8x32xf32>
    %1873 = arith.mulf %1872, %1428 : vector<8x32xf32>
    %1874 = vector.extract_strided_slice %216 {offsets = [0, 1], sizes = [8, 1], strides = [1, 1]} : vector<8x8xf32> to vector<8x1xf32>
    %1875 = vector.broadcast %1874 : vector<8x1xf32> to vector<8x32xf32>
    %1876 = arith.mulf %1875, %1432 : vector<8x32xf32>
    %1877 = arith.addf %1873, %1876 : vector<8x32xf32>
    %1878 = vector.extract_strided_slice %216 {offsets = [0, 2], sizes = [8, 1], strides = [1, 1]} : vector<8x8xf32> to vector<8x1xf32>
    %1879 = vector.broadcast %1878 : vector<8x1xf32> to vector<8x32xf32>
    %1880 = arith.mulf %1879, %1436 : vector<8x32xf32>
    %1881 = arith.addf %1877, %1880 : vector<8x32xf32>
    %1882 = vector.extract_strided_slice %216 {offsets = [0, 3], sizes = [8, 1], strides = [1, 1]} : vector<8x8xf32> to vector<8x1xf32>
    %1883 = vector.broadcast %1882 : vector<8x1xf32> to vector<8x32xf32>
    %1884 = arith.mulf %1883, %1440 : vector<8x32xf32>
    %1885 = arith.addf %1881, %1884 : vector<8x32xf32>
    %1886 = vector.extract_strided_slice %216 {offsets = [0, 4], sizes = [8, 1], strides = [1, 1]} : vector<8x8xf32> to vector<8x1xf32>
    %1887 = vector.broadcast %1886 : vector<8x1xf32> to vector<8x32xf32>
    %1888 = arith.mulf %1887, %1444 : vector<8x32xf32>
    %1889 = arith.addf %1885, %1888 : vector<8x32xf32>
    %1890 = vector.extract_strided_slice %216 {offsets = [0, 5], sizes = [8, 1], strides = [1, 1]} : vector<8x8xf32> to vector<8x1xf32>
    %1891 = vector.broadcast %1890 : vector<8x1xf32> to vector<8x32xf32>
    %1892 = arith.mulf %1891, %1448 : vector<8x32xf32>
    %1893 = arith.addf %1889, %1892 : vector<8x32xf32>
    %1894 = vector.extract_strided_slice %216 {offsets = [0, 6], sizes = [8, 1], strides = [1, 1]} : vector<8x8xf32> to vector<8x1xf32>
    %1895 = vector.broadcast %1894 : vector<8x1xf32> to vector<8x32xf32>
    %1896 = arith.mulf %1895, %1452 : vector<8x32xf32>
    %1897 = arith.addf %1893, %1896 : vector<8x32xf32>
    %1898 = vector.extract_strided_slice %216 {offsets = [0, 7], sizes = [8, 1], strides = [1, 1]} : vector<8x8xf32> to vector<8x1xf32>
    %1899 = vector.broadcast %1898 : vector<8x1xf32> to vector<8x32xf32>
    %1900 = arith.mulf %1899, %1456 : vector<8x32xf32>
    %1901 = arith.addf %1897, %1900 : vector<8x32xf32>
    %1902 = arith.truncf %1901 : vector<8x32xf32> to vector<8x32xbf16>
    %c2_410 = arith.constant 2 : index
    %c6_411 = arith.constant 6 : index
    %c0_412 = arith.constant 0 : index
    %c0_413 = arith.constant 0 : index
    %1903 = vector.load %arg4[%c2_410, %c6_411, %c0_412, %c0_413] : memref<3x8x32x32xbf16, #tpu.memory_space<vmem>>, vector<1x1x32x32xbf16>
    %1904 = vector.shape_cast %1903 : vector<1x1x32x32xbf16> to vector<32x32xbf16>
    %cst_414 = arith.constant dense<0.000000e+00> : vector<8x32xf32>
    %1905 = tpu.matmul %1902, %1904, %cst_414 {dimension_numbers = #tpu.dot_dimension_numbers<[1], [0], [0], [1], [0, 0, 1, 1], [], []>} : vector<8x32xbf16>, vector<32x32xbf16>, vector<8x32xf32> -> vector<8x32xf32>
    %1906 = arith.addf %1905, %1424 : vector<8x32xf32>
    %1907 = arith.truncf %1906 : vector<8x32xf32> to vector<8x32xbf16>
    %cst_415 = arith.constant dense<0.000000e+00> : vector<8x96xf32>
    %1908 = tpu.matmul %1907, %237, %cst_415 {dimension_numbers = #tpu.dot_dimension_numbers<[1], [0], [0], [1], [0, 0, 1, 1], [], []>} : vector<8x32xbf16>, vector<32x96xbf16>, vector<8x96xf32> -> vector<8x96xf32>
    %1909 = arith.addf %1908, %241 : vector<8x96xf32>
    %1910 = arith.truncf %1351 : vector<8x32xf32> to vector<8x32xbf16>
    %cst_416 = arith.constant dense<0.000000e+00> : vector<8x96xf32>
    %1911 = tpu.matmul %1910, %238, %cst_416 {dimension_numbers = #tpu.dot_dimension_numbers<[1], [0], [0], [1], [0, 0, 1, 1], [], []>} : vector<8x32xbf16>, vector<32x96xbf16>, vector<8x96xf32> -> vector<8x96xf32>
    %1912 = arith.addf %1911, %244 : vector<8x96xf32>
    %1913 = vector.extract_strided_slice %1909 {offsets = [0, 0], sizes = [8, 32], strides = [1, 1]} : vector<8x96xf32> to vector<8x32xf32>
    %1914 = vector.extract_strided_slice %1912 {offsets = [0, 0], sizes = [8, 32], strides = [1, 1]} : vector<8x96xf32> to vector<8x32xf32>
    %1915 = arith.addf %1913, %1914 : vector<8x32xf32>
    %1916 = arith.negf %1915 : vector<8x32xf32>
    %1917 = math.exp %1916 : vector<8x32xf32>
    %cst_417 = arith.constant 1.000000e+00 : f32
    %1918 = vector.broadcast %cst_417 : f32 to vector<8x32xf32>
    %1919 = arith.addf %1918, %1917 : vector<8x32xf32>
    %1920 = arith.divf %1918, %1919 : vector<8x32xf32>
    %1921 = vector.extract_strided_slice %1909 {offsets = [0, 32], sizes = [8, 32], strides = [1, 1]} : vector<8x96xf32> to vector<8x32xf32>
    %1922 = vector.extract_strided_slice %1912 {offsets = [0, 32], sizes = [8, 32], strides = [1, 1]} : vector<8x96xf32> to vector<8x32xf32>
    %1923 = arith.addf %1921, %1922 : vector<8x32xf32>
    %1924 = arith.negf %1923 : vector<8x32xf32>
    %1925 = math.exp %1924 : vector<8x32xf32>
    %cst_418 = arith.constant 1.000000e+00 : f32
    %1926 = vector.broadcast %cst_418 : f32 to vector<8x32xf32>
    %1927 = arith.addf %1926, %1925 : vector<8x32xf32>
    %1928 = arith.divf %1926, %1927 : vector<8x32xf32>
    %1929 = vector.extract_strided_slice %1909 {offsets = [0, 64], sizes = [8, 32], strides = [1, 1]} : vector<8x96xf32> to vector<8x32xf32>
    %1930 = vector.extract_strided_slice %1912 {offsets = [0, 64], sizes = [8, 32], strides = [1, 1]} : vector<8x96xf32> to vector<8x32xf32>
    %1931 = arith.mulf %1920, %1930 : vector<8x32xf32>
    %1932 = arith.addf %1929, %1931 : vector<8x32xf32>
    %1933 = math.tanh %1932 : vector<8x32xf32>
    %cst_419 = arith.constant 1.000000e+00 : f32
    %1934 = vector.broadcast %cst_419 : f32 to vector<8x32xf32>
    %1935 = arith.subf %1934, %1928 : vector<8x32xf32>
    %1936 = arith.mulf %1935, %1933 : vector<8x32xf32>
    %1937 = arith.mulf %1928, %1351 : vector<8x32xf32>
    %1938 = arith.addf %1936, %1937 : vector<8x32xf32>
    %1939 = arith.addf %1938, %7 : vector<8x32xf32>
    %1940 = vector.extract_strided_slice %236 {offsets = [0, 0], sizes = [8, 1], strides = [1, 1]} : vector<8x8xf32> to vector<8x1xf32>
    %1941 = vector.broadcast %1940 : vector<8x1xf32> to vector<8x32xf32>
    %1942 = arith.mulf %1941, %1428 : vector<8x32xf32>
    %1943 = vector.extract_strided_slice %236 {offsets = [0, 1], sizes = [8, 1], strides = [1, 1]} : vector<8x8xf32> to vector<8x1xf32>
    %1944 = vector.broadcast %1943 : vector<8x1xf32> to vector<8x32xf32>
    %1945 = arith.mulf %1944, %1432 : vector<8x32xf32>
    %1946 = arith.addf %1942, %1945 : vector<8x32xf32>
    %1947 = vector.extract_strided_slice %236 {offsets = [0, 2], sizes = [8, 1], strides = [1, 1]} : vector<8x8xf32> to vector<8x1xf32>
    %1948 = vector.broadcast %1947 : vector<8x1xf32> to vector<8x32xf32>
    %1949 = arith.mulf %1948, %1436 : vector<8x32xf32>
    %1950 = arith.addf %1946, %1949 : vector<8x32xf32>
    %1951 = vector.extract_strided_slice %236 {offsets = [0, 3], sizes = [8, 1], strides = [1, 1]} : vector<8x8xf32> to vector<8x1xf32>
    %1952 = vector.broadcast %1951 : vector<8x1xf32> to vector<8x32xf32>
    %1953 = arith.mulf %1952, %1440 : vector<8x32xf32>
    %1954 = arith.addf %1950, %1953 : vector<8x32xf32>
    %1955 = vector.extract_strided_slice %236 {offsets = [0, 4], sizes = [8, 1], strides = [1, 1]} : vector<8x8xf32> to vector<8x1xf32>
    %1956 = vector.broadcast %1955 : vector<8x1xf32> to vector<8x32xf32>
    %1957 = arith.mulf %1956, %1444 : vector<8x32xf32>
    %1958 = arith.addf %1954, %1957 : vector<8x32xf32>
    %1959 = vector.extract_strided_slice %236 {offsets = [0, 5], sizes = [8, 1], strides = [1, 1]} : vector<8x8xf32> to vector<8x1xf32>
    %1960 = vector.broadcast %1959 : vector<8x1xf32> to vector<8x32xf32>
    %1961 = arith.mulf %1960, %1448 : vector<8x32xf32>
    %1962 = arith.addf %1958, %1961 : vector<8x32xf32>
    %1963 = vector.extract_strided_slice %236 {offsets = [0, 6], sizes = [8, 1], strides = [1, 1]} : vector<8x8xf32> to vector<8x1xf32>
    %1964 = vector.broadcast %1963 : vector<8x1xf32> to vector<8x32xf32>
    %1965 = arith.mulf %1964, %1452 : vector<8x32xf32>
    %1966 = arith.addf %1962, %1965 : vector<8x32xf32>
    %1967 = vector.extract_strided_slice %236 {offsets = [0, 7], sizes = [8, 1], strides = [1, 1]} : vector<8x8xf32> to vector<8x1xf32>
    %1968 = vector.broadcast %1967 : vector<8x1xf32> to vector<8x32xf32>
    %1969 = arith.mulf %1968, %1456 : vector<8x32xf32>
    %1970 = arith.addf %1966, %1969 : vector<8x32xf32>
    %1971 = arith.truncf %1970 : vector<8x32xf32> to vector<8x32xbf16>
    %c2_420 = arith.constant 2 : index
    %c7_421 = arith.constant 7 : index
    %c0_422 = arith.constant 0 : index
    %c0_423 = arith.constant 0 : index
    %1972 = vector.load %arg4[%c2_420, %c7_421, %c0_422, %c0_423] : memref<3x8x32x32xbf16, #tpu.memory_space<vmem>>, vector<1x1x32x32xbf16>
    %1973 = vector.shape_cast %1972 : vector<1x1x32x32xbf16> to vector<32x32xbf16>
    %cst_424 = arith.constant dense<0.000000e+00> : vector<8x32xf32>
    %1974 = tpu.matmul %1971, %1973, %cst_424 {dimension_numbers = #tpu.dot_dimension_numbers<[1], [0], [0], [1], [0, 0, 1, 1], [], []>} : vector<8x32xbf16>, vector<32x32xbf16>, vector<8x32xf32> -> vector<8x32xf32>
    %1975 = arith.addf %1974, %1424 : vector<8x32xf32>
    %1976 = arith.truncf %1975 : vector<8x32xf32> to vector<8x32xbf16>
    %cst_425 = arith.constant dense<0.000000e+00> : vector<8x96xf32>
    %1977 = tpu.matmul %1976, %237, %cst_425 {dimension_numbers = #tpu.dot_dimension_numbers<[1], [0], [0], [1], [0, 0, 1, 1], [], []>} : vector<8x32xbf16>, vector<32x96xbf16>, vector<8x96xf32> -> vector<8x96xf32>
    %1978 = arith.addf %1977, %241 : vector<8x96xf32>
    %1979 = arith.truncf %1420 : vector<8x32xf32> to vector<8x32xbf16>
    %cst_426 = arith.constant dense<0.000000e+00> : vector<8x96xf32>
    %1980 = tpu.matmul %1979, %238, %cst_426 {dimension_numbers = #tpu.dot_dimension_numbers<[1], [0], [0], [1], [0, 0, 1, 1], [], []>} : vector<8x32xbf16>, vector<32x96xbf16>, vector<8x96xf32> -> vector<8x96xf32>
    %1981 = arith.addf %1980, %244 : vector<8x96xf32>
    %1982 = vector.extract_strided_slice %1978 {offsets = [0, 0], sizes = [8, 32], strides = [1, 1]} : vector<8x96xf32> to vector<8x32xf32>
    %1983 = vector.extract_strided_slice %1981 {offsets = [0, 0], sizes = [8, 32], strides = [1, 1]} : vector<8x96xf32> to vector<8x32xf32>
    %1984 = arith.addf %1982, %1983 : vector<8x32xf32>
    %1985 = arith.negf %1984 : vector<8x32xf32>
    %1986 = math.exp %1985 : vector<8x32xf32>
    %cst_427 = arith.constant 1.000000e+00 : f32
    %1987 = vector.broadcast %cst_427 : f32 to vector<8x32xf32>
    %1988 = arith.addf %1987, %1986 : vector<8x32xf32>
    %1989 = arith.divf %1987, %1988 : vector<8x32xf32>
    %1990 = vector.extract_strided_slice %1978 {offsets = [0, 32], sizes = [8, 32], strides = [1, 1]} : vector<8x96xf32> to vector<8x32xf32>
    %1991 = vector.extract_strided_slice %1981 {offsets = [0, 32], sizes = [8, 32], strides = [1, 1]} : vector<8x96xf32> to vector<8x32xf32>
    %1992 = arith.addf %1990, %1991 : vector<8x32xf32>
    %1993 = arith.negf %1992 : vector<8x32xf32>
    %1994 = math.exp %1993 : vector<8x32xf32>
    %cst_428 = arith.constant 1.000000e+00 : f32
    %1995 = vector.broadcast %cst_428 : f32 to vector<8x32xf32>
    %1996 = arith.addf %1995, %1994 : vector<8x32xf32>
    %1997 = arith.divf %1995, %1996 : vector<8x32xf32>
    %1998 = vector.extract_strided_slice %1978 {offsets = [0, 64], sizes = [8, 32], strides = [1, 1]} : vector<8x96xf32> to vector<8x32xf32>
    %1999 = vector.extract_strided_slice %1981 {offsets = [0, 64], sizes = [8, 32], strides = [1, 1]} : vector<8x96xf32> to vector<8x32xf32>
    %2000 = arith.mulf %1989, %1999 : vector<8x32xf32>
    %2001 = arith.addf %1998, %2000 : vector<8x32xf32>
    %2002 = math.tanh %2001 : vector<8x32xf32>
    %cst_429 = arith.constant 1.000000e+00 : f32
    %2003 = vector.broadcast %cst_429 : f32 to vector<8x32xf32>
    %2004 = arith.subf %2003, %1997 : vector<8x32xf32>
    %2005 = arith.mulf %2004, %2002 : vector<8x32xf32>
    %2006 = arith.mulf %1997, %1420 : vector<8x32xf32>
    %2007 = arith.addf %2005, %2006 : vector<8x32xf32>
    %2008 = arith.addf %2007, %8 : vector<8x32xf32>
    %2009 = tpu.concatenate %1525, %1594, %1663, %1732, %1801, %1870, %1939, %2008 in 1 : vector<8x32xf32>, vector<8x32xf32>, vector<8x32xf32>, vector<8x32xf32>, vector<8x32xf32>, vector<8x32xf32>, vector<8x32xf32>, vector<8x32xf32> -> vector<8x256xf32>
    %c0_430 = arith.constant 0 : index
    %c0_431 = arith.constant 0 : index
    %2010 = vector.load %arg10[%c0_430, %c0_431] : memref<8x256xf32, #tpu.memory_space<vmem>>, vector<8x256xf32>
    tpu.vector_store %arg10[%c0_430, %c0_431], %2009 {strides = array<i32>} : memref<8x256xf32, #tpu.memory_space<vmem>>, vector<8x256xf32>,
    return
  }
  func.func @transform_0(%arg0: i32) -> (i32, i32) {
    %c0_i32 = arith.constant 0 : i32
    %c0_i32_0 = arith.constant 0 : i32
    return %arg0, %c0_i32 : i32, i32
  }
  func.func @transform_1(%arg0: i32) -> (i32, i32) {
    %c0_i32 = arith.constant 0 : i32
    %c0_i32_0 = arith.constant 0 : i32
    %c0_i32_1 = arith.constant 0 : i32
    return %c0_i32, %c0_i32_0 : i32, i32
  }
  func.func @transform_2(%arg0: i32) -> (i32, i32, i32, i32) {
    %c0_i32 = arith.constant 0 : i32
    %c0_i32_0 = arith.constant 0 : i32
    %c0_i32_1 = arith.constant 0 : i32
    %c0_i32_2 = arith.constant 0 : i32
    %c0_i32_3 = arith.constant 0 : i32
    return %c0_i32, %c0_i32_0, %c0_i32_1, %c0_i32_2 : i32, i32, i32, i32
  }
  func.func @transform_3(%arg0: i32) -> (i32, i32, i32, i32) {
    %c0_i32 = arith.constant 0 : i32
    %c0_i32_0 = arith.constant 0 : i32
    %c0_i32_1 = arith.constant 0 : i32
    %c0_i32_2 = arith.constant 0 : i32
    %c0_i32_3 = arith.constant 0 : i32
    return %c0_i32, %c0_i32_0, %c0_i32_1, %c0_i32_2 : i32, i32, i32, i32
  }
  func.func @transform_4(%arg0: i32) -> (i32, i32, i32) {
    %c0_i32 = arith.constant 0 : i32
    %c0_i32_0 = arith.constant 0 : i32
    %c0_i32_1 = arith.constant 0 : i32
    %c0_i32_2 = arith.constant 0 : i32
    return %c0_i32, %c0_i32_0, %c0_i32_1 : i32, i32, i32
  }
  func.func @transform_5(%arg0: i32) -> (i32, i32) {
    %c0_i32 = arith.constant 0 : i32
    %c0_i32_0 = arith.constant 0 : i32
    %c0_i32_1 = arith.constant 0 : i32
    return %c0_i32, %c0_i32_0 : i32, i32
  }
  func.func @transform_6(%arg0: i32) -> (i32, i32) {
    %c0_i32 = arith.constant 0 : i32
    %c0_i32_0 = arith.constant 0 : i32
    %c0_i32_1 = arith.constant 0 : i32
    return %c0_i32, %c0_i32_0 : i32, i32
  }
  func.func @transform_7(%arg0: i32) -> (i32, i32) {
    %c0_i32 = arith.constant 0 : i32
    %c0_i32_0 = arith.constant 0 : i32
    %c0_i32_1 = arith.constant 0 : i32
    return %c0_i32, %c0_i32_0 : i32, i32
  }
  func.func @transform_8(%arg0: i32) -> (i32, i32) {
    %c0_i32 = arith.constant 0 : i32
    %c0_i32_0 = arith.constant 0 : i32
    %c0_i32_1 = arith.constant 0 : i32
    return %c0_i32, %c0_i32_0 : i32, i32
  }
  func.func @transform_9(%arg0: i32) -> (i32, i32) {
    %c0_i32 = arith.constant 0 : i32
    %c0_i32_0 = arith.constant 0 : i32
    return %arg0, %c0_i32 : i32, i32
  }
}

</mosaic_0001>

<llo_original>
// kernel: tpu_custom_call.1
$region0: #{tpu_custom_call.1}
  #allocation0 [shape = 'u32[]', space=smem, size = 0x4, offset = 0x4, fixed_abs, tag = 'smem constant byte address 0x4 - core index']
  #allocation1 [shape = 'u32[72,128]{1,0:T(1,128)}', space=vmem, size = 0x9000, scoped, tag = 'internal scratch']
  %s0 = inlined_call_operand.hbm [shape: f32[16,256], index: 0, kind: input, shape index: {}]
  %s1 = inlined_call_operand.hbm [shape: f32[2,32], index: 1, kind: input, shape index: {}]
  %s2 = inlined_call_operand.hbm [shape: bf16[3,8,32,32], index: 2, kind: input, shape index: {}]
  %s3 = inlined_call_operand.hbm [shape: bf16[3,8,32,32], index: 3, kind: input, shape index: {}]
  %s4 = inlined_call_operand.vmem [shape: f32[3,1,32], index: 4, kind: input, shape index: {}]
  %s5 = inlined_call_operand.hbm [shape: bf16[32,96], index: 5, kind: input, shape index: {}]
  %s6 = inlined_call_operand.hbm [shape: bf16[32,96], index: 6, kind: input, shape index: {}]
  %s7 = inlined_call_operand.vmem [shape: f32[1,96], index: 7, kind: input, shape index: {}]
  %s8 = inlined_call_operand.vmem [shape: f32[1,96], index: 8, kind: input, shape index: {}]
  %s9 = inlined_call_operand.hbm [shape: f32[16,256], index: 9, kind: output, shape index: {}]
  %s10 = sld [smem:[#allocation0]]
  $region93: #{tpu_custom_call.1} parent=0
    _
  %s12 = ssub.s32 1, %s10
  %s13 = scalar_select 0, %s12, %s10
  $region1: #{tpu_custom_call.1} parent=0
    #allocation2 [shape = 'u8[16384]{0}', space=vmem, size = 0x4000, scoped, tag = 'input window, operand 0']
    #allocation3 [shape = 's32[2]{0}', space=sflag, size = 0x8, scoped, tag = 'scoped memory for tpu_custom_call.1']
    #allocation4 [shape = 's32[2]{0}', space=sflag, size = 0x8, scoped, tag = 'scoped memory for tpu_custom_call.1']
    #allocation5 [shape = 'u8[1024]{0}', space=vmem, size = 0x400, scoped, tag = 'input window, operand 1, single buffered']
    #allocation6 [shape = 's32[1]{0}', space=sflag, size = 0x4, scoped, tag = 'scoped memory for tpu_custom_call.1']
    #allocation7 [shape = 'u8[196608]{0}', space=vmem, size = 0x30000, scoped, tag = 'input window, operand 2, single buffered']
    #allocation8 [shape = 'u8[196608]{0}', space=vmem, size = 0x30000, scoped, tag = 'input window, operand 3, single buffered']
    #allocation9 [shape = 's32[1]{0}', space=sflag, size = 0x4, scoped, tag = 'scoped memory for tpu_custom_call.1']
    #allocation10 [shape = 'u8[8192]{0}', space=vmem, size = 0x2000, scoped, tag = 'input window, operand 5, single buffered']
    #allocation11 [shape = 'u8[8192]{0}', space=vmem, size = 0x2000, scoped, tag = 'input window, operand 6, single buffered']
    #allocation12 [shape = 's32[1]{0}', space=sflag, size = 0x4, scoped, tag = 'scoped memory for tpu_custom_call.1']
    #allocation13 [shape = 'u8[16384]{0}', space=vmem, size = 0x4000, scoped, tag = 'output window, operand 0']
    %14 = vsyncpa [#allocation3], 0
    %s15 = scalar_lea.sflag [#allocation3], 1
    %16 = vsyncpa %s15, 0
    %17 = vsyncpa [#allocation6], 0
    %18 = vsyncpa [#allocation9], 0
    %19 = vsyncpa [#allocation12], 0
    %20 = vsyncpa [#allocation4], 0
    %s21 = scalar_lea.sflag [#allocation4], 1
    %22 = vsyncpa %s21, 0
    loop: start=0, step=1, limit=4
    $region2: #{tpu_custom_call.1} parent=1 // loop_pre_header
      _
    $region3: #{tpu_custom_call.1} parent=1 // loop_header
      %s24 = sphi 0, %s28
      %p25 = scmp.ge.s32.totalorder %s24, 4
      %s34 = sphi 0, %s36
      %s37 = sphi 0, %s34
      %s38 = sphi 0, %s37
      %s54 = sphi 0, %s38
      %s58 = sphi 0, %s58
      %s60 = sphi 0, %s58
      %s61 = sphi 0, %s60
      %s75 = sphi 0, %s61
      %s79 = sphi 0, %s79
      %s81 = sphi 0, %s79
      %s82 = sphi 0, %s81
      %s96 = sphi 0, %s82
      %s100 = sphi 0, %s100
      %s102 = sphi 0, %s100
      %s103 = sphi 0, %s102
      %s117 = sphi 0, %s103
      %s121 = sphi 0, %s121
      %s123 = sphi 0, %s121
      %s124 = sphi 0, %s123
      %s138 = sphi 0, %s124
      %s142 = sphi 0, %s142
      %s144 = sphi 0, %s142
      %s145 = sphi 0, %s144
      %s159 = sphi 0, %s145
      %s163 = sphi 0, %s163
      %s165 = sphi 0, %s163
      %s166 = sphi 0, %s165
      %s180 = sphi 0, %s166
      %s184 = sphi 0, %s184
      %s186 = sphi 0, %s184
      %s187 = sphi 0, %s186
      %s201 = sphi 0, %s187
      %s205 = sphi 0, %s205
      %s207 = sphi 0, %s205
      %s208 = sphi 0, %s207
      %s222 = sphi 0, %s208
      %s228 = sphi 0, %s230
      %s231 = sphi 0, %s228
      %s232 = sphi 0, %s231
      %s248 = sphi 0, %s232
    $region4: #{tpu_custom_call.1} parent=1 // loop_header_branch
      %27 = sbr.rel (%p25) target = $region8
    $region5: #{tpu_custom_call.1} parent=1 // loop_body
      %s29 = ssub.s32 %s24, 1
      %s30 = ssub.s32 %s24, 2
      %s31 = sadd.s32 %s24, 1
      %s32 = ssub.s32 %s24, %s31
      %p33 = scmp.eq.s32.totalorder %s32, 0
      %s35 = sadd.s32 %s34, 1
      %s36 = scalar_select %p33, %s34, %s35
      %p39 = pneg %p33
      %p40 = scmp.eq.s32.totalorder %s24, 1
      %p41 = por %p39, %p40
      %p42 = scmp.ne.s32.totalorder %s34, %s37
      %p43 = scmp.eq.s32.totalorder %s24, 0
      %p44 = por %p42, %p43
      %p45 = scmp.ne.s32.totalorder %s34, %s37
      %p46 = scmp.eq.s32.totalorder %s29, 1
      %p47 = por %p45, %p46
      %p48 = scmp.ne.s32.totalorder %s37, %s38
      %p49 = scmp.eq.s32.totalorder %s29, 0
      %p50 = por %p48, %p49
      %p51 = scmp.ne.s32.totalorder %s37, %s38
      %p52 = scmp.eq.s32.totalorder %s30, 1
      %p53 = por %p51, %p52
      %p55 = scmp.ne.s32.totalorder %s38, %s54
      %p56 = scmp.eq.s32.totalorder %s30, 0
      %p57 = por %p55, %p56
      %s59 = sadd.s32 %s58, 1
      %p62 = scmp.eq.s32.totalorder %s24, 1
      %p63 = scmp.ne.s32.totalorder %s58, %s60
      %p64 = scmp.eq.s32.totalorder %s24, 0
      %p65 = por %p63, %p64
      %p66 = scmp.ne.s32.totalorder %s58, %s60
      %p67 = scmp.eq.s32.totalorder %s29, 1
      %p68 = por %p66, %p67
      %p69 = scmp.ne.s32.totalorder %s60, %s61
      %p70 = scmp.eq.s32.totalorder %s29, 0
      %p71 = por %p69, %p70
      %p72 = scmp.ne.s32.totalorder %s60, %s61
      %p73 = scmp.eq.s32.totalorder %s30, 1
      %p74 = por %p72, %p73
      %p76 = scmp.ne.s32.totalorder %s61, %s75
      %p77 = scmp.eq.s32.totalorder %s30, 0
      %p78 = por %p76, %p77
      %s80 = sadd.s32 %s79, 1
      %p83 = scmp.eq.s32.totalorder %s24, 1
      %p84 = scmp.ne.s32.totalorder %s79, %s81
      %p85 = scmp.eq.s32.totalorder %s24, 0
      %p86 = por %p84, %p85
      %p87 = scmp.ne.s32.totalorder %s79, %s81
      %p88 = scmp.eq.s32.totalorder %s29, 1
      %p89 = por %p87, %p88
      %p90 = scmp.ne.s32.totalorder %s81, %s82
      %p91 = scmp.eq.s32.totalorder %s29, 0
      %p92 = por %p90, %p91
      %p93 = scmp.ne.s32.totalorder %s81, %s82
      %p94 = scmp.eq.s32.totalorder %s30, 1
      %p95 = por %p93, %p94
      %p97 = scmp.ne.s32.totalorder %s82, %s96
      %p98 = scmp.eq.s32.totalorder %s30, 0
      %p99 = por %p97, %p98
      %s101 = sadd.s32 %s100, 1
      %p104 = scmp.eq.s32.totalorder %s24, 1
      %p105 = scmp.ne.s32.totalorder %s100, %s102
      %p106 = scmp.eq.s32.totalorder %s24, 0
      %p107 = por %p105, %p106
      %p108 = scmp.ne.s32.totalorder %s100, %s102
      %p109 = scmp.eq.s32.totalorder %s29, 1
      %p110 = por %p108, %p109
      %p111 = scmp.ne.s32.totalorder %s102, %s103
      %p112 = scmp.eq.s32.totalorder %s29, 0
      %p113 = por %p111, %p112
      %p114 = scmp.ne.s32.totalorder %s102, %s103
      %p115 = scmp.eq.s32.totalorder %s30, 1
      %p116 = por %p114, %p115
      %p118 = scmp.ne.s32.totalorder %s103, %s117
      %p119 = scmp.eq.s32.totalorder %s30, 0
      %p120 = por %p118, %p119
      %s122 = sadd.s32 %s121, 1
      %p125 = scmp.eq.s32.totalorder %s24, 1
      %p126 = scmp.ne.s32.totalorder %s121, %s123
      %p127 = scmp.eq.s32.totalorder %s24, 0
      %p128 = por %p126, %p127
      %p129 = scmp.ne.s32.totalorder %s121, %s123
      %p130 = scmp.eq.s32.totalorder %s29, 1
      %p131 = por %p129, %p130
      %p132 = scmp.ne.s32.totalorder %s123, %s124
      %p133 = scmp.eq.s32.totalorder %s29, 0
      %p134 = por %p132, %p133
      %p135 = scmp.ne.s32.totalorder %s123, %s124
      %p136 = scmp.eq.s32.totalorder %s30, 1
      %p137 = por %p135, %p136
      %p139 = scmp.ne.s32.totalorder %s124, %s138
      %p140 = scmp.eq.s32.totalorder %s30, 0
      %p141 = por %p139, %p140
      %s143 = sadd.s32 %s142, 1
      %p146 = scmp.eq.s32.totalorder %s24, 1
      %p147 = scmp.ne.s32.totalorder %s142, %s144
      %p148 = scmp.eq.s32.totalorder %s24, 0
      %p149 = por %p147, %p148
      %p150 = scmp.ne.s32.totalorder %s142, %s144
      %p151 = scmp.eq.s32.totalorder %s29, 1
      %p152 = por %p150, %p151
      %p153 = scmp.ne.s32.totalorder %s144, %s145
      %p154 = scmp.eq.s32.totalorder %s29, 0
      %p155 = por %p153, %p154
      %p156 = scmp.ne.s32.totalorder %s144, %s145
      %p157 = scmp.eq.s32.totalorder %s30, 1
      %p158 = por %p156, %p157
      %p160 = scmp.ne.s32.totalorder %s145, %s159
      %p161 = scmp.eq.s32.totalorder %s30, 0
      %p162 = por %p160, %p161
      %s164 = sadd.s32 %s163, 1
      %p167 = scmp.eq.s32.totalorder %s24, 1
      %p168 = scmp.ne.s32.totalorder %s163, %s165
      %p169 = scmp.eq.s32.totalorder %s24, 0
      %p170 = por %p168, %p169
      %p171 = scmp.ne.s32.totalorder %s163, %s165
      %p172 = scmp.eq.s32.totalorder %s29, 1
      %p173 = por %p171, %p172
      %p174 = scmp.ne.s32.totalorder %s165, %s166
      %p175 = scmp.eq.s32.totalorder %s29, 0
      %p176 = por %p174, %p175
      %p177 = scmp.ne.s32.totalorder %s165, %s166
      %p178 = scmp.eq.s32.totalorder %s30, 1
      %p179 = por %p177, %p178
      %p181 = scmp.ne.s32.totalorder %s166, %s180
      %p182 = scmp.eq.s32.totalorder %s30, 0
      %p183 = por %p181, %p182
      %s185 = sadd.s32 %s184, 1
      %p188 = scmp.eq.s32.totalorder %s24, 1
      %p189 = scmp.ne.s32.totalorder %s184, %s186
      %p190 = scmp.eq.s32.totalorder %s24, 0
      %p191 = por %p189, %p190
      %p192 = scmp.ne.s32.totalorder %s184, %s186
      %p193 = scmp.eq.s32.totalorder %s29, 1
      %p194 = por %p192, %p193
      %p195 = scmp.ne.s32.totalorder %s186, %s187
      %p196 = scmp.eq.s32.totalorder %s29, 0
      %p197 = por %p195, %p196
      %p198 = scmp.ne.s32.totalorder %s186, %s187
      %p199 = scmp.eq.s32.totalorder %s30, 1
      %p200 = por %p198, %p199
      %p202 = scmp.ne.s32.totalorder %s187, %s201
      %p203 = scmp.eq.s32.totalorder %s30, 0
      %p204 = por %p202, %p203
      %s206 = sadd.s32 %s205, 1
      %p209 = scmp.eq.s32.totalorder %s24, 1
      %p210 = scmp.ne.s32.totalorder %s205, %s207
      %p211 = scmp.eq.s32.totalorder %s24, 0
      %p212 = por %p210, %p211
      %p213 = scmp.ne.s32.totalorder %s205, %s207
      %p214 = scmp.eq.s32.totalorder %s29, 1
      %p215 = por %p213, %p214
      %p216 = scmp.ne.s32.totalorder %s207, %s208
      %p217 = scmp.eq.s32.totalorder %s29, 0
      %p218 = por %p216, %p217
      %p219 = scmp.ne.s32.totalorder %s207, %s208
      %p220 = scmp.eq.s32.totalorder %s30, 1
      %p221 = por %p219, %p220
      %p223 = scmp.ne.s32.totalorder %s208, %s222
      %p224 = scmp.eq.s32.totalorder %s30, 0
      %p225 = por %p223, %p224
      %s226 = ssub.s32 %s24, %s31
      %p227 = scmp.eq.s32.totalorder %s226, 0
      %s229 = sadd.s32 %s228, 1
      %s230 = scalar_select %p227, %s228, %s229
      %p233 = pneg %p227
      %p234 = scmp.eq.s32.totalorder %s24, 1
      %p235 = por %p233, %p234
      %p236 = scmp.ne.s32.totalorder %s228, %s231
      %p237 = scmp.eq.s32.totalorder %s24, 0
      %p238 = por %p236, %p237
      %p239 = scmp.ne.s32.totalorder %s228, %s231
      %p240 = scmp.eq.s32.totalorder %s29, 1
      %p241 = por %p239, %p240
      %p242 = scmp.ne.s32.totalorder %s231, %s232
      %p243 = scmp.eq.s32.totalorder %s29, 0
      %p244 = por %p242, %p243
      %p245 = scmp.ne.s32.totalorder %s231, %s232
      %p246 = scmp.eq.s32.totalorder %s30, 1
      %p247 = por %p245, %p246
      %p249 = scmp.ne.s32.totalorder %s232, %s248
      %p250 = scmp.eq.s32.totalorder %s30, 0
      %p251 = por %p249, %p250
      %p252 = scmp.le.s32.totalorder 1, %s24
      %p253 = scmp.lt.s32.totalorder %s24, 3
      %p254 = pnand %p252, %p253
      %p255 = pneg %p254
      // Predicated region
      $region9: #{tpu_custom_call.1} parent=5 // pred_check
        _
      $region10: #{tpu_custom_call.1} parent=5 // pred_check_branch
        %257 = sbr.rel (%p254) target = $region12
      $region11: #{tpu_custom_call.1} parent=5 // pred_region
        %s258 = ssub.s32 %s24, 1
        // Predicated region
        $region13: #{tpu_custom_call.1} parent=11 // pred_check
          %p259 = pneg %p71
        $region14: #{tpu_custom_call.1} parent=11 // pred_check_branch
          %261 = sbr.rel (%p259) target = $region16
        $region15: #{tpu_custom_call.1} parent=11 // pred_region
          %263 = vsyncadd [#allocation6], 0
          %s265 = sshll.u32 %s1, 4
          %s266 = int_to_ptr.hbm [resolvable:$true] %s265
          %s267 = sshll.u32 [#allocation5], 4
          %s268 = int_to_ptr.vmem [resolvable:$true] %s267
          %270 = dma.hbm_to_vmem [thread:$0]  %s266, 32, %s268, [#allocation6]
        $region16: #{tpu_custom_call.1} parent=11 // pred_fallthru
          _
        // Predicated region
        $region17: #{tpu_custom_call.1} parent=11 // pred_check
          %p271 = pneg %p92
        $region18: #{tpu_custom_call.1} parent=11 // pred_check_branch
          %273 = sbr.rel (%p271) target = $region20
        $region19: #{tpu_custom_call.1} parent=11 // pred_region
          %275 = vsyncadd [#allocation6], 0
          %s276 = sshll.u32 %s2, 4
          %s277 = int_to_ptr.hbm [resolvable:$true] %s276
          %s278 = sshll.u32 [#allocation7], 4
          %s279 = int_to_ptr.vmem [resolvable:$true] %s278
          %284 = dma.hbm_to_vmem [thread:$0]  %s277, 6144, %s279, [#allocation6], 64, 64, 4
        $region20: #{tpu_custom_call.1} parent=11 // pred_fallthru
          _
        // Predicated region
        $region21: #{tpu_custom_call.1} parent=11 // pred_check
          %p285 = pneg %p113
        $region22: #{tpu_custom_call.1} parent=11 // pred_check_branch
          %287 = sbr.rel (%p285) target = $region24
        $region23: #{tpu_custom_call.1} parent=11 // pred_region
          %289 = vsyncadd [#allocation9], 0
          %s290 = sshll.u32 %s3, 4
          %s291 = int_to_ptr.hbm [resolvable:$true] %s290
          %s292 = sshll.u32 [#allocation8], 4
          %s293 = int_to_ptr.vmem [resolvable:$true] %s292
          %298 = dma.hbm_to_vmem [thread:$0]  %s291, 6144, %s293, [#allocation9], 64, 64, 4
        $region24: #{tpu_custom_call.1} parent=11 // pred_fallthru
          _
        // Predicated region
        $region25: #{tpu_custom_call.1} parent=11 // pred_check
          %p299 = pneg %p134
        $region26: #{tpu_custom_call.1} parent=11 // pred_check_branch
          %301 = sbr.rel (%p299) target = $region28
        $region27: #{tpu_custom_call.1} parent=11 // pred_region
          _
        $region28: #{tpu_custom_call.1} parent=11 // pred_fallthru
          _
        // Predicated region
        $region29: #{tpu_custom_call.1} parent=11 // pred_check
          %p302 = pneg %p155
        $region30: #{tpu_custom_call.1} parent=11 // pred_check_branch
          %304 = sbr.rel (%p302) target = $region32
        $region31: #{tpu_custom_call.1} parent=11 // pred_region
          %306 = vsyncadd [#allocation9], 0
          %s307 = sshll.u32 %s5, 4
          %s308 = int_to_ptr.hbm [resolvable:$true] %s307
          %s309 = sshll.u32 [#allocation10], 4
          %s310 = int_to_ptr.vmem [resolvable:$true] %s309
          %315 = dma.hbm_to_vmem [thread:$0]  %s308, 256, %s310, [#allocation9], 64, 64, 4
        $region32: #{tpu_custom_call.1} parent=11 // pred_fallthru
          _
        // Predicated region
        $region33: #{tpu_custom_call.1} parent=11 // pred_check
          %p316 = pneg %p176
        $region34: #{tpu_custom_call.1} parent=11 // pred_check_branch
          %318 = sbr.rel (%p316) target = $region36
        $region35: #{tpu_custom_call.1} parent=11 // pred_region
          %320 = vsyncadd [#allocation12], 0
          %s321 = sshll.u32 %s6, 4
          %s322 = int_to_ptr.hbm [resolvable:$true] %s321
          %s323 = sshll.u32 [#allocation11], 4
          %s324 = int_to_ptr.vmem [resolvable:$true] %s323
          %329 = dma.hbm_to_vmem [thread:$0]  %s322, 256, %s324, [#allocation12], 64, 64, 4
        $region36: #{tpu_custom_call.1} parent=11 // pred_fallthru
          _
        // Predicated region
        $region37: #{tpu_custom_call.1} parent=11 // pred_check
          %p330 = pneg %p197
        $region38: #{tpu_custom_call.1} parent=11 // pred_check_branch
          %332 = sbr.rel (%p330) target = $region40
        $region39: #{tpu_custom_call.1} parent=11 // pred_region
          _
        $region40: #{tpu_custom_call.1} parent=11 // pred_fallthru
          _
        // Predicated region
        $region41: #{tpu_custom_call.1} parent=11 // pred_check
          %p333 = pneg %p218
        $region42: #{tpu_custom_call.1} parent=11 // pred_check_branch
          %335 = sbr.rel (%p333) target = $region44
        $region43: #{tpu_custom_call.1} parent=11 // pred_region
          _
        $region44: #{tpu_custom_call.1} parent=11 // pred_fallthru
          _
      $region12: #{tpu_custom_call.1} parent=5 // pred_fallthru
        _
      %p336 = scmp.lt.s32.totalorder %s24, 2
      // Predicated region
      $region45: #{tpu_custom_call.1} parent=5 // pred_check
        %p337 = pneg %p336
      $region46: #{tpu_custom_call.1} parent=5 // pred_check_branch
        %339 = sbr.rel (%p337) target = $region48
      $region47: #{tpu_custom_call.1} parent=5 // pred_region
        // Predicated region
        $region49: #{tpu_custom_call.1} parent=47 // pred_check
          %p340 = pneg %p44
        $region50: #{tpu_custom_call.1} parent=47 // pred_check_branch
          %342 = sbr.rel (%p340) target = $region52
        $region51: #{tpu_custom_call.1} parent=47 // pred_region
          %s343 = sand.u32 %s34, 1
          %s344 = scalar_lea.sflag [#allocation3], %s343
          %s345 = sand.u32 %s34, 1
          %s346 = smul.addr %s345, 16
          %s347 = scalar_lea.vmem [#allocation2], %s346
          %349 = vsyncadd %s344, 0
          %s350 = smul.addr %s24, 2
          %s351 = smul.addr %s350, 8
          %s352 = scalar_lea.hbm %s0, %s351
          %s354 = sshll.u32 %s352, 4
          %s355 = int_to_ptr.hbm [resolvable:$true] %s354
          %s356 = sshll.u32 %s347, 4
          %s357 = int_to_ptr.vmem [resolvable:$true] %s356
          %359 = dma.hbm_to_vmem [thread:$0]  %s355, 256, %s357, %s344
        $region52: #{tpu_custom_call.1} parent=47 // pred_fallthru
          _
      $region48: #{tpu_custom_call.1} parent=5 // pred_fallthru
        _
      %p360 = scmp.le.s32.totalorder 1, %s24
      %p361 = scmp.lt.s32.totalorder %s24, 3
      %p362 = pnand %p360, %p361
      %p363 = pneg %p362
      // Predicated region
      $region53: #{tpu_custom_call.1} parent=5 // pred_check
        _
      $region54: #{tpu_custom_call.1} parent=5 // pred_check_branch
        %365 = sbr.rel (%p362) target = $region56
      $region55: #{tpu_custom_call.1} parent=5 // pred_region
        %s366 = ssub.s32 %s24, 1
        %s367 = sand.u32 %s37, 1
        %s368 = scalar_lea.sflag [#allocation3], %s367
        %s369 = sand.u32 %s37, 1
        %s370 = smul.addr %s369, 16
        %s371 = scalar_lea.vmem [#allocation2], %s370
        // Predicated region
        $region57: #{tpu_custom_call.1} parent=55 // pred_check
          %p372 = pneg %p50
        $region58: #{tpu_custom_call.1} parent=55 // pred_check_branch
          %374 = sbr.rel (%p372) target = $region60
        $region59: #{tpu_custom_call.1} parent=55 // pred_region
          %376 = dma.done %s368, 256
        $region60: #{tpu_custom_call.1} parent=55 // pred_fallthru
          _
        // Predicated region
        $region61: #{tpu_custom_call.1} parent=55 // pred_check
          %p377 = pneg %p71
        $region62: #{tpu_custom_call.1} parent=55 // pred_check_branch
          %379 = sbr.rel (%p377) target = $region64
        $region63: #{tpu_custom_call.1} parent=55 // pred_region
          %381 = dma.done [#allocation6], 32
        $region64: #{tpu_custom_call.1} parent=55 // pred_fallthru
          _
        // Predicated region
        $region65: #{tpu_custom_call.1} parent=55 // pred_check
          %p382 = pneg %p92
        $region66: #{tpu_custom_call.1} parent=55 // pred_check_branch
          %384 = sbr.rel (%p382) target = $region68
        $region67: #{tpu_custom_call.1} parent=55 // pred_region
          %386 = dma.done [#allocation6], 6144
        $region68: #{tpu_custom_call.1} parent=55 // pred_fallthru
          _
        // Predicated region
        $region69: #{tpu_custom_call.1} parent=55 // pred_check
          %p387 = pneg %p113
        $region70: #{tpu_custom_call.1} parent=55 // pred_check_branch
          %389 = sbr.rel (%p387) target = $region72
        $region71: #{tpu_custom_call.1} parent=55 // pred_region
          %391 = dma.done [#allocation9], 6144
        $region72: #{tpu_custom_call.1} parent=55 // pred_fallthru
          _
        // Predicated region
        $region73: #{tpu_custom_call.1} parent=55 // pred_check
          %p392 = pneg %p155
        $region74: #{tpu_custom_call.1} parent=55 // pred_check_branch
          %394 = sbr.rel (%p392) target = $region76
        $region75: #{tpu_custom_call.1} parent=55 // pred_region
          %396 = dma.done [#allocation9], 256
        $region76: #{tpu_custom_call.1} parent=55 // pred_fallthru
          _
        // Predicated region
        $region77: #{tpu_custom_call.1} parent=55 // pred_check
          %p397 = pneg %p176
        $region78: #{tpu_custom_call.1} parent=55 // pred_check_branch
          %399 = sbr.rel (%p397) target = $region80
        $region79: #{tpu_custom_call.1} parent=55 // pred_region
          %401 = dma.done [#allocation12], 256
        $region80: #{tpu_custom_call.1} parent=55 // pred_fallthru
          _
        %s402 = sand.u32 %s37, 1
        %s403 = scalar_lea.sflag [#allocation3], %s402
        %s404 = sand.u32 %s37, 1
        %s405 = smul.addr %s404, 16
        %s406 = scalar_lea.vmem [#allocation2], %s405
        %p407 = pneg %p50
        %p408 = pneg %p47
        %p409 = pneg %p71
        %p410 = pneg %p68
        %p411 = pneg %p92
        %p412 = pneg %p89
        %p413 = pneg %p113
        %p414 = pneg %p110
        %p415 = pneg %p134
        %p416 = pneg %p131
        %p417 = pneg %p155
        %p418 = pneg %p152
        %p419 = pneg %p176
        %p420 = pneg %p173
        %p421 = pneg %p197
        %p422 = pneg %p194
        %p423 = pneg %p218
        %p424 = pneg %p215
        %p425 = pneg %p244
        %p426 = pneg %p241
        %s427 = sand.u32 %s231, 1
        %s428 = scalar_lea.sflag [#allocation4], %s427
        %s429 = sand.u32 %s231, 1
        %s430 = smul.addr %s429, 16
        %s431 = scalar_lea.vmem [#allocation13], %s430
        %v433 = vld [vmem:[%s371] sm:$0xff]
        %v434 = vld [vmem:[%s371 + $0x8] sm:$0xff]
        %v435 = vld [vmem:[#allocation5] sm:$0x1]
        %v436 = vld [vmem:[#allocation5 + $0x1] sm:$0x1]
        %v437 = vperm.slane %v435, 0
        %v438 = vmul.f32 %v433, %v437
        %vm439 = vcmask 261120
        %v440 = vsel %vm439, %v438, 0.0
        %441 = vadd.xlane.f32.xlu0 %v440
        %v442 = vpop.xlane.xlu0 %441
        %444 = vrot.lane.b32.xlu0 %v437, 32
        %v445 = vpop.permute.xlu0 %444
        %v447 = vmul.f32 %v433, %v445
        %449 = vrot.lane.b32.xlu0 %v447, 96
        %v450 = vpop.permute.xlu0 %449
        %v452 = vsel %vm439, %v450, 0.0
        %453 = vadd.xlane.f32.xlu0 %v452
        %v454 = vpop.xlane.xlu0 %453
        %455 = vrot.lane.b32.xlu0 %v437, 64
        %v456 = vpop.permute.xlu0 %455
        %v458 = vmul.f32 %v433, %v456
        %460 = vrot.lane.b32.xlu0 %v458, 64
        %v461 = vpop.permute.xlu0 %460
        %v463 = vsel %vm439, %v461, 0.0
        %464 = vadd.xlane.f32.xlu0 %v463
        %v465 = vpop.xlane.xlu0 %464
        %466 = vrot.lane.b32.xlu0 %v437, 96
        %v467 = vpop.permute.xlu0 %466
        %v469 = vmul.f32 %v433, %v467
        %471 = vrot.lane.b32.xlu0 %v469, 32
        %v472 = vpop.permute.xlu0 %471
        %v474 = vsel %vm439, %v472, 0.0
        %475 = vadd.xlane.f32.xlu0 %v474
        %v476 = vpop.xlane.xlu0 %475
        %v477 = vmul.f32 %v434, %v437
        %v478 = vsel %vm439, %v477, 0.0
        %479 = vadd.xlane.f32.xlu0 %v478
        %v480 = vpop.xlane.xlu0 %479
        %v481 = vmul.f32 %v434, %v445
        %483 = vrot.lane.b32.xlu0 %v481, 96
        %v484 = vpop.permute.xlu0 %483
        %v486 = vsel %vm439, %v484, 0.0
        %487 = vadd.xlane.f32.xlu0 %v486
        %v488 = vpop.xlane.xlu0 %487
        %v489 = vmul.f32 %v434, %v456
        %491 = vrot.lane.b32.xlu0 %v489, 64
        %v492 = vpop.permute.xlu0 %491
        %v494 = vsel %vm439, %v492, 0.0
        %495 = vadd.xlane.f32.xlu0 %v494
        %v496 = vpop.xlane.xlu0 %495
        %v497 = vmul.f32 %v434, %v467
        %499 = vrot.lane.b32.xlu0 %v497, 32
        %v500 = vpop.permute.xlu0 %499
        %v502 = vsel %vm439, %v500, 0.0
        %503 = vadd.xlane.f32.xlu0 %v502
        %v504 = vpop.xlane.xlu0 %503
        %v505 = vperm.slane %v436, 0
        %v506 = vmul.f32 %v433, %v505
        %v507 = vsel %vm439, %v506, 0.0
        %508 = vadd.xlane.f32.xlu0 %v507
        %v509 = vpop.xlane.xlu0 %508
        %511 = vrot.lane.b32.xlu0 %v505, 32
        %v512 = vpop.permute.xlu0 %511
        %v514 = vmul.f32 %v433, %v512
        %516 = vrot.lane.b32.xlu0 %v514, 96
        %v517 = vpop.permute.xlu0 %516
        %v519 = vsel %vm439, %v517, 0.0
        %520 = vadd.xlane.f32.xlu0 %v519
        %v521 = vpop.xlane.xlu0 %520
        %522 = vrot.lane.b32.xlu0 %v505, 64
        %v523 = vpop.permute.xlu0 %522
        %v525 = vmul.f32 %v433, %v523
        %527 = vrot.lane.b32.xlu0 %v525, 64
        %v528 = vpop.permute.xlu0 %527
        %v530 = vsel %vm439, %v528, 0.0
        %531 = vadd.xlane.f32.xlu0 %v530
        %v532 = vpop.xlane.xlu0 %531
        %533 = vrot.lane.b32.xlu0 %v505, 96
        %v534 = vpop.permute.xlu0 %533
        %v536 = vmul.f32 %v433, %v534
        %538 = vrot.lane.b32.xlu0 %v536, 32
        %v539 = vpop.permute.xlu0 %538
        %v541 = vsel %vm439, %v539, 0.0
        %542 = vadd.xlane.f32.xlu0 %v541
        %v543 = vpop.xlane.xlu0 %542
        %v544 = vmul.f32 %v434, %v505
        %v545 = vsel %vm439, %v544, 0.0
        %546 = vadd.xlane.f32.xlu0 %v545
        %v547 = vpop.xlane.xlu0 %546
        %v548 = vmul.f32 %v434, %v512
        %550 = vrot.lane.b32.xlu0 %v548, 96
        %v551 = vpop.permute.xlu0 %550
        %v553 = vsel %vm439, %v551, 0.0
        %554 = vadd.xlane.f32.xlu0 %v553
        %v555 = vpop.xlane.xlu0 %554
        %v556 = vmul.f32 %v434, %v523
        %558 = vrot.lane.b32.xlu0 %v556, 64
        %v559 = vpop.permute.xlu0 %558
        %v561 = vsel %vm439, %v559, 0.0
        %562 = vadd.xlane.f32.xlu0 %v561
        %v563 = vpop.xlane.xlu0 %562
        %v564 = vmul.f32 %v434, %v534
        %566 = vrot.lane.b32.xlu0 %v564, 32
        %v567 = vpop.permute.xlu0 %566
        %v569 = vsel %vm439, %v567, 0.0
        %570 = vadd.xlane.f32.xlu0 %v569
        %v571 = vpop.xlane.xlu0 %570
        %vm572 = vcmask 7168
        %v573 = vsel %vm572, %v509, %v521
        %vm574 = vcmask 15360
        %v575 = vsel %vm574, %v573, %v532
        %vm576 = vcmask 23552
        %v577 = vsel %vm576, %v575, %v543
        %vm578 = vcmask 31744
        %v579 = vsel %vm578, %v577, %v547
        %vm580 = vcmask 39936
        %v581 = vsel %vm580, %v579, %v555
        %vm582 = vcmask 48128
        %v583 = vsel %vm582, %v581, %v563
        %vm584 = vcmask 56320
        %v585 = vsel %vm584, %v583, %v571
        %v586 = vlaneseq
        %v587 = vand.u32 %v586, 127
        %v588 = vadd.f32 %v442, %v585
        %vm589 = vcmp.gt.f32.partialorder %v588, 0.0
        %v590 = vmul.f32 %v588, 0.01
        %v591 = vsel %vm589, %v588, %v590
        %vm592 = vcmp.eq.s32.totalorder %v587, 0
        %v593 = vsel %vm592, -inf, %v591
        %vm594 = vcmask 64512
        %v595 = vsel %vm594, %v593, -inf
        %596 = vmax.xlane.f32.xlu0 %v595
        %v597 = vpop.xlane.xlu0 %596
        %v598 = vsub.f32 %v593, %v597
        %v599 = vmul.f32 %v598, 1.442695
        %v600 = vpow.pop %v599
        %v601 = vsel %vm594, %v600, 0.0
        %602 = vadd.xlane.f32.xlu0 %v601
        %v603 = vpop.xlane.xlu0 %602
        %v604 = vrcp.pop %v603
        %v605 = vmul.f32 %v603, %v604
        %v606 = vsub.f32 1.0, %v605
        %v607 = vmul.f32 %v604, %v606
        %v608 = vadd.f32 %v604, %v607
        %vm609 = vweird.f32 %v603
        %vm610 = vweird.f32 %v604
        %vm611 = vmor %vm609, %vm610
        %v612 = vsel %vm611, %v604, %v608
        %v613 = vand.u32 2147483647, %v603
        %vm614 = vcmp.eq.f32.partialorder %v613, 8.507059e+37
        %v615 = vand.u32 %v603, 2147483648
        %v616 = vor.u32 1.1754944e-38, %v615
        %v617 = vsel %vm614, %v616, %v612
        %v618 = vmul.f32 %v600, %v617
        %v619 = vadd.f32 %v454, %v585
        %vm620 = vcmp.gt.f32.partialorder %v619, 0.0
        %v621 = vmul.f32 %v619, 0.01
        %v622 = vsel %vm620, %v619, %v621
        %vm623 = vcmp.eq.s32.totalorder %v587, 1
        %v624 = vsel %vm623, -inf, %v622
        %v625 = vsel %vm594, %v624, -inf
        %626 = vmax.xlane.f32.xlu0 %v625
        %v627 = vpop.xlane.xlu0 %626
        %v628 = vsub.f32 %v624, %v627
        %v629 = vmul.f32 %v628, 1.442695
        %v630 = vpow.pop %v629
        %v631 = vsel %vm594, %v630, 0.0
        %632 = vadd.xlane.f32.xlu0 %v631
        %v633 = vpop.xlane.xlu0 %632
        %v634 = vrcp.pop %v633
        %v635 = vmul.f32 %v633, %v634
        %v636 = vsub.f32 1.0, %v635
        %v637 = vmul.f32 %v634, %v636
        %v638 = vadd.f32 %v634, %v637
        %vm639 = vweird.f32 %v633
        %vm640 = vweird.f32 %v634
        %vm641 = vmor %vm639, %vm640
        %v642 = vsel %vm641, %v634, %v638
        %v643 = vand.u32 2147483647, %v633
        %vm644 = vcmp.eq.f32.partialorder %v643, 8.507059e+37
        %v645 = vand.u32 %v633, 2147483648
        %v646 = vor.u32 1.1754944e-38, %v645
        %v647 = vsel %vm644, %v646, %v642
        %v648 = vmul.f32 %v630, %v647
        %v649 = vadd.f32 %v465, %v585
        %vm650 = vcmp.gt.f32.partialorder %v649, 0.0
        %v651 = vmul.f32 %v649, 0.01
        %v652 = vsel %vm650, %v649, %v651
        %vm653 = vcmp.eq.s32.totalorder %v587, 2
        %v654 = vsel %vm653, -inf, %v652
        %v655 = vsel %vm594, %v654, -inf
        %656 = vmax.xlane.f32.xlu0 %v655
        %v657 = vpop.xlane.xlu0 %656
        %v658 = vsub.f32 %v654, %v657
        %v659 = vmul.f32 %v658, 1.442695
        %v660 = vpow.pop %v659
        %v661 = vsel %vm594, %v660, 0.0
        %662 = vadd.xlane.f32.xlu0 %v661
        %v663 = vpop.xlane.xlu0 %662
        %v664 = vrcp.pop %v663
        %v665 = vmul.f32 %v663, %v664
        %v666 = vsub.f32 1.0, %v665
        %v667 = vmul.f32 %v664, %v666
        %v668 = vadd.f32 %v664, %v667
        %vm669 = vweird.f32 %v663
        %vm670 = vweird.f32 %v664
        %vm671 = vmor %vm669, %vm670
        %v672 = vsel %vm671, %v664, %v668
        %v673 = vand.u32 2147483647, %v663
        %vm674 = vcmp.eq.f32.partialorder %v673, 8.507059e+37
        %v675 = vand.u32 %v663, 2147483648
        %v676 = vor.u32 1.1754944e-38, %v675
        %v677 = vsel %vm674, %v676, %v672
        %v678 = vmul.f32 %v660, %v677
        %v679 = vadd.f32 %v476, %v585
        %vm680 = vcmp.gt.f32.partialorder %v679, 0.0
        %v681 = vmul.f32 %v679, 0.01
        %v682 = vsel %vm680, %v679, %v681
        %vm683 = vcmp.eq.s32.totalorder %v587, 3
        %v684 = vsel %vm683, -inf, %v682
        %v685 = vsel %vm594, %v684, -inf
        %686 = vmax.xlane.f32.xlu0 %v685
        %v687 = vpop.xlane.xlu0 %686
        %v688 = vsub.f32 %v684, %v687
        %v689 = vmul.f32 %v688, 1.442695
        %v690 = vpow.pop %v689
        %v691 = vsel %vm594, %v690, 0.0
        %692 = vadd.xlane.f32.xlu0 %v691
        %v693 = vpop.xlane.xlu0 %692
        %v694 = vrcp.pop %v693
        %v695 = vmul.f32 %v693, %v694
        %v696 = vsub.f32 1.0, %v695
        %v697 = vmul.f32 %v694, %v696
        %v698 = vadd.f32 %v694, %v697
        %vm699 = vweird.f32 %v693
        %vm700 = vweird.f32 %v694
        %vm701 = vmor %vm699, %vm700
        %v702 = vsel %vm701, %v694, %v698
        %v703 = vand.u32 2147483647, %v693
        %vm704 = vcmp.eq.f32.partialorder %v703, 8.507059e+37
        %v705 = vand.u32 %v693, 2147483648
        %v706 = vor.u32 1.1754944e-38, %v705
        %v707 = vsel %vm704, %v706, %v702
        %v708 = vmul.f32 %v690, %v707
        %v709 = vadd.f32 %v480, %v585
        %vm710 = vcmp.gt.f32.partialorder %v709, 0.0
        %v711 = vmul.f32 %v709, 0.01
        %v712 = vsel %vm710, %v709, %v711
        %vm713 = vcmp.eq.s32.totalorder %v587, 4
        %v714 = vsel %vm713, -inf, %v712
        %v715 = vsel %vm594, %v714, -inf
        %716 = vmax.xlane.f32.xlu0 %v715
        %v717 = vpop.xlane.xlu0 %716
        %v718 = vsub.f32 %v714, %v717
        %v719 = vmul.f32 %v718, 1.442695
        %v720 = vpow.pop %v719
        %v721 = vsel %vm594, %v720, 0.0
        %722 = vadd.xlane.f32.xlu0 %v721
        %v723 = vpop.xlane.xlu0 %722
        %v724 = vrcp.pop %v723
        %v725 = vmul.f32 %v723, %v724
        %v726 = vsub.f32 1.0, %v725
        %v727 = vmul.f32 %v724, %v726
        %v728 = vadd.f32 %v724, %v727
        %vm729 = vweird.f32 %v723
        %vm730 = vweird.f32 %v724
        %vm731 = vmor %vm729, %vm730
        %v732 = vsel %vm731, %v724, %v728
        %v733 = vand.u32 2147483647, %v723
        %vm734 = vcmp.eq.f32.partialorder %v733, 8.507059e+37
        %v735 = vand.u32 %v723, 2147483648
        %v736 = vor.u32 1.1754944e-38, %v735
        %v737 = vsel %vm734, %v736, %v732
        %v738 = vmul.f32 %v720, %v737
        %v739 = vadd.f32 %v488, %v585
        %vm740 = vcmp.gt.f32.partialorder %v739, 0.0
        %v741 = vmul.f32 %v739, 0.01
        %v742 = vsel %vm740, %v739, %v741
        %vm743 = vcmp.eq.s32.totalorder %v587, 5
        %v744 = vsel %vm743, -inf, %v742
        %v745 = vsel %vm594, %v744, -inf
        %746 = vmax.xlane.f32.xlu0 %v745
        %v747 = vpop.xlane.xlu0 %746
        %v748 = vsub.f32 %v744, %v747
        %v749 = vmul.f32 %v748, 1.442695
        %v750 = vpow.pop %v749
        %v751 = vsel %vm594, %v750, 0.0
        %752 = vadd.xlane.f32.xlu0 %v751
        %v753 = vpop.xlane.xlu0 %752
        %v754 = vrcp.pop %v753
        %v755 = vmul.f32 %v753, %v754
        %v756 = vsub.f32 1.0, %v755
        %v757 = vmul.f32 %v754, %v756
        %v758 = vadd.f32 %v754, %v757
        %vm759 = vweird.f32 %v753
        %vm760 = vweird.f32 %v754
        %vm761 = vmor %vm759, %vm760
        %v762 = vsel %vm761, %v754, %v758
        %v763 = vand.u32 2147483647, %v753
        %vm764 = vcmp.eq.f32.partialorder %v763, 8.507059e+37
        %v765 = vand.u32 %v753, 2147483648
        %v766 = vor.u32 1.1754944e-38, %v765
        %v767 = vsel %vm764, %v766, %v762
        %v768 = vmul.f32 %v750, %v767
        %v769 = vadd.f32 %v496, %v585
        %vm770 = vcmp.gt.f32.partialorder %v769, 0.0
        %v771 = vmul.f32 %v769, 0.01
        %v772 = vsel %vm770, %v769, %v771
        %vm773 = vcmp.eq.s32.totalorder %v587, 6
        %v774 = vsel %vm773, -inf, %v772
        %v775 = vsel %vm594, %v774, -inf
        %776 = vmax.xlane.f32.xlu0 %v775
        %v777 = vpop.xlane.xlu0 %776
        %v778 = vsub.f32 %v774, %v777
        %v779 = vmul.f32 %v778, 1.442695
        %v780 = vpow.pop %v779
        %v781 = vsel %vm594, %v780, 0.0
        %782 = vadd.xlane.f32.xlu0 %v781
        %v783 = vpop.xlane.xlu0 %782
        %v784 = vrcp.pop %v783
        %v785 = vmul.f32 %v783, %v784
        %v786 = vsub.f32 1.0, %v785
        %v787 = vmul.f32 %v784, %v786
        %v788 = vadd.f32 %v784, %v787
        %vm789 = vweird.f32 %v783
        %vm790 = vweird.f32 %v784
        %vm791 = vmor %vm789, %vm790
        %v792 = vsel %vm791, %v784, %v788
        %v793 = vand.u32 2147483647, %v783
        %vm794 = vcmp.eq.f32.partialorder %v793, 8.507059e+37
        %v795 = vand.u32 %v783, 2147483648
        %v796 = vor.u32 1.1754944e-38, %v795
        %v797 = vsel %vm794, %v796, %v792
        %v798 = vmul.f32 %v780, %v797
        %v799 = vadd.f32 %v504, %v585
        %vm800 = vcmp.gt.f32.partialorder %v799, 0.0
        %v801 = vmul.f32 %v799, 0.01
        %v802 = vsel %vm800, %v799, %v801
        %vm803 = vcmp.eq.s32.totalorder %v587, 7
        %v804 = vsel %vm803, -inf, %v802
        %v805 = vsel %vm594, %v804, -inf
        %806 = vmax.xlane.f32.xlu0 %v805
        %v807 = vpop.xlane.xlu0 %806
        %v808 = vsub.f32 %v804, %v807
        %v809 = vmul.f32 %v808, 1.442695
        %v810 = vpow.pop %v809
        %v811 = vsel %vm594, %v810, 0.0
        %812 = vadd.xlane.f32.xlu0 %v811
        %v813 = vpop.xlane.xlu0 %812
        %v814 = vrcp.pop %v813
        %v815 = vmul.f32 %v813, %v814
        %v816 = vsub.f32 1.0, %v815
        %v817 = vmul.f32 %v814, %v816
        %v818 = vadd.f32 %v814, %v817
        %vm819 = vweird.f32 %v813
        %vm820 = vweird.f32 %v814
        %vm821 = vmor %vm819, %vm820
        %v822 = vsel %vm821, %v814, %v818
        %v823 = vand.u32 2147483647, %v813
        %vm824 = vcmp.eq.f32.partialorder %v823, 8.507059e+37
        %v825 = vand.u32 %v813, 2147483648
        %v826 = vor.u32 1.1754944e-38, %v825
        %v827 = vsel %vm824, %v826, %v822
        %v828 = vmul.f32 %v810, %v827
        %v829 = vld [vmem:[#allocation10] sm:$0xf]
        %v830 = vld [vmem:[#allocation10 + $0x4] sm:$0xf]
        %v831 = vld [vmem:[#allocation10 + $0x8] sm:$0xf]
        %v832 = vld [vmem:[#allocation10 + $0xc] sm:$0xf]
        %v833 = vld [vmem:[#allocation11] sm:$0xf]
        %v834 = vld [vmem:[#allocation11 + $0x4] sm:$0xf]
        %v835 = vld [vmem:[#allocation11 + $0x8] sm:$0xf]
        %v836 = vld [vmem:[#allocation11 + $0xc] sm:$0xf]
        %v837 = vld [vmem:[%s7] sm:$0x1]
        %v839 = vperm.slane %v837, 0
        %v841 = vld [vmem:[%s8] sm:$0x1]
        %v843 = vperm.slane %v841, 0
        %v845 = vld [vmem:[%s4] sm:$0x1]
        %v847 = vperm.slane %v845, 0
        %v849 = vpack.c.bf16 %v433, %v433
        %v850 = vld [vmem:[#allocation7] sm:$0xf]
        %v851 = vld [vmem:[#allocation7 + $0x4] sm:$0xf]
        %v852 = vld [vmem:[#allocation7 + $0x8] sm:$0xf]
        %v853 = vld [vmem:[#allocation7 + $0xc] sm:$0xf]
        %v858 = vunpack.c.l.b16 %v850
        %v859 = vunpack.c.l.b16 %v851
        %v860 = vunpack.c.l.b16 %v852
        %v861 = vunpack.c.l.b16 %v853
        %v862 = vpack.c.b16 %v859, %v858
        %v863 = vpack.c.b16 %v861, %v860
        %v867 = vsel %vm439, %v849, 0
        %869 = vmatpush.bf16.msra.mxu0 0
        %870 = vmatpush.bf16.msra.mxu0 0
        %871 = vmatpush.bf16.msra.mxu0 0
        %872 = vmatpush.bf16.msra.mxu0 0
        %873 = vmatpush.bf16.msra.mxu0 0
        %874 = vmatpush.bf16.msra.mxu0 0
        %875 = vmatpush.bf16.msra.mxu0 %v863
        %876 = vmatpush.bf16.msra.mxu0 %v862
        %877 = vmatmul.bf16.gmra.mxu0 %v867
        %v878 = vpop.f32.mrf.mxu0
        %v879 = vadd.f32 0.0, %v878
        %v880 = vpop.f32.mrf.mxu0
        %881 = vdwg.mxu0
        %s882 = scalar_lea.vmem [#allocation7], 16
        %v883 = vld [vmem:[%s882] sm:$0xf]
        %v884 = vld [vmem:[%s882 + $0x4] sm:$0xf]
        %v885 = vld [vmem:[%s882 + $0x8] sm:$0xf]
        %v886 = vld [vmem:[%s882 + $0xc] sm:$0xf]
        %888 = vrot.lane.b32.xlu0 %v849, 96
        %v889 = vpop.permute.xlu0 %888
        %v894 = vunpack.c.l.b16 %v883
        %v895 = vunpack.c.l.b16 %v884
        %v896 = vunpack.c.l.b16 %v885
        %v897 = vunpack.c.l.b16 %v886
        %v898 = vpack.c.b16 %v895, %v894
        %v899 = vpack.c.b16 %v897, %v896
        %v903 = vsel %vm439, %v889, 0
        %905 = vmatpush.bf16.msra.mxu0 0
        %906 = vmatpush.bf16.msra.mxu0 0
        %907 = vmatpush.bf16.msra.mxu0 0
        %908 = vmatpush.bf16.msra.mxu0 0
        %909 = vmatpush.bf16.msra.mxu0 0
        %910 = vmatpush.bf16.msra.mxu0 0
        %911 = vmatpush.bf16.msra.mxu0 %v899
        %912 = vmatpush.bf16.msra.mxu0 %v898
        %913 = vmatmul.bf16.gmra.mxu0 %v903
        %v914 = vpop.f32.mrf.mxu0
        %v915 = vadd.f32 0.0, %v914
        %v916 = vpop.f32.mrf.mxu0
        %917 = vdwg.mxu0
        %s918 = scalar_lea.vmem [#allocation7], 32
        %v919 = vld [vmem:[%s918] sm:$0xf]
        %v920 = vld [vmem:[%s918 + $0x4] sm:$0xf]
        %v921 = vld [vmem:[%s918 + $0x8] sm:$0xf]
        %v922 = vld [vmem:[%s918 + $0xc] sm:$0xf]
        %923 = vrot.lane.b32.xlu0 %v849, 64
        %v924 = vpop.permute.xlu0 %923
        %v929 = vunpack.c.l.b16 %v919
        %v930 = vunpack.c.l.b16 %v920
        %v931 = vunpack.c.l.b16 %v921
        %v932 = vunpack.c.l.b16 %v922
        %v933 = vpack.c.b16 %v930, %v929
        %v934 = vpack.c.b16 %v932, %v931
        %v938 = vsel %vm439, %v924, 0
        %940 = vmatpush.bf16.msra.mxu0 0
        %941 = vmatpush.bf16.msra.mxu0 0
        %942 = vmatpush.bf16.msra.mxu0 0
        %943 = vmatpush.bf16.msra.mxu0 0
        %944 = vmatpush.bf16.msra.mxu0 0
        %945 = vmatpush.bf16.msra.mxu0 0
        %946 = vmatpush.bf16.msra.mxu0 %v934
        %947 = vmatpush.bf16.msra.mxu0 %v933
        %948 = vmatmul.bf16.gmra.mxu0 %v938
        %v949 = vpop.f32.mrf.mxu0
        %v950 = vadd.f32 0.0, %v949
        %v951 = vpop.f32.mrf.mxu0
        %952 = vdwg.mxu0
        %s953 = scalar_lea.vmem [#allocation7], 48
        %v954 = vld [vmem:[%s953] sm:$0xf]
        %v955 = vld [vmem:[%s953 + $0x4] sm:$0xf]
        %v956 = vld [vmem:[%s953 + $0x8] sm:$0xf]
        %v957 = vld [vmem:[%s953 + $0xc] sm:$0xf]
        %958 = vrot.lane.b32.xlu0 %v849, 32
        %v959 = vpop.permute.xlu0 %958
        %v964 = vunpack.c.l.b16 %v954
        %v965 = vunpack.c.l.b16 %v955
        %v966 = vunpack.c.l.b16 %v956
        %v967 = vunpack.c.l.b16 %v957
        %v968 = vpack.c.b16 %v965, %v964
        %v969 = vpack.c.b16 %v967, %v966
        %v973 = vsel %vm439, %v959, 0
        %975 = vmatpush.bf16.msra.mxu0 0
        %976 = vmatpush.bf16.msra.mxu0 0
        %977 = vmatpush.bf16.msra.mxu0 0
        %978 = vmatpush.bf16.msra.mxu0 0
        %979 = vmatpush.bf16.msra.mxu0 0
        %980 = vmatpush.bf16.msra.mxu0 0
        %981 = vmatpush.bf16.msra.mxu0 %v969
        %982 = vmatpush.bf16.msra.mxu0 %v968
        %983 = vmatmul.bf16.gmra.mxu0 %v973
        %v984 = vpop.f32.mrf.mxu0
        %v985 = vadd.f32 0.0, %v984
        %v986 = vpop.f32.mrf.mxu0
        %987 = vdwg.mxu0
        %v988 = vpack.c.bf16 %v434, %v434
        %s989 = scalar_lea.vmem [#allocation7], 64
        %v990 = vld [vmem:[%s989] sm:$0xf]
        %v991 = vld [vmem:[%s989 + $0x4] sm:$0xf]
        %v992 = vld [vmem:[%s989 + $0x8] sm:$0xf]
        %v993 = vld [vmem:[%s989 + $0xc] sm:$0xf]
        %v998 = vunpack.c.l.b16 %v990
        %v999 = vunpack.c.l.b16 %v991
        %v1000 = vunpack.c.l.b16 %v992
        %v1001 = vunpack.c.l.b16 %v993
        %v1002 = vpack.c.b16 %v999, %v998
        %v1003 = vpack.c.b16 %v1001, %v1000
        %v1007 = vsel %vm439, %v988, 0
        %1009 = vmatpush.bf16.msra.mxu0 0
        %1010 = vmatpush.bf16.msra.mxu0 0
        %1011 = vmatpush.bf16.msra.mxu0 0
        %1012 = vmatpush.bf16.msra.mxu0 0
        %1013 = vmatpush.bf16.msra.mxu0 0
        %1014 = vmatpush.bf16.msra.mxu0 0
        %1015 = vmatpush.bf16.msra.mxu0 %v1003
        %1016 = vmatpush.bf16.msra.mxu0 %v1002
        %1017 = vmatmul.bf16.gmra.mxu0 %v1007
        %v1018 = vpop.f32.mrf.mxu0
        %v1019 = vadd.f32 0.0, %v1018
        %v1020 = vpop.f32.mrf.mxu0
        %1021 = vdwg.mxu0
        %s1022 = scalar_lea.vmem [#allocation7], 80
        %v1023 = vld [vmem:[%s1022] sm:$0xf]
        %v1024 = vld [vmem:[%s1022 + $0x4] sm:$0xf]
        %v1025 = vld [vmem:[%s1022 + $0x8] sm:$0xf]
        %v1026 = vld [vmem:[%s1022 + $0xc] sm:$0xf]
        %1028 = vrot.lane.b32.xlu0 %v988, 96
        %v1029 = vpop.permute.xlu0 %1028
        %v1034 = vunpack.c.l.b16 %v1023
        %v1035 = vunpack.c.l.b16 %v1024
        %v1036 = vunpack.c.l.b16 %v1025
        %v1037 = vunpack.c.l.b16 %v1026
        %v1038 = vpack.c.b16 %v1035, %v1034
        %v1039 = vpack.c.b16 %v1037, %v1036
        %v1043 = vsel %vm439, %v1029, 0
        %1045 = vmatpush.bf16.msra.mxu0 0
        %1046 = vmatpush.bf16.msra.mxu0 0
        %1047 = vmatpush.bf16.msra.mxu0 0
        %1048 = vmatpush.bf16.msra.mxu0 0
        %1049 = vmatpush.bf16.msra.mxu0 0
        %1050 = vmatpush.bf16.msra.mxu0 0
        %1051 = vmatpush.bf16.msra.mxu0 %v1039
        %1052 = vmatpush.bf16.msra.mxu0 %v1038
        %1053 = vmatmul.bf16.gmra.mxu0 %v1043
        %v1054 = vpop.f32.mrf.mxu0
        %v1055 = vadd.f32 0.0, %v1054
        %v1056 = vpop.f32.mrf.mxu0
        %1057 = vdwg.mxu0
        %s1058 = scalar_lea.vmem [#allocation7], 96
        %v1059 = vld [vmem:[%s1058] sm:$0xf]
        %v1060 = vld [vmem:[%s1058 + $0x4] sm:$0xf]
        %v1061 = vld [vmem:[%s1058 + $0x8] sm:$0xf]
        %v1062 = vld [vmem:[%s1058 + $0xc] sm:$0xf]
        %1063 = vrot.lane.b32.xlu0 %v988, 64
        %v1064 = vpop.permute.xlu0 %1063
        %v1069 = vunpack.c.l.b16 %v1059
        %v1070 = vunpack.c.l.b16 %v1060
        %v1071 = vunpack.c.l.b16 %v1061
        %v1072 = vunpack.c.l.b16 %v1062
        %v1073 = vpack.c.b16 %v1070, %v1069
        %v1074 = vpack.c.b16 %v1072, %v1071
        %v1078 = vsel %vm439, %v1064, 0
        %1080 = vmatpush.bf16.msra.mxu0 0
        %1081 = vmatpush.bf16.msra.mxu0 0
        %1082 = vmatpush.bf16.msra.mxu0 0
        %1083 = vmatpush.bf16.msra.mxu0 0
        %1084 = vmatpush.bf16.msra.mxu0 0
        %1085 = vmatpush.bf16.msra.mxu0 0
        %1086 = vmatpush.bf16.msra.mxu0 %v1074
        %1087 = vmatpush.bf16.msra.mxu0 %v1073
        %1088 = vmatmul.bf16.gmra.mxu0 %v1078
        %v1089 = vpop.f32.mrf.mxu0
        %v1090 = vadd.f32 0.0, %v1089
        %v1091 = vpop.f32.mrf.mxu0
        %1092 = vdwg.mxu0
        %s1093 = scalar_lea.vmem [#allocation7], 112
        %v1094 = vld [vmem:[%s1093] sm:$0xf]
        %v1095 = vld [vmem:[%s1093 + $0x4] sm:$0xf]
        %v1096 = vld [vmem:[%s1093 + $0x8] sm:$0xf]
        %v1097 = vld [vmem:[%s1093 + $0xc] sm:$0xf]
        %1098 = vrot.lane.b32.xlu0 %v988, 32
        %v1099 = vpop.permute.xlu0 %1098
        %v1104 = vunpack.c.l.b16 %v1094
        %v1105 = vunpack.c.l.b16 %v1095
        %v1106 = vunpack.c.l.b16 %v1096
        %v1107 = vunpack.c.l.b16 %v1097
        %v1108 = vpack.c.b16 %v1105, %v1104
        %v1109 = vpack.c.b16 %v1107, %v1106
        %v1113 = vsel %vm439, %v1099, 0
        %1115 = vmatpush.bf16.msra.mxu0 0
        %1116 = vmatpush.bf16.msra.mxu0 0
        %1117 = vmatpush.bf16.msra.mxu0 0
        %1118 = vmatpush.bf16.msra.mxu0 0
        %1119 = vmatpush.bf16.msra.mxu0 0
        %1120 = vmatpush.bf16.msra.mxu0 0
        %1121 = vmatpush.bf16.msra.mxu0 %v1109
        %1122 = vmatpush.bf16.msra.mxu0 %v1108
        %1123 = vmatmul.bf16.gmra.mxu0 %v1113
        %v1124 = vpop.f32.mrf.mxu0
        %v1125 = vadd.f32 0.0, %v1124
        %v1126 = vpop.f32.mrf.mxu0
        %1127 = vdwg.mxu0
        %1129 = vset.pattern.permute.xlu0 0
        %1130 = vperm.xlu0 %1129, %v618
        %v1131 = vpop.permute.xlu0 %1130
        %v1133 = vmul.f32 %v1131, %v879
        %1134 = vset.pattern.permute.xlu0 1
        %1135 = vperm.xlu0 %1134, %v618
        %v1136 = vpop.permute.xlu0 %1135
        %v1138 = vmul.f32 %v1136, %v915
        %v1139 = vadd.f32 %v1133, %v1138
        %1140 = vset.pattern.permute.xlu0 2
        %1141 = vperm.xlu0 %1140, %v618
        %v1142 = vpop.permute.xlu0 %1141
        %v1144 = vmul.f32 %v1142, %v950
        %v1145 = vadd.f32 %v1139, %v1144
        %1146 = vset.pattern.permute.xlu0 3
        %1147 = vperm.xlu0 %1146, %v618
        %v1148 = vpop.permute.xlu0 %1147
        %v1150 = vmul.f32 %v1148, %v985
        %v1151 = vadd.f32 %v1145, %v1150
        %1152 = vset.pattern.permute.xlu0 4
        %1153 = vperm.xlu0 %1152, %v618
        %v1154 = vpop.permute.xlu0 %1153
        %v1156 = vmul.f32 %v1154, %v1019
        %v1157 = vadd.f32 %v1151, %v1156
        %1158 = vset.pattern.permute.xlu0 5
        %1159 = vperm.xlu0 %1158, %v618
        %v1160 = vpop.permute.xlu0 %1159
        %v1162 = vmul.f32 %v1160, %v1055
        %v1163 = vadd.f32 %v1157, %v1162
        %1164 = vset.pattern.permute.xlu0 6
        %1165 = vperm.xlu0 %1164, %v618
        %v1166 = vpop.permute.xlu0 %1165
        %v1168 = vmul.f32 %v1166, %v1090
        %v1169 = vadd.f32 %v1163, %v1168
        %1170 = vset.pattern.permute.xlu0 7
        %1171 = vperm.xlu0 %1170, %v618
        %v1172 = vpop.permute.xlu0 %1171
        %v1174 = vmul.f32 %v1172, %v1125
        %v1175 = vadd.f32 %v1169, %v1174
        %v1176 = vpack.c.bf16 %v1175, %v1175
        %v1177 = vld [vmem:[#allocation8] sm:$0xf]
        %v1178 = vld [vmem:[#allocation8 + $0x4] sm:$0xf]
        %v1179 = vld [vmem:[#allocation8 + $0x8] sm:$0xf]
        %v1180 = vld [vmem:[#allocation8 + $0xc] sm:$0xf]
        %v1185 = vunpack.c.l.b16 %v1177
        %v1186 = vunpack.c.l.b16 %v1178
        %v1187 = vunpack.c.l.b16 %v1179
        %v1188 = vunpack.c.l.b16 %v1180
        %v1189 = vpack.c.b16 %v1186, %v1185
        %v1190 = vpack.c.b16 %v1188, %v1187
        %v1194 = vsel %vm439, %v1176, 0
        %1196 = vmatpush.bf16.msra.mxu0 0
        %1197 = vmatpush.bf16.msra.mxu0 0
        %1198 = vmatpush.bf16.msra.mxu0 0
        %1199 = vmatpush.bf16.msra.mxu0 0
        %1200 = vmatpush.bf16.msra.mxu0 0
        %1201 = vmatpush.bf16.msra.mxu0 0
        %1202 = vmatpush.bf16.msra.mxu0 %v1190
        %1203 = vmatpush.bf16.msra.mxu0 %v1189
        %1204 = vmatmul.bf16.gmra.mxu0 %v1194
        %v1205 = vpop.f32.mrf.mxu0
        %v1206 = vadd.f32 %v847, %v1205
        %v1207 = vpop.f32.mrf.mxu0
        %1208 = vdwg.mxu0
        %v1209 = vpack.c.bf16 %v1206, %v1206
        %v1214 = vunpack.c.l.b16 %v829
        %v1215 = vunpack.c.l.b16 %v830
        %v1216 = vunpack.c.l.b16 %v831
        %v1217 = vunpack.c.l.b16 %v832
        %v1218 = vpack.c.b16 %v1215, %v1214
        %v1219 = vpack.c.b16 %v1217, %v1216
        %v1223 = vsel %vm439, %v1209, 0
        %1225 = vmatpush.bf16.msra.mxu0 0
        %1226 = vmatpush.bf16.msra.mxu0 0
        %1227 = vmatpush.bf16.msra.mxu0 0
        %1228 = vmatpush.bf16.msra.mxu0 0
        %1229 = vmatpush.bf16.msra.mxu0 0
        %1230 = vmatpush.bf16.msra.mxu0 0
        %1231 = vmatpush.bf16.msra.mxu0 %v1219
        %1232 = vmatpush.bf16.msra.mxu0 %v1218
        %1233 = vmatmul.bf16.gmra.mxu0 %v1223
        %v1234 = vpop.f32.mrf.mxu0
        %v1235 = vadd.f32 %v839, %v1234
        %v1236 = vpop.f32.mrf.mxu0
        %1237 = vdwg.mxu0
        %v1242 = vunpack.c.l.b16 %v833
        %v1243 = vunpack.c.l.b16 %v834
        %v1244 = vunpack.c.l.b16 %v835
        %v1245 = vunpack.c.l.b16 %v836
        %v1246 = vpack.c.b16 %v1243, %v1242
        %v1247 = vpack.c.b16 %v1245, %v1244
        %1250 = vmatpush.bf16.msra.mxu0 0
        %1251 = vmatpush.bf16.msra.mxu0 0
        %1252 = vmatpush.bf16.msra.mxu0 0
        %1253 = vmatpush.bf16.msra.mxu0 0
        %1254 = vmatpush.bf16.msra.mxu0 0
        %1255 = vmatpush.bf16.msra.mxu0 0
        %1256 = vmatpush.bf16.msra.mxu0 %v1247
        %1257 = vmatpush.bf16.msra.mxu0 %v1246
        %1258 = vmatmul.bf16.gmra.mxu0 %v867
        %v1259 = vpop.f32.mrf.mxu0
        %v1260 = vadd.f32 %v843, %v1259
        %v1261 = vpop.f32.mrf.mxu0
        %1262 = vdwg.mxu0
        %v1263 = vadd.f32 %v1235, %v1260
        %v1264 = vxor.u32 %v1263, 2147483648
        %v1265 = vmul.f32 %v1264, 1.442695
        %v1266 = vpow.pop %v1265
        %v1267 = vadd.f32 %v1266, 1.0
        %v1268 = vrcp.pop %v1267
        %v1269 = vmul.f32 %v1267, %v1268
        %v1270 = vsub.f32 1.0, %v1269
        %v1271 = vmul.f32 %v1268, %v1270
        %v1272 = vadd.f32 %v1268, %v1271
        %vm1273 = vweird.f32 %v1267
        %vm1274 = vweird.f32 %v1268
        %vm1275 = vmor %vm1273, %vm1274
        %v1276 = vsel %vm1275, %v1268, %v1272
        %v1277 = vand.u32 2147483647, %v1267
        %vm1278 = vcmp.eq.f32.partialorder %v1277, 8.507059e+37
        %v1279 = vand.u32 %v1267, 2147483648
        %v1280 = vor.u32 1.1754944e-38, %v1279
        %v1281 = vsel %vm1278, %v1280, %v1276
        %v1282 = vmul.f32 1.0, %v1281
        %1284 = vrot.lane.b32.xlu0 %v1260, 64
        %v1285 = vpop.permute.xlu0 %1284
        %v1287 = vmul.f32 %v1282, %v1285
        %1289 = vrot.lane.b32.xlu0 %v1287, 64
        %v1290 = vpop.permute.xlu0 %1289
        %v1292 = vadd.f32 %v1235, %v1290
        %v1293 = vtanh.pop %v1292
        %v1294 = vsub.f32 1.0, %v1282
        %1296 = vrot.lane.b32.xlu0 %v1293, 96
        %v1297 = vpop.permute.xlu0 %1296
        %v1299 = vmul.f32 %v1294, %v1297
        %1301 = vrot.lane.b32.xlu0 %v433, 32
        %v1302 = vpop.permute.xlu0 %1301
        %v1304 = vmul.f32 %v1282, %v1302
        %v1305 = vadd.f32 %v1299, %v1304
        %v1306 = vadd.f32 %v1305, %v1302
        %1308 = vset.pattern.permute.xlu0 0
        %1309 = vperm.xlu0 %1308, %v648
        %v1310 = vpop.permute.xlu0 %1309
        %v1312 = vmul.f32 %v1310, %v879
        %1313 = vset.pattern.permute.xlu0 1
        %1314 = vperm.xlu0 %1313, %v648
        %v1315 = vpop.permute.xlu0 %1314
        %v1317 = vmul.f32 %v1315, %v915
        %v1318 = vadd.f32 %v1312, %v1317
        %1319 = vset.pattern.permute.xlu0 2
        %1320 = vperm.xlu0 %1319, %v648
        %v1321 = vpop.permute.xlu0 %1320
        %v1323 = vmul.f32 %v1321, %v950
        %v1324 = vadd.f32 %v1318, %v1323
        %1325 = vset.pattern.permute.xlu0 3
        %1326 = vperm.xlu0 %1325, %v648
        %v1327 = vpop.permute.xlu0 %1326
        %v1329 = vmul.f32 %v1327, %v985
        %v1330 = vadd.f32 %v1324, %v1329
        %1331 = vset.pattern.permute.xlu0 4
        %1332 = vperm.xlu0 %1331, %v648
        %v1333 = vpop.permute.xlu0 %1332
        %v1335 = vmul.f32 %v1333, %v1019
        %v1336 = vadd.f32 %v1330, %v1335
        %1337 = vset.pattern.permute.xlu0 5
        %1338 = vperm.xlu0 %1337, %v648
        %v1339 = vpop.permute.xlu0 %1338
        %v1341 = vmul.f32 %v1339, %v1055
        %v1342 = vadd.f32 %v1336, %v1341
        %1343 = vset.pattern.permute.xlu0 6
        %1344 = vperm.xlu0 %1343, %v648
        %v1345 = vpop.permute.xlu0 %1344
        %v1347 = vmul.f32 %v1345, %v1090
        %v1348 = vadd.f32 %v1342, %v1347
        %1349 = vset.pattern.permute.xlu0 7
        %1350 = vperm.xlu0 %1349, %v648
        %v1351 = vpop.permute.xlu0 %1350
        %v1353 = vmul.f32 %v1351, %v1125
        %v1354 = vadd.f32 %v1348, %v1353
        %v1355 = vpack.c.bf16 %v1354, %v1354
        %s1356 = scalar_lea.vmem [#allocation8], 16
        %v1357 = vld [vmem:[%s1356] sm:$0xf]
        %v1358 = vld [vmem:[%s1356 + $0x4] sm:$0xf]
        %v1359 = vld [vmem:[%s1356 + $0x8] sm:$0xf]
        %v1360 = vld [vmem:[%s1356 + $0xc] sm:$0xf]
        %v1365 = vunpack.c.l.b16 %v1357
        %v1366 = vunpack.c.l.b16 %v1358
        %v1367 = vunpack.c.l.b16 %v1359
        %v1368 = vunpack.c.l.b16 %v1360
        %v1369 = vpack.c.b16 %v1366, %v1365
        %v1370 = vpack.c.b16 %v1368, %v1367
        %v1374 = vsel %vm439, %v1355, 0
        %1376 = vmatpush.bf16.msra.mxu0 0
        %1377 = vmatpush.bf16.msra.mxu0 0
        %1378 = vmatpush.bf16.msra.mxu0 0
        %1379 = vmatpush.bf16.msra.mxu0 0
        %1380 = vmatpush.bf16.msra.mxu0 0
        %1381 = vmatpush.bf16.msra.mxu0 0
        %1382 = vmatpush.bf16.msra.mxu0 %v1370
        %1383 = vmatpush.bf16.msra.mxu0 %v1369
        %1384 = vmatmul.bf16.gmra.mxu0 %v1374
        %v1385 = vpop.f32.mrf.mxu0
        %v1386 = vadd.f32 %v847, %v1385
        %v1387 = vpop.f32.mrf.mxu0
        %1388 = vdwg.mxu0
        %v1389 = vpack.c.bf16 %v1386, %v1386
        %v1391 = vsel %vm439, %v1389, 0
        %1393 = vmatpush.bf16.msra.mxu0 0
        %1394 = vmatpush.bf16.msra.mxu0 0
        %1395 = vmatpush.bf16.msra.mxu0 0
        %1396 = vmatpush.bf16.msra.mxu0 0
        %1397 = vmatpush.bf16.msra.mxu0 0
        %1398 = vmatpush.bf16.msra.mxu0 0
        %1399 = vmatpush.bf16.msra.mxu0 %v1219
        %1400 = vmatpush.bf16.msra.mxu0 %v1218
        %1401 = vmatmul.bf16.gmra.mxu0 %v1391
        %v1402 = vpop.f32.mrf.mxu0
        %v1403 = vadd.f32 %v839, %v1402
        %v1404 = vpop.f32.mrf.mxu0
        %1405 = vdwg.mxu0
        %1406 = vmatpush.bf16.msra.mxu0 0
        %1407 = vmatpush.bf16.msra.mxu0 0
        %1408 = vmatpush.bf16.msra.mxu0 0
        %1409 = vmatpush.bf16.msra.mxu0 0
        %1410 = vmatpush.bf16.msra.mxu0 0
        %1411 = vmatpush.bf16.msra.mxu0 0
        %1412 = vmatpush.bf16.msra.mxu0 %v1247
        %1413 = vmatpush.bf16.msra.mxu0 %v1246
        %1414 = vmatmul.bf16.gmra.mxu0 %v903
        %v1415 = vpop.f32.mrf.mxu0
        %v1416 = vadd.f32 %v843, %v1415
        %v1417 = vpop.f32.mrf.mxu0
        %1418 = vdwg.mxu0
        %v1419 = vadd.f32 %v1403, %v1416
        %v1420 = vxor.u32 %v1419, 2147483648
        %v1421 = vmul.f32 %v1420, 1.442695
        %v1422 = vpow.pop %v1421
        %v1423 = vadd.f32 %v1422, 1.0
        %v1424 = vrcp.pop %v1423
        %v1425 = vmul.f32 %v1423, %v1424
        %v1426 = vsub.f32 1.0, %v1425
        %v1427 = vmul.f32 %v1424, %v1426
        %v1428 = vadd.f32 %v1424, %v1427
        %vm1429 = vweird.f32 %v1423
        %vm1430 = vweird.f32 %v1424
        %vm1431 = vmor %vm1429, %vm1430
        %v1432 = vsel %vm1431, %v1424, %v1428
        %v1433 = vand.u32 2147483647, %v1423
        %vm1434 = vcmp.eq.f32.partialorder %v1433, 8.507059e+37
        %v1435 = vand.u32 %v1423, 2147483648
        %v1436 = vor.u32 1.1754944e-38, %v1435
        %v1437 = vsel %vm1434, %v1436, %v1432
        %v1438 = vmul.f32 1.0, %v1437
        %1440 = vrot.lane.b32.xlu0 %v1416, 64
        %v1441 = vpop.permute.xlu0 %1440
        %v1443 = vmul.f32 %v1438, %v1441
        %1445 = vrot.lane.b32.xlu0 %v1443, 64
        %v1446 = vpop.permute.xlu0 %1445
        %v1448 = vadd.f32 %v1403, %v1446
        %v1449 = vtanh.pop %v1448
        %v1450 = vsub.f32 1.0, %v1438
        %1452 = vrot.lane.b32.xlu0 %v1449, 96
        %v1453 = vpop.permute.xlu0 %1452
        %v1455 = vmul.f32 %v1450, %v1453
        %v1456 = vmul.f32 %v1438, %v433
        %v1457 = vadd.f32 %v1455, %v1456
        %v1458 = vadd.f32 %v1457, %v433
        %1460 = vset.pattern.permute.xlu0 0
        %1461 = vperm.xlu0 %1460, %v678
        %v1462 = vpop.permute.xlu0 %1461
        %v1464 = vmul.f32 %v1462, %v879
        %1465 = vset.pattern.permute.xlu0 1
        %1466 = vperm.xlu0 %1465, %v678
        %v1467 = vpop.permute.xlu0 %1466
        %v1469 = vmul.f32 %v1467, %v915
        %v1470 = vadd.f32 %v1464, %v1469
        %1471 = vset.pattern.permute.xlu0 2
        %1472 = vperm.xlu0 %1471, %v678
        %v1473 = vpop.permute.xlu0 %1472
        %v1475 = vmul.f32 %v1473, %v950
        %v1476 = vadd.f32 %v1470, %v1475
        %1477 = vset.pattern.permute.xlu0 3
        %1478 = vperm.xlu0 %1477, %v678
        %v1479 = vpop.permute.xlu0 %1478
        %v1481 = vmul.f32 %v1479, %v985
        %v1482 = vadd.f32 %v1476, %v1481
        %1483 = vset.pattern.permute.xlu0 4
        %1484 = vperm.xlu0 %1483, %v678
        %v1485 = vpop.permute.xlu0 %1484
        %v1487 = vmul.f32 %v1485, %v1019
        %v1488 = vadd.f32 %v1482, %v1487
        %1489 = vset.pattern.permute.xlu0 5
        %1490 = vperm.xlu0 %1489, %v678
        %v1491 = vpop.permute.xlu0 %1490
        %v1493 = vmul.f32 %v1491, %v1055
        %v1494 = vadd.f32 %v1488, %v1493
        %1495 = vset.pattern.permute.xlu0 6
        %1496 = vperm.xlu0 %1495, %v678
        %v1497 = vpop.permute.xlu0 %1496
        %v1499 = vmul.f32 %v1497, %v1090
        %v1500 = vadd.f32 %v1494, %v1499
        %1501 = vset.pattern.permute.xlu0 7
        %1502 = vperm.xlu0 %1501, %v678
        %v1503 = vpop.permute.xlu0 %1502
        %v1505 = vmul.f32 %v1503, %v1125
        %v1506 = vadd.f32 %v1500, %v1505
        %v1507 = vpack.c.bf16 %v1506, %v1506
        %s1508 = scalar_lea.vmem [#allocation8], 32
        %v1509 = vld [vmem:[%s1508] sm:$0xf]
        %v1510 = vld [vmem:[%s1508 + $0x4] sm:$0xf]
        %v1511 = vld [vmem:[%s1508 + $0x8] sm:$0xf]
        %v1512 = vld [vmem:[%s1508 + $0xc] sm:$0xf]
        %v1517 = vunpack.c.l.b16 %v1509
        %v1518 = vunpack.c.l.b16 %v1510
        %v1519 = vunpack.c.l.b16 %v1511
        %v1520 = vunpack.c.l.b16 %v1512
        %v1521 = vpack.c.b16 %v1518, %v1517
        %v1522 = vpack.c.b16 %v1520, %v1519
        %v1526 = vsel %vm439, %v1507, 0
        %1528 = vmatpush.bf16.msra.mxu0 0
        %1529 = vmatpush.bf16.msra.mxu0 0
        %1530 = vmatpush.bf16.msra.mxu0 0
        %1531 = vmatpush.bf16.msra.mxu0 0
        %1532 = vmatpush.bf16.msra.mxu0 0
        %1533 = vmatpush.bf16.msra.mxu0 0
        %1534 = vmatpush.bf16.msra.mxu0 %v1522
        %1535 = vmatpush.bf16.msra.mxu0 %v1521
        %1536 = vmatmul.bf16.gmra.mxu0 %v1526
        %v1537 = vpop.f32.mrf.mxu0
        %v1538 = vadd.f32 %v847, %v1537
        %v1539 = vpop.f32.mrf.mxu0
        %1540 = vdwg.mxu0
        %v1541 = vpack.c.bf16 %v1538, %v1538
        %v1543 = vsel %vm439, %v1541, 0
        %1545 = vmatpush.bf16.msra.mxu0 0
        %1546 = vmatpush.bf16.msra.mxu0 0
        %1547 = vmatpush.bf16.msra.mxu0 0
        %1548 = vmatpush.bf16.msra.mxu0 0
        %1549 = vmatpush.bf16.msra.mxu0 0
        %1550 = vmatpush.bf16.msra.mxu0 0
        %1551 = vmatpush.bf16.msra.mxu0 %v1219
        %1552 = vmatpush.bf16.msra.mxu0 %v1218
        %1553 = vmatmul.bf16.gmra.mxu0 %v1543
        %v1554 = vpop.f32.mrf.mxu0
        %v1555 = vadd.f32 %v839, %v1554
        %v1556 = vpop.f32.mrf.mxu0
        %1557 = vdwg.mxu0
        %1558 = vmatpush.bf16.msra.mxu0 0
        %1559 = vmatpush.bf16.msra.mxu0 0
        %1560 = vmatpush.bf16.msra.mxu0 0
        %1561 = vmatpush.bf16.msra.mxu0 0
        %1562 = vmatpush.bf16.msra.mxu0 0
        %1563 = vmatpush.bf16.msra.mxu0 0
        %1564 = vmatpush.bf16.msra.mxu0 %v1247
        %1565 = vmatpush.bf16.msra.mxu0 %v1246
        %1566 = vmatmul.bf16.gmra.mxu0 %v938
        %v1567 = vpop.f32.mrf.mxu0
        %v1568 = vadd.f32 %v843, %v1567
        %v1569 = vpop.f32.mrf.mxu0
        %1570 = vdwg.mxu0
        %v1571 = vadd.f32 %v1555, %v1568
        %v1572 = vxor.u32 %v1571, 2147483648
        %v1573 = vmul.f32 %v1572, 1.442695
        %v1574 = vpow.pop %v1573
        %v1575 = vadd.f32 %v1574, 1.0
        %v1576 = vrcp.pop %v1575
        %v1577 = vmul.f32 %v1575, %v1576
        %v1578 = vsub.f32 1.0, %v1577
        %v1579 = vmul.f32 %v1576, %v1578
        %v1580 = vadd.f32 %v1576, %v1579
        %vm1581 = vweird.f32 %v1575
        %vm1582 = vweird.f32 %v1576
        %vm1583 = vmor %vm1581, %vm1582
        %v1584 = vsel %vm1583, %v1576, %v1580
        %v1585 = vand.u32 2147483647, %v1575
        %vm1586 = vcmp.eq.f32.partialorder %v1585, 8.507059e+37
        %v1587 = vand.u32 %v1575, 2147483648
        %v1588 = vor.u32 1.1754944e-38, %v1587
        %v1589 = vsel %vm1586, %v1588, %v1584
        %v1590 = vmul.f32 1.0, %v1589
        %1592 = vrot.lane.b32.xlu0 %v1568, 64
        %v1593 = vpop.permute.xlu0 %1592
        %v1595 = vmul.f32 %v1590, %v1593
        %1597 = vrot.lane.b32.xlu0 %v1595, 64
        %v1598 = vpop.permute.xlu0 %1597
        %v1600 = vadd.f32 %v1555, %v1598
        %v1601 = vtanh.pop %v1600
        %v1602 = vsub.f32 1.0, %v1590
        %1604 = vrot.lane.b32.xlu0 %v1601, 96
        %v1605 = vpop.permute.xlu0 %1604
        %v1607 = vmul.f32 %v1602, %v1605
        %1608 = vrot.lane.b32.xlu0 %v433, 96
        %v1609 = vpop.permute.xlu0 %1608
        %v1611 = vmul.f32 %v1590, %v1609
        %v1612 = vadd.f32 %v1607, %v1611
        %v1613 = vadd.f32 %v1612, %v1609
        %1615 = vset.pattern.permute.xlu0 0
        %1616 = vperm.xlu0 %1615, %v708
        %v1617 = vpop.permute.xlu0 %1616
        %v1619 = vmul.f32 %v1617, %v879
        %1620 = vset.pattern.permute.xlu0 1
        %1621 = vperm.xlu0 %1620, %v708
        %v1622 = vpop.permute.xlu0 %1621
        %v1624 = vmul.f32 %v1622, %v915
        %v1625 = vadd.f32 %v1619, %v1624
        %1626 = vset.pattern.permute.xlu0 2
        %1627 = vperm.xlu0 %1626, %v708
        %v1628 = vpop.permute.xlu0 %1627
        %v1630 = vmul.f32 %v1628, %v950
        %v1631 = vadd.f32 %v1625, %v1630
        %1632 = vset.pattern.permute.xlu0 3
        %1633 = vperm.xlu0 %1632, %v708
        %v1634 = vpop.permute.xlu0 %1633
        %v1636 = vmul.f32 %v1634, %v985
        %v1637 = vadd.f32 %v1631, %v1636
        %1638 = vset.pattern.permute.xlu0 4
        %1639 = vperm.xlu0 %1638, %v708
        %v1640 = vpop.permute.xlu0 %1639
        %v1642 = vmul.f32 %v1640, %v1019
        %v1643 = vadd.f32 %v1637, %v1642
        %1644 = vset.pattern.permute.xlu0 5
        %1645 = vperm.xlu0 %1644, %v708
        %v1646 = vpop.permute.xlu0 %1645
        %v1648 = vmul.f32 %v1646, %v1055
        %v1649 = vadd.f32 %v1643, %v1648
        %1650 = vset.pattern.permute.xlu0 6
        %1651 = vperm.xlu0 %1650, %v708
        %v1652 = vpop.permute.xlu0 %1651
        %v1654 = vmul.f32 %v1652, %v1090
        %v1655 = vadd.f32 %v1649, %v1654
        %1656 = vset.pattern.permute.xlu0 7
        %1657 = vperm.xlu0 %1656, %v708
        %v1658 = vpop.permute.xlu0 %1657
        %v1660 = vmul.f32 %v1658, %v1125
        %v1661 = vadd.f32 %v1655, %v1660
        %v1662 = vpack.c.bf16 %v1661, %v1661
        %s1663 = scalar_lea.vmem [#allocation8], 48
        %v1664 = vld [vmem:[%s1663] sm:$0xf]
        %v1665 = vld [vmem:[%s1663 + $0x4] sm:$0xf]
        %v1666 = vld [vmem:[%s1663 + $0x8] sm:$0xf]
        %v1667 = vld [vmem:[%s1663 + $0xc] sm:$0xf]
        %v1672 = vunpack.c.l.b16 %v1664
        %v1673 = vunpack.c.l.b16 %v1665
        %v1674 = vunpack.c.l.b16 %v1666
        %v1675 = vunpack.c.l.b16 %v1667
        %v1676 = vpack.c.b16 %v1673, %v1672
        %v1677 = vpack.c.b16 %v1675, %v1674
        %v1681 = vsel %vm439, %v1662, 0
        %1683 = vmatpush.bf16.msra.mxu0 0
        %1684 = vmatpush.bf16.msra.mxu0 0
        %1685 = vmatpush.bf16.msra.mxu0 0
        %1686 = vmatpush.bf16.msra.mxu0 0
        %1687 = vmatpush.bf16.msra.mxu0 0
        %1688 = vmatpush.bf16.msra.mxu0 0
        %1689 = vmatpush.bf16.msra.mxu0 %v1677
        %1690 = vmatpush.bf16.msra.mxu0 %v1676
        %1691 = vmatmul.bf16.gmra.mxu0 %v1681
        %v1692 = vpop.f32.mrf.mxu0
        %v1693 = vadd.f32 %v847, %v1692
        %v1694 = vpop.f32.mrf.mxu0
        %1695 = vdwg.mxu0
        %v1696 = vpack.c.bf16 %v1693, %v1693
        %v1698 = vsel %vm439, %v1696, 0
        %1700 = vmatpush.bf16.msra.mxu0 0
        %1701 = vmatpush.bf16.msra.mxu0 0
        %1702 = vmatpush.bf16.msra.mxu0 0
        %1703 = vmatpush.bf16.msra.mxu0 0
        %1704 = vmatpush.bf16.msra.mxu0 0
        %1705 = vmatpush.bf16.msra.mxu0 0
        %1706 = vmatpush.bf16.msra.mxu0 %v1219
        %1707 = vmatpush.bf16.msra.mxu0 %v1218
        %1708 = vmatmul.bf16.gmra.mxu0 %v1698
        %v1709 = vpop.f32.mrf.mxu0
        %v1710 = vadd.f32 %v839, %v1709
        %v1711 = vpop.f32.mrf.mxu0
        %1712 = vdwg.mxu0
        %1713 = vmatpush.bf16.msra.mxu0 0
        %1714 = vmatpush.bf16.msra.mxu0 0
        %1715 = vmatpush.bf16.msra.mxu0 0
        %1716 = vmatpush.bf16.msra.mxu0 0
        %1717 = vmatpush.bf16.msra.mxu0 0
        %1718 = vmatpush.bf16.msra.mxu0 0
        %1719 = vmatpush.bf16.msra.mxu0 %v1247
        %1720 = vmatpush.bf16.msra.mxu0 %v1246
        %1721 = vmatmul.bf16.gmra.mxu0 %v973
        %v1722 = vpop.f32.mrf.mxu0
        %v1723 = vadd.f32 %v843, %v1722
        %v1724 = vpop.f32.mrf.mxu0
        %1725 = vdwg.mxu0
        %v1726 = vadd.f32 %v1710, %v1723
        %v1727 = vxor.u32 %v1726, 2147483648
        %v1728 = vmul.f32 %v1727, 1.442695
        %v1729 = vpow.pop %v1728
        %v1730 = vadd.f32 %v1729, 1.0
        %v1731 = vrcp.pop %v1730
        %v1732 = vmul.f32 %v1730, %v1731
        %v1733 = vsub.f32 1.0, %v1732
        %v1734 = vmul.f32 %v1731, %v1733
        %v1735 = vadd.f32 %v1731, %v1734
        %vm1736 = vweird.f32 %v1730
        %vm1737 = vweird.f32 %v1731
        %vm1738 = vmor %vm1736, %vm1737
        %v1739 = vsel %vm1738, %v1731, %v1735
        %v1740 = vand.u32 2147483647, %v1730
        %vm1741 = vcmp.eq.f32.partialorder %v1740, 8.507059e+37
        %v1742 = vand.u32 %v1730, 2147483648
        %v1743 = vor.u32 1.1754944e-38, %v1742
        %v1744 = vsel %vm1741, %v1743, %v1739
        %v1745 = vmul.f32 1.0, %v1744
        %1747 = vrot.lane.b32.xlu0 %v1723, 64
        %v1748 = vpop.permute.xlu0 %1747
        %v1750 = vmul.f32 %v1745, %v1748
        %1752 = vrot.lane.b32.xlu0 %v1750, 64
        %v1753 = vpop.permute.xlu0 %1752
        %v1755 = vadd.f32 %v1710, %v1753
        %v1756 = vtanh.pop %v1755
        %v1757 = vsub.f32 1.0, %v1745
        %1759 = vrot.lane.b32.xlu0 %v1756, 96
        %v1760 = vpop.permute.xlu0 %1759
        %v1762 = vmul.f32 %v1757, %v1760
        %1763 = vrot.lane.b32.xlu0 %v433, 64
        %v1764 = vpop.permute.xlu0 %1763
        %v1766 = vmul.f32 %v1745, %v1764
        %v1767 = vadd.f32 %v1762, %v1766
        %v1768 = vadd.f32 %v1767, %v1764
        %1770 = vset.pattern.permute.xlu0 0
        %1771 = vperm.xlu0 %1770, %v738
        %v1772 = vpop.permute.xlu0 %1771
        %v1774 = vmul.f32 %v1772, %v879
        %1775 = vset.pattern.permute.xlu0 1
        %1776 = vperm.xlu0 %1775, %v738
        %v1777 = vpop.permute.xlu0 %1776
        %v1779 = vmul.f32 %v1777, %v915
        %v1780 = vadd.f32 %v1774, %v1779
        %1781 = vset.pattern.permute.xlu0 2
        %1782 = vperm.xlu0 %1781, %v738
        %v1783 = vpop.permute.xlu0 %1782
        %v1785 = vmul.f32 %v1783, %v950
        %v1786 = vadd.f32 %v1780, %v1785
        %1787 = vset.pattern.permute.xlu0 3
        %1788 = vperm.xlu0 %1787, %v738
        %v1789 = vpop.permute.xlu0 %1788
        %v1791 = vmul.f32 %v1789, %v985
        %v1792 = vadd.f32 %v1786, %v1791
        %1793 = vset.pattern.permute.xlu0 4
        %1794 = vperm.xlu0 %1793, %v738
        %v1795 = vpop.permute.xlu0 %1794
        %v1797 = vmul.f32 %v1795, %v1019
        %v1798 = vadd.f32 %v1792, %v1797
        %1799 = vset.pattern.permute.xlu0 5
        %1800 = vperm.xlu0 %1799, %v738
        %v1801 = vpop.permute.xlu0 %1800
        %v1803 = vmul.f32 %v1801, %v1055
        %v1804 = vadd.f32 %v1798, %v1803
        %1805 = vset.pattern.permute.xlu0 6
        %1806 = vperm.xlu0 %1805, %v738
        %v1807 = vpop.permute.xlu0 %1806
        %v1809 = vmul.f32 %v1807, %v1090
        %v1810 = vadd.f32 %v1804, %v1809
        %1811 = vset.pattern.permute.xlu0 7
        %1812 = vperm.xlu0 %1811, %v738
        %v1813 = vpop.permute.xlu0 %1812
        %v1815 = vmul.f32 %v1813, %v1125
        %v1816 = vadd.f32 %v1810, %v1815
        %v1817 = vpack.c.bf16 %v1816, %v1816
        %s1818 = scalar_lea.vmem [#allocation8], 64
        %v1819 = vld [vmem:[%s1818] sm:$0xf]
        %v1820 = vld [vmem:[%s1818 + $0x4] sm:$0xf]
        %v1821 = vld [vmem:[%s1818 + $0x8] sm:$0xf]
        %v1822 = vld [vmem:[%s1818 + $0xc] sm:$0xf]
        %v1827 = vunpack.c.l.b16 %v1819
        %v1828 = vunpack.c.l.b16 %v1820
        %v1829 = vunpack.c.l.b16 %v1821
        %v1830 = vunpack.c.l.b16 %v1822
        %v1831 = vpack.c.b16 %v1828, %v1827
        %v1832 = vpack.c.b16 %v1830, %v1829
        %v1836 = vsel %vm439, %v1817, 0
        %1838 = vmatpush.bf16.msra.mxu0 0
        %1839 = vmatpush.bf16.msra.mxu0 0
        %1840 = vmatpush.bf16.msra.mxu0 0
        %1841 = vmatpush.bf16.msra.mxu0 0
        %1842 = vmatpush.bf16.msra.mxu0 0
        %1843 = vmatpush.bf16.msra.mxu0 0
        %1844 = vmatpush.bf16.msra.mxu0 %v1832
        %1845 = vmatpush.bf16.msra.mxu0 %v1831
        %1846 = vmatmul.bf16.gmra.mxu0 %v1836
        %v1847 = vpop.f32.mrf.mxu0
        %v1848 = vadd.f32 %v847, %v1847
        %v1849 = vpop.f32.mrf.mxu0
        %1850 = vdwg.mxu0
        %v1851 = vpack.c.bf16 %v1848, %v1848
        %v1853 = vsel %vm439, %v1851, 0
        %1855 = vmatpush.bf16.msra.mxu0 0
        %1856 = vmatpush.bf16.msra.mxu0 0
        %1857 = vmatpush.bf16.msra.mxu0 0
        %1858 = vmatpush.bf16.msra.mxu0 0
        %1859 = vmatpush.bf16.msra.mxu0 0
        %1860 = vmatpush.bf16.msra.mxu0 0
        %1861 = vmatpush.bf16.msra.mxu0 %v1219
        %1862 = vmatpush.bf16.msra.mxu0 %v1218
        %1863 = vmatmul.bf16.gmra.mxu0 %v1853
        %v1864 = vpop.f32.mrf.mxu0
        %v1865 = vadd.f32 %v839, %v1864
        %v1866 = vpop.f32.mrf.mxu0
        %1867 = vdwg.mxu0
        %1868 = vmatpush.bf16.msra.mxu0 0
        %1869 = vmatpush.bf16.msra.mxu0 0
        %1870 = vmatpush.bf16.msra.mxu0 0
        %1871 = vmatpush.bf16.msra.mxu0 0
        %1872 = vmatpush.bf16.msra.mxu0 0
        %1873 = vmatpush.bf16.msra.mxu0 0
        %1874 = vmatpush.bf16.msra.mxu0 %v1247
        %1875 = vmatpush.bf16.msra.mxu0 %v1246
        %1876 = vmatmul.bf16.gmra.mxu0 %v1007
        %v1877 = vpop.f32.mrf.mxu0
        %v1878 = vadd.f32 %v843, %v1877
        %v1879 = vpop.f32.mrf.mxu0
        %1880 = vdwg.mxu0
        %v1881 = vadd.f32 %v1865, %v1878
        %v1882 = vxor.u32 %v1881, 2147483648
        %v1883 = vmul.f32 %v1882, 1.442695
        %v1884 = vpow.pop %v1883
        %v1885 = vadd.f32 %v1884, 1.0
        %v1886 = vrcp.pop %v1885
        %v1887 = vmul.f32 %v1885, %v1886
        %v1888 = vsub.f32 1.0, %v1887
        %v1889 = vmul.f32 %v1886, %v1888
        %v1890 = vadd.f32 %v1886, %v1889
        %vm1891 = vweird.f32 %v1885
        %vm1892 = vweird.f32 %v1886
        %vm1893 = vmor %vm1891, %vm1892
        %v1894 = vsel %vm1893, %v1886, %v1890
        %v1895 = vand.u32 2147483647, %v1885
        %vm1896 = vcmp.eq.f32.partialorder %v1895, 8.507059e+37
        %v1897 = vand.u32 %v1885, 2147483648
        %v1898 = vor.u32 1.1754944e-38, %v1897
        %v1899 = vsel %vm1896, %v1898, %v1894
        %v1900 = vmul.f32 1.0, %v1899
        %1902 = vrot.lane.b32.xlu0 %v1878, 64
        %v1903 = vpop.permute.xlu0 %1902
        %v1905 = vmul.f32 %v1900, %v1903
        %1907 = vrot.lane.b32.xlu0 %v1905, 64
        %v1908 = vpop.permute.xlu0 %1907
        %v1910 = vadd.f32 %v1865, %v1908
        %v1911 = vtanh.pop %v1910
        %v1912 = vsub.f32 1.0, %v1900
        %1914 = vrot.lane.b32.xlu0 %v1911, 96
        %v1915 = vpop.permute.xlu0 %1914
        %v1917 = vmul.f32 %v1912, %v1915
        %1919 = vrot.lane.b32.xlu0 %v434, 32
        %v1920 = vpop.permute.xlu0 %1919
        %v1922 = vmul.f32 %v1900, %v1920
        %v1923 = vadd.f32 %v1917, %v1922
        %v1924 = vadd.f32 %v1923, %v1920
        %1926 = vset.pattern.permute.xlu0 0
        %1927 = vperm.xlu0 %1926, %v768
        %v1928 = vpop.permute.xlu0 %1927
        %v1930 = vmul.f32 %v1928, %v879
        %1931 = vset.pattern.permute.xlu0 1
        %1932 = vperm.xlu0 %1931, %v768
        %v1933 = vpop.permute.xlu0 %1932
        %v1935 = vmul.f32 %v1933, %v915
        %v1936 = vadd.f32 %v1930, %v1935
        %1937 = vset.pattern.permute.xlu0 2
        %1938 = vperm.xlu0 %1937, %v768
        %v1939 = vpop.permute.xlu0 %1938
        %v1941 = vmul.f32 %v1939, %v950
        %v1942 = vadd.f32 %v1936, %v1941
        %1943 = vset.pattern.permute.xlu0 3
        %1944 = vperm.xlu0 %1943, %v768
        %v1945 = vpop.permute.xlu0 %1944
        %v1947 = vmul.f32 %v1945, %v985
        %v1948 = vadd.f32 %v1942, %v1947
        %1949 = vset.pattern.permute.xlu0 4
        %1950 = vperm.xlu0 %1949, %v768
        %v1951 = vpop.permute.xlu0 %1950
        %v1953 = vmul.f32 %v1951, %v1019
        %v1954 = vadd.f32 %v1948, %v1953
        %1955 = vset.pattern.permute.xlu0 5
        %1956 = vperm.xlu0 %1955, %v768
        %v1957 = vpop.permute.xlu0 %1956
        %v1959 = vmul.f32 %v1957, %v1055
        %v1960 = vadd.f32 %v1954, %v1959
        %1961 = vset.pattern.permute.xlu0 6
        %1962 = vperm.xlu0 %1961, %v768
        %v1963 = vpop.permute.xlu0 %1962
        %v1965 = vmul.f32 %v1963, %v1090
        %v1966 = vadd.f32 %v1960, %v1965
        %1967 = vset.pattern.permute.xlu0 7
        %1968 = vperm.xlu0 %1967, %v768
        %v1969 = vpop.permute.xlu0 %1968
        %v1971 = vmul.f32 %v1969, %v1125
        %v1972 = vadd.f32 %v1966, %v1971
        %v1973 = vpack.c.bf16 %v1972, %v1972
        %s1974 = scalar_lea.vmem [#allocation8], 80
        %v1975 = vld [vmem:[%s1974] sm:$0xf]
        %v1976 = vld [vmem:[%s1974 + $0x4] sm:$0xf]
        %v1977 = vld [vmem:[%s1974 + $0x8] sm:$0xf]
        %v1978 = vld [vmem:[%s1974 + $0xc] sm:$0xf]
        %v1983 = vunpack.c.l.b16 %v1975
        %v1984 = vunpack.c.l.b16 %v1976
        %v1985 = vunpack.c.l.b16 %v1977
        %v1986 = vunpack.c.l.b16 %v1978
        %v1987 = vpack.c.b16 %v1984, %v1983
        %v1988 = vpack.c.b16 %v1986, %v1985
        %v1992 = vsel %vm439, %v1973, 0
        %1994 = vmatpush.bf16.msra.mxu0 0
        %1995 = vmatpush.bf16.msra.mxu0 0
        %1996 = vmatpush.bf16.msra.mxu0 0
        %1997 = vmatpush.bf16.msra.mxu0 0
        %1998 = vmatpush.bf16.msra.mxu0 0
        %1999 = vmatpush.bf16.msra.mxu0 0
        %2000 = vmatpush.bf16.msra.mxu0 %v1988
        %2001 = vmatpush.bf16.msra.mxu0 %v1987
        %2002 = vmatmul.bf16.gmra.mxu0 %v1992
        %v2003 = vpop.f32.mrf.mxu0
        %v2004 = vadd.f32 %v847, %v2003
        %v2005 = vpop.f32.mrf.mxu0
        %2006 = vdwg.mxu0
        %v2007 = vpack.c.bf16 %v2004, %v2004
        %v2009 = vsel %vm439, %v2007, 0
        %2011 = vmatpush.bf16.msra.mxu0 0
        %2012 = vmatpush.bf16.msra.mxu0 0
        %2013 = vmatpush.bf16.msra.mxu0 0
        %2014 = vmatpush.bf16.msra.mxu0 0
        %2015 = vmatpush.bf16.msra.mxu0 0
        %2016 = vmatpush.bf16.msra.mxu0 0
        %2017 = vmatpush.bf16.msra.mxu0 %v1219
        %2018 = vmatpush.bf16.msra.mxu0 %v1218
        %2019 = vmatmul.bf16.gmra.mxu0 %v2009
        %v2020 = vpop.f32.mrf.mxu0
        %v2021 = vadd.f32 %v839, %v2020
        %v2022 = vpop.f32.mrf.mxu0
        %2023 = vdwg.mxu0
        %2024 = vmatpush.bf16.msra.mxu0 0
        %2025 = vmatpush.bf16.msra.mxu0 0
        %2026 = vmatpush.bf16.msra.mxu0 0
        %2027 = vmatpush.bf16.msra.mxu0 0
        %2028 = vmatpush.bf16.msra.mxu0 0
        %2029 = vmatpush.bf16.msra.mxu0 0
        %2030 = vmatpush.bf16.msra.mxu0 %v1247
        %2031 = vmatpush.bf16.msra.mxu0 %v1246
        %2032 = vmatmul.bf16.gmra.mxu0 %v1043
        %v2033 = vpop.f32.mrf.mxu0
        %v2034 = vadd.f32 %v843, %v2033
        %v2035 = vpop.f32.mrf.mxu0
        %2036 = vdwg.mxu0
        %v2037 = vadd.f32 %v2021, %v2034
        %v2038 = vxor.u32 %v2037, 2147483648
        %v2039 = vmul.f32 %v2038, 1.442695
        %v2040 = vpow.pop %v2039
        %v2041 = vadd.f32 %v2040, 1.0
        %v2042 = vrcp.pop %v2041
        %v2043 = vmul.f32 %v2041, %v2042
        %v2044 = vsub.f32 1.0, %v2043
        %v2045 = vmul.f32 %v2042, %v2044
        %v2046 = vadd.f32 %v2042, %v2045
        %vm2047 = vweird.f32 %v2041
        %vm2048 = vweird.f32 %v2042
        %vm2049 = vmor %vm2047, %vm2048
        %v2050 = vsel %vm2049, %v2042, %v2046
        %v2051 = vand.u32 2147483647, %v2041
        %vm2052 = vcmp.eq.f32.partialorder %v2051, 8.507059e+37
        %v2053 = vand.u32 %v2041, 2147483648
        %v2054 = vor.u32 1.1754944e-38, %v2053
        %v2055 = vsel %vm2052, %v2054, %v2050
        %v2056 = vmul.f32 1.0, %v2055
        %2058 = vrot.lane.b32.xlu0 %v2034, 64
        %v2059 = vpop.permute.xlu0 %2058
        %v2061 = vmul.f32 %v2056, %v2059
        %2063 = vrot.lane.b32.xlu0 %v2061, 64
        %v2064 = vpop.permute.xlu0 %2063
        %v2066 = vadd.f32 %v2021, %v2064
        %v2067 = vtanh.pop %v2066
        %v2068 = vsub.f32 1.0, %v2056
        %2070 = vrot.lane.b32.xlu0 %v2067, 96
        %v2071 = vpop.permute.xlu0 %2070
        %v2073 = vmul.f32 %v2068, %v2071
        %v2074 = vmul.f32 %v2056, %v434
        %v2075 = vadd.f32 %v2073, %v2074
        %v2076 = vadd.f32 %v2075, %v434
        %2078 = vset.pattern.permute.xlu0 0
        %2079 = vperm.xlu0 %2078, %v798
        %v2080 = vpop.permute.xlu0 %2079
        %v2082 = vmul.f32 %v2080, %v879
        %2083 = vset.pattern.permute.xlu0 1
        %2084 = vperm.xlu0 %2083, %v798
        %v2085 = vpop.permute.xlu0 %2084
        %v2087 = vmul.f32 %v2085, %v915
        %v2088 = vadd.f32 %v2082, %v2087
        %2089 = vset.pattern.permute.xlu0 2
        %2090 = vperm.xlu0 %2089, %v798
        %v2091 = vpop.permute.xlu0 %2090
        %v2093 = vmul.f32 %v2091, %v950
        %v2094 = vadd.f32 %v2088, %v2093
        %2095 = vset.pattern.permute.xlu0 3
        %2096 = vperm.xlu0 %2095, %v798
        %v2097 = vpop.permute.xlu0 %2096
        %v2099 = vmul.f32 %v2097, %v985
        %v2100 = vadd.f32 %v2094, %v2099
        %2101 = vset.pattern.permute.xlu0 4
        %2102 = vperm.xlu0 %2101, %v798
        %v2103 = vpop.permute.xlu0 %2102
        %v2105 = vmul.f32 %v2103, %v1019
        %v2106 = vadd.f32 %v2100, %v2105
        %2107 = vset.pattern.permute.xlu0 5
        %2108 = vperm.xlu0 %2107, %v798
        %v2109 = vpop.permute.xlu0 %2108
        %v2111 = vmul.f32 %v2109, %v1055
        %v2112 = vadd.f32 %v2106, %v2111
        %2113 = vset.pattern.permute.xlu0 6
        %2114 = vperm.xlu0 %2113, %v798
        %v2115 = vpop.permute.xlu0 %2114
        %v2117 = vmul.f32 %v2115, %v1090
        %v2118 = vadd.f32 %v2112, %v2117
        %2119 = vset.pattern.permute.xlu0 7
        %2120 = vperm.xlu0 %2119, %v798
        %v2121 = vpop.permute.xlu0 %2120
        %v2123 = vmul.f32 %v2121, %v1125
        %v2124 = vadd.f32 %v2118, %v2123
        %v2125 = vpack.c.bf16 %v2124, %v2124
        %s2126 = scalar_lea.vmem [#allocation8], 96
        %v2127 = vld [vmem:[%s2126] sm:$0xf]
        %v2128 = vld [vmem:[%s2126 + $0x4] sm:$0xf]
        %v2129 = vld [vmem:[%s2126 + $0x8] sm:$0xf]
        %v2130 = vld [vmem:[%s2126 + $0xc] sm:$0xf]
        %v2135 = vunpack.c.l.b16 %v2127
        %v2136 = vunpack.c.l.b16 %v2128
        %v2137 = vunpack.c.l.b16 %v2129
        %v2138 = vunpack.c.l.b16 %v2130
        %v2139 = vpack.c.b16 %v2136, %v2135
        %v2140 = vpack.c.b16 %v2138, %v2137
        %v2144 = vsel %vm439, %v2125, 0
        %2146 = vmatpush.bf16.msra.mxu0 0
        %2147 = vmatpush.bf16.msra.mxu0 0
        %2148 = vmatpush.bf16.msra.mxu0 0
        %2149 = vmatpush.bf16.msra.mxu0 0
        %2150 = vmatpush.bf16.msra.mxu0 0
        %2151 = vmatpush.bf16.msra.mxu0 0
        %2152 = vmatpush.bf16.msra.mxu0 %v2140
        %2153 = vmatpush.bf16.msra.mxu0 %v2139
        %2154 = vmatmul.bf16.gmra.mxu0 %v2144
        %v2155 = vpop.f32.mrf.mxu0
        %v2156 = vadd.f32 %v847, %v2155
        %v2157 = vpop.f32.mrf.mxu0
        %2158 = vdwg.mxu0
        %v2159 = vpack.c.bf16 %v2156, %v2156
        %v2161 = vsel %vm439, %v2159, 0
        %2163 = vmatpush.bf16.msra.mxu0 0
        %2164 = vmatpush.bf16.msra.mxu0 0
        %2165 = vmatpush.bf16.msra.mxu0 0
        %2166 = vmatpush.bf16.msra.mxu0 0
        %2167 = vmatpush.bf16.msra.mxu0 0
        %2168 = vmatpush.bf16.msra.mxu0 0
        %2169 = vmatpush.bf16.msra.mxu0 %v1219
        %2170 = vmatpush.bf16.msra.mxu0 %v1218
        %2171 = vmatmul.bf16.gmra.mxu0 %v2161
        %v2172 = vpop.f32.mrf.mxu0
        %v2173 = vadd.f32 %v839, %v2172
        %v2174 = vpop.f32.mrf.mxu0
        %2175 = vdwg.mxu0
        %2176 = vmatpush.bf16.msra.mxu0 0
        %2177 = vmatpush.bf16.msra.mxu0 0
        %2178 = vmatpush.bf16.msra.mxu0 0
        %2179 = vmatpush.bf16.msra.mxu0 0
        %2180 = vmatpush.bf16.msra.mxu0 0
        %2181 = vmatpush.bf16.msra.mxu0 0
        %2182 = vmatpush.bf16.msra.mxu0 %v1247
        %2183 = vmatpush.bf16.msra.mxu0 %v1246
        %2184 = vmatmul.bf16.gmra.mxu0 %v1078
        %v2185 = vpop.f32.mrf.mxu0
        %v2186 = vadd.f32 %v843, %v2185
        %v2187 = vpop.f32.mrf.mxu0
        %2188 = vdwg.mxu0
        %v2189 = vadd.f32 %v2173, %v2186
        %v2190 = vxor.u32 %v2189, 2147483648
        %v2191 = vmul.f32 %v2190, 1.442695
        %v2192 = vpow.pop %v2191
        %v2193 = vadd.f32 %v2192, 1.0
        %v2194 = vrcp.pop %v2193
        %v2195 = vmul.f32 %v2193, %v2194
        %v2196 = vsub.f32 1.0, %v2195
        %v2197 = vmul.f32 %v2194, %v2196
        %v2198 = vadd.f32 %v2194, %v2197
        %vm2199 = vweird.f32 %v2193
        %vm2200 = vweird.f32 %v2194
        %vm2201 = vmor %vm2199, %vm2200
        %v2202 = vsel %vm2201, %v2194, %v2198
        %v2203 = vand.u32 2147483647, %v2193
        %vm2204 = vcmp.eq.f32.partialorder %v2203, 8.507059e+37
        %v2205 = vand.u32 %v2193, 2147483648
        %v2206 = vor.u32 1.1754944e-38, %v2205
        %v2207 = vsel %vm2204, %v2206, %v2202
        %v2208 = vmul.f32 1.0, %v2207
        %2210 = vrot.lane.b32.xlu0 %v2186, 64
        %v2211 = vpop.permute.xlu0 %2210
        %v2213 = vmul.f32 %v2208, %v2211
        %2215 = vrot.lane.b32.xlu0 %v2213, 64
        %v2216 = vpop.permute.xlu0 %2215
        %v2218 = vadd.f32 %v2173, %v2216
        %v2219 = vtanh.pop %v2218
        %v2220 = vsub.f32 1.0, %v2208
        %2222 = vrot.lane.b32.xlu0 %v2219, 96
        %v2223 = vpop.permute.xlu0 %2222
        %v2225 = vmul.f32 %v2220, %v2223
        %2226 = vrot.lane.b32.xlu0 %v434, 96
        %v2227 = vpop.permute.xlu0 %2226
        %v2229 = vmul.f32 %v2208, %v2227
        %v2230 = vadd.f32 %v2225, %v2229
        %v2231 = vadd.f32 %v2230, %v2227
        %2233 = vset.pattern.permute.xlu0 0
        %2234 = vperm.xlu0 %2233, %v828
        %v2235 = vpop.permute.xlu0 %2234
        %v2237 = vmul.f32 %v2235, %v879
        %2238 = vset.pattern.permute.xlu0 1
        %2239 = vperm.xlu0 %2238, %v828
        %v2240 = vpop.permute.xlu0 %2239
        %v2242 = vmul.f32 %v2240, %v915
        %v2243 = vadd.f32 %v2237, %v2242
        %2244 = vset.pattern.permute.xlu0 2
        %2245 = vperm.xlu0 %2244, %v828
        %v2246 = vpop.permute.xlu0 %2245
        %v2248 = vmul.f32 %v2246, %v950
        %v2249 = vadd.f32 %v2243, %v2248
        %2250 = vset.pattern.permute.xlu0 3
        %2251 = vperm.xlu0 %2250, %v828
        %v2252 = vpop.permute.xlu0 %2251
        %v2254 = vmul.f32 %v2252, %v985
        %v2255 = vadd.f32 %v2249, %v2254
        %2256 = vset.pattern.permute.xlu0 4
        %2257 = vperm.xlu0 %2256, %v828
        %v2258 = vpop.permute.xlu0 %2257
        %v2260 = vmul.f32 %v2258, %v1019
        %v2261 = vadd.f32 %v2255, %v2260
        %2262 = vset.pattern.permute.xlu0 5
        %2263 = vperm.xlu0 %2262, %v828
        %v2264 = vpop.permute.xlu0 %2263
        %v2266 = vmul.f32 %v2264, %v1055
        %v2267 = vadd.f32 %v2261, %v2266
        %2268 = vset.pattern.permute.xlu0 6
        %2269 = vperm.xlu0 %2268, %v828
        %v2270 = vpop.permute.xlu0 %2269
        %v2272 = vmul.f32 %v2270, %v1090
        %v2273 = vadd.f32 %v2267, %v2272
        %2274 = vset.pattern.permute.xlu0 7
        %2275 = vperm.xlu0 %2274, %v828
        %v2276 = vpop.permute.xlu0 %2275
        %v2278 = vmul.f32 %v2276, %v1125
        %v2279 = vadd.f32 %v2273, %v2278
        %v2280 = vpack.c.bf16 %v2279, %v2279
        %s2281 = scalar_lea.vmem [#allocation8], 112
        %v2282 = vld [vmem:[%s2281] sm:$0xf]
        %v2283 = vld [vmem:[%s2281 + $0x4] sm:$0xf]
        %v2284 = vld [vmem:[%s2281 + $0x8] sm:$0xf]
        %v2285 = vld [vmem:[%s2281 + $0xc] sm:$0xf]
        %v2290 = vunpack.c.l.b16 %v2282
        %v2291 = vunpack.c.l.b16 %v2283
        %v2292 = vunpack.c.l.b16 %v2284
        %v2293 = vunpack.c.l.b16 %v2285
        %v2294 = vpack.c.b16 %v2291, %v2290
        %v2295 = vpack.c.b16 %v2293, %v2292
        %v2299 = vsel %vm439, %v2280, 0
        %2301 = vmatpush.bf16.msra.mxu0 0
        %2302 = vmatpush.bf16.msra.mxu0 0
        %2303 = vmatpush.bf16.msra.mxu0 0
        %2304 = vmatpush.bf16.msra.mxu0 0
        %2305 = vmatpush.bf16.msra.mxu0 0
        %2306 = vmatpush.bf16.msra.mxu0 0
        %2307 = vmatpush.bf16.msra.mxu0 %v2295
        %2308 = vmatpush.bf16.msra.mxu0 %v2294
        %2309 = vmatmul.bf16.gmra.mxu0 %v2299
        %v2310 = vpop.f32.mrf.mxu0
        %v2311 = vadd.f32 %v847, %v2310
        %v2312 = vpop.f32.mrf.mxu0
        %2313 = vdwg.mxu0
        %v2314 = vpack.c.bf16 %v2311, %v2311
        %v2316 = vsel %vm439, %v2314, 0
        %2318 = vmatpush.bf16.msra.mxu0 0
        %2319 = vmatpush.bf16.msra.mxu0 0
        %2320 = vmatpush.bf16.msra.mxu0 0
        %2321 = vmatpush.bf16.msra.mxu0 0
        %2322 = vmatpush.bf16.msra.mxu0 0
        %2323 = vmatpush.bf16.msra.mxu0 0
        %2324 = vmatpush.bf16.msra.mxu0 %v1219
        %2325 = vmatpush.bf16.msra.mxu0 %v1218
        %2326 = vmatmul.bf16.gmra.mxu0 %v2316
        %v2327 = vpop.f32.mrf.mxu0
        %v2328 = vadd.f32 %v839, %v2327
        %v2329 = vpop.f32.mrf.mxu0
        %2330 = vdwg.mxu0
        %2331 = vmatpush.bf16.msra.mxu0 0
        %2332 = vmatpush.bf16.msra.mxu0 0
        %2333 = vmatpush.bf16.msra.mxu0 0
        %2334 = vmatpush.bf16.msra.mxu0 0
        %2335 = vmatpush.bf16.msra.mxu0 0
        %2336 = vmatpush.bf16.msra.mxu0 0
        %2337 = vmatpush.bf16.msra.mxu0 %v1247
        %2338 = vmatpush.bf16.msra.mxu0 %v1246
        %2339 = vmatmul.bf16.gmra.mxu0 %v1113
        %v2340 = vpop.f32.mrf.mxu0
        %v2341 = vadd.f32 %v843, %v2340
        %v2342 = vpop.f32.mrf.mxu0
        %2343 = vdwg.mxu0
        %v2344 = vadd.f32 %v2328, %v2341
        %v2345 = vxor.u32 %v2344, 2147483648
        %v2346 = vmul.f32 %v2345, 1.442695
        %v2347 = vpow.pop %v2346
        %v2348 = vadd.f32 %v2347, 1.0
        %v2349 = vrcp.pop %v2348
        %v2350 = vmul.f32 %v2348, %v2349
        %v2351 = vsub.f32 1.0, %v2350
        %v2352 = vmul.f32 %v2349, %v2351
        %v2353 = vadd.f32 %v2349, %v2352
        %vm2354 = vweird.f32 %v2348
        %vm2355 = vweird.f32 %v2349
        %vm2356 = vmor %vm2354, %vm2355
        %v2357 = vsel %vm2356, %v2349, %v2353
        %v2358 = vand.u32 2147483647, %v2348
        %vm2359 = vcmp.eq.f32.partialorder %v2358, 8.507059e+37
        %v2360 = vand.u32 %v2348, 2147483648
        %v2361 = vor.u32 1.1754944e-38, %v2360
        %v2362 = vsel %vm2359, %v2361, %v2357
        %v2363 = vmul.f32 1.0, %v2362
        %2365 = vrot.lane.b32.xlu0 %v2341, 64
        %v2366 = vpop.permute.xlu0 %2365
        %v2368 = vmul.f32 %v2363, %v2366
        %2370 = vrot.lane.b32.xlu0 %v2368, 64
        %v2371 = vpop.permute.xlu0 %2370
        %v2373 = vadd.f32 %v2328, %v2371
        %v2374 = vtanh.pop %v2373
        %v2375 = vsub.f32 1.0, %v2363
        %2377 = vrot.lane.b32.xlu0 %v2374, 96
        %v2378 = vpop.permute.xlu0 %2377
        %v2380 = vmul.f32 %v2375, %v2378
        %2381 = vrot.lane.b32.xlu0 %v434, 64
        %v2382 = vpop.permute.xlu0 %2381
        %v2384 = vmul.f32 %v2363, %v2382
        %v2385 = vadd.f32 %v2380, %v2384
        %v2386 = vadd.f32 %v2385, %v2382
        %s2387 = scalar_lea.vmem %s4, 1
        %v2388 = vld [vmem:[%s2387] sm:$0x1]
        %v2390 = vperm.slane %v2388, 0
        %v2392 = vpack.c.bf16 %v1306, %v1306
        %s2393 = scalar_lea.vmem [#allocation7], 128
        %v2394 = vld [vmem:[%s2393] sm:$0xf]
        %v2395 = vld [vmem:[%s2393 + $0x4] sm:$0xf]
        %v2396 = vld [vmem:[%s2393 + $0x8] sm:$0xf]
        %v2397 = vld [vmem:[%s2393 + $0xc] sm:$0xf]
        %2399 = vrot.lane.b32.xlu0 %v2392, 96
        %v2400 = vpop.permute.xlu0 %2399
        %v2405 = vunpack.c.l.b16 %v2394
        %v2406 = vunpack.c.l.b16 %v2395
        %v2407 = vunpack.c.l.b16 %v2396
        %v2408 = vunpack.c.l.b16 %v2397
        %v2409 = vpack.c.b16 %v2406, %v2405
        %v2410 = vpack.c.b16 %v2408, %v2407
        %v2414 = vsel %vm439, %v2400, 0
        %2416 = vmatpush.bf16.msra.mxu0 0
        %2417 = vmatpush.bf16.msra.mxu0 0
        %2418 = vmatpush.bf16.msra.mxu0 0
        %2419 = vmatpush.bf16.msra.mxu0 0
        %2420 = vmatpush.bf16.msra.mxu0 0
        %2421 = vmatpush.bf16.msra.mxu0 0
        %2422 = vmatpush.bf16.msra.mxu0 %v2410
        %2423 = vmatpush.bf16.msra.mxu0 %v2409
        %2424 = vmatmul.bf16.gmra.mxu0 %v2414
        %v2425 = vpop.f32.mrf.mxu0
        %v2426 = vadd.f32 0.0, %v2425
        %v2427 = vpop.f32.mrf.mxu0
        %2428 = vdwg.mxu0
        %v2429 = vpack.c.bf16 %v1458, %v1458
        %s2430 = scalar_lea.vmem [#allocation7], 144
        %v2431 = vld [vmem:[%s2430] sm:$0xf]
        %v2432 = vld [vmem:[%s2430 + $0x4] sm:$0xf]
        %v2433 = vld [vmem:[%s2430 + $0x8] sm:$0xf]
        %v2434 = vld [vmem:[%s2430 + $0xc] sm:$0xf]
        %2436 = vrot.lane.b32.xlu0 %v2429, 96
        %v2437 = vpop.permute.xlu0 %2436
        %v2442 = vunpack.c.l.b16 %v2431
        %v2443 = vunpack.c.l.b16 %v2432
        %v2444 = vunpack.c.l.b16 %v2433
        %v2445 = vunpack.c.l.b16 %v2434
        %v2446 = vpack.c.b16 %v2443, %v2442
        %v2447 = vpack.c.b16 %v2445, %v2444
        %v2451 = vsel %vm439, %v2437, 0
        %2453 = vmatpush.bf16.msra.mxu0 0
        %2454 = vmatpush.bf16.msra.mxu0 0
        %2455 = vmatpush.bf16.msra.mxu0 0
        %2456 = vmatpush.bf16.msra.mxu0 0
        %2457 = vmatpush.bf16.msra.mxu0 0
        %2458 = vmatpush.bf16.msra.mxu0 0
        %2459 = vmatpush.bf16.msra.mxu0 %v2447
        %2460 = vmatpush.bf16.msra.mxu0 %v2446
        %2461 = vmatmul.bf16.gmra.mxu0 %v2451
        %v2462 = vpop.f32.mrf.mxu0
        %v2463 = vadd.f32 0.0, %v2462
        %v2464 = vpop.f32.mrf.mxu0
        %2465 = vdwg.mxu0
        %v2466 = vpack.c.bf16 %v1613, %v1613
        %s2467 = scalar_lea.vmem [#allocation7], 160
        %v2468 = vld [vmem:[%s2467] sm:$0xf]
        %v2469 = vld [vmem:[%s2467 + $0x4] sm:$0xf]
        %v2470 = vld [vmem:[%s2467 + $0x8] sm:$0xf]
        %v2471 = vld [vmem:[%s2467 + $0xc] sm:$0xf]
        %2473 = vrot.lane.b32.xlu0 %v2466, 96
        %v2474 = vpop.permute.xlu0 %2473
        %v2479 = vunpack.c.l.b16 %v2468
        %v2480 = vunpack.c.l.b16 %v2469
        %v2481 = vunpack.c.l.b16 %v2470
        %v2482 = vunpack.c.l.b16 %v2471
        %v2483 = vpack.c.b16 %v2480, %v2479
        %v2484 = vpack.c.b16 %v2482, %v2481
        %v2488 = vsel %vm439, %v2474, 0
        %2490 = vmatpush.bf16.msra.mxu0 0
        %2491 = vmatpush.bf16.msra.mxu0 0
        %2492 = vmatpush.bf16.msra.mxu0 0
        %2493 = vmatpush.bf16.msra.mxu0 0
        %2494 = vmatpush.bf16.msra.mxu0 0
        %2495 = vmatpush.bf16.msra.mxu0 0
        %2496 = vmatpush.bf16.msra.mxu0 %v2484
        %2497 = vmatpush.bf16.msra.mxu0 %v2483
        %2498 = vmatmul.bf16.gmra.mxu0 %v2488
        %v2499 = vpop.f32.mrf.mxu0
        %v2500 = vadd.f32 0.0, %v2499
        %v2501 = vpop.f32.mrf.mxu0
        %2502 = vdwg.mxu0
        %v2503 = vpack.c.bf16 %v1768, %v1768
        %s2504 = scalar_lea.vmem [#allocation7], 176
        %v2505 = vld [vmem:[%s2504] sm:$0xf]
        %v2506 = vld [vmem:[%s2504 + $0x4] sm:$0xf]
        %v2507 = vld [vmem:[%s2504 + $0x8] sm:$0xf]
        %v2508 = vld [vmem:[%s2504 + $0xc] sm:$0xf]
        %2510 = vrot.lane.b32.xlu0 %v2503, 96
        %v2511 = vpop.permute.xlu0 %2510
        %v2516 = vunpack.c.l.b16 %v2505
        %v2517 = vunpack.c.l.b16 %v2506
        %v2518 = vunpack.c.l.b16 %v2507
        %v2519 = vunpack.c.l.b16 %v2508
        %v2520 = vpack.c.b16 %v2517, %v2516
        %v2521 = vpack.c.b16 %v2519, %v2518
        %v2525 = vsel %vm439, %v2511, 0
        %2527 = vmatpush.bf16.msra.mxu0 0
        %2528 = vmatpush.bf16.msra.mxu0 0
        %2529 = vmatpush.bf16.msra.mxu0 0
        %2530 = vmatpush.bf16.msra.mxu0 0
        %2531 = vmatpush.bf16.msra.mxu0 0
        %2532 = vmatpush.bf16.msra.mxu0 0
        %2533 = vmatpush.bf16.msra.mxu0 %v2521
        %2534 = vmatpush.bf16.msra.mxu0 %v2520
        %2535 = vmatmul.bf16.gmra.mxu0 %v2525
        %v2536 = vpop.f32.mrf.mxu0
        %v2537 = vadd.f32 0.0, %v2536
        %v2538 = vpop.f32.mrf.mxu0
        %2539 = vdwg.mxu0
        %v2540 = vpack.c.bf16 %v1924, %v1924
        %s2541 = scalar_lea.vmem [#allocation7], 192
        %v2542 = vld [vmem:[%s2541] sm:$0xf]
        %v2543 = vld [vmem:[%s2541 + $0x4] sm:$0xf]
        %v2544 = vld [vmem:[%s2541 + $0x8] sm:$0xf]
        %v2545 = vld [vmem:[%s2541 + $0xc] sm:$0xf]
        %2547 = vrot.lane.b32.xlu0 %v2540, 96
        %v2548 = vpop.permute.xlu0 %2547
        %v2553 = vunpack.c.l.b16 %v2542
        %v2554 = vunpack.c.l.b16 %v2543
        %v2555 = vunpack.c.l.b16 %v2544
        %v2556 = vunpack.c.l.b16 %v2545
        %v2557 = vpack.c.b16 %v2554, %v2553
        %v2558 = vpack.c.b16 %v2556, %v2555
        %v2562 = vsel %vm439, %v2548, 0
        %2564 = vmatpush.bf16.msra.mxu0 0
        %2565 = vmatpush.bf16.msra.mxu0 0
        %2566 = vmatpush.bf16.msra.mxu0 0
        %2567 = vmatpush.bf16.msra.mxu0 0
        %2568 = vmatpush.bf16.msra.mxu0 0
        %2569 = vmatpush.bf16.msra.mxu0 0
        %2570 = vmatpush.bf16.msra.mxu0 %v2558
        %2571 = vmatpush.bf16.msra.mxu0 %v2557
        %2572 = vmatmul.bf16.gmra.mxu0 %v2562
        %v2573 = vpop.f32.mrf.mxu0
        %v2574 = vadd.f32 0.0, %v2573
        %v2575 = vpop.f32.mrf.mxu0
        %2576 = vdwg.mxu0
        %v2577 = vpack.c.bf16 %v2076, %v2076
        %s2578 = scalar_lea.vmem [#allocation7], 208
        %v2579 = vld [vmem:[%s2578] sm:$0xf]
        %v2580 = vld [vmem:[%s2578 + $0x4] sm:$0xf]
        %v2581 = vld [vmem:[%s2578 + $0x8] sm:$0xf]
        %v2582 = vld [vmem:[%s2578 + $0xc] sm:$0xf]
        %2584 = vrot.lane.b32.xlu0 %v2577, 96
        %v2585 = vpop.permute.xlu0 %2584
        %v2590 = vunpack.c.l.b16 %v2579
        %v2591 = vunpack.c.l.b16 %v2580
        %v2592 = vunpack.c.l.b16 %v2581
        %v2593 = vunpack.c.l.b16 %v2582
        %v2594 = vpack.c.b16 %v2591, %v2590
        %v2595 = vpack.c.b16 %v2593, %v2592
        %v2599 = vsel %vm439, %v2585, 0
        %2601 = vmatpush.bf16.msra.mxu0 0
        %2602 = vmatpush.bf16.msra.mxu0 0
        %2603 = vmatpush.bf16.msra.mxu0 0
        %2604 = vmatpush.bf16.msra.mxu0 0
        %2605 = vmatpush.bf16.msra.mxu0 0
        %2606 = vmatpush.bf16.msra.mxu0 0
        %2607 = vmatpush.bf16.msra.mxu0 %v2595
        %2608 = vmatpush.bf16.msra.mxu0 %v2594
        %2609 = vmatmul.bf16.gmra.mxu0 %v2599
        %v2610 = vpop.f32.mrf.mxu0
        %v2611 = vadd.f32 0.0, %v2610
        %v2612 = vpop.f32.mrf.mxu0
        %2613 = vdwg.mxu0
        %v2614 = vpack.c.bf16 %v2231, %v2231
        %s2615 = scalar_lea.vmem [#allocation7], 224
        %v2616 = vld [vmem:[%s2615] sm:$0xf]
        %v2617 = vld [vmem:[%s2615 + $0x4] sm:$0xf]
        %v2618 = vld [vmem:[%s2615 + $0x8] sm:$0xf]
        %v2619 = vld [vmem:[%s2615 + $0xc] sm:$0xf]
        %2621 = vrot.lane.b32.xlu0 %v2614, 96
        %v2622 = vpop.permute.xlu0 %2621
        %v2627 = vunpack.c.l.b16 %v2616
        %v2628 = vunpack.c.l.b16 %v2617
        %v2629 = vunpack.c.l.b16 %v2618
        %v2630 = vunpack.c.l.b16 %v2619
        %v2631 = vpack.c.b16 %v2628, %v2627
        %v2632 = vpack.c.b16 %v2630, %v2629
        %v2636 = vsel %vm439, %v2622, 0
        %2638 = vmatpush.bf16.msra.mxu0 0
        %2639 = vmatpush.bf16.msra.mxu0 0
        %2640 = vmatpush.bf16.msra.mxu0 0
        %2641 = vmatpush.bf16.msra.mxu0 0
        %2642 = vmatpush.bf16.msra.mxu0 0
        %2643 = vmatpush.bf16.msra.mxu0 0
        %2644 = vmatpush.bf16.msra.mxu0 %v2632
        %2645 = vmatpush.bf16.msra.mxu0 %v2631
        %2646 = vmatmul.bf16.gmra.mxu0 %v2636
        %v2647 = vpop.f32.mrf.mxu0
        %v2648 = vadd.f32 0.0, %v2647
        %v2649 = vpop.f32.mrf.mxu0
        %2650 = vdwg.mxu0
        %v2651 = vpack.c.bf16 %v2386, %v2386
        %s2652 = scalar_lea.vmem [#allocation7], 240
        %v2653 = vld [vmem:[%s2652] sm:$0xf]
        %v2654 = vld [vmem:[%s2652 + $0x4] sm:$0xf]
        %v2655 = vld [vmem:[%s2652 + $0x8] sm:$0xf]
        %v2656 = vld [vmem:[%s2652 + $0xc] sm:$0xf]
        %2658 = vrot.lane.b32.xlu0 %v2651, 96
        %v2659 = vpop.permute.xlu0 %2658
        %v2664 = vunpack.c.l.b16 %v2653
        %v2665 = vunpack.c.l.b16 %v2654
        %v2666 = vunpack.c.l.b16 %v2655
        %v2667 = vunpack.c.l.b16 %v2656
        %v2668 = vpack.c.b16 %v2665, %v2664
        %v2669 = vpack.c.b16 %v2667, %v2666
        %v2673 = vsel %vm439, %v2659, 0
        %2675 = vmatpush.bf16.msra.mxu0 0
        %2676 = vmatpush.bf16.msra.mxu0 0
        %2677 = vmatpush.bf16.msra.mxu0 0
        %2678 = vmatpush.bf16.msra.mxu0 0
        %2679 = vmatpush.bf16.msra.mxu0 0
        %2680 = vmatpush.bf16.msra.mxu0 0
        %2681 = vmatpush.bf16.msra.mxu0 %v2669
        %2682 = vmatpush.bf16.msra.mxu0 %v2668
        %2683 = vmatmul.bf16.gmra.mxu0 %v2673
        %v2684 = vpop.f32.mrf.mxu0
        %v2685 = vadd.f32 0.0, %v2684
        %v2686 = vpop.f32.mrf.mxu0
        %2687 = vdwg.mxu0
        %v2688 = vmul.f32 %v1131, %v2426
        %v2689 = vmul.f32 %v1136, %v2463
        %v2690 = vadd.f32 %v2688, %v2689
        %v2691 = vmul.f32 %v1142, %v2500
        %v2692 = vadd.f32 %v2690, %v2691
        %v2693 = vmul.f32 %v1148, %v2537
        %v2694 = vadd.f32 %v2692, %v2693
        %v2695 = vmul.f32 %v1154, %v2574
        %v2696 = vadd.f32 %v2694, %v2695
        %v2697 = vmul.f32 %v1160, %v2611
        %v2698 = vadd.f32 %v2696, %v2697
        %v2699 = vmul.f32 %v1166, %v2648
        %v2700 = vadd.f32 %v2698, %v2699
        %v2701 = vmul.f32 %v1172, %v2685
        %v2702 = vadd.f32 %v2700, %v2701
        %v2703 = vpack.c.bf16 %v2702, %v2702
        %s2704 = scalar_lea.vmem [#allocation8], 128
        %v2705 = vld [vmem:[%s2704] sm:$0xf]
        %v2706 = vld [vmem:[%s2704 + $0x4] sm:$0xf]
        %v2707 = vld [vmem:[%s2704 + $0x8] sm:$0xf]
        %v2708 = vld [vmem:[%s2704 + $0xc] sm:$0xf]
        %v2713 = vunpack.c.l.b16 %v2705
        %v2714 = vunpack.c.l.b16 %v2706
        %v2715 = vunpack.c.l.b16 %v2707
        %v2716 = vunpack.c.l.b16 %v2708
        %v2717 = vpack.c.b16 %v2714, %v2713
        %v2718 = vpack.c.b16 %v2716, %v2715
        %v2722 = vsel %vm439, %v2703, 0
        %2724 = vmatpush.bf16.msra.mxu0 0
        %2725 = vmatpush.bf16.msra.mxu0 0
        %2726 = vmatpush.bf16.msra.mxu0 0
        %2727 = vmatpush.bf16.msra.mxu0 0
        %2728 = vmatpush.bf16.msra.mxu0 0
        %2729 = vmatpush.bf16.msra.mxu0 0
        %2730 = vmatpush.bf16.msra.mxu0 %v2718
        %2731 = vmatpush.bf16.msra.mxu0 %v2717
        %2732 = vmatmul.bf16.gmra.mxu0 %v2722
        %v2733 = vpop.f32.mrf.mxu0
        %v2734 = vadd.f32 %v2390, %v2733
        %v2735 = vpop.f32.mrf.mxu0
        %2736 = vdwg.mxu0
        %v2737 = vpack.c.bf16 %v2734, %v2734
        %v2739 = vsel %vm439, %v2737, 0
        %2741 = vmatpush.bf16.msra.mxu0 0
        %2742 = vmatpush.bf16.msra.mxu0 0
        %2743 = vmatpush.bf16.msra.mxu0 0
        %2744 = vmatpush.bf16.msra.mxu0 0
        %2745 = vmatpush.bf16.msra.mxu0 0
        %2746 = vmatpush.bf16.msra.mxu0 0
        %2747 = vmatpush.bf16.msra.mxu0 %v1219
        %2748 = vmatpush.bf16.msra.mxu0 %v1218
        %2749 = vmatmul.bf16.gmra.mxu0 %v2739
        %v2750 = vpop.f32.mrf.mxu0
        %v2751 = vadd.f32 %v839, %v2750
        %v2752 = vpop.f32.mrf.mxu0
        %2753 = vdwg.mxu0
        %2754 = vmatpush.bf16.msra.mxu0 0
        %2755 = vmatpush.bf16.msra.mxu0 0
        %2756 = vmatpush.bf16.msra.mxu0 0
        %2757 = vmatpush.bf16.msra.mxu0 0
        %2758 = vmatpush.bf16.msra.mxu0 0
        %2759 = vmatpush.bf16.msra.mxu0 0
        %2760 = vmatpush.bf16.msra.mxu0 %v1247
        %2761 = vmatpush.bf16.msra.mxu0 %v1246
        %2762 = vmatmul.bf16.gmra.mxu0 %v2414
        %v2763 = vpop.f32.mrf.mxu0
        %v2764 = vadd.f32 %v843, %v2763
        %v2765 = vpop.f32.mrf.mxu0
        %2766 = vdwg.mxu0
        %v2767 = vadd.f32 %v2751, %v2764
        %v2768 = vxor.u32 %v2767, 2147483648
        %v2769 = vmul.f32 %v2768, 1.442695
        %v2770 = vpow.pop %v2769
        %v2771 = vadd.f32 %v2770, 1.0
        %v2772 = vrcp.pop %v2771
        %v2773 = vmul.f32 %v2771, %v2772
        %v2774 = vsub.f32 1.0, %v2773
        %v2775 = vmul.f32 %v2772, %v2774
        %v2776 = vadd.f32 %v2772, %v2775
        %vm2777 = vweird.f32 %v2771
        %vm2778 = vweird.f32 %v2772
        %vm2779 = vmor %vm2777, %vm2778
        %v2780 = vsel %vm2779, %v2772, %v2776
        %v2781 = vand.u32 2147483647, %v2771
        %vm2782 = vcmp.eq.f32.partialorder %v2781, 8.507059e+37
        %v2783 = vand.u32 %v2771, 2147483648
        %v2784 = vor.u32 1.1754944e-38, %v2783
        %v2785 = vsel %vm2782, %v2784, %v2780
        %v2786 = vmul.f32 1.0, %v2785
        %2788 = vrot.lane.b32.xlu0 %v2764, 64
        %v2789 = vpop.permute.xlu0 %2788
        %v2791 = vmul.f32 %v2786, %v2789
        %2793 = vrot.lane.b32.xlu0 %v2791, 64
        %v2794 = vpop.permute.xlu0 %2793
        %v2796 = vadd.f32 %v2751, %v2794
        %v2797 = vtanh.pop %v2796
        %v2798 = vsub.f32 1.0, %v2786
        %2800 = vrot.lane.b32.xlu0 %v2797, 96
        %v2801 = vpop.permute.xlu0 %2800
        %v2803 = vmul.f32 %v2798, %v2801
        %v2804 = vmul.f32 %v2786, %v1306
        %v2805 = vadd.f32 %v2803, %v2804
        %v2806 = vadd.f32 %v2805, %v1302
        %v2807 = vmul.f32 %v1310, %v2426
        %v2808 = vmul.f32 %v1315, %v2463
        %v2809 = vadd.f32 %v2807, %v2808
        %v2810 = vmul.f32 %v1321, %v2500
        %v2811 = vadd.f32 %v2809, %v2810
        %v2812 = vmul.f32 %v1327, %v2537
        %v2813 = vadd.f32 %v2811, %v2812
        %v2814 = vmul.f32 %v1333, %v2574
        %v2815 = vadd.f32 %v2813, %v2814
        %v2816 = vmul.f32 %v1339, %v2611
        %v2817 = vadd.f32 %v2815, %v2816
        %v2818 = vmul.f32 %v1345, %v2648
        %v2819 = vadd.f32 %v2817, %v2818
        %v2820 = vmul.f32 %v1351, %v2685
        %v2821 = vadd.f32 %v2819, %v2820
        %v2822 = vpack.c.bf16 %v2821, %v2821
        %s2823 = scalar_lea.vmem [#allocation8], 144
        %v2824 = vld [vmem:[%s2823] sm:$0xf]
        %v2825 = vld [vmem:[%s2823 + $0x4] sm:$0xf]
        %v2826 = vld [vmem:[%s2823 + $0x8] sm:$0xf]
        %v2827 = vld [vmem:[%s2823 + $0xc] sm:$0xf]
        %v2832 = vunpack.c.l.b16 %v2824
        %v2833 = vunpack.c.l.b16 %v2825
        %v2834 = vunpack.c.l.b16 %v2826
        %v2835 = vunpack.c.l.b16 %v2827
        %v2836 = vpack.c.b16 %v2833, %v2832
        %v2837 = vpack.c.b16 %v2835, %v2834
        %v2841 = vsel %vm439, %v2822, 0
        %2843 = vmatpush.bf16.msra.mxu0 0
        %2844 = vmatpush.bf16.msra.mxu0 0
        %2845 = vmatpush.bf16.msra.mxu0 0
        %2846 = vmatpush.bf16.msra.mxu0 0
        %2847 = vmatpush.bf16.msra.mxu0 0
        %2848 = vmatpush.bf16.msra.mxu0 0
        %2849 = vmatpush.bf16.msra.mxu0 %v2837
        %2850 = vmatpush.bf16.msra.mxu0 %v2836
        %2851 = vmatmul.bf16.gmra.mxu0 %v2841
        %v2852 = vpop.f32.mrf.mxu0
        %v2853 = vadd.f32 %v2390, %v2852
        %v2854 = vpop.f32.mrf.mxu0
        %2855 = vdwg.mxu0
        %v2856 = vpack.c.bf16 %v2853, %v2853
        %v2858 = vsel %vm439, %v2856, 0
        %2860 = vmatpush.bf16.msra.mxu0 0
        %2861 = vmatpush.bf16.msra.mxu0 0
        %2862 = vmatpush.bf16.msra.mxu0 0
        %2863 = vmatpush.bf16.msra.mxu0 0
        %2864 = vmatpush.bf16.msra.mxu0 0
        %2865 = vmatpush.bf16.msra.mxu0 0
        %2866 = vmatpush.bf16.msra.mxu0 %v1219
        %2867 = vmatpush.bf16.msra.mxu0 %v1218
        %2868 = vmatmul.bf16.gmra.mxu0 %v2858
        %v2869 = vpop.f32.mrf.mxu0
        %v2870 = vadd.f32 %v839, %v2869
        %v2871 = vpop.f32.mrf.mxu0
        %2872 = vdwg.mxu0
        %2873 = vmatpush.bf16.msra.mxu0 0
        %2874 = vmatpush.bf16.msra.mxu0 0
        %2875 = vmatpush.bf16.msra.mxu0 0
        %2876 = vmatpush.bf16.msra.mxu0 0
        %2877 = vmatpush.bf16.msra.mxu0 0
        %2878 = vmatpush.bf16.msra.mxu0 0
        %2879 = vmatpush.bf16.msra.mxu0 %v1247
        %2880 = vmatpush.bf16.msra.mxu0 %v1246
        %2881 = vmatmul.bf16.gmra.mxu0 %v2451
        %v2882 = vpop.f32.mrf.mxu0
        %v2883 = vadd.f32 %v843, %v2882
        %v2884 = vpop.f32.mrf.mxu0
        %2885 = vdwg.mxu0
        %v2886 = vadd.f32 %v2870, %v2883
        %v2887 = vxor.u32 %v2886, 2147483648
        %v2888 = vmul.f32 %v2887, 1.442695
        %v2889 = vpow.pop %v2888
        %v2890 = vadd.f32 %v2889, 1.0
        %v2891 = vrcp.pop %v2890
        %v2892 = vmul.f32 %v2890, %v2891
        %v2893 = vsub.f32 1.0, %v2892
        %v2894 = vmul.f32 %v2891, %v2893
        %v2895 = vadd.f32 %v2891, %v2894
        %vm2896 = vweird.f32 %v2890
        %vm2897 = vweird.f32 %v2891
        %vm2898 = vmor %vm2896, %vm2897
        %v2899 = vsel %vm2898, %v2891, %v2895
        %v2900 = vand.u32 2147483647, %v2890
        %vm2901 = vcmp.eq.f32.partialorder %v2900, 8.507059e+37
        %v2902 = vand.u32 %v2890, 2147483648
        %v2903 = vor.u32 1.1754944e-38, %v2902
        %v2904 = vsel %vm2901, %v2903, %v2899
        %v2905 = vmul.f32 1.0, %v2904
        %2907 = vrot.lane.b32.xlu0 %v2883, 64
        %v2908 = vpop.permute.xlu0 %2907
        %v2910 = vmul.f32 %v2905, %v2908
        %2912 = vrot.lane.b32.xlu0 %v2910, 64
        %v2913 = vpop.permute.xlu0 %2912
        %v2915 = vadd.f32 %v2870, %v2913
        %v2916 = vtanh.pop %v2915
        %v2917 = vsub.f32 1.0, %v2905
        %2919 = vrot.lane.b32.xlu0 %v2916, 96
        %v2920 = vpop.permute.xlu0 %2919
        %v2922 = vmul.f32 %v2917, %v2920
        %v2923 = vmul.f32 %v2905, %v1458
        %v2924 = vadd.f32 %v2922, %v2923
        %v2925 = vadd.f32 %v2924, %v433
        %v2926 = vmul.f32 %v1462, %v2426
        %v2927 = vmul.f32 %v1467, %v2463
        %v2928 = vadd.f32 %v2926, %v2927
        %v2929 = vmul.f32 %v1473, %v2500
        %v2930 = vadd.f32 %v2928, %v2929
        %v2931 = vmul.f32 %v1479, %v2537
        %v2932 = vadd.f32 %v2930, %v2931
        %v2933 = vmul.f32 %v1485, %v2574
        %v2934 = vadd.f32 %v2932, %v2933
        %v2935 = vmul.f32 %v1491, %v2611
        %v2936 = vadd.f32 %v2934, %v2935
        %v2937 = vmul.f32 %v1497, %v2648
        %v2938 = vadd.f32 %v2936, %v2937
        %v2939 = vmul.f32 %v1503, %v2685
        %v2940 = vadd.f32 %v2938, %v2939
        %v2941 = vpack.c.bf16 %v2940, %v2940
        %s2942 = scalar_lea.vmem [#allocation8], 160
        %v2943 = vld [vmem:[%s2942] sm:$0xf]
        %v2944 = vld [vmem:[%s2942 + $0x4] sm:$0xf]
        %v2945 = vld [vmem:[%s2942 + $0x8] sm:$0xf]
        %v2946 = vld [vmem:[%s2942 + $0xc] sm:$0xf]
        %v2951 = vunpack.c.l.b16 %v2943
        %v2952 = vunpack.c.l.b16 %v2944
        %v2953 = vunpack.c.l.b16 %v2945
        %v2954 = vunpack.c.l.b16 %v2946
        %v2955 = vpack.c.b16 %v2952, %v2951
        %v2956 = vpack.c.b16 %v2954, %v2953
        %v2960 = vsel %vm439, %v2941, 0
        %2962 = vmatpush.bf16.msra.mxu0 0
        %2963 = vmatpush.bf16.msra.mxu0 0
        %2964 = vmatpush.bf16.msra.mxu0 0
        %2965 = vmatpush.bf16.msra.mxu0 0
        %2966 = vmatpush.bf16.msra.mxu0 0
        %2967 = vmatpush.bf16.msra.mxu0 0
        %2968 = vmatpush.bf16.msra.mxu0 %v2956
        %2969 = vmatpush.bf16.msra.mxu0 %v2955
        %2970 = vmatmul.bf16.gmra.mxu0 %v2960
        %v2971 = vpop.f32.mrf.mxu0
        %v2972 = vadd.f32 %v2390, %v2971
        %v2973 = vpop.f32.mrf.mxu0
        %2974 = vdwg.mxu0
        %v2975 = vpack.c.bf16 %v2972, %v2972
        %v2977 = vsel %vm439, %v2975, 0
        %2979 = vmatpush.bf16.msra.mxu0 0
        %2980 = vmatpush.bf16.msra.mxu0 0
        %2981 = vmatpush.bf16.msra.mxu0 0
        %2982 = vmatpush.bf16.msra.mxu0 0
        %2983 = vmatpush.bf16.msra.mxu0 0
        %2984 = vmatpush.bf16.msra.mxu0 0
        %2985 = vmatpush.bf16.msra.mxu0 %v1219
        %2986 = vmatpush.bf16.msra.mxu0 %v1218
        %2987 = vmatmul.bf16.gmra.mxu0 %v2977
        %v2988 = vpop.f32.mrf.mxu0
        %v2989 = vadd.f32 %v839, %v2988
        %v2990 = vpop.f32.mrf.mxu0
        %2991 = vdwg.mxu0
        %2992 = vmatpush.bf16.msra.mxu0 0
        %2993 = vmatpush.bf16.msra.mxu0 0
        %2994 = vmatpush.bf16.msra.mxu0 0
        %2995 = vmatpush.bf16.msra.mxu0 0
        %2996 = vmatpush.bf16.msra.mxu0 0
        %2997 = vmatpush.bf16.msra.mxu0 0
        %2998 = vmatpush.bf16.msra.mxu0 %v1247
        %2999 = vmatpush.bf16.msra.mxu0 %v1246
        %3000 = vmatmul.bf16.gmra.mxu0 %v2488
        %v3001 = vpop.f32.mrf.mxu0
        %v3002 = vadd.f32 %v843, %v3001
        %v3003 = vpop.f32.mrf.mxu0
        %3004 = vdwg.mxu0
        %v3005 = vadd.f32 %v2989, %v3002
        %v3006 = vxor.u32 %v3005, 2147483648
        %v3007 = vmul.f32 %v3006, 1.442695
        %v3008 = vpow.pop %v3007
        %v3009 = vadd.f32 %v3008, 1.0
        %v3010 = vrcp.pop %v3009
        %v3011 = vmul.f32 %v3009, %v3010
        %v3012 = vsub.f32 1.0, %v3011
        %v3013 = vmul.f32 %v3010, %v3012
        %v3014 = vadd.f32 %v3010, %v3013
        %vm3015 = vweird.f32 %v3009
        %vm3016 = vweird.f32 %v3010
        %vm3017 = vmor %vm3015, %vm3016
        %v3018 = vsel %vm3017, %v3010, %v3014
        %v3019 = vand.u32 2147483647, %v3009
        %vm3020 = vcmp.eq.f32.partialorder %v3019, 8.507059e+37
        %v3021 = vand.u32 %v3009, 2147483648
        %v3022 = vor.u32 1.1754944e-38, %v3021
        %v3023 = vsel %vm3020, %v3022, %v3018
        %v3024 = vmul.f32 1.0, %v3023
        %3026 = vrot.lane.b32.xlu0 %v3002, 64
        %v3027 = vpop.permute.xlu0 %3026
        %v3029 = vmul.f32 %v3024, %v3027
        %3031 = vrot.lane.b32.xlu0 %v3029, 64
        %v3032 = vpop.permute.xlu0 %3031
        %v3034 = vadd.f32 %v2989, %v3032
        %v3035 = vtanh.pop %v3034
        %v3036 = vsub.f32 1.0, %v3024
        %3038 = vrot.lane.b32.xlu0 %v3035, 96
        %v3039 = vpop.permute.xlu0 %3038
        %v3041 = vmul.f32 %v3036, %v3039
        %v3042 = vmul.f32 %v3024, %v1613
        %v3043 = vadd.f32 %v3041, %v3042
        %v3044 = vadd.f32 %v3043, %v1609
        %v3045 = vmul.f32 %v1617, %v2426
        %v3046 = vmul.f32 %v1622, %v2463
        %v3047 = vadd.f32 %v3045, %v3046
        %v3048 = vmul.f32 %v1628, %v2500
        %v3049 = vadd.f32 %v3047, %v3048
        %v3050 = vmul.f32 %v1634, %v2537
        %v3051 = vadd.f32 %v3049, %v3050
        %v3052 = vmul.f32 %v1640, %v2574
        %v3053 = vadd.f32 %v3051, %v3052
        %v3054 = vmul.f32 %v1646, %v2611
        %v3055 = vadd.f32 %v3053, %v3054
        %v3056 = vmul.f32 %v1652, %v2648
        %v3057 = vadd.f32 %v3055, %v3056
        %v3058 = vmul.f32 %v1658, %v2685
        %v3059 = vadd.f32 %v3057, %v3058
        %v3060 = vpack.c.bf16 %v3059, %v3059
        %s3061 = scalar_lea.vmem [#allocation8], 176
        %v3062 = vld [vmem:[%s3061] sm:$0xf]
        %v3063 = vld [vmem:[%s3061 + $0x4] sm:$0xf]
        %v3064 = vld [vmem:[%s3061 + $0x8] sm:$0xf]
        %v3065 = vld [vmem:[%s3061 + $0xc] sm:$0xf]
        %v3070 = vunpack.c.l.b16 %v3062
        %v3071 = vunpack.c.l.b16 %v3063
        %v3072 = vunpack.c.l.b16 %v3064
        %v3073 = vunpack.c.l.b16 %v3065
        %v3074 = vpack.c.b16 %v3071, %v3070
        %v3075 = vpack.c.b16 %v3073, %v3072
        %v3079 = vsel %vm439, %v3060, 0
        %3081 = vmatpush.bf16.msra.mxu0 0
        %3082 = vmatpush.bf16.msra.mxu0 0
        %3083 = vmatpush.bf16.msra.mxu0 0
        %3084 = vmatpush.bf16.msra.mxu0 0
        %3085 = vmatpush.bf16.msra.mxu0 0
        %3086 = vmatpush.bf16.msra.mxu0 0
        %3087 = vmatpush.bf16.msra.mxu0 %v3075
        %3088 = vmatpush.bf16.msra.mxu0 %v3074
        %3089 = vmatmul.bf16.gmra.mxu0 %v3079
        %v3090 = vpop.f32.mrf.mxu0
        %v3091 = vadd.f32 %v2390, %v3090
        %v3092 = vpop.f32.mrf.mxu0
        %3093 = vdwg.mxu0
        %v3094 = vpack.c.bf16 %v3091, %v3091
        %v3096 = vsel %vm439, %v3094, 0
        %3098 = vmatpush.bf16.msra.mxu0 0
        %3099 = vmatpush.bf16.msra.mxu0 0
        %3100 = vmatpush.bf16.msra.mxu0 0
        %3101 = vmatpush.bf16.msra.mxu0 0
        %3102 = vmatpush.bf16.msra.mxu0 0
        %3103 = vmatpush.bf16.msra.mxu0 0
        %3104 = vmatpush.bf16.msra.mxu0 %v1219
        %3105 = vmatpush.bf16.msra.mxu0 %v1218
        %3106 = vmatmul.bf16.gmra.mxu0 %v3096
        %v3107 = vpop.f32.mrf.mxu0
        %v3108 = vadd.f32 %v839, %v3107
        %v3109 = vpop.f32.mrf.mxu0
        %3110 = vdwg.mxu0
        %3111 = vmatpush.bf16.msra.mxu0 0
        %3112 = vmatpush.bf16.msra.mxu0 0
        %3113 = vmatpush.bf16.msra.mxu0 0
        %3114 = vmatpush.bf16.msra.mxu0 0
        %3115 = vmatpush.bf16.msra.mxu0 0
        %3116 = vmatpush.bf16.msra.mxu0 0
        %3117 = vmatpush.bf16.msra.mxu0 %v1247
        %3118 = vmatpush.bf16.msra.mxu0 %v1246
        %3119 = vmatmul.bf16.gmra.mxu0 %v2525
        %v3120 = vpop.f32.mrf.mxu0
        %v3121 = vadd.f32 %v843, %v3120
        %v3122 = vpop.f32.mrf.mxu0
        %3123 = vdwg.mxu0
        %v3124 = vadd.f32 %v3108, %v3121
        %v3125 = vxor.u32 %v3124, 2147483648
        %v3126 = vmul.f32 %v3125, 1.442695
        %v3127 = vpow.pop %v3126
        %v3128 = vadd.f32 %v3127, 1.0
        %v3129 = vrcp.pop %v3128
        %v3130 = vmul.f32 %v3128, %v3129
        %v3131 = vsub.f32 1.0, %v3130
        %v3132 = vmul.f32 %v3129, %v3131
        %v3133 = vadd.f32 %v3129, %v3132
        %vm3134 = vweird.f32 %v3128
        %vm3135 = vweird.f32 %v3129
        %vm3136 = vmor %vm3134, %vm3135
        %v3137 = vsel %vm3136, %v3129, %v3133
        %v3138 = vand.u32 2147483647, %v3128
        %vm3139 = vcmp.eq.f32.partialorder %v3138, 8.507059e+37
        %v3140 = vand.u32 %v3128, 2147483648
        %v3141 = vor.u32 1.1754944e-38, %v3140
        %v3142 = vsel %vm3139, %v3141, %v3137
        %v3143 = vmul.f32 1.0, %v3142
        %3145 = vrot.lane.b32.xlu0 %v3121, 64
        %v3146 = vpop.permute.xlu0 %3145
        %v3148 = vmul.f32 %v3143, %v3146
        %3150 = vrot.lane.b32.xlu0 %v3148, 64
        %v3151 = vpop.permute.xlu0 %3150
        %v3153 = vadd.f32 %v3108, %v3151
        %v3154 = vtanh.pop %v3153
        %v3155 = vsub.f32 1.0, %v3143
        %3157 = vrot.lane.b32.xlu0 %v3154, 96
        %v3158 = vpop.permute.xlu0 %3157
        %v3160 = vmul.f32 %v3155, %v3158
        %v3161 = vmul.f32 %v3143, %v1768
        %v3162 = vadd.f32 %v3160, %v3161
        %v3163 = vadd.f32 %v3162, %v1764
        %v3164 = vmul.f32 %v1772, %v2426
        %v3165 = vmul.f32 %v1777, %v2463
        %v3166 = vadd.f32 %v3164, %v3165
        %v3167 = vmul.f32 %v1783, %v2500
        %v3168 = vadd.f32 %v3166, %v3167
        %v3169 = vmul.f32 %v1789, %v2537
        %v3170 = vadd.f32 %v3168, %v3169
        %v3171 = vmul.f32 %v1795, %v2574
        %v3172 = vadd.f32 %v3170, %v3171
        %v3173 = vmul.f32 %v1801, %v2611
        %v3174 = vadd.f32 %v3172, %v3173
        %v3175 = vmul.f32 %v1807, %v2648
        %v3176 = vadd.f32 %v3174, %v3175
        %v3177 = vmul.f32 %v1813, %v2685
        %v3178 = vadd.f32 %v3176, %v3177
        %v3179 = vpack.c.bf16 %v3178, %v3178
        %s3180 = scalar_lea.vmem [#allocation8], 192
        %v3181 = vld [vmem:[%s3180] sm:$0xf]
        %v3182 = vld [vmem:[%s3180 + $0x4] sm:$0xf]
        %v3183 = vld [vmem:[%s3180 + $0x8] sm:$0xf]
        %v3184 = vld [vmem:[%s3180 + $0xc] sm:$0xf]
        %v3189 = vunpack.c.l.b16 %v3181
        %v3190 = vunpack.c.l.b16 %v3182
        %v3191 = vunpack.c.l.b16 %v3183
        %v3192 = vunpack.c.l.b16 %v3184
        %v3193 = vpack.c.b16 %v3190, %v3189
        %v3194 = vpack.c.b16 %v3192, %v3191
        %v3198 = vsel %vm439, %v3179, 0
        %3200 = vmatpush.bf16.msra.mxu0 0
        %3201 = vmatpush.bf16.msra.mxu0 0
        %3202 = vmatpush.bf16.msra.mxu0 0
        %3203 = vmatpush.bf16.msra.mxu0 0
        %3204 = vmatpush.bf16.msra.mxu0 0
        %3205 = vmatpush.bf16.msra.mxu0 0
        %3206 = vmatpush.bf16.msra.mxu0 %v3194
        %3207 = vmatpush.bf16.msra.mxu0 %v3193
        %3208 = vmatmul.bf16.gmra.mxu0 %v3198
        %v3209 = vpop.f32.mrf.mxu0
        %v3210 = vadd.f32 %v2390, %v3209
        %v3211 = vpop.f32.mrf.mxu0
        %3212 = vdwg.mxu0
        %v3213 = vpack.c.bf16 %v3210, %v3210
        %v3215 = vsel %vm439, %v3213, 0
        %3217 = vmatpush.bf16.msra.mxu0 0
        %3218 = vmatpush.bf16.msra.mxu0 0
        %3219 = vmatpush.bf16.msra.mxu0 0
        %3220 = vmatpush.bf16.msra.mxu0 0
        %3221 = vmatpush.bf16.msra.mxu0 0
        %3222 = vmatpush.bf16.msra.mxu0 0
        %3223 = vmatpush.bf16.msra.mxu0 %v1219
        %3224 = vmatpush.bf16.msra.mxu0 %v1218
        %3225 = vmatmul.bf16.gmra.mxu0 %v3215
        %v3226 = vpop.f32.mrf.mxu0
        %v3227 = vadd.f32 %v839, %v3226
        %v3228 = vpop.f32.mrf.mxu0
        %3229 = vdwg.mxu0
        %3230 = vmatpush.bf16.msra.mxu0 0
        %3231 = vmatpush.bf16.msra.mxu0 0
        %3232 = vmatpush.bf16.msra.mxu0 0
        %3233 = vmatpush.bf16.msra.mxu0 0
        %3234 = vmatpush.bf16.msra.mxu0 0
        %3235 = vmatpush.bf16.msra.mxu0 0
        %3236 = vmatpush.bf16.msra.mxu0 %v1247
        %3237 = vmatpush.bf16.msra.mxu0 %v1246
        %3238 = vmatmul.bf16.gmra.mxu0 %v2562
        %v3239 = vpop.f32.mrf.mxu0
        %v3240 = vadd.f32 %v843, %v3239
        %v3241 = vpop.f32.mrf.mxu0
        %3242 = vdwg.mxu0
        %v3243 = vadd.f32 %v3227, %v3240
        %v3244 = vxor.u32 %v3243, 2147483648
        %v3245 = vmul.f32 %v3244, 1.442695
        %v3246 = vpow.pop %v3245
        %v3247 = vadd.f32 %v3246, 1.0
        %v3248 = vrcp.pop %v3247
        %v3249 = vmul.f32 %v3247, %v3248
        %v3250 = vsub.f32 1.0, %v3249
        %v3251 = vmul.f32 %v3248, %v3250
        %v3252 = vadd.f32 %v3248, %v3251
        %vm3253 = vweird.f32 %v3247
        %vm3254 = vweird.f32 %v3248
        %vm3255 = vmor %vm3253, %vm3254
        %v3256 = vsel %vm3255, %v3248, %v3252
        %v3257 = vand.u32 2147483647, %v3247
        %vm3258 = vcmp.eq.f32.partialorder %v3257, 8.507059e+37
        %v3259 = vand.u32 %v3247, 2147483648
        %v3260 = vor.u32 1.1754944e-38, %v3259
        %v3261 = vsel %vm3258, %v3260, %v3256
        %v3262 = vmul.f32 1.0, %v3261
        %3264 = vrot.lane.b32.xlu0 %v3240, 64
        %v3265 = vpop.permute.xlu0 %3264
        %v3267 = vmul.f32 %v3262, %v3265
        %3269 = vrot.lane.b32.xlu0 %v3267, 64
        %v3270 = vpop.permute.xlu0 %3269
        %v3272 = vadd.f32 %v3227, %v3270
        %v3273 = vtanh.pop %v3272
        %v3274 = vsub.f32 1.0, %v3262
        %3276 = vrot.lane.b32.xlu0 %v3273, 96
        %v3277 = vpop.permute.xlu0 %3276
        %v3279 = vmul.f32 %v3274, %v3277
        %v3280 = vmul.f32 %v3262, %v1924
        %v3281 = vadd.f32 %v3279, %v3280
        %v3282 = vadd.f32 %v3281, %v1920
        %v3283 = vmul.f32 %v1928, %v2426
        %v3284 = vmul.f32 %v1933, %v2463
        %v3285 = vadd.f32 %v3283, %v3284
        %v3286 = vmul.f32 %v1939, %v2500
        %v3287 = vadd.f32 %v3285, %v3286
        %v3288 = vmul.f32 %v1945, %v2537
        %v3289 = vadd.f32 %v3287, %v3288
        %v3290 = vmul.f32 %v1951, %v2574
        %v3291 = vadd.f32 %v3289, %v3290
        %v3292 = vmul.f32 %v1957, %v2611
        %v3293 = vadd.f32 %v3291, %v3292
        %v3294 = vmul.f32 %v1963, %v2648
        %v3295 = vadd.f32 %v3293, %v3294
        %v3296 = vmul.f32 %v1969, %v2685
        %v3297 = vadd.f32 %v3295, %v3296
        %v3298 = vpack.c.bf16 %v3297, %v3297
        %s3299 = scalar_lea.vmem [#allocation8], 208
        %v3300 = vld [vmem:[%s3299] sm:$0xf]
        %v3301 = vld [vmem:[%s3299 + $0x4] sm:$0xf]
        %v3302 = vld [vmem:[%s3299 + $0x8] sm:$0xf]
        %v3303 = vld [vmem:[%s3299 + $0xc] sm:$0xf]
        %v3308 = vunpack.c.l.b16 %v3300
        %v3309 = vunpack.c.l.b16 %v3301
        %v3310 = vunpack.c.l.b16 %v3302
        %v3311 = vunpack.c.l.b16 %v3303
        %v3312 = vpack.c.b16 %v3309, %v3308
        %v3313 = vpack.c.b16 %v3311, %v3310
        %v3317 = vsel %vm439, %v3298, 0
        %3319 = vmatpush.bf16.msra.mxu0 0
        %3320 = vmatpush.bf16.msra.mxu0 0
        %3321 = vmatpush.bf16.msra.mxu0 0
        %3322 = vmatpush.bf16.msra.mxu0 0
        %3323 = vmatpush.bf16.msra.mxu0 0
        %3324 = vmatpush.bf16.msra.mxu0 0
        %3325 = vmatpush.bf16.msra.mxu0 %v3313
        %3326 = vmatpush.bf16.msra.mxu0 %v3312
        %3327 = vmatmul.bf16.gmra.mxu0 %v3317
        %v3328 = vpop.f32.mrf.mxu0
        %v3329 = vadd.f32 %v2390, %v3328
        %v3330 = vpop.f32.mrf.mxu0
        %3331 = vdwg.mxu0
        %v3332 = vpack.c.bf16 %v3329, %v3329
        %v3334 = vsel %vm439, %v3332, 0
        %3336 = vmatpush.bf16.msra.mxu0 0
        %3337 = vmatpush.bf16.msra.mxu0 0
        %3338 = vmatpush.bf16.msra.mxu0 0
        %3339 = vmatpush.bf16.msra.mxu0 0
        %3340 = vmatpush.bf16.msra.mxu0 0
        %3341 = vmatpush.bf16.msra.mxu0 0
        %3342 = vmatpush.bf16.msra.mxu0 %v1219
        %3343 = vmatpush.bf16.msra.mxu0 %v1218
        %3344 = vmatmul.bf16.gmra.mxu0 %v3334
        %v3345 = vpop.f32.mrf.mxu0
        %v3346 = vadd.f32 %v839, %v3345
        %v3347 = vpop.f32.mrf.mxu0
        %3348 = vdwg.mxu0
        %3349 = vmatpush.bf16.msra.mxu0 0
        %3350 = vmatpush.bf16.msra.mxu0 0
        %3351 = vmatpush.bf16.msra.mxu0 0
        %3352 = vmatpush.bf16.msra.mxu0 0
        %3353 = vmatpush.bf16.msra.mxu0 0
        %3354 = vmatpush.bf16.msra.mxu0 0
        %3355 = vmatpush.bf16.msra.mxu0 %v1247
        %3356 = vmatpush.bf16.msra.mxu0 %v1246
        %3357 = vmatmul.bf16.gmra.mxu0 %v2599
        %v3358 = vpop.f32.mrf.mxu0
        %v3359 = vadd.f32 %v843, %v3358
        %v3360 = vpop.f32.mrf.mxu0
        %3361 = vdwg.mxu0
        %v3362 = vadd.f32 %v3346, %v3359
        %v3363 = vxor.u32 %v3362, 2147483648
        %v3364 = vmul.f32 %v3363, 1.442695
        %v3365 = vpow.pop %v3364
        %v3366 = vadd.f32 %v3365, 1.0
        %v3367 = vrcp.pop %v3366
        %v3368 = vmul.f32 %v3366, %v3367
        %v3369 = vsub.f32 1.0, %v3368
        %v3370 = vmul.f32 %v3367, %v3369
        %v3371 = vadd.f32 %v3367, %v3370
        %vm3372 = vweird.f32 %v3366
        %vm3373 = vweird.f32 %v3367
        %vm3374 = vmor %vm3372, %vm3373
        %v3375 = vsel %vm3374, %v3367, %v3371
        %v3376 = vand.u32 2147483647, %v3366
        %vm3377 = vcmp.eq.f32.partialorder %v3376, 8.507059e+37
        %v3378 = vand.u32 %v3366, 2147483648
        %v3379 = vor.u32 1.1754944e-38, %v3378
        %v3380 = vsel %vm3377, %v3379, %v3375
        %v3381 = vmul.f32 1.0, %v3380
        %3383 = vrot.lane.b32.xlu0 %v3359, 64
        %v3384 = vpop.permute.xlu0 %3383
        %v3386 = vmul.f32 %v3381, %v3384
        %3388 = vrot.lane.b32.xlu0 %v3386, 64
        %v3389 = vpop.permute.xlu0 %3388
        %v3391 = vadd.f32 %v3346, %v3389
        %v3392 = vtanh.pop %v3391
        %v3393 = vsub.f32 1.0, %v3381
        %3395 = vrot.lane.b32.xlu0 %v3392, 96
        %v3396 = vpop.permute.xlu0 %3395
        %v3398 = vmul.f32 %v3393, %v3396
        %v3399 = vmul.f32 %v3381, %v2076
        %v3400 = vadd.f32 %v3398, %v3399
        %v3401 = vadd.f32 %v3400, %v434
        %v3402 = vmul.f32 %v2080, %v2426
        %v3403 = vmul.f32 %v2085, %v2463
        %v3404 = vadd.f32 %v3402, %v3403
        %v3405 = vmul.f32 %v2091, %v2500
        %v3406 = vadd.f32 %v3404, %v3405
        %v3407 = vmul.f32 %v2097, %v2537
        %v3408 = vadd.f32 %v3406, %v3407
        %v3409 = vmul.f32 %v2103, %v2574
        %v3410 = vadd.f32 %v3408, %v3409
        %v3411 = vmul.f32 %v2109, %v2611
        %v3412 = vadd.f32 %v3410, %v3411
        %v3413 = vmul.f32 %v2115, %v2648
        %v3414 = vadd.f32 %v3412, %v3413
        %v3415 = vmul.f32 %v2121, %v2685
        %v3416 = vadd.f32 %v3414, %v3415
        %v3417 = vpack.c.bf16 %v3416, %v3416
        %s3418 = scalar_lea.vmem [#allocation8], 224
        %v3419 = vld [vmem:[%s3418] sm:$0xf]
        %v3420 = vld [vmem:[%s3418 + $0x4] sm:$0xf]
        %v3421 = vld [vmem:[%s3418 + $0x8] sm:$0xf]
        %v3422 = vld [vmem:[%s3418 + $0xc] sm:$0xf]
        %v3427 = vunpack.c.l.b16 %v3419
        %v3428 = vunpack.c.l.b16 %v3420
        %v3429 = vunpack.c.l.b16 %v3421
        %v3430 = vunpack.c.l.b16 %v3422
        %v3431 = vpack.c.b16 %v3428, %v3427
        %v3432 = vpack.c.b16 %v3430, %v3429
        %v3436 = vsel %vm439, %v3417, 0
        %3438 = vmatpush.bf16.msra.mxu0 0
        %3439 = vmatpush.bf16.msra.mxu0 0
        %3440 = vmatpush.bf16.msra.mxu0 0
        %3441 = vmatpush.bf16.msra.mxu0 0
        %3442 = vmatpush.bf16.msra.mxu0 0
        %3443 = vmatpush.bf16.msra.mxu0 0
        %3444 = vmatpush.bf16.msra.mxu0 %v3432
        %3445 = vmatpush.bf16.msra.mxu0 %v3431
        %3446 = vmatmul.bf16.gmra.mxu0 %v3436
        %v3447 = vpop.f32.mrf.mxu0
        %v3448 = vadd.f32 %v2390, %v3447
        %v3449 = vpop.f32.mrf.mxu0
        %3450 = vdwg.mxu0
        %v3451 = vpack.c.bf16 %v3448, %v3448
        %v3453 = vsel %vm439, %v3451, 0
        %3455 = vmatpush.bf16.msra.mxu0 0
        %3456 = vmatpush.bf16.msra.mxu0 0
        %3457 = vmatpush.bf16.msra.mxu0 0
        %3458 = vmatpush.bf16.msra.mxu0 0
        %3459 = vmatpush.bf16.msra.mxu0 0
        %3460 = vmatpush.bf16.msra.mxu0 0
        %3461 = vmatpush.bf16.msra.mxu0 %v1219
        %3462 = vmatpush.bf16.msra.mxu0 %v1218
        %3463 = vmatmul.bf16.gmra.mxu0 %v3453
        %v3464 = vpop.f32.mrf.mxu0
        %v3465 = vadd.f32 %v839, %v3464
        %v3466 = vpop.f32.mrf.mxu0
        %3467 = vdwg.mxu0
        %3468 = vmatpush.bf16.msra.mxu0 0
        %3469 = vmatpush.bf16.msra.mxu0 0
        %3470 = vmatpush.bf16.msra.mxu0 0
        %3471 = vmatpush.bf16.msra.mxu0 0
        %3472 = vmatpush.bf16.msra.mxu0 0
        %3473 = vmatpush.bf16.msra.mxu0 0
        %3474 = vmatpush.bf16.msra.mxu0 %v1247
        %3475 = vmatpush.bf16.msra.mxu0 %v1246
        %3476 = vmatmul.bf16.gmra.mxu0 %v2636
        %v3477 = vpop.f32.mrf.mxu0
        %v3478 = vadd.f32 %v843, %v3477
        %v3479 = vpop.f32.mrf.mxu0
        %3480 = vdwg.mxu0
        %v3481 = vadd.f32 %v3465, %v3478
        %v3482 = vxor.u32 %v3481, 2147483648
        %v3483 = vmul.f32 %v3482, 1.442695
        %v3484 = vpow.pop %v3483
        %v3485 = vadd.f32 %v3484, 1.0
        %v3486 = vrcp.pop %v3485
        %v3487 = vmul.f32 %v3485, %v3486
        %v3488 = vsub.f32 1.0, %v3487
        %v3489 = vmul.f32 %v3486, %v3488
        %v3490 = vadd.f32 %v3486, %v3489
        %vm3491 = vweird.f32 %v3485
        %vm3492 = vweird.f32 %v3486
        %vm3493 = vmor %vm3491, %vm3492
        %v3494 = vsel %vm3493, %v3486, %v3490
        %v3495 = vand.u32 2147483647, %v3485
        %vm3496 = vcmp.eq.f32.partialorder %v3495, 8.507059e+37
        %v3497 = vand.u32 %v3485, 2147483648
        %v3498 = vor.u32 1.1754944e-38, %v3497
        %v3499 = vsel %vm3496, %v3498, %v3494
        %v3500 = vmul.f32 1.0, %v3499
        %3502 = vrot.lane.b32.xlu0 %v3478, 64
        %v3503 = vpop.permute.xlu0 %3502
        %v3505 = vmul.f32 %v3500, %v3503
        %3507 = vrot.lane.b32.xlu0 %v3505, 64
        %v3508 = vpop.permute.xlu0 %3507
        %v3510 = vadd.f32 %v3465, %v3508
        %v3511 = vtanh.pop %v3510
        %v3512 = vsub.f32 1.0, %v3500
        %3514 = vrot.lane.b32.xlu0 %v3511, 96
        %v3515 = vpop.permute.xlu0 %3514
        %v3517 = vmul.f32 %v3512, %v3515
        %v3518 = vmul.f32 %v3500, %v2231
        %v3519 = vadd.f32 %v3517, %v3518
        %v3520 = vadd.f32 %v3519, %v2227
        %v3521 = vmul.f32 %v2235, %v2426
        %v3522 = vmul.f32 %v2240, %v2463
        %v3523 = vadd.f32 %v3521, %v3522
        %v3524 = vmul.f32 %v2246, %v2500
        %v3525 = vadd.f32 %v3523, %v3524
        %v3526 = vmul.f32 %v2252, %v2537
        %v3527 = vadd.f32 %v3525, %v3526
        %v3528 = vmul.f32 %v2258, %v2574
        %v3529 = vadd.f32 %v3527, %v3528
        %v3530 = vmul.f32 %v2264, %v2611
        %v3531 = vadd.f32 %v3529, %v3530
        %v3532 = vmul.f32 %v2270, %v2648
        %v3533 = vadd.f32 %v3531, %v3532
        %v3534 = vmul.f32 %v2276, %v2685
        %v3535 = vadd.f32 %v3533, %v3534
        %v3536 = vpack.c.bf16 %v3535, %v3535
        %s3537 = scalar_lea.vmem [#allocation8], 240
        %v3538 = vld [vmem:[%s3537] sm:$0xf]
        %v3539 = vld [vmem:[%s3537 + $0x4] sm:$0xf]
        %v3540 = vld [vmem:[%s3537 + $0x8] sm:$0xf]
        %v3541 = vld [vmem:[%s3537 + $0xc] sm:$0xf]
        %v3546 = vunpack.c.l.b16 %v3538
        %v3547 = vunpack.c.l.b16 %v3539
        %v3548 = vunpack.c.l.b16 %v3540
        %v3549 = vunpack.c.l.b16 %v3541
        %v3550 = vpack.c.b16 %v3547, %v3546
        %v3551 = vpack.c.b16 %v3549, %v3548
        %v3555 = vsel %vm439, %v3536, 0
        %3557 = vmatpush.bf16.msra.mxu0 0
        %3558 = vmatpush.bf16.msra.mxu0 0
        %3559 = vmatpush.bf16.msra.mxu0 0
        %3560 = vmatpush.bf16.msra.mxu0 0
        %3561 = vmatpush.bf16.msra.mxu0 0
        %3562 = vmatpush.bf16.msra.mxu0 0
        %3563 = vmatpush.bf16.msra.mxu0 %v3551
        %3564 = vmatpush.bf16.msra.mxu0 %v3550
        %3565 = vmatmul.bf16.gmra.mxu0 %v3555
        %v3566 = vpop.f32.mrf.mxu0
        %v3567 = vadd.f32 %v2390, %v3566
        %v3568 = vpop.f32.mrf.mxu0
        %3569 = vdwg.mxu0
        %v3570 = vpack.c.bf16 %v3567, %v3567
        %v3572 = vsel %vm439, %v3570, 0
        %3574 = vmatpush.bf16.msra.mxu0 0
        %3575 = vmatpush.bf16.msra.mxu0 0
        %3576 = vmatpush.bf16.msra.mxu0 0
        %3577 = vmatpush.bf16.msra.mxu0 0
        %3578 = vmatpush.bf16.msra.mxu0 0
        %3579 = vmatpush.bf16.msra.mxu0 0
        %3580 = vmatpush.bf16.msra.mxu0 %v1219
        %3581 = vmatpush.bf16.msra.mxu0 %v1218
        %3582 = vmatmul.bf16.gmra.mxu0 %v3572
        %v3583 = vpop.f32.mrf.mxu0
        %v3584 = vadd.f32 %v839, %v3583
        %v3585 = vpop.f32.mrf.mxu0
        %3586 = vdwg.mxu0
        %3587 = vmatpush.bf16.msra.mxu0 0
        %3588 = vmatpush.bf16.msra.mxu0 0
        %3589 = vmatpush.bf16.msra.mxu0 0
        %3590 = vmatpush.bf16.msra.mxu0 0
        %3591 = vmatpush.bf16.msra.mxu0 0
        %3592 = vmatpush.bf16.msra.mxu0 0
        %3593 = vmatpush.bf16.msra.mxu0 %v1247
        %3594 = vmatpush.bf16.msra.mxu0 %v1246
        %3595 = vmatmul.bf16.gmra.mxu0 %v2673
        %v3596 = vpop.f32.mrf.mxu0
        %v3597 = vadd.f32 %v843, %v3596
        %v3598 = vpop.f32.mrf.mxu0
        %3599 = vdwg.mxu0
        %v3600 = vadd.f32 %v3584, %v3597
        %v3601 = vxor.u32 %v3600, 2147483648
        %v3602 = vmul.f32 %v3601, 1.442695
        %v3603 = vpow.pop %v3602
        %v3604 = vadd.f32 %v3603, 1.0
        %v3605 = vrcp.pop %v3604
        %v3606 = vmul.f32 %v3604, %v3605
        %v3607 = vsub.f32 1.0, %v3606
        %v3608 = vmul.f32 %v3605, %v3607
        %v3609 = vadd.f32 %v3605, %v3608
        %vm3610 = vweird.f32 %v3604
        %vm3611 = vweird.f32 %v3605
        %vm3612 = vmor %vm3610, %vm3611
        %v3613 = vsel %vm3612, %v3605, %v3609
        %v3614 = vand.u32 2147483647, %v3604
        %vm3615 = vcmp.eq.f32.partialorder %v3614, 8.507059e+37
        %v3616 = vand.u32 %v3604, 2147483648
        %v3617 = vor.u32 1.1754944e-38, %v3616
        %v3618 = vsel %vm3615, %v3617, %v3613
        %v3619 = vmul.f32 1.0, %v3618
        %3621 = vrot.lane.b32.xlu0 %v3597, 64
        %v3622 = vpop.permute.xlu0 %3621
        %v3624 = vmul.f32 %v3619, %v3622
        %3626 = vrot.lane.b32.xlu0 %v3624, 64
        %v3627 = vpop.permute.xlu0 %3626
        %v3629 = vadd.f32 %v3584, %v3627
        %v3630 = vtanh.pop %v3629
        %v3631 = vsub.f32 1.0, %v3619
        %3633 = vrot.lane.b32.xlu0 %v3630, 96
        %v3634 = vpop.permute.xlu0 %3633
        %v3636 = vmul.f32 %v3631, %v3634
        %v3637 = vmul.f32 %v3619, %v2386
        %v3638 = vadd.f32 %v3636, %v3637
        %v3639 = vadd.f32 %v3638, %v2382
        %s3640 = scalar_lea.vmem %s4, 2
        %v3641 = vld [vmem:[%s3640] sm:$0x1]
        %v3643 = vperm.slane %v3641, 0
        %v3645 = vpack.c.bf16 %v2806, %v2806
        %s3646 = scalar_lea.vmem [#allocation7], 256
        %v3647 = vld [vmem:[%s3646] sm:$0xf]
        %v3648 = vld [vmem:[%s3646 + $0x4] sm:$0xf]
        %v3649 = vld [vmem:[%s3646 + $0x8] sm:$0xf]
        %v3650 = vld [vmem:[%s3646 + $0xc] sm:$0xf]
        %3652 = vrot.lane.b32.xlu0 %v3645, 96
        %v3653 = vpop.permute.xlu0 %3652
        %v3658 = vunpack.c.l.b16 %v3647
        %v3659 = vunpack.c.l.b16 %v3648
        %v3660 = vunpack.c.l.b16 %v3649
        %v3661 = vunpack.c.l.b16 %v3650
        %v3662 = vpack.c.b16 %v3659, %v3658
        %v3663 = vpack.c.b16 %v3661, %v3660
        %v3667 = vsel %vm439, %v3653, 0
        %3669 = vmatpush.bf16.msra.mxu0 0
        %3670 = vmatpush.bf16.msra.mxu0 0
        %3671 = vmatpush.bf16.msra.mxu0 0
        %3672 = vmatpush.bf16.msra.mxu0 0
        %3673 = vmatpush.bf16.msra.mxu0 0
        %3674 = vmatpush.bf16.msra.mxu0 0
        %3675 = vmatpush.bf16.msra.mxu0 %v3663
        %3676 = vmatpush.bf16.msra.mxu0 %v3662
        %3677 = vmatmul.bf16.gmra.mxu0 %v3667
        %v3678 = vpop.f32.mrf.mxu0
        %v3679 = vadd.f32 0.0, %v3678
        %v3680 = vpop.f32.mrf.mxu0
        %3681 = vdwg.mxu0
        %v3682 = vpack.c.bf16 %v2925, %v2925
        %s3683 = scalar_lea.vmem [#allocation7], 272
        %v3684 = vld [vmem:[%s3683] sm:$0xf]
        %v3685 = vld [vmem:[%s3683 + $0x4] sm:$0xf]
        %v3686 = vld [vmem:[%s3683 + $0x8] sm:$0xf]
        %v3687 = vld [vmem:[%s3683 + $0xc] sm:$0xf]
        %3689 = vrot.lane.b32.xlu0 %v3682, 96
        %v3690 = vpop.permute.xlu0 %3689
        %v3695 = vunpack.c.l.b16 %v3684
        %v3696 = vunpack.c.l.b16 %v3685
        %v3697 = vunpack.c.l.b16 %v3686
        %v3698 = vunpack.c.l.b16 %v3687
        %v3699 = vpack.c.b16 %v3696, %v3695
        %v3700 = vpack.c.b16 %v3698, %v3697
        %v3704 = vsel %vm439, %v3690, 0
        %3706 = vmatpush.bf16.msra.mxu0 0
        %3707 = vmatpush.bf16.msra.mxu0 0
        %3708 = vmatpush.bf16.msra.mxu0 0
        %3709 = vmatpush.bf16.msra.mxu0 0
        %3710 = vmatpush.bf16.msra.mxu0 0
        %3711 = vmatpush.bf16.msra.mxu0 0
        %3712 = vmatpush.bf16.msra.mxu0 %v3700
        %3713 = vmatpush.bf16.msra.mxu0 %v3699
        %3714 = vmatmul.bf16.gmra.mxu0 %v3704
        %v3715 = vpop.f32.mrf.mxu0
        %v3716 = vadd.f32 0.0, %v3715
        %v3717 = vpop.f32.mrf.mxu0
        %3718 = vdwg.mxu0
        %v3719 = vpack.c.bf16 %v3044, %v3044
        %s3720 = scalar_lea.vmem [#allocation7], 288
        %v3721 = vld [vmem:[%s3720] sm:$0xf]
        %v3722 = vld [vmem:[%s3720 + $0x4] sm:$0xf]
        %v3723 = vld [vmem:[%s3720 + $0x8] sm:$0xf]
        %v3724 = vld [vmem:[%s3720 + $0xc] sm:$0xf]
        %3726 = vrot.lane.b32.xlu0 %v3719, 96
        %v3727 = vpop.permute.xlu0 %3726
        %v3732 = vunpack.c.l.b16 %v3721
        %v3733 = vunpack.c.l.b16 %v3722
        %v3734 = vunpack.c.l.b16 %v3723
        %v3735 = vunpack.c.l.b16 %v3724
        %v3736 = vpack.c.b16 %v3733, %v3732
        %v3737 = vpack.c.b16 %v3735, %v3734
        %v3741 = vsel %vm439, %v3727, 0
        %3743 = vmatpush.bf16.msra.mxu0 0
        %3744 = vmatpush.bf16.msra.mxu0 0
        %3745 = vmatpush.bf16.msra.mxu0 0
        %3746 = vmatpush.bf16.msra.mxu0 0
        %3747 = vmatpush.bf16.msra.mxu0 0
        %3748 = vmatpush.bf16.msra.mxu0 0
        %3749 = vmatpush.bf16.msra.mxu0 %v3737
        %3750 = vmatpush.bf16.msra.mxu0 %v3736
        %3751 = vmatmul.bf16.gmra.mxu0 %v3741
        %v3752 = vpop.f32.mrf.mxu0
        %v3753 = vadd.f32 0.0, %v3752
        %v3754 = vpop.f32.mrf.mxu0
        %3755 = vdwg.mxu0
        %v3756 = vpack.c.bf16 %v3163, %v3163
        %s3757 = scalar_lea.vmem [#allocation7], 304
        %v3758 = vld [vmem:[%s3757] sm:$0xf]
        %v3759 = vld [vmem:[%s3757 + $0x4] sm:$0xf]
        %v3760 = vld [vmem:[%s3757 + $0x8] sm:$0xf]
        %v3761 = vld [vmem:[%s3757 + $0xc] sm:$0xf]
        %3763 = vrot.lane.b32.xlu0 %v3756, 96
        %v3764 = vpop.permute.xlu0 %3763
        %v3769 = vunpack.c.l.b16 %v3758
        %v3770 = vunpack.c.l.b16 %v3759
        %v3771 = vunpack.c.l.b16 %v3760
        %v3772 = vunpack.c.l.b16 %v3761
        %v3773 = vpack.c.b16 %v3770, %v3769
        %v3774 = vpack.c.b16 %v3772, %v3771
        %v3778 = vsel %vm439, %v3764, 0
        %3780 = vmatpush.bf16.msra.mxu0 0
        %3781 = vmatpush.bf16.msra.mxu0 0
        %3782 = vmatpush.bf16.msra.mxu0 0
        %3783 = vmatpush.bf16.msra.mxu0 0
        %3784 = vmatpush.bf16.msra.mxu0 0
        %3785 = vmatpush.bf16.msra.mxu0 0
        %3786 = vmatpush.bf16.msra.mxu0 %v3774
        %3787 = vmatpush.bf16.msra.mxu0 %v3773
        %3788 = vmatmul.bf16.gmra.mxu0 %v3778
        %v3789 = vpop.f32.mrf.mxu0
        %v3790 = vadd.f32 0.0, %v3789
        %v3791 = vpop.f32.mrf.mxu0
        %3792 = vdwg.mxu0
        %v3793 = vpack.c.bf16 %v3282, %v3282
        %s3794 = scalar_lea.vmem [#allocation7], 320
        %v3795 = vld [vmem:[%s3794] sm:$0xf]
        %v3796 = vld [vmem:[%s3794 + $0x4] sm:$0xf]
        %v3797 = vld [vmem:[%s3794 + $0x8] sm:$0xf]
        %v3798 = vld [vmem:[%s3794 + $0xc] sm:$0xf]
        %3800 = vrot.lane.b32.xlu0 %v3793, 96
        %v3801 = vpop.permute.xlu0 %3800
        %v3806 = vunpack.c.l.b16 %v3795
        %v3807 = vunpack.c.l.b16 %v3796
        %v3808 = vunpack.c.l.b16 %v3797
        %v3809 = vunpack.c.l.b16 %v3798
        %v3810 = vpack.c.b16 %v3807, %v3806
        %v3811 = vpack.c.b16 %v3809, %v3808
        %v3815 = vsel %vm439, %v3801, 0
        %3817 = vmatpush.bf16.msra.mxu0 0
        %3818 = vmatpush.bf16.msra.mxu0 0
        %3819 = vmatpush.bf16.msra.mxu0 0
        %3820 = vmatpush.bf16.msra.mxu0 0
        %3821 = vmatpush.bf16.msra.mxu0 0
        %3822 = vmatpush.bf16.msra.mxu0 0
        %3823 = vmatpush.bf16.msra.mxu0 %v3811
        %3824 = vmatpush.bf16.msra.mxu0 %v3810
        %3825 = vmatmul.bf16.gmra.mxu0 %v3815
        %v3826 = vpop.f32.mrf.mxu0
        %v3827 = vadd.f32 0.0, %v3826
        %v3828 = vpop.f32.mrf.mxu0
        %3829 = vdwg.mxu0
        %v3830 = vpack.c.bf16 %v3401, %v3401
        %s3831 = scalar_lea.vmem [#allocation7], 336
        %v3832 = vld [vmem:[%s3831] sm:$0xf]
        %v3833 = vld [vmem:[%s3831 + $0x4] sm:$0xf]
        %v3834 = vld [vmem:[%s3831 + $0x8] sm:$0xf]
        %v3835 = vld [vmem:[%s3831 + $0xc] sm:$0xf]
        %3837 = vrot.lane.b32.xlu0 %v3830, 96
        %v3838 = vpop.permute.xlu0 %3837
        %v3843 = vunpack.c.l.b16 %v3832
        %v3844 = vunpack.c.l.b16 %v3833
        %v3845 = vunpack.c.l.b16 %v3834
        %v3846 = vunpack.c.l.b16 %v3835
        %v3847 = vpack.c.b16 %v3844, %v3843
        %v3848 = vpack.c.b16 %v3846, %v3845
        %v3852 = vsel %vm439, %v3838, 0
        %3854 = vmatpush.bf16.msra.mxu0 0
        %3855 = vmatpush.bf16.msra.mxu0 0
        %3856 = vmatpush.bf16.msra.mxu0 0
        %3857 = vmatpush.bf16.msra.mxu0 0
        %3858 = vmatpush.bf16.msra.mxu0 0
        %3859 = vmatpush.bf16.msra.mxu0 0
        %3860 = vmatpush.bf16.msra.mxu0 %v3848
        %3861 = vmatpush.bf16.msra.mxu0 %v3847
        %3862 = vmatmul.bf16.gmra.mxu0 %v3852
        %v3863 = vpop.f32.mrf.mxu0
        %v3864 = vadd.f32 0.0, %v3863
        %v3865 = vpop.f32.mrf.mxu0
        %3866 = vdwg.mxu0
        %v3867 = vpack.c.bf16 %v3520, %v3520
        %s3868 = scalar_lea.vmem [#allocation7], 352
        %v3869 = vld [vmem:[%s3868] sm:$0xf]
        %v3870 = vld [vmem:[%s3868 + $0x4] sm:$0xf]
        %v3871 = vld [vmem:[%s3868 + $0x8] sm:$0xf]
        %v3872 = vld [vmem:[%s3868 + $0xc] sm:$0xf]
        %3874 = vrot.lane.b32.xlu0 %v3867, 96
        %v3875 = vpop.permute.xlu0 %3874
        %v3880 = vunpack.c.l.b16 %v3869
        %v3881 = vunpack.c.l.b16 %v3870
        %v3882 = vunpack.c.l.b16 %v3871
        %v3883 = vunpack.c.l.b16 %v3872
        %v3884 = vpack.c.b16 %v3881, %v3880
        %v3885 = vpack.c.b16 %v3883, %v3882
        %v3889 = vsel %vm439, %v3875, 0
        %3891 = vmatpush.bf16.msra.mxu0 0
        %3892 = vmatpush.bf16.msra.mxu0 0
        %3893 = vmatpush.bf16.msra.mxu0 0
        %3894 = vmatpush.bf16.msra.mxu0 0
        %3895 = vmatpush.bf16.msra.mxu0 0
        %3896 = vmatpush.bf16.msra.mxu0 0
        %3897 = vmatpush.bf16.msra.mxu0 %v3885
        %3898 = vmatpush.bf16.msra.mxu0 %v3884
        %3899 = vmatmul.bf16.gmra.mxu0 %v3889
        %v3900 = vpop.f32.mrf.mxu0
        %v3901 = vadd.f32 0.0, %v3900
        %v3902 = vpop.f32.mrf.mxu0
        %3903 = vdwg.mxu0
        %v3904 = vpack.c.bf16 %v3639, %v3639
        %s3905 = scalar_lea.vmem [#allocation7], 368
        %v3906 = vld [vmem:[%s3905] sm:$0xf]
        %v3907 = vld [vmem:[%s3905 + $0x4] sm:$0xf]
        %v3908 = vld [vmem:[%s3905 + $0x8] sm:$0xf]
        %v3909 = vld [vmem:[%s3905 + $0xc] sm:$0xf]
        %3911 = vrot.lane.b32.xlu0 %v3904, 96
        %v3912 = vpop.permute.xlu0 %3911
        %v3917 = vunpack.c.l.b16 %v3906
        %v3918 = vunpack.c.l.b16 %v3907
        %v3919 = vunpack.c.l.b16 %v3908
        %v3920 = vunpack.c.l.b16 %v3909
        %v3921 = vpack.c.b16 %v3918, %v3917
        %v3922 = vpack.c.b16 %v3920, %v3919
        %v3926 = vsel %vm439, %v3912, 0
        %3928 = vmatpush.bf16.msra.mxu0 0
        %3929 = vmatpush.bf16.msra.mxu0 0
        %3930 = vmatpush.bf16.msra.mxu0 0
        %3931 = vmatpush.bf16.msra.mxu0 0
        %3932 = vmatpush.bf16.msra.mxu0 0
        %3933 = vmatpush.bf16.msra.mxu0 0
        %3934 = vmatpush.bf16.msra.mxu0 %v3922
        %3935 = vmatpush.bf16.msra.mxu0 %v3921
        %3936 = vmatmul.bf16.gmra.mxu0 %v3926
        %v3937 = vpop.f32.mrf.mxu0
        %v3938 = vadd.f32 0.0, %v3937
        %v3939 = vpop.f32.mrf.mxu0
        %3940 = vdwg.mxu0
        %v3941 = vmul.f32 %v1131, %v3679
        %v3942 = vmul.f32 %v1136, %v3716
        %v3943 = vadd.f32 %v3941, %v3942
        %v3944 = vmul.f32 %v1142, %v3753
        %v3945 = vadd.f32 %v3943, %v3944
        %v3946 = vmul.f32 %v1148, %v3790
        %v3947 = vadd.f32 %v3945, %v3946
        %v3948 = vmul.f32 %v1154, %v3827
        %v3949 = vadd.f32 %v3947, %v3948
        %v3950 = vmul.f32 %v1160, %v3864
        %v3951 = vadd.f32 %v3949, %v3950
        %v3952 = vmul.f32 %v1166, %v3901
        %v3953 = vadd.f32 %v3951, %v3952
        %v3954 = vmul.f32 %v1172, %v3938
        %v3955 = vadd.f32 %v3953, %v3954
        %v3956 = vpack.c.bf16 %v3955, %v3955
        %s3957 = scalar_lea.vmem [#allocation8], 256
        %v3958 = vld [vmem:[%s3957] sm:$0xf]
        %v3959 = vld [vmem:[%s3957 + $0x4] sm:$0xf]
        %v3960 = vld [vmem:[%s3957 + $0x8] sm:$0xf]
        %v3961 = vld [vmem:[%s3957 + $0xc] sm:$0xf]
        %v3966 = vunpack.c.l.b16 %v3958
        %v3967 = vunpack.c.l.b16 %v3959
        %v3968 = vunpack.c.l.b16 %v3960
        %v3969 = vunpack.c.l.b16 %v3961
        %v3970 = vpack.c.b16 %v3967, %v3966
        %v3971 = vpack.c.b16 %v3969, %v3968
        %v3975 = vsel %vm439, %v3956, 0
        %3977 = vmatpush.bf16.msra.mxu0 0
        %3978 = vmatpush.bf16.msra.mxu0 0
        %3979 = vmatpush.bf16.msra.mxu0 0
        %3980 = vmatpush.bf16.msra.mxu0 0
        %3981 = vmatpush.bf16.msra.mxu0 0
        %3982 = vmatpush.bf16.msra.mxu0 0
        %3983 = vmatpush.bf16.msra.mxu0 %v3971
        %3984 = vmatpush.bf16.msra.mxu0 %v3970
        %3985 = vmatmul.bf16.gmra.mxu0 %v3975
        %v3986 = vpop.f32.mrf.mxu0
        %v3987 = vadd.f32 %v3643, %v3986
        %v3988 = vpop.f32.mrf.mxu0
        %3989 = vdwg.mxu0
        %v3990 = vpack.c.bf16 %v3987, %v3987
        %v3992 = vsel %vm439, %v3990, 0
        %3994 = vmatpush.bf16.msra.mxu0 0
        %3995 = vmatpush.bf16.msra.mxu0 0
        %3996 = vmatpush.bf16.msra.mxu0 0
        %3997 = vmatpush.bf16.msra.mxu0 0
        %3998 = vmatpush.bf16.msra.mxu0 0
        %3999 = vmatpush.bf16.msra.mxu0 0
        %4000 = vmatpush.bf16.msra.mxu0 %v1219
        %4001 = vmatpush.bf16.msra.mxu0 %v1218
        %4002 = vmatmul.bf16.gmra.mxu0 %v3992
        %v4003 = vpop.f32.mrf.mxu0
        %v4004 = vadd.f32 %v839, %v4003
        %v4005 = vpop.f32.mrf.mxu0
        %4006 = vdwg.mxu0
        %4007 = vmatpush.bf16.msra.mxu0 0
        %4008 = vmatpush.bf16.msra.mxu0 0
        %4009 = vmatpush.bf16.msra.mxu0 0
        %4010 = vmatpush.bf16.msra.mxu0 0
        %4011 = vmatpush.bf16.msra.mxu0 0
        %4012 = vmatpush.bf16.msra.mxu0 0
        %4013 = vmatpush.bf16.msra.mxu0 %v1247
        %4014 = vmatpush.bf16.msra.mxu0 %v1246
        %4015 = vmatmul.bf16.gmra.mxu0 %v3667
        %v4016 = vpop.f32.mrf.mxu0
        %v4017 = vadd.f32 %v843, %v4016
        %v4018 = vpop.f32.mrf.mxu0
        %4019 = vdwg.mxu0
        %v4020 = vadd.f32 %v4004, %v4017
        %v4021 = vxor.u32 %v4020, 2147483648
        %v4022 = vmul.f32 %v4021, 1.442695
        %v4023 = vpow.pop %v4022
        %v4024 = vadd.f32 %v4023, 1.0
        %v4025 = vrcp.pop %v4024
        %v4026 = vmul.f32 %v4024, %v4025
        %v4027 = vsub.f32 1.0, %v4026
        %v4028 = vmul.f32 %v4025, %v4027
        %v4029 = vadd.f32 %v4025, %v4028
        %vm4030 = vweird.f32 %v4024
        %vm4031 = vweird.f32 %v4025
        %vm4032 = vmor %vm4030, %vm4031
        %v4033 = vsel %vm4032, %v4025, %v4029
        %v4034 = vand.u32 2147483647, %v4024
        %vm4035 = vcmp.eq.f32.partialorder %v4034, 8.507059e+37
        %v4036 = vand.u32 %v4024, 2147483648
        %v4037 = vor.u32 1.1754944e-38, %v4036
        %v4038 = vsel %vm4035, %v4037, %v4033
        %v4039 = vmul.f32 1.0, %v4038
        %4041 = vrot.lane.b32.xlu0 %v4017, 64
        %v4042 = vpop.permute.xlu0 %4041
        %v4044 = vmul.f32 %v4039, %v4042
        %4046 = vrot.lane.b32.xlu0 %v4044, 64
        %v4047 = vpop.permute.xlu0 %4046
        %v4049 = vadd.f32 %v4004, %v4047
        %v4050 = vtanh.pop %v4049
        %v4051 = vsub.f32 1.0, %v4039
        %4053 = vrot.lane.b32.xlu0 %v4050, 96
        %v4054 = vpop.permute.xlu0 %4053
        %v4056 = vmul.f32 %v4051, %v4054
        %v4057 = vmul.f32 %v4039, %v2806
        %v4058 = vadd.f32 %v4056, %v4057
        %v4059 = vadd.f32 %v4058, %v1302
        %v4060 = vmul.f32 %v1310, %v3679
        %v4061 = vmul.f32 %v1315, %v3716
        %v4062 = vadd.f32 %v4060, %v4061
        %v4063 = vmul.f32 %v1321, %v3753
        %v4064 = vadd.f32 %v4062, %v4063
        %v4065 = vmul.f32 %v1327, %v3790
        %v4066 = vadd.f32 %v4064, %v4065
        %v4067 = vmul.f32 %v1333, %v3827
        %v4068 = vadd.f32 %v4066, %v4067
        %v4069 = vmul.f32 %v1339, %v3864
        %v4070 = vadd.f32 %v4068, %v4069
        %v4071 = vmul.f32 %v1345, %v3901
        %v4072 = vadd.f32 %v4070, %v4071
        %v4073 = vmul.f32 %v1351, %v3938
        %v4074 = vadd.f32 %v4072, %v4073
        %v4075 = vpack.c.bf16 %v4074, %v4074
        %s4076 = scalar_lea.vmem [#allocation8], 272
        %v4077 = vld [vmem:[%s4076] sm:$0xf]
        %v4078 = vld [vmem:[%s4076 + $0x4] sm:$0xf]
        %v4079 = vld [vmem:[%s4076 + $0x8] sm:$0xf]
        %v4080 = vld [vmem:[%s4076 + $0xc] sm:$0xf]
        %v4085 = vunpack.c.l.b16 %v4077
        %v4086 = vunpack.c.l.b16 %v4078
        %v4087 = vunpack.c.l.b16 %v4079
        %v4088 = vunpack.c.l.b16 %v4080
        %v4089 = vpack.c.b16 %v4086, %v4085
        %v4090 = vpack.c.b16 %v4088, %v4087
        %v4094 = vsel %vm439, %v4075, 0
        %4096 = vmatpush.bf16.msra.mxu0 0
        %4097 = vmatpush.bf16.msra.mxu0 0
        %4098 = vmatpush.bf16.msra.mxu0 0
        %4099 = vmatpush.bf16.msra.mxu0 0
        %4100 = vmatpush.bf16.msra.mxu0 0
        %4101 = vmatpush.bf16.msra.mxu0 0
        %4102 = vmatpush.bf16.msra.mxu0 %v4090
        %4103 = vmatpush.bf16.msra.mxu0 %v4089
        %4104 = vmatmul.bf16.gmra.mxu0 %v4094
        %v4105 = vpop.f32.mrf.mxu0
        %v4106 = vadd.f32 %v3643, %v4105
        %v4107 = vpop.f32.mrf.mxu0
        %4108 = vdwg.mxu0
        %v4109 = vpack.c.bf16 %v4106, %v4106
        %v4111 = vsel %vm439, %v4109, 0
        %4113 = vmatpush.bf16.msra.mxu0 0
        %4114 = vmatpush.bf16.msra.mxu0 0
        %4115 = vmatpush.bf16.msra.mxu0 0
        %4116 = vmatpush.bf16.msra.mxu0 0
        %4117 = vmatpush.bf16.msra.mxu0 0
        %4118 = vmatpush.bf16.msra.mxu0 0
        %4119 = vmatpush.bf16.msra.mxu0 %v1219
        %4120 = vmatpush.bf16.msra.mxu0 %v1218
        %4121 = vmatmul.bf16.gmra.mxu0 %v4111
        %v4122 = vpop.f32.mrf.mxu0
        %v4123 = vadd.f32 %v839, %v4122
        %v4124 = vpop.f32.mrf.mxu0
        %4125 = vdwg.mxu0
        %4126 = vmatpush.bf16.msra.mxu0 0
        %4127 = vmatpush.bf16.msra.mxu0 0
        %4128 = vmatpush.bf16.msra.mxu0 0
        %4129 = vmatpush.bf16.msra.mxu0 0
        %4130 = vmatpush.bf16.msra.mxu0 0
        %4131 = vmatpush.bf16.msra.mxu0 0
        %4132 = vmatpush.bf16.msra.mxu0 %v1247
        %4133 = vmatpush.bf16.msra.mxu0 %v1246
        %4134 = vmatmul.bf16.gmra.mxu0 %v3704
        %v4135 = vpop.f32.mrf.mxu0
        %v4136 = vadd.f32 %v843, %v4135
        %v4137 = vpop.f32.mrf.mxu0
        %4138 = vdwg.mxu0
        %v4139 = vadd.f32 %v4123, %v4136
        %v4140 = vxor.u32 %v4139, 2147483648
        %v4141 = vmul.f32 %v4140, 1.442695
        %v4142 = vpow.pop %v4141
        %v4143 = vadd.f32 %v4142, 1.0
        %v4144 = vrcp.pop %v4143
        %v4145 = vmul.f32 %v4143, %v4144
        %v4146 = vsub.f32 1.0, %v4145
        %v4147 = vmul.f32 %v4144, %v4146
        %v4148 = vadd.f32 %v4144, %v4147
        %vm4149 = vweird.f32 %v4143
        %vm4150 = vweird.f32 %v4144
        %vm4151 = vmor %vm4149, %vm4150
        %v4152 = vsel %vm4151, %v4144, %v4148
        %v4153 = vand.u32 2147483647, %v4143
        %vm4154 = vcmp.eq.f32.partialorder %v4153, 8.507059e+37
        %v4155 = vand.u32 %v4143, 2147483648
        %v4156 = vor.u32 1.1754944e-38, %v4155
        %v4157 = vsel %vm4154, %v4156, %v4152
        %v4158 = vmul.f32 1.0, %v4157
        %4160 = vrot.lane.b32.xlu0 %v4136, 64
        %v4161 = vpop.permute.xlu0 %4160
        %v4163 = vmul.f32 %v4158, %v4161
        %4165 = vrot.lane.b32.xlu0 %v4163, 64
        %v4166 = vpop.permute.xlu0 %4165
        %v4168 = vadd.f32 %v4123, %v4166
        %v4169 = vtanh.pop %v4168
        %v4170 = vsub.f32 1.0, %v4158
        %4172 = vrot.lane.b32.xlu0 %v4169, 96
        %v4173 = vpop.permute.xlu0 %4172
        %v4175 = vmul.f32 %v4170, %v4173
        %v4176 = vmul.f32 %v4158, %v2925
        %v4177 = vadd.f32 %v4175, %v4176
        %v4178 = vadd.f32 %v4177, %v433
        %v4179 = vmul.f32 %v1462, %v3679
        %v4180 = vmul.f32 %v1467, %v3716
        %v4181 = vadd.f32 %v4179, %v4180
        %v4182 = vmul.f32 %v1473, %v3753
        %v4183 = vadd.f32 %v4181, %v4182
        %v4184 = vmul.f32 %v1479, %v3790
        %v4185 = vadd.f32 %v4183, %v4184
        %v4186 = vmul.f32 %v1485, %v3827
        %v4187 = vadd.f32 %v4185, %v4186
        %v4188 = vmul.f32 %v1491, %v3864
        %v4189 = vadd.f32 %v4187, %v4188
        %v4190 = vmul.f32 %v1497, %v3901
        %v4191 = vadd.f32 %v4189, %v4190
        %v4192 = vmul.f32 %v1503, %v3938
        %v4193 = vadd.f32 %v4191, %v4192
        %v4194 = vpack.c.bf16 %v4193, %v4193
        %s4195 = scalar_lea.vmem [#allocation8], 288
        %v4196 = vld [vmem:[%s4195] sm:$0xf]
        %v4197 = vld [vmem:[%s4195 + $0x4] sm:$0xf]
        %v4198 = vld [vmem:[%s4195 + $0x8] sm:$0xf]
        %v4199 = vld [vmem:[%s4195 + $0xc] sm:$0xf]
        %v4204 = vunpack.c.l.b16 %v4196
        %v4205 = vunpack.c.l.b16 %v4197
        %v4206 = vunpack.c.l.b16 %v4198
        %v4207 = vunpack.c.l.b16 %v4199
        %v4208 = vpack.c.b16 %v4205, %v4204
        %v4209 = vpack.c.b16 %v4207, %v4206
        %v4213 = vsel %vm439, %v4194, 0
        %4215 = vmatpush.bf16.msra.mxu0 0
        %4216 = vmatpush.bf16.msra.mxu0 0
        %4217 = vmatpush.bf16.msra.mxu0 0
        %4218 = vmatpush.bf16.msra.mxu0 0
        %4219 = vmatpush.bf16.msra.mxu0 0
        %4220 = vmatpush.bf16.msra.mxu0 0
        %4221 = vmatpush.bf16.msra.mxu0 %v4209
        %4222 = vmatpush.bf16.msra.mxu0 %v4208
        %4223 = vmatmul.bf16.gmra.mxu0 %v4213
        %v4224 = vpop.f32.mrf.mxu0
        %v4225 = vadd.f32 %v3643, %v4224
        %v4226 = vpop.f32.mrf.mxu0
        %4227 = vdwg.mxu0
        %v4228 = vpack.c.bf16 %v4225, %v4225
        %v4230 = vsel %vm439, %v4228, 0
        %4232 = vmatpush.bf16.msra.mxu0 0
        %4233 = vmatpush.bf16.msra.mxu0 0
        %4234 = vmatpush.bf16.msra.mxu0 0
        %4235 = vmatpush.bf16.msra.mxu0 0
        %4236 = vmatpush.bf16.msra.mxu0 0
        %4237 = vmatpush.bf16.msra.mxu0 0
        %4238 = vmatpush.bf16.msra.mxu0 %v1219
        %4239 = vmatpush.bf16.msra.mxu0 %v1218
        %4240 = vmatmul.bf16.gmra.mxu0 %v4230
        %v4241 = vpop.f32.mrf.mxu0
        %v4242 = vadd.f32 %v839, %v4241
        %v4243 = vpop.f32.mrf.mxu0
        %4244 = vdwg.mxu0
        %4245 = vmatpush.bf16.msra.mxu0 0
        %4246 = vmatpush.bf16.msra.mxu0 0
        %4247 = vmatpush.bf16.msra.mxu0 0
        %4248 = vmatpush.bf16.msra.mxu0 0
        %4249 = vmatpush.bf16.msra.mxu0 0
        %4250 = vmatpush.bf16.msra.mxu0 0
        %4251 = vmatpush.bf16.msra.mxu0 %v1247
        %4252 = vmatpush.bf16.msra.mxu0 %v1246
        %4253 = vmatmul.bf16.gmra.mxu0 %v3741
        %v4254 = vpop.f32.mrf.mxu0
        %v4255 = vadd.f32 %v843, %v4254
        %v4256 = vpop.f32.mrf.mxu0
        %4257 = vdwg.mxu0
        %v4258 = vadd.f32 %v4242, %v4255
        %v4259 = vxor.u32 %v4258, 2147483648
        %v4260 = vmul.f32 %v4259, 1.442695
        %v4261 = vpow.pop %v4260
        %v4262 = vadd.f32 %v4261, 1.0
        %v4263 = vrcp.pop %v4262
        %v4264 = vmul.f32 %v4262, %v4263
        %v4265 = vsub.f32 1.0, %v4264
        %v4266 = vmul.f32 %v4263, %v4265
        %v4267 = vadd.f32 %v4263, %v4266
        %vm4268 = vweird.f32 %v4262
        %vm4269 = vweird.f32 %v4263
        %vm4270 = vmor %vm4268, %vm4269
        %v4271 = vsel %vm4270, %v4263, %v4267
        %v4272 = vand.u32 2147483647, %v4262
        %vm4273 = vcmp.eq.f32.partialorder %v4272, 8.507059e+37
        %v4274 = vand.u32 %v4262, 2147483648
        %v4275 = vor.u32 1.1754944e-38, %v4274
        %v4276 = vsel %vm4273, %v4275, %v4271
        %v4277 = vmul.f32 1.0, %v4276
        %4279 = vrot.lane.b32.xlu0 %v4255, 64
        %v4280 = vpop.permute.xlu0 %4279
        %v4282 = vmul.f32 %v4277, %v4280
        %4284 = vrot.lane.b32.xlu0 %v4282, 64
        %v4285 = vpop.permute.xlu0 %4284
        %v4287 = vadd.f32 %v4242, %v4285
        %v4288 = vtanh.pop %v4287
        %v4289 = vsub.f32 1.0, %v4277
        %4291 = vrot.lane.b32.xlu0 %v4288, 96
        %v4292 = vpop.permute.xlu0 %4291
        %v4294 = vmul.f32 %v4289, %v4292
        %v4295 = vmul.f32 %v4277, %v3044
        %v4296 = vadd.f32 %v4294, %v4295
        %v4297 = vadd.f32 %v4296, %v1609
        %v4298 = vmul.f32 %v1617, %v3679
        %v4299 = vmul.f32 %v1622, %v3716
        %v4300 = vadd.f32 %v4298, %v4299
        %v4301 = vmul.f32 %v1628, %v3753
        %v4302 = vadd.f32 %v4300, %v4301
        %v4303 = vmul.f32 %v1634, %v3790
        %v4304 = vadd.f32 %v4302, %v4303
        %v4305 = vmul.f32 %v1640, %v3827
        %v4306 = vadd.f32 %v4304, %v4305
        %v4307 = vmul.f32 %v1646, %v3864
        %v4308 = vadd.f32 %v4306, %v4307
        %v4309 = vmul.f32 %v1652, %v3901
        %v4310 = vadd.f32 %v4308, %v4309
        %v4311 = vmul.f32 %v1658, %v3938
        %v4312 = vadd.f32 %v4310, %v4311
        %v4313 = vpack.c.bf16 %v4312, %v4312
        %s4314 = scalar_lea.vmem [#allocation8], 304
        %v4315 = vld [vmem:[%s4314] sm:$0xf]
        %v4316 = vld [vmem:[%s4314 + $0x4] sm:$0xf]
        %v4317 = vld [vmem:[%s4314 + $0x8] sm:$0xf]
        %v4318 = vld [vmem:[%s4314 + $0xc] sm:$0xf]
        %v4323 = vunpack.c.l.b16 %v4315
        %v4324 = vunpack.c.l.b16 %v4316
        %v4325 = vunpack.c.l.b16 %v4317
        %v4326 = vunpack.c.l.b16 %v4318
        %v4327 = vpack.c.b16 %v4324, %v4323
        %v4328 = vpack.c.b16 %v4326, %v4325
        %v4332 = vsel %vm439, %v4313, 0
        %4334 = vmatpush.bf16.msra.mxu0 0
        %4335 = vmatpush.bf16.msra.mxu0 0
        %4336 = vmatpush.bf16.msra.mxu0 0
        %4337 = vmatpush.bf16.msra.mxu0 0
        %4338 = vmatpush.bf16.msra.mxu0 0
        %4339 = vmatpush.bf16.msra.mxu0 0
        %4340 = vmatpush.bf16.msra.mxu0 %v4328
        %4341 = vmatpush.bf16.msra.mxu0 %v4327
        %4342 = vmatmul.bf16.gmra.mxu0 %v4332
        %v4343 = vpop.f32.mrf.mxu0
        %v4344 = vadd.f32 %v3643, %v4343
        %v4345 = vpop.f32.mrf.mxu0
        %4346 = vdwg.mxu0
        %v4347 = vpack.c.bf16 %v4344, %v4344
        %v4349 = vsel %vm439, %v4347, 0
        %4351 = vmatpush.bf16.msra.mxu0 0
        %4352 = vmatpush.bf16.msra.mxu0 0
        %4353 = vmatpush.bf16.msra.mxu0 0
        %4354 = vmatpush.bf16.msra.mxu0 0
        %4355 = vmatpush.bf16.msra.mxu0 0
        %4356 = vmatpush.bf16.msra.mxu0 0
        %4357 = vmatpush.bf16.msra.mxu0 %v1219
        %4358 = vmatpush.bf16.msra.mxu0 %v1218
        %4359 = vmatmul.bf16.gmra.mxu0 %v4349
        %v4360 = vpop.f32.mrf.mxu0
        %v4361 = vadd.f32 %v839, %v4360
        %v4362 = vpop.f32.mrf.mxu0
        %4363 = vdwg.mxu0
        %4364 = vmatpush.bf16.msra.mxu0 0
        %4365 = vmatpush.bf16.msra.mxu0 0
        %4366 = vmatpush.bf16.msra.mxu0 0
        %4367 = vmatpush.bf16.msra.mxu0 0
        %4368 = vmatpush.bf16.msra.mxu0 0
        %4369 = vmatpush.bf16.msra.mxu0 0
        %4370 = vmatpush.bf16.msra.mxu0 %v1247
        %4371 = vmatpush.bf16.msra.mxu0 %v1246
        %4372 = vmatmul.bf16.gmra.mxu0 %v3778
        %v4373 = vpop.f32.mrf.mxu0
        %v4374 = vadd.f32 %v843, %v4373
        %v4375 = vpop.f32.mrf.mxu0
        %4376 = vdwg.mxu0
        %v4377 = vadd.f32 %v4361, %v4374
        %v4378 = vxor.u32 %v4377, 2147483648
        %v4379 = vmul.f32 %v4378, 1.442695
        %v4380 = vpow.pop %v4379
        %v4381 = vadd.f32 %v4380, 1.0
        %v4382 = vrcp.pop %v4381
        %v4383 = vmul.f32 %v4381, %v4382
        %v4384 = vsub.f32 1.0, %v4383
        %v4385 = vmul.f32 %v4382, %v4384
        %v4386 = vadd.f32 %v4382, %v4385
        %vm4387 = vweird.f32 %v4381
        %vm4388 = vweird.f32 %v4382
        %vm4389 = vmor %vm4387, %vm4388
        %v4390 = vsel %vm4389, %v4382, %v4386
        %v4391 = vand.u32 2147483647, %v4381
        %vm4392 = vcmp.eq.f32.partialorder %v4391, 8.507059e+37
        %v4393 = vand.u32 %v4381, 2147483648
        %v4394 = vor.u32 1.1754944e-38, %v4393
        %v4395 = vsel %vm4392, %v4394, %v4390
        %v4396 = vmul.f32 1.0, %v4395
        %4398 = vrot.lane.b32.xlu0 %v4374, 64
        %v4399 = vpop.permute.xlu0 %4398
        %v4401 = vmul.f32 %v4396, %v4399
        %4403 = vrot.lane.b32.xlu0 %v4401, 64
        %v4404 = vpop.permute.xlu0 %4403
        %v4406 = vadd.f32 %v4361, %v4404
        %v4407 = vtanh.pop %v4406
        %v4408 = vsub.f32 1.0, %v4396
        %4410 = vrot.lane.b32.xlu0 %v4407, 96
        %v4411 = vpop.permute.xlu0 %4410
        %v4413 = vmul.f32 %v4408, %v4411
        %v4414 = vmul.f32 %v4396, %v3163
        %v4415 = vadd.f32 %v4413, %v4414
        %v4416 = vadd.f32 %v4415, %v1764
        %v4417 = vmul.f32 %v1772, %v3679
        %v4418 = vmul.f32 %v1777, %v3716
        %v4419 = vadd.f32 %v4417, %v4418
        %v4420 = vmul.f32 %v1783, %v3753
        %v4421 = vadd.f32 %v4419, %v4420
        %v4422 = vmul.f32 %v1789, %v3790
        %v4423 = vadd.f32 %v4421, %v4422
        %v4424 = vmul.f32 %v1795, %v3827
        %v4425 = vadd.f32 %v4423, %v4424
        %v4426 = vmul.f32 %v1801, %v3864
        %v4427 = vadd.f32 %v4425, %v4426
        %v4428 = vmul.f32 %v1807, %v3901
        %v4429 = vadd.f32 %v4427, %v4428
        %v4430 = vmul.f32 %v1813, %v3938
        %v4431 = vadd.f32 %v4429, %v4430
        %v4432 = vpack.c.bf16 %v4431, %v4431
        %s4433 = scalar_lea.vmem [#allocation8], 320
        %v4434 = vld [vmem:[%s4433] sm:$0xf]
        %v4435 = vld [vmem:[%s4433 + $0x4] sm:$0xf]
        %v4436 = vld [vmem:[%s4433 + $0x8] sm:$0xf]
        %v4437 = vld [vmem:[%s4433 + $0xc] sm:$0xf]
        %v4442 = vunpack.c.l.b16 %v4434
        %v4443 = vunpack.c.l.b16 %v4435
        %v4444 = vunpack.c.l.b16 %v4436
        %v4445 = vunpack.c.l.b16 %v4437
        %v4446 = vpack.c.b16 %v4443, %v4442
        %v4447 = vpack.c.b16 %v4445, %v4444
        %v4451 = vsel %vm439, %v4432, 0
        %4453 = vmatpush.bf16.msra.mxu0 0
        %4454 = vmatpush.bf16.msra.mxu0 0
        %4455 = vmatpush.bf16.msra.mxu0 0
        %4456 = vmatpush.bf16.msra.mxu0 0
        %4457 = vmatpush.bf16.msra.mxu0 0
        %4458 = vmatpush.bf16.msra.mxu0 0
        %4459 = vmatpush.bf16.msra.mxu0 %v4447
        %4460 = vmatpush.bf16.msra.mxu0 %v4446
        %4461 = vmatmul.bf16.gmra.mxu0 %v4451
        %v4462 = vpop.f32.mrf.mxu0
        %v4463 = vadd.f32 %v3643, %v4462
        %v4464 = vpop.f32.mrf.mxu0
        %4465 = vdwg.mxu0
        %v4466 = vpack.c.bf16 %v4463, %v4463
        %v4468 = vsel %vm439, %v4466, 0
        %4470 = vmatpush.bf16.msra.mxu0 0
        %4471 = vmatpush.bf16.msra.mxu0 0
        %4472 = vmatpush.bf16.msra.mxu0 0
        %4473 = vmatpush.bf16.msra.mxu0 0
        %4474 = vmatpush.bf16.msra.mxu0 0
        %4475 = vmatpush.bf16.msra.mxu0 0
        %4476 = vmatpush.bf16.msra.mxu0 %v1219
        %4477 = vmatpush.bf16.msra.mxu0 %v1218
        %4478 = vmatmul.bf16.gmra.mxu0 %v4468
        %v4479 = vpop.f32.mrf.mxu0
        %v4480 = vadd.f32 %v839, %v4479
        %v4481 = vpop.f32.mrf.mxu0
        %4482 = vdwg.mxu0
        %4483 = vmatpush.bf16.msra.mxu0 0
        %4484 = vmatpush.bf16.msra.mxu0 0
        %4485 = vmatpush.bf16.msra.mxu0 0
        %4486 = vmatpush.bf16.msra.mxu0 0
        %4487 = vmatpush.bf16.msra.mxu0 0
        %4488 = vmatpush.bf16.msra.mxu0 0
        %4489 = vmatpush.bf16.msra.mxu0 %v1247
        %4490 = vmatpush.bf16.msra.mxu0 %v1246
        %4491 = vmatmul.bf16.gmra.mxu0 %v3815
        %v4492 = vpop.f32.mrf.mxu0
        %v4493 = vadd.f32 %v843, %v4492
        %v4494 = vpop.f32.mrf.mxu0
        %4495 = vdwg.mxu0
        %v4496 = vadd.f32 %v4480, %v4493
        %v4497 = vxor.u32 %v4496, 2147483648
        %v4498 = vmul.f32 %v4497, 1.442695
        %v4499 = vpow.pop %v4498
        %v4500 = vadd.f32 %v4499, 1.0
        %v4501 = vrcp.pop %v4500
        %v4502 = vmul.f32 %v4500, %v4501
        %v4503 = vsub.f32 1.0, %v4502
        %v4504 = vmul.f32 %v4501, %v4503
        %v4505 = vadd.f32 %v4501, %v4504
        %vm4506 = vweird.f32 %v4500
        %vm4507 = vweird.f32 %v4501
        %vm4508 = vmor %vm4506, %vm4507
        %v4509 = vsel %vm4508, %v4501, %v4505
        %v4510 = vand.u32 2147483647, %v4500
        %vm4511 = vcmp.eq.f32.partialorder %v4510, 8.507059e+37
        %v4512 = vand.u32 %v4500, 2147483648
        %v4513 = vor.u32 1.1754944e-38, %v4512
        %v4514 = vsel %vm4511, %v4513, %v4509
        %v4515 = vmul.f32 1.0, %v4514
        %4517 = vrot.lane.b32.xlu0 %v4493, 64
        %v4518 = vpop.permute.xlu0 %4517
        %v4520 = vmul.f32 %v4515, %v4518
        %4522 = vrot.lane.b32.xlu0 %v4520, 64
        %v4523 = vpop.permute.xlu0 %4522
        %v4525 = vadd.f32 %v4480, %v4523
        %v4526 = vtanh.pop %v4525
        %v4527 = vsub.f32 1.0, %v4515
        %4529 = vrot.lane.b32.xlu0 %v4526, 96
        %v4530 = vpop.permute.xlu0 %4529
        %v4532 = vmul.f32 %v4527, %v4530
        %v4533 = vmul.f32 %v4515, %v3282
        %v4534 = vadd.f32 %v4532, %v4533
        %v4535 = vadd.f32 %v4534, %v1920
        %v4536 = vmul.f32 %v1928, %v3679
        %v4537 = vmul.f32 %v1933, %v3716
        %v4538 = vadd.f32 %v4536, %v4537
        %v4539 = vmul.f32 %v1939, %v3753
        %v4540 = vadd.f32 %v4538, %v4539
        %v4541 = vmul.f32 %v1945, %v3790
        %v4542 = vadd.f32 %v4540, %v4541
        %v4543 = vmul.f32 %v1951, %v3827
        %v4544 = vadd.f32 %v4542, %v4543
        %v4545 = vmul.f32 %v1957, %v3864
        %v4546 = vadd.f32 %v4544, %v4545
        %v4547 = vmul.f32 %v1963, %v3901
        %v4548 = vadd.f32 %v4546, %v4547
        %v4549 = vmul.f32 %v1969, %v3938
        %v4550 = vadd.f32 %v4548, %v4549
        %v4551 = vpack.c.bf16 %v4550, %v4550
        %s4552 = scalar_lea.vmem [#allocation8], 336
        %v4553 = vld [vmem:[%s4552] sm:$0xf]
        %v4554 = vld [vmem:[%s4552 + $0x4] sm:$0xf]
        %v4555 = vld [vmem:[%s4552 + $0x8] sm:$0xf]
        %v4556 = vld [vmem:[%s4552 + $0xc] sm:$0xf]
        %v4561 = vunpack.c.l.b16 %v4553
        %v4562 = vunpack.c.l.b16 %v4554
        %v4563 = vunpack.c.l.b16 %v4555
        %v4564 = vunpack.c.l.b16 %v4556
        %v4565 = vpack.c.b16 %v4562, %v4561
        %v4566 = vpack.c.b16 %v4564, %v4563
        %v4570 = vsel %vm439, %v4551, 0
        %4572 = vmatpush.bf16.msra.mxu0 0
        %4573 = vmatpush.bf16.msra.mxu0 0
        %4574 = vmatpush.bf16.msra.mxu0 0
        %4575 = vmatpush.bf16.msra.mxu0 0
        %4576 = vmatpush.bf16.msra.mxu0 0
        %4577 = vmatpush.bf16.msra.mxu0 0
        %4578 = vmatpush.bf16.msra.mxu0 %v4566
        %4579 = vmatpush.bf16.msra.mxu0 %v4565
        %4580 = vmatmul.bf16.gmra.mxu0 %v4570
        %v4581 = vpop.f32.mrf.mxu0
        %v4582 = vadd.f32 %v3643, %v4581
        %v4583 = vpop.f32.mrf.mxu0
        %4584 = vdwg.mxu0
        %v4585 = vpack.c.bf16 %v4582, %v4582
        %v4587 = vsel %vm439, %v4585, 0
        %4589 = vmatpush.bf16.msra.mxu0 0
        %4590 = vmatpush.bf16.msra.mxu0 0
        %4591 = vmatpush.bf16.msra.mxu0 0
        %4592 = vmatpush.bf16.msra.mxu0 0
        %4593 = vmatpush.bf16.msra.mxu0 0
        %4594 = vmatpush.bf16.msra.mxu0 0
        %4595 = vmatpush.bf16.msra.mxu0 %v1219
        %4596 = vmatpush.bf16.msra.mxu0 %v1218
        %4597 = vmatmul.bf16.gmra.mxu0 %v4587
        %v4598 = vpop.f32.mrf.mxu0
        %v4599 = vadd.f32 %v839, %v4598
        %v4600 = vpop.f32.mrf.mxu0
        %4601 = vdwg.mxu0
        %4602 = vmatpush.bf16.msra.mxu0 0
        %4603 = vmatpush.bf16.msra.mxu0 0
        %4604 = vmatpush.bf16.msra.mxu0 0
        %4605 = vmatpush.bf16.msra.mxu0 0
        %4606 = vmatpush.bf16.msra.mxu0 0
        %4607 = vmatpush.bf16.msra.mxu0 0
        %4608 = vmatpush.bf16.msra.mxu0 %v1247
        %4609 = vmatpush.bf16.msra.mxu0 %v1246
        %4610 = vmatmul.bf16.gmra.mxu0 %v3852
        %v4611 = vpop.f32.mrf.mxu0
        %v4612 = vadd.f32 %v843, %v4611
        %v4613 = vpop.f32.mrf.mxu0
        %4614 = vdwg.mxu0
        %v4615 = vadd.f32 %v4599, %v4612
        %v4616 = vxor.u32 %v4615, 2147483648
        %v4617 = vmul.f32 %v4616, 1.442695
        %v4618 = vpow.pop %v4617
        %v4619 = vadd.f32 %v4618, 1.0
        %v4620 = vrcp.pop %v4619
        %v4621 = vmul.f32 %v4619, %v4620
        %v4622 = vsub.f32 1.0, %v4621
        %v4623 = vmul.f32 %v4620, %v4622
        %v4624 = vadd.f32 %v4620, %v4623
        %vm4625 = vweird.f32 %v4619
        %vm4626 = vweird.f32 %v4620
        %vm4627 = vmor %vm4625, %vm4626
        %v4628 = vsel %vm4627, %v4620, %v4624
        %v4629 = vand.u32 2147483647, %v4619
        %vm4630 = vcmp.eq.f32.partialorder %v4629, 8.507059e+37
        %v4631 = vand.u32 %v4619, 2147483648
        %v4632 = vor.u32 1.1754944e-38, %v4631
        %v4633 = vsel %vm4630, %v4632, %v4628
        %v4634 = vmul.f32 1.0, %v4633
        %4636 = vrot.lane.b32.xlu0 %v4612, 64
        %v4637 = vpop.permute.xlu0 %4636
        %v4639 = vmul.f32 %v4634, %v4637
        %4641 = vrot.lane.b32.xlu0 %v4639, 64
        %v4642 = vpop.permute.xlu0 %4641
        %v4644 = vadd.f32 %v4599, %v4642
        %v4645 = vtanh.pop %v4644
        %v4646 = vsub.f32 1.0, %v4634
        %4648 = vrot.lane.b32.xlu0 %v4645, 96
        %v4649 = vpop.permute.xlu0 %4648
        %v4651 = vmul.f32 %v4646, %v4649
        %v4652 = vmul.f32 %v4634, %v3401
        %v4653 = vadd.f32 %v4651, %v4652
        %v4654 = vadd.f32 %v4653, %v434
        %v4655 = vmul.f32 %v2080, %v3679
        %v4656 = vmul.f32 %v2085, %v3716
        %v4657 = vadd.f32 %v4655, %v4656
        %v4658 = vmul.f32 %v2091, %v3753
        %v4659 = vadd.f32 %v4657, %v4658
        %v4660 = vmul.f32 %v2097, %v3790
        %v4661 = vadd.f32 %v4659, %v4660
        %v4662 = vmul.f32 %v2103, %v3827
        %v4663 = vadd.f32 %v4661, %v4662
        %v4664 = vmul.f32 %v2109, %v3864
        %v4665 = vadd.f32 %v4663, %v4664
        %v4666 = vmul.f32 %v2115, %v3901
        %v4667 = vadd.f32 %v4665, %v4666
        %v4668 = vmul.f32 %v2121, %v3938
        %v4669 = vadd.f32 %v4667, %v4668
        %v4670 = vpack.c.bf16 %v4669, %v4669
        %s4671 = scalar_lea.vmem [#allocation8], 352
        %v4672 = vld [vmem:[%s4671] sm:$0xf]
        %v4673 = vld [vmem:[%s4671 + $0x4] sm:$0xf]
        %v4674 = vld [vmem:[%s4671 + $0x8] sm:$0xf]
        %v4675 = vld [vmem:[%s4671 + $0xc] sm:$0xf]
        %v4680 = vunpack.c.l.b16 %v4672
        %v4681 = vunpack.c.l.b16 %v4673
        %v4682 = vunpack.c.l.b16 %v4674
        %v4683 = vunpack.c.l.b16 %v4675
        %v4684 = vpack.c.b16 %v4681, %v4680
        %v4685 = vpack.c.b16 %v4683, %v4682
        %v4689 = vsel %vm439, %v4670, 0
        %4691 = vmatpush.bf16.msra.mxu0 0
        %4692 = vmatpush.bf16.msra.mxu0 0
        %4693 = vmatpush.bf16.msra.mxu0 0
        %4694 = vmatpush.bf16.msra.mxu0 0
        %4695 = vmatpush.bf16.msra.mxu0 0
        %4696 = vmatpush.bf16.msra.mxu0 0
        %4697 = vmatpush.bf16.msra.mxu0 %v4685
        %4698 = vmatpush.bf16.msra.mxu0 %v4684
        %4699 = vmatmul.bf16.gmra.mxu0 %v4689
        %v4700 = vpop.f32.mrf.mxu0
        %v4701 = vadd.f32 %v3643, %v4700
        %v4702 = vpop.f32.mrf.mxu0
        %4703 = vdwg.mxu0
        %v4704 = vpack.c.bf16 %v4701, %v4701
        %v4706 = vsel %vm439, %v4704, 0
        %4708 = vmatpush.bf16.msra.mxu0 0
        %4709 = vmatpush.bf16.msra.mxu0 0
        %4710 = vmatpush.bf16.msra.mxu0 0
        %4711 = vmatpush.bf16.msra.mxu0 0
        %4712 = vmatpush.bf16.msra.mxu0 0
        %4713 = vmatpush.bf16.msra.mxu0 0
        %4714 = vmatpush.bf16.msra.mxu0 %v1219
        %4715 = vmatpush.bf16.msra.mxu0 %v1218
        %4716 = vmatmul.bf16.gmra.mxu0 %v4706
        %v4717 = vpop.f32.mrf.mxu0
        %v4718 = vadd.f32 %v839, %v4717
        %v4719 = vpop.f32.mrf.mxu0
        %4720 = vdwg.mxu0
        %4721 = vmatpush.bf16.msra.mxu0 0
        %4722 = vmatpush.bf16.msra.mxu0 0
        %4723 = vmatpush.bf16.msra.mxu0 0
        %4724 = vmatpush.bf16.msra.mxu0 0
        %4725 = vmatpush.bf16.msra.mxu0 0
        %4726 = vmatpush.bf16.msra.mxu0 0
        %4727 = vmatpush.bf16.msra.mxu0 %v1247
        %4728 = vmatpush.bf16.msra.mxu0 %v1246
        %4729 = vmatmul.bf16.gmra.mxu0 %v3889
        %v4730 = vpop.f32.mrf.mxu0
        %v4731 = vadd.f32 %v843, %v4730
        %v4732 = vpop.f32.mrf.mxu0
        %4733 = vdwg.mxu0
        %v4734 = vadd.f32 %v4718, %v4731
        %v4735 = vxor.u32 %v4734, 2147483648
        %v4736 = vmul.f32 %v4735, 1.442695
        %v4737 = vpow.pop %v4736
        %v4738 = vadd.f32 %v4737, 1.0
        %v4739 = vrcp.pop %v4738
        %v4740 = vmul.f32 %v4738, %v4739
        %v4741 = vsub.f32 1.0, %v4740
        %v4742 = vmul.f32 %v4739, %v4741
        %v4743 = vadd.f32 %v4739, %v4742
        %vm4744 = vweird.f32 %v4738
        %vm4745 = vweird.f32 %v4739
        %vm4746 = vmor %vm4744, %vm4745
        %v4747 = vsel %vm4746, %v4739, %v4743
        %v4748 = vand.u32 2147483647, %v4738
        %vm4749 = vcmp.eq.f32.partialorder %v4748, 8.507059e+37
        %v4750 = vand.u32 %v4738, 2147483648
        %v4751 = vor.u32 1.1754944e-38, %v4750
        %v4752 = vsel %vm4749, %v4751, %v4747
        %v4753 = vmul.f32 1.0, %v4752
        %4755 = vrot.lane.b32.xlu0 %v4731, 64
        %v4756 = vpop.permute.xlu0 %4755
        %v4758 = vmul.f32 %v4753, %v4756
        %4760 = vrot.lane.b32.xlu0 %v4758, 64
        %v4761 = vpop.permute.xlu0 %4760
        %v4763 = vadd.f32 %v4718, %v4761
        %v4764 = vtanh.pop %v4763
        %v4765 = vsub.f32 1.0, %v4753
        %4767 = vrot.lane.b32.xlu0 %v4764, 96
        %v4768 = vpop.permute.xlu0 %4767
        %v4770 = vmul.f32 %v4765, %v4768
        %v4771 = vmul.f32 %v4753, %v3520
        %v4772 = vadd.f32 %v4770, %v4771
        %v4773 = vadd.f32 %v4772, %v2227
        %v4774 = vmul.f32 %v2235, %v3679
        %v4775 = vmul.f32 %v2240, %v3716
        %v4776 = vadd.f32 %v4774, %v4775
        %v4777 = vmul.f32 %v2246, %v3753
        %v4778 = vadd.f32 %v4776, %v4777
        %v4779 = vmul.f32 %v2252, %v3790
        %v4780 = vadd.f32 %v4778, %v4779
        %v4781 = vmul.f32 %v2258, %v3827
        %v4782 = vadd.f32 %v4780, %v4781
        %v4783 = vmul.f32 %v2264, %v3864
        %v4784 = vadd.f32 %v4782, %v4783
        %v4785 = vmul.f32 %v2270, %v3901
        %v4786 = vadd.f32 %v4784, %v4785
        %v4787 = vmul.f32 %v2276, %v3938
        %v4788 = vadd.f32 %v4786, %v4787
        %v4789 = vpack.c.bf16 %v4788, %v4788
        %s4790 = scalar_lea.vmem [#allocation8], 368
        %v4791 = vld [vmem:[%s4790] sm:$0xf]
        %v4792 = vld [vmem:[%s4790 + $0x4] sm:$0xf]
        %v4793 = vld [vmem:[%s4790 + $0x8] sm:$0xf]
        %v4794 = vld [vmem:[%s4790 + $0xc] sm:$0xf]
        %v4799 = vunpack.c.l.b16 %v4791
        %v4800 = vunpack.c.l.b16 %v4792
        %v4801 = vunpack.c.l.b16 %v4793
        %v4802 = vunpack.c.l.b16 %v4794
        %v4803 = vpack.c.b16 %v4800, %v4799
        %v4804 = vpack.c.b16 %v4802, %v4801
        %v4808 = vsel %vm439, %v4789, 0
        %4810 = vmatpush.bf16.msra.mxu0 0
        %4811 = vmatpush.bf16.msra.mxu0 0
        %4812 = vmatpush.bf16.msra.mxu0 0
        %4813 = vmatpush.bf16.msra.mxu0 0
        %4814 = vmatpush.bf16.msra.mxu0 0
        %4815 = vmatpush.bf16.msra.mxu0 0
        %4816 = vmatpush.bf16.msra.mxu0 %v4804
        %4817 = vmatpush.bf16.msra.mxu0 %v4803
        %4818 = vmatmul.bf16.gmra.mxu0 %v4808
        %v4819 = vpop.f32.mrf.mxu0
        %v4820 = vadd.f32 %v3643, %v4819
        %v4821 = vpop.f32.mrf.mxu0
        %4822 = vdwg.mxu0
        %v4823 = vpack.c.bf16 %v4820, %v4820
        %v4825 = vsel %vm439, %v4823, 0
        %4827 = vmatpush.bf16.msra.mxu0 0
        %4828 = vmatpush.bf16.msra.mxu0 0
        %4829 = vmatpush.bf16.msra.mxu0 0
        %4830 = vmatpush.bf16.msra.mxu0 0
        %4831 = vmatpush.bf16.msra.mxu0 0
        %4832 = vmatpush.bf16.msra.mxu0 0
        %4833 = vmatpush.bf16.msra.mxu0 %v1219
        %4834 = vmatpush.bf16.msra.mxu0 %v1218
        %4835 = vmatmul.bf16.gmra.mxu0 %v4825
        %v4836 = vpop.f32.mrf.mxu0
        %v4837 = vadd.f32 %v839, %v4836
        %v4838 = vpop.f32.mrf.mxu0
        %4839 = vdwg.mxu0
        %4840 = vmatpush.bf16.msra.mxu0 0
        %4841 = vmatpush.bf16.msra.mxu0 0
        %4842 = vmatpush.bf16.msra.mxu0 0
        %4843 = vmatpush.bf16.msra.mxu0 0
        %4844 = vmatpush.bf16.msra.mxu0 0
        %4845 = vmatpush.bf16.msra.mxu0 0
        %4846 = vmatpush.bf16.msra.mxu0 %v1247
        %4847 = vmatpush.bf16.msra.mxu0 %v1246
        %4848 = vmatmul.bf16.gmra.mxu0 %v3926
        %v4849 = vpop.f32.mrf.mxu0
        %v4850 = vadd.f32 %v843, %v4849
        %v4851 = vpop.f32.mrf.mxu0
        %4852 = vdwg.mxu0
        %v4853 = vadd.f32 %v4837, %v4850
        %v4854 = vxor.u32 %v4853, 2147483648
        %v4855 = vmul.f32 %v4854, 1.442695
        %v4856 = vpow.pop %v4855
        %v4857 = vadd.f32 %v4856, 1.0
        %v4858 = vrcp.pop %v4857
        %v4859 = vmul.f32 %v4857, %v4858
        %v4860 = vsub.f32 1.0, %v4859
        %v4861 = vmul.f32 %v4858, %v4860
        %v4862 = vadd.f32 %v4858, %v4861
        %vm4863 = vweird.f32 %v4857
        %vm4864 = vweird.f32 %v4858
        %vm4865 = vmor %vm4863, %vm4864
        %v4866 = vsel %vm4865, %v4858, %v4862
        %v4867 = vand.u32 2147483647, %v4857
        %vm4868 = vcmp.eq.f32.partialorder %v4867, 8.507059e+37
        %v4869 = vand.u32 %v4857, 2147483648
        %v4870 = vor.u32 1.1754944e-38, %v4869
        %v4871 = vsel %vm4868, %v4870, %v4866
        %v4872 = vmul.f32 1.0, %v4871
        %4874 = vrot.lane.b32.xlu0 %v4850, 64
        %v4875 = vpop.permute.xlu0 %4874
        %v4877 = vmul.f32 %v4872, %v4875
        %4879 = vrot.lane.b32.xlu0 %v4877, 64
        %v4880 = vpop.permute.xlu0 %4879
        %v4882 = vadd.f32 %v4837, %v4880
        %v4883 = vtanh.pop %v4882
        %v4884 = vsub.f32 1.0, %v4872
        %4886 = vrot.lane.b32.xlu0 %v4883, 96
        %v4887 = vpop.permute.xlu0 %4886
        %v4889 = vmul.f32 %v4884, %v4887
        %v4890 = vmul.f32 %v4872, %v3639
        %v4891 = vadd.f32 %v4889, %v4890
        %v4892 = vadd.f32 %v4891, %v2382
        %4894 = vrot.lane.b32.xlu0 %v4059, 96
        %v4895 = vpop.permute.xlu0 %4894
        %4898 = vrot.lane.b32.xlu0 %v4297, 32
        %v4899 = vpop.permute.xlu0 %4898
        %4902 = vrot.lane.b32.xlu0 %v4416, 64
        %v4903 = vpop.permute.xlu0 %4902
        %4906 = vrot.lane.b32.xlu0 %v4535, 96
        %v4907 = vpop.permute.xlu0 %4906
        %4910 = vrot.lane.b32.xlu0 %v4773, 32
        %v4911 = vpop.permute.xlu0 %4910
        %4914 = vrot.lane.b32.xlu0 %v4892, 64
        %v4915 = vpop.permute.xlu0 %4914
        %v4917 = vsel %vm439, %v4895, %v4178
        %vm4918 = vcmask 523264
        %v4919 = vsel %vm4918, %v4917, %v4899
        %vm4920 = vcmask 785408
        %v4921 = vsel %vm4920, %v4919, %v4903
        %v4922 = vsel %vm439, %v4907, %v4654
        %v4923 = vsel %vm4918, %v4922, %v4911
        %v4924 = vsel %vm4920, %v4923, %v4915
        %4925 = vst [vmem:[%s431] sm:$0xff] %v4921
        %4926 = vst [vmem:[%s431 + $0x8] sm:$0xff] %v4924
        %s4927 = sand.u32 %s231, 1
        %s4928 = scalar_lea.sflag [#allocation4], %s4927
        %s4929 = sand.u32 %s231, 1
        %s4930 = smul.addr %s4929, 16
        %s4931 = scalar_lea.vmem [#allocation13], %s4930
        // Predicated region
        $region81: #{tpu_custom_call.1} parent=55 // pred_check
          %p4932 = pneg %p241
        $region82: #{tpu_custom_call.1} parent=55 // pred_check_branch
          %4934 = sbr.rel (%p4932) target = $region84
        $region83: #{tpu_custom_call.1} parent=55 // pred_region
          %4936 = vsyncadd %s4928, 0
          %s4937 = smul.addr %s29, 2
          %s4938 = smul.addr %s4937, 8
          %s4939 = scalar_lea.hbm %s9, %s4938
          %s4941 = sshll.u32 %s4931, 4
          %s4942 = int_to_ptr.vmem [resolvable:$true] %s4941
          %s4943 = sshll.u32 %s4939, 4
          %s4944 = int_to_ptr.hbm [resolvable:$true] %s4943
          %4946 = dma.vmem_to_hbm [thread:$0]  %s4942, 256, %s4944, %s4928
        $region84: #{tpu_custom_call.1} parent=55 // pred_fallthru
          _
      $region56: #{tpu_custom_call.1} parent=5 // pred_fallthru
        _
      %p4947 = scmp.le.s32.totalorder 2, %s24
      // Predicated region
      $region85: #{tpu_custom_call.1} parent=5 // pred_check
        %p4948 = pneg %p4947
      $region86: #{tpu_custom_call.1} parent=5 // pred_check_branch
        %4950 = sbr.rel (%p4948) target = $region88
      $region87: #{tpu_custom_call.1} parent=5 // pred_region
        %s4951 = ssub.s32 %s24, 2
        // Predicated region
        $region89: #{tpu_custom_call.1} parent=87 // pred_check
          %p4952 = pneg %p247
        $region90: #{tpu_custom_call.1} parent=87 // pred_check_branch
          %4954 = sbr.rel (%p4952) target = $region92
        $region91: #{tpu_custom_call.1} parent=87 // pred_region
          %s4955 = sand.u32 %s232, 1
          %s4956 = scalar_lea.sflag [#allocation4], %s4955
          %s4957 = sand.u32 %s232, 1
          %s4958 = smul.addr %s4957, 16
          %s4959 = scalar_lea.vmem [#allocation13], %s4958
          %4961 = dma.done %s4956, 256
        $region92: #{tpu_custom_call.1} parent=87 // pred_fallthru
          _
      $region88: #{tpu_custom_call.1} parent=5 // pred_fallthru
        _
    $region6: #{tpu_custom_call.1} parent=1 // loop_footer
      %s28 = sadd.s32 1, %s24
    $region7: #{tpu_custom_call.1} parent=1 // loop_footer_branch
      %23 = sbr.rel target = $region3
    $region8: #{tpu_custom_call.1} parent=1 // loop_exit
      _
    %4962 = vsyncpa [#allocation3], 1
    %s4963 = scalar_lea.sflag [#allocation3], 1
    %4964 = vsyncpa %s4963, 1
    %4965 = vsyncpa [#allocation6], 1
    %4966 = vsyncpa [#allocation9], 1
    %4967 = vsyncpa [#allocation12], 1
    %4968 = vsyncpa [#allocation4], 1
    %s4969 = scalar_lea.sflag [#allocation4], 1
    %4970 = vsyncpa %s4969, 1

</llo_original>
